<compile_context>
chip_gen: v5e
topology: v5e:2x2
jax: 0.10.0
libtpu: 0.0.40
codegen_flags: <defaults>
</compile_context>

<pallas_src>
import functools
import numpy as np
import jax
import jax.numpy as jnp
from jax import lax
from jax.experimental import pallas as pl
from jax.experimental.pallas import tpu as pltpu

# Full-precision f32 matmuls in both the kernel and the pure-JAX reference so the
# correctness check can be tight (TPU default rounds f32 dot inputs to bf16).
jax.config.update("jax_default_matmul_precision", "highest")


def _layer_norm(x, gamma, beta, eps=1e-5):
    mean = jnp.mean(x, axis=-1, keepdims=True)
    var = jnp.mean((x - mean) ** 2, axis=-1, keepdims=True)
    return (x - mean) * lax.rsqrt(var + eps) * gamma + beta


def selfie_fused_kernel(x_ref, wqkv_ref, bqkv_ref, wo_ref, bo_ref,
                        g1_ref, be1_ref, w1_ref, b1_ref, w2_ref, b2_ref,
                        g2_ref, be2_ref, rowe_ref, cole_ref, out_ref,
                        *, n_layers, n_head, d_k, d_v):
    """One grid step == full forward for one batch element.

    x_ref:    (S, D)                 this batch element's rows (CLS row 0 + seq)
    wqkv_ref: (L, D, 2*H*dk+H*dv)    fused Q|K|V projection weights
    bqkv_ref: (L, 1, 2*H*dk+H*dv)
    wo_ref:   (L, H*dv, D)           output projection (whole slab, not per-head)
    bo/g1/be1/b2/g2/be2: (L, 1, D);  w1: (L, D, d_ff); b1: (L, 1, d_ff); w2: (L, d_ff, D)
    rowe/cole_ref: (P, D)            gathered row / column embeddings
    out_ref:  (P, D)                 this batch element's output rows
    """
    x = x_ref[...].astype(jnp.float32)                       # (S, D)
    hk = n_head * d_k
    scale = 1.0 / (d_k ** 0.5)
    wd = wqkv_ref.dtype                                       # matmul storage dtype

    for l in range(n_layers):
        # ---- multi-head self attention: one fused QKV matmul per layer ----
        qkv = (jnp.dot(x.astype(wd), wqkv_ref[l],
                       preferred_element_type=jnp.float32)
               + bqkv_ref[l])                                 # (S, 2*H*dk + H*dv), f32
        heads = []
        for h in range(n_head):                               # static lane views only
            qh = qkv[:, h * d_k:(h + 1) * d_k]
            kh = qkv[:, hk + h * d_k: hk + (h + 1) * d_k]
            vh = qkv[:, 2 * hk + h * d_v: 2 * hk + (h + 1) * d_v]
            s = jnp.dot(qh, kh.T, preferred_element_type=jnp.float32) * scale
            s = s - jnp.max(s, axis=-1, keepdims=True)
            e = jnp.exp(s)
            attn = e / jnp.sum(e, axis=-1, keepdims=True)     # exact softmax
            heads.append(jnp.dot(attn, vh, preferred_element_type=jnp.float32))
        o = jnp.concatenate(heads, axis=-1)                   # (S, H*dv), lane-packed
        proj = (jnp.dot(o.astype(wd), wo_ref[l],
                        preferred_element_type=jnp.float32) + bo_ref[l])
        a = _layer_norm(proj + x, g1_ref[l], be1_ref[l])

        # ---- position-wise FFN (1x1 conv == linear along d_model) ----
        h1 = jnp.maximum(
            jnp.dot(a.astype(wd), w1_ref[l], preferred_element_type=jnp.float32)
            + b1_ref[l], 0.0)
        h2 = (jnp.dot(h1.astype(wd), w2_ref[l], preferred_element_type=jnp.float32)
              + b2_ref[l])
        x = _layer_norm(h2 + a, g2_ref[l], be2_ref[l])

    # ---- pos-embedding epilogue: row 0 broadcast-added to the (P, D) embeddings ----
    emb = rowe_ref[...] + cole_ref[...]                       # (P, D)
    out_ref[...] = (x[0:1, :] + emb).astype(out_ref.dtype)


def _stack_layer_params(layers, param_dtype):
    """Stack per-layer weights into [L, ...] arrays; fuse Q|K|V along lanes."""
    def stack(name):
        return jnp.stack([lp[name] for lp in layers], axis=0)

    wqkv = jnp.concatenate([stack('wq'), stack('wk'), stack('wv')],
                           axis=-1).astype(param_dtype)       # (L, D, 2*H*dk+H*dv)
    bqkv = jnp.concatenate([stack('bq'), stack('bk'), stack('bv')],
                           axis=-1)                           # (L, 1, 2*H*dk+H*dv), f32
    wo = stack('wo').astype(param_dtype)                      # (L, H*dv, D)
    w1 = stack('w1').astype(param_dtype)                      # (L, D, d_ff)
    w2 = stack('w2').astype(param_dtype)                      # (L, d_ff, D)
    # Biases / LayerNorm params stay f32: cheap and keeps normalization exact.
    return (wqkv, bqkv, wo, stack('bo'), stack('g1'), stack('be1'),
            w1, stack('b1'), w2, stack('b2'), stack('g2'), stack('be2'))


def init_params(key, n_layers, n_heads, d_in, d_model, d_ff, n_split):
    """Deterministic synthetic init matching the PyTorch module's parameter shapes."""
    d_k = d_v = d_in
    n_total_layers = n_layers + 1          # attention_pooling(n_layers + 1, ...)
    keys = jax.random.split(key, n_total_layers * 4 + 1)
    layers = []
    for l in range(n_total_layers):
        kq, kk, kv, kf = keys[4 * l:4 * l + 4]
        std_qkv = (2.0 / (d_model + d_k)) ** 0.5
        kw1, kw2 = jax.random.split(kf)
        layers.append({
            'wq': jax.random.normal(kq, (d_model, n_heads * d_k), jnp.float32) * std_qkv,
            'bq': jnp.zeros((1, n_heads * d_k), jnp.float32),
            'wk': jax.random.normal(kk, (d_model, n_heads * d_k), jnp.float32) * std_qkv,
            'bk': jnp.zeros((1, n_heads * d_k), jnp.float32),
            'wv': jax.random.normal(kv, (d_model, n_heads * d_v), jnp.float32) * std_qkv,
            'bv': jnp.zeros((1, n_heads * d_v), jnp.float32),
            'wo': jax.random.normal(kw1, (n_heads * d_v, d_model), jnp.float32)
                  * (2.0 / (n_heads * d_v + d_model)) ** 0.5,
            'bo': jnp.zeros((1, d_model), jnp.float32),
            'g1': jnp.ones((1, d_model), jnp.float32),
            'be1': jnp.zeros((1, d_model), jnp.float32),
            'w1': jax.random.normal(kw2, (d_model, d_ff), jnp.float32)
                  * (2.0 / (d_model + d_ff)) ** 0.5,
            'b1': jnp.zeros((1, d_ff), jnp.float32),
            'w2': jax.random.normal(jax.random.fold_in(kw2, 1), (d_ff, d_model), jnp.float32)
                  * (2.0 / (d_model + d_ff)) ** 0.5,
            'b2': jnp.zeros((1, d_model), jnp.float32),
            'g2': jnp.ones((1, d_model), jnp.float32),
            'be2': jnp.zeros((1, d_model), jnp.float32),
        })
    return {
        'layers': layers,
        'row_embeddings': jax.random.normal(keys[-1], (n_split, d_model), jnp.float32),
        'column_embeddings': jnp.zeros((n_split, d_model), jnp.float32),
        'u0': jnp.zeros((1, 1, d_model), jnp.float32),
    }


def selfie_forward(params, src_seq, pos, *, n_split, n_heads, d_k, d_v,
                   param_dtype=jnp.float32):
    B, S0, D = src_seq.shape
    S = S0 + 1
    # u0.repeat((B, 1, 1)); cat([u, src_seq], dim=1)  (trivial XLA glue outside kernel)
    u = jnp.broadcast_to(params['u0'], (B, 1, D))
    x = jnp.concatenate([u, src_seq], axis=1)                 # (B, S, D)

    # trace-time pos -> (row, col), matching np.trunc / np.mod in the PyTorch forward
    pos = np.asarray(pos)
    rows = np.trunc(pos / n_split).astype('int')
    cols = np.mod(pos, n_split).astype('int')
    rowe_sel = params['row_embeddings'][jnp.asarray(rows)]    # (P, D) gathers (glue)
    cole_sel = params['column_embeddings'][jnp.asarray(cols)]
    P = int(pos.shape[0])

    stacked = _stack_layer_params(params['layers'], param_dtype)
    wqkv = stacked[0]
    L, _, QKV = wqkv.shape
    HV = stacked[2].shape[1]
    d_ff = stacked[6].shape[-1]

    def full_spec(shape):
        # Whole array resident in VMEM; block index constant across the batch grid,
        # so it is only DMA'd once.  (For large d_model/d_ff configs, add a layer
        # grid axis here and stream per-layer weight slabs instead.)
        return pl.BlockSpec(shape, lambda b: (0,) * len(shape))

    in_specs = [
        pl.BlockSpec((None, S, D), lambda b: (b, 0, 0)),      # x: one batch's rows
        full_spec((L, D, QKV)), full_spec((L, 1, QKV)),       # wqkv, bqkv
        full_spec((L, HV, D)), full_spec((L, 1, D)),          # wo, bo
        full_spec((L, 1, D)), full_spec((L, 1, D)),           # g1, be1
        full_spec((L, D, d_ff)), full_spec((L, 1, d_ff)),     # w1, b1
        full_spec((L, d_ff, D)), full_spec((L, 1, D)),        # w2, b2
        full_spec((L, 1, D)), full_spec((L, 1, D)),           # g2, be2
        full_spec((P, D)), full_spec((P, D)),                 # rowe, cole
    ]

    kernel = functools.partial(selfie_fused_kernel, n_layers=L, n_head=n_heads,
                               d_k=d_k, d_v=d_v)
    # Single fused launch, gridded over the (fully independent) batch dimension:
    # "parallel" lets v7x shard it across its 2 TensorCores.
    return pl.pallas_call(
        kernel,
        grid=(B,),
        in_specs=in_specs,
        out_specs=pl.BlockSpec((None, P, D), lambda b: (b, 0, 0)),
        out_shape=jax.ShapeDtypeStruct((B, P, D), jnp.float32),
        compiler_params=pltpu.CompilerParams(dimension_semantics=("parallel",)),
    )(x, *stacked, rowe_sel, cole_sel)


def _reference_forward(params, src_seq, pos, *, n_split, n_heads, d_k, d_v):
    """Pure-JAX reference mirroring the PyTorch forward (for correctness check)."""
    B, S0, D = src_seq.shape
    u = jnp.broadcast_to(params['u0'], (B, 1, D))
    x = jnp.concatenate([u, src_seq], axis=1)
    S = S0 + 1

    def ln(y, g, b):
        m = y.mean(-1, keepdims=True)
        v = ((y - m) ** 2).mean(-1, keepdims=True)
        return (y - m) / jnp.sqrt(v + 1e-5) * g + b

    for lp in params['layers']:
        q = x @ lp['wq'] + lp['bq']
        k = x @ lp['wk'] + lp['bk']
        v = x @ lp['wv'] + lp['bv']
        qh = q.reshape(B, S, n_heads, d_k).transpose(0, 2, 1, 3)
        kh = k.reshape(B, S, n_heads, d_k).transpose(0, 2, 1, 3)
        vh = v.reshape(B, S, n_heads, d_v).transpose(0, 2, 1, 3)
        sc = jnp.einsum('bhqd,bhkd->bhqk', qh, kh) / (d_k ** 0.5)
        attn = jax.nn.softmax(sc, axis=-1)
        o = jnp.einsum('bhqk,bhkd->bhqd', attn, vh)
        o = o.transpose(0, 2, 1, 3).reshape(B, S, n_heads * d_v)
        proj = o @ lp['wo'] + lp['bo']
        a = ln(proj + x, lp['g1'], lp['be1'])
        h1 = jax.nn.relu(a @ lp['w1'] + lp['b1'])
        h2 = h1 @ lp['w2'] + lp['b2']
        x = ln(h2 + a, lp['g2'], lp['be2'])

    before = x[:, 0, :]
    pos = np.asarray(pos)
    rows = np.trunc(pos / n_split).astype(int)
    cols = np.mod(pos, n_split).astype(int)
    emb = (params['row_embeddings'][jnp.asarray(rows)]
           + params['column_embeddings'][jnp.asarray(cols)])
    return before[:, None, :] + emb[None, :, :]


if __name__ == "__main__":
    # SelfieModel(n_layers=1, n_heads=4, d_in=8, d_model=32, d_ff=64, n_split=4)
    n_layers, n_heads, d_in, d_model, d_ff, n_split = 1, 4, 8, 32, 64, 4
    B, S = 2, 8
    key = jax.random.PRNGKey(0)
    k_x, k_p = jax.random.split(key)

    src_seq = jax.random.normal(k_x, (B, S, d_model), jnp.float32)
    pos = [0, 5, 10]                                          # patch ids in [0, n_split^2)

    params = init_params(k_p, n_layers, n_heads, d_in, d_model, d_ff, n_split)

    # --- f32 run: exact softmax + full-precision matmuls -> tight tolerance ---
    out = selfie_forward(params, src_seq, pos,
                         n_split=n_split, n_heads=n_heads, d_k=d_in, d_v=d_in)
    out = jax.block_until_ready(out)
    assert out.shape == (B, len(pos), d_model), out.shape
    assert bool(jnp.all(jnp.isfinite(out)))

    ref = _reference_forward(params, src_seq, pos,
                             n_split=n_split, n_heads=n_heads, d_k=d_in, d_v=d_in)
    max_err = float(jnp.max(jnp.abs(out - ref)))
    assert bool(jnp.allclose(out, ref, atol=2e-3, rtol=2e-3)), max_err

    # --- bf16-weight run (v6e/v7x native MXU rate); LN/softmax still f32 ---
    out_bf16 = selfie_forward(params, src_seq, pos,
                              n_split=n_split, n_heads=n_heads, d_k=d_in, d_v=d_in,
                              param_dtype=jnp.bfloat16)
    out_bf16 = jax.block_until_ready(out_bf16)
    assert out_bf16.shape == (B, len(pos), d_model), out_bf16.shape
    assert bool(jnp.all(jnp.isfinite(out_bf16)))
    assert bool(jnp.allclose(out_bf16, ref, atol=3e-1, rtol=3e-1))

    print("KERNEL_OK")
</pallas_src>

<mosaic_0001>
module attributes {stable_mosaic.version = 11 : i64} {
  func.func @selfie_fused_kernel(%arg0: i32, %arg1: memref<1x9x32xf32, #tpu.memory_space<vmem>>, %arg2: memref<2x32x96xf32, #tpu.memory_space<vmem>>, %arg3: memref<2x1x96xf32, #tpu.memory_space<vmem>>, %arg4: memref<2x32x32xf32, #tpu.memory_space<vmem>>, %arg5: memref<2x1x32xf32, #tpu.memory_space<vmem>>, %arg6: memref<2x1x32xf32, #tpu.memory_space<vmem>>, %arg7: memref<2x1x32xf32, #tpu.memory_space<vmem>>, %arg8: memref<2x32x64xf32, #tpu.memory_space<vmem>>, %arg9: memref<2x1x64xf32, #tpu.memory_space<vmem>>, %arg10: memref<2x64x32xf32, #tpu.memory_space<vmem>>, %arg11: memref<2x1x32xf32, #tpu.memory_space<vmem>>, %arg12: memref<2x1x32xf32, #tpu.memory_space<vmem>>, %arg13: memref<2x1x32xf32, #tpu.memory_space<vmem>>, %arg14: memref<3x32xf32, #tpu.memory_space<vmem>>, %arg15: memref<3x32xf32, #tpu.memory_space<vmem>>, %arg16: memref<1x3x32xf32, #tpu.memory_space<vmem>>) attributes {dimension_semantics = [#tpu.dimension_semantics<parallel>], iteration_bounds = array<i64: 2>, scalar_prefetch = 0 : i64, scratch_operands = 0 : i64, tpu.core_type = #tpu.core_type<tc>, window_params = [{transform_indices = @transform_0, window_bounds = array<i64: 1, 9, 32>}, {pipeline_mode = #tpu.pipeline_mode<synchronous>, transform_indices = @transform_1, window_bounds = array<i64: 2, 32, 96>}, {pipeline_mode = #tpu.pipeline_mode<synchronous>, transform_indices = @transform_2, window_bounds = array<i64: 2, 1, 96>}, {pipeline_mode = #tpu.pipeline_mode<synchronous>, transform_indices = @transform_3, window_bounds = array<i64: 2, 32, 32>}, {pipeline_mode = #tpu.pipeline_mode<synchronous>, transform_indices = @transform_4, window_bounds = array<i64: 2, 1, 32>}, {pipeline_mode = #tpu.pipeline_mode<synchronous>, transform_indices = @transform_5, window_bounds = array<i64: 2, 1, 32>}, {pipeline_mode = #tpu.pipeline_mode<synchronous>, transform_indices = @transform_6, window_bounds = array<i64: 2, 1, 32>}, {pipeline_mode = #tpu.pipeline_mode<synchronous>, transform_indices = @transform_7, window_bounds = array<i64: 2, 32, 64>}, {pipeline_mode = #tpu.pipeline_mode<synchronous>, transform_indices = @transform_8, window_bounds = array<i64: 2, 1, 64>}, {pipeline_mode = #tpu.pipeline_mode<synchronous>, transform_indices = @transform_9, window_bounds = array<i64: 2, 64, 32>}, {pipeline_mode = #tpu.pipeline_mode<synchronous>, transform_indices = @transform_10, window_bounds = array<i64: 2, 1, 32>}, {pipeline_mode = #tpu.pipeline_mode<synchronous>, transform_indices = @transform_11, window_bounds = array<i64: 2, 1, 32>}, {pipeline_mode = #tpu.pipeline_mode<synchronous>, transform_indices = @transform_12, window_bounds = array<i64: 2, 1, 32>}, {pipeline_mode = #tpu.pipeline_mode<synchronous>, transform_indices = @transform_13, window_bounds = array<i64: 3, 32>}, {pipeline_mode = #tpu.pipeline_mode<synchronous>, transform_indices = @transform_14, window_bounds = array<i64: 3, 32>}, {transform_indices = @transform_15, window_bounds = array<i64: 1, 3, 32>}]} {
    %c0 = arith.constant 0 : index
    %c0_0 = arith.constant 0 : index
    %c0_1 = arith.constant 0 : index
    %0 = vector.load %arg1[%c0, %c0_0, %c0_1] : memref<1x9x32xf32, #tpu.memory_space<vmem>>, vector<1x9x32xf32>
    %1 = vector.shape_cast %0 : vector<1x9x32xf32> to vector<9x32xf32>
    %c0_2 = arith.constant 0 : index
    %c0_3 = arith.constant 0 : index
    %c0_4 = arith.constant 0 : index
    %2 = vector.load %arg2[%c0_2, %c0_3, %c0_4] : memref<2x32x96xf32, #tpu.memory_space<vmem>>, vector<1x32x96xf32>
    %3 = vector.shape_cast %2 : vector<1x32x96xf32> to vector<32x96xf32>
    %cst = arith.constant dense<0.000000e+00> : vector<9x96xf32>
    %4 = tpu.matmul %1, %3, %cst {dimension_numbers = #tpu.dot_dimension_numbers<[1], [0], [0], [1], [0, 0, 1, 1], [], []>, precision = #tpu.contract_precision<fp32>} : vector<9x32xf32>, vector<32x96xf32>, vector<9x96xf32> -> vector<9x96xf32>
    %c0_5 = arith.constant 0 : index
    %c0_6 = arith.constant 0 : index
    %c0_7 = arith.constant 0 : index
    %5 = vector.load %arg3[%c0_5, %c0_6, %c0_7] : memref<2x1x96xf32, #tpu.memory_space<vmem>>, vector<1x1x96xf32>
    %6 = vector.shape_cast %5 : vector<1x1x96xf32> to vector<1x96xf32>
    %7 = vector.broadcast %6 : vector<1x96xf32> to vector<9x96xf32>
    %8 = arith.addf %4, %7 : vector<9x96xf32>
    %9 = vector.extract_strided_slice %8 {offsets = [0, 0], sizes = [9, 8], strides = [1, 1]} : vector<9x96xf32> to vector<9x8xf32>
    %10 = vector.extract_strided_slice %8 {offsets = [0, 32], sizes = [9, 8], strides = [1, 1]} : vector<9x96xf32> to vector<9x8xf32>
    %11 = vector.extract_strided_slice %8 {offsets = [0, 64], sizes = [9, 8], strides = [1, 1]} : vector<9x96xf32> to vector<9x8xf32>
    %12 = tpu.transpose %10, [1, 0] : vector<9x8xf32> -> vector<8x9xf32>
    %cst_8 = arith.constant dense<0.000000e+00> : vector<9x9xf32>
    %13 = tpu.matmul %9, %12, %cst_8 {dimension_numbers = #tpu.dot_dimension_numbers<[1], [0], [0], [1], [0, 0, 1, 1], [], []>, precision = #tpu.contract_precision<fp32>} : vector<9x8xf32>, vector<8x9xf32>, vector<9x9xf32> -> vector<9x9xf32>
    %cst_9 = arith.constant 0.353553385 : f32
    %14 = vector.broadcast %cst_9 : f32 to vector<9x9xf32>
    %15 = arith.mulf %13, %14 : vector<9x9xf32>
    %cst_10 = arith.constant dense<0xFF800000> : vector<9xf32>
    %16 = vector.multi_reduction <maximumf>, %15, %cst_10 [1] : vector<9x9xf32> to vector<9xf32>
    %17 = vector.shape_cast %16 : vector<9xf32> to vector<9x1xf32>
    %18 = vector.broadcast %17 : vector<9x1xf32> to vector<9x9xf32>
    %19 = arith.subf %15, %18 : vector<9x9xf32>
    %20 = math.exp %19 : vector<9x9xf32>
    %cst_11 = arith.constant dense<0.000000e+00> : vector<9xf32>
    %21 = vector.multi_reduction <add>, %20, %cst_11 [1] : vector<9x9xf32> to vector<9xf32>
    %22 = vector.shape_cast %21 : vector<9xf32> to vector<9x1xf32>
    %23 = vector.broadcast %22 : vector<9x1xf32> to vector<9x9xf32>
    %24 = arith.divf %20, %23 : vector<9x9xf32>
    %cst_12 = arith.constant dense<0.000000e+00> : vector<9x8xf32>
    %25 = tpu.matmul %24, %11, %cst_12 {dimension_numbers = #tpu.dot_dimension_numbers<[1], [0], [0], [1], [0, 0, 1, 1], [], []>, precision = #tpu.contract_precision<fp32>} : vector<9x9xf32>, vector<9x8xf32>, vector<9x8xf32> -> vector<9x8xf32>
    %26 = vector.extract_strided_slice %8 {offsets = [0, 8], sizes = [9, 8], strides = [1, 1]} : vector<9x96xf32> to vector<9x8xf32>
    %27 = vector.extract_strided_slice %8 {offsets = [0, 40], sizes = [9, 8], strides = [1, 1]} : vector<9x96xf32> to vector<9x8xf32>
    %28 = vector.extract_strided_slice %8 {offsets = [0, 72], sizes = [9, 8], strides = [1, 1]} : vector<9x96xf32> to vector<9x8xf32>
    %29 = tpu.transpose %27, [1, 0] : vector<9x8xf32> -> vector<8x9xf32>
    %cst_13 = arith.constant dense<0.000000e+00> : vector<9x9xf32>
    %30 = tpu.matmul %26, %29, %cst_13 {dimension_numbers = #tpu.dot_dimension_numbers<[1], [0], [0], [1], [0, 0, 1, 1], [], []>, precision = #tpu.contract_precision<fp32>} : vector<9x8xf32>, vector<8x9xf32>, vector<9x9xf32> -> vector<9x9xf32>
    %cst_14 = arith.constant 0.353553385 : f32
    %31 = vector.broadcast %cst_14 : f32 to vector<9x9xf32>
    %32 = arith.mulf %30, %31 : vector<9x9xf32>
    %cst_15 = arith.constant dense<0xFF800000> : vector<9xf32>
    %33 = vector.multi_reduction <maximumf>, %32, %cst_15 [1] : vector<9x9xf32> to vector<9xf32>
    %34 = vector.shape_cast %33 : vector<9xf32> to vector<9x1xf32>
    %35 = vector.broadcast %34 : vector<9x1xf32> to vector<9x9xf32>
    %36 = arith.subf %32, %35 : vector<9x9xf32>
    %37 = math.exp %36 : vector<9x9xf32>
    %cst_16 = arith.constant dense<0.000000e+00> : vector<9xf32>
    %38 = vector.multi_reduction <add>, %37, %cst_16 [1] : vector<9x9xf32> to vector<9xf32>
    %39 = vector.shape_cast %38 : vector<9xf32> to vector<9x1xf32>
    %40 = vector.broadcast %39 : vector<9x1xf32> to vector<9x9xf32>
    %41 = arith.divf %37, %40 : vector<9x9xf32>
    %cst_17 = arith.constant dense<0.000000e+00> : vector<9x8xf32>
    %42 = tpu.matmul %41, %28, %cst_17 {dimension_numbers = #tpu.dot_dimension_numbers<[1], [0], [0], [1], [0, 0, 1, 1], [], []>, precision = #tpu.contract_precision<fp32>} : vector<9x9xf32>, vector<9x8xf32>, vector<9x8xf32> -> vector<9x8xf32>
    %43 = vector.extract_strided_slice %8 {offsets = [0, 16], sizes = [9, 8], strides = [1, 1]} : vector<9x96xf32> to vector<9x8xf32>
    %44 = vector.extract_strided_slice %8 {offsets = [0, 48], sizes = [9, 8], strides = [1, 1]} : vector<9x96xf32> to vector<9x8xf32>
    %45 = vector.extract_strided_slice %8 {offsets = [0, 80], sizes = [9, 8], strides = [1, 1]} : vector<9x96xf32> to vector<9x8xf32>
    %46 = tpu.transpose %44, [1, 0] : vector<9x8xf32> -> vector<8x9xf32>
    %cst_18 = arith.constant dense<0.000000e+00> : vector<9x9xf32>
    %47 = tpu.matmul %43, %46, %cst_18 {dimension_numbers = #tpu.dot_dimension_numbers<[1], [0], [0], [1], [0, 0, 1, 1], [], []>, precision = #tpu.contract_precision<fp32>} : vector<9x8xf32>, vector<8x9xf32>, vector<9x9xf32> -> vector<9x9xf32>
    %cst_19 = arith.constant 0.353553385 : f32
    %48 = vector.broadcast %cst_19 : f32 to vector<9x9xf32>
    %49 = arith.mulf %47, %48 : vector<9x9xf32>
    %cst_20 = arith.constant dense<0xFF800000> : vector<9xf32>
    %50 = vector.multi_reduction <maximumf>, %49, %cst_20 [1] : vector<9x9xf32> to vector<9xf32>
    %51 = vector.shape_cast %50 : vector<9xf32> to vector<9x1xf32>
    %52 = vector.broadcast %51 : vector<9x1xf32> to vector<9x9xf32>
    %53 = arith.subf %49, %52 : vector<9x9xf32>
    %54 = math.exp %53 : vector<9x9xf32>
    %cst_21 = arith.constant dense<0.000000e+00> : vector<9xf32>
    %55 = vector.multi_reduction <add>, %54, %cst_21 [1] : vector<9x9xf32> to vector<9xf32>
    %56 = vector.shape_cast %55 : vector<9xf32> to vector<9x1xf32>
    %57 = vector.broadcast %56 : vector<9x1xf32> to vector<9x9xf32>
    %58 = arith.divf %54, %57 : vector<9x9xf32>
    %cst_22 = arith.constant dense<0.000000e+00> : vector<9x8xf32>
    %59 = tpu.matmul %58, %45, %cst_22 {dimension_numbers = #tpu.dot_dimension_numbers<[1], [0], [0], [1], [0, 0, 1, 1], [], []>, precision = #tpu.contract_precision<fp32>} : vector<9x9xf32>, vector<9x8xf32>, vector<9x8xf32> -> vector<9x8xf32>
    %60 = vector.extract_strided_slice %8 {offsets = [0, 24], sizes = [9, 8], strides = [1, 1]} : vector<9x96xf32> to vector<9x8xf32>
    %61 = vector.extract_strided_slice %8 {offsets = [0, 56], sizes = [9, 8], strides = [1, 1]} : vector<9x96xf32> to vector<9x8xf32>
    %62 = vector.extract_strided_slice %8 {offsets = [0, 88], sizes = [9, 8], strides = [1, 1]} : vector<9x96xf32> to vector<9x8xf32>
    %63 = tpu.transpose %61, [1, 0] : vector<9x8xf32> -> vector<8x9xf32>
    %cst_23 = arith.constant dense<0.000000e+00> : vector<9x9xf32>
    %64 = tpu.matmul %60, %63, %cst_23 {dimension_numbers = #tpu.dot_dimension_numbers<[1], [0], [0], [1], [0, 0, 1, 1], [], []>, precision = #tpu.contract_precision<fp32>} : vector<9x8xf32>, vector<8x9xf32>, vector<9x9xf32> -> vector<9x9xf32>
    %cst_24 = arith.constant 0.353553385 : f32
    %65 = vector.broadcast %cst_24 : f32 to vector<9x9xf32>
    %66 = arith.mulf %64, %65 : vector<9x9xf32>
    %cst_25 = arith.constant dense<0xFF800000> : vector<9xf32>
    %67 = vector.multi_reduction <maximumf>, %66, %cst_25 [1] : vector<9x9xf32> to vector<9xf32>
    %68 = vector.shape_cast %67 : vector<9xf32> to vector<9x1xf32>
    %69 = vector.broadcast %68 : vector<9x1xf32> to vector<9x9xf32>
    %70 = arith.subf %66, %69 : vector<9x9xf32>
    %71 = math.exp %70 : vector<9x9xf32>
    %cst_26 = arith.constant dense<0.000000e+00> : vector<9xf32>
    %72 = vector.multi_reduction <add>, %71, %cst_26 [1] : vector<9x9xf32> to vector<9xf32>
    %73 = vector.shape_cast %72 : vector<9xf32> to vector<9x1xf32>
    %74 = vector.broadcast %73 : vector<9x1xf32> to vector<9x9xf32>
    %75 = arith.divf %71, %74 : vector<9x9xf32>
    %cst_27 = arith.constant dense<0.000000e+00> : vector<9x8xf32>
    %76 = tpu.matmul %75, %62, %cst_27 {dimension_numbers = #tpu.dot_dimension_numbers<[1], [0], [0], [1], [0, 0, 1, 1], [], []>, precision = #tpu.contract_precision<fp32>} : vector<9x9xf32>, vector<9x8xf32>, vector<9x8xf32> -> vector<9x8xf32>
    %77 = tpu.concatenate %25, %42, %59, %76 in 1 : vector<9x8xf32>, vector<9x8xf32>, vector<9x8xf32>, vector<9x8xf32> -> vector<9x32xf32>
    %c0_28 = arith.constant 0 : index
    %c0_29 = arith.constant 0 : index
    %c0_30 = arith.constant 0 : index
    %78 = vector.load %arg4[%c0_28, %c0_29, %c0_30] : memref<2x32x32xf32, #tpu.memory_space<vmem>>, vector<1x32x32xf32>
    %79 = vector.shape_cast %78 : vector<1x32x32xf32> to vector<32x32xf32>
    %cst_31 = arith.constant dense<0.000000e+00> : vector<9x32xf32>
    %80 = tpu.matmul %77, %79, %cst_31 {dimension_numbers = #tpu.dot_dimension_numbers<[1], [0], [0], [1], [0, 0, 1, 1], [], []>, precision = #tpu.contract_precision<fp32>} : vector<9x32xf32>, vector<32x32xf32>, vector<9x32xf32> -> vector<9x32xf32>
    %c0_32 = arith.constant 0 : index
    %c0_33 = arith.constant 0 : index
    %c0_34 = arith.constant 0 : index
    %81 = vector.load %arg5[%c0_32, %c0_33, %c0_34] : memref<2x1x32xf32, #tpu.memory_space<vmem>>, vector<1x1x32xf32>
    %82 = vector.shape_cast %81 : vector<1x1x32xf32> to vector<1x32xf32>
    %83 = vector.broadcast %82 : vector<1x32xf32> to vector<9x32xf32>
    %84 = arith.addf %80, %83 : vector<9x32xf32>
    %85 = arith.addf %84, %1 : vector<9x32xf32>
    %c0_35 = arith.constant 0 : index
    %c0_36 = arith.constant 0 : index
    %c0_37 = arith.constant 0 : index
    %86 = vector.load %arg6[%c0_35, %c0_36, %c0_37] : memref<2x1x32xf32, #tpu.memory_space<vmem>>, vector<1x1x32xf32>
    %87 = vector.shape_cast %86 : vector<1x1x32xf32> to vector<1x32xf32>
    %c0_38 = arith.constant 0 : index
    %c0_39 = arith.constant 0 : index
    %c0_40 = arith.constant 0 : index
    %88 = vector.load %arg7[%c0_38, %c0_39, %c0_40] : memref<2x1x32xf32, #tpu.memory_space<vmem>>, vector<1x1x32xf32>
    %89 = vector.shape_cast %88 : vector<1x1x32xf32> to vector<1x32xf32>
    %cst_41 = arith.constant dense<0.000000e+00> : vector<9xf32>
    %90 = vector.multi_reduction <add>, %85, %cst_41 [1] : vector<9x32xf32> to vector<9xf32>
    %91 = vector.shape_cast %90 : vector<9xf32> to vector<9x1xf32>
    %cst_42 = arith.constant 3.200000e+01 : f32
    %92 = vector.broadcast %cst_42 : f32 to vector<9x1xf32>
    %93 = arith.divf %91, %92 : vector<9x1xf32>
    %94 = vector.broadcast %93 : vector<9x1xf32> to vector<9x32xf32>
    %95 = arith.subf %85, %94 : vector<9x32xf32>
    %96 = arith.mulf %95, %95 : vector<9x32xf32>
    %cst_43 = arith.constant dense<0.000000e+00> : vector<9xf32>
    %97 = vector.multi_reduction <add>, %96, %cst_43 [1] : vector<9x32xf32> to vector<9xf32>
    %98 = vector.shape_cast %97 : vector<9xf32> to vector<9x1xf32>
    %cst_44 = arith.constant 3.200000e+01 : f32
    %99 = vector.broadcast %cst_44 : f32 to vector<9x1xf32>
    %100 = arith.divf %98, %99 : vector<9x1xf32>
    %101 = vector.broadcast %93 : vector<9x1xf32> to vector<9x32xf32>
    %102 = arith.subf %85, %101 : vector<9x32xf32>
    %cst_45 = arith.constant 9.99999974E-6 : f32
    %103 = vector.broadcast %cst_45 : f32 to vector<9x1xf32>
    %104 = arith.addf %100, %103 : vector<9x1xf32>
    %105 = math.rsqrt %104 : vector<9x1xf32>
    %106 = vector.broadcast %105 : vector<9x1xf32> to vector<9x32xf32>
    %107 = arith.mulf %102, %106 : vector<9x32xf32>
    %108 = vector.broadcast %87 : vector<1x32xf32> to vector<9x32xf32>
    %109 = arith.mulf %107, %108 : vector<9x32xf32>
    %110 = vector.broadcast %89 : vector<1x32xf32> to vector<9x32xf32>
    %111 = arith.addf %109, %110 : vector<9x32xf32>
    %c0_46 = arith.constant 0 : index
    %c0_47 = arith.constant 0 : index
    %c0_48 = arith.constant 0 : index
    %112 = vector.load %arg8[%c0_46, %c0_47, %c0_48] : memref<2x32x64xf32, #tpu.memory_space<vmem>>, vector<1x32x64xf32>
    %113 = vector.shape_cast %112 : vector<1x32x64xf32> to vector<32x64xf32>
    %cst_49 = arith.constant dense<0.000000e+00> : vector<9x64xf32>
    %114 = tpu.matmul %111, %113, %cst_49 {dimension_numbers = #tpu.dot_dimension_numbers<[1], [0], [0], [1], [0, 0, 1, 1], [], []>, precision = #tpu.contract_precision<fp32>} : vector<9x32xf32>, vector<32x64xf32>, vector<9x64xf32> -> vector<9x64xf32>
    %c0_50 = arith.constant 0 : index
    %c0_51 = arith.constant 0 : index
    %c0_52 = arith.constant 0 : index
    %115 = vector.load %arg9[%c0_50, %c0_51, %c0_52] : memref<2x1x64xf32, #tpu.memory_space<vmem>>, vector<1x1x64xf32>
    %116 = vector.shape_cast %115 : vector<1x1x64xf32> to vector<1x64xf32>
    %117 = vector.broadcast %116 : vector<1x64xf32> to vector<9x64xf32>
    %118 = arith.addf %114, %117 : vector<9x64xf32>
    %cst_53 = arith.constant 0.000000e+00 : f32
    %119 = vector.broadcast %cst_53 : f32 to vector<9x64xf32>
    %120 = arith.maximumf %118, %119 : vector<9x64xf32>
    %c0_54 = arith.constant 0 : index
    %c0_55 = arith.constant 0 : index
    %c0_56 = arith.constant 0 : index
    %121 = vector.load %arg10[%c0_54, %c0_55, %c0_56] : memref<2x64x32xf32, #tpu.memory_space<vmem>>, vector<1x64x32xf32>
    %122 = vector.shape_cast %121 : vector<1x64x32xf32> to vector<64x32xf32>
    %cst_57 = arith.constant dense<0.000000e+00> : vector<9x32xf32>
    %123 = tpu.matmul %120, %122, %cst_57 {dimension_numbers = #tpu.dot_dimension_numbers<[1], [0], [0], [1], [0, 0, 1, 1], [], []>, precision = #tpu.contract_precision<fp32>} : vector<9x64xf32>, vector<64x32xf32>, vector<9x32xf32> -> vector<9x32xf32>
    %c0_58 = arith.constant 0 : index
    %c0_59 = arith.constant 0 : index
    %c0_60 = arith.constant 0 : index
    %124 = vector.load %arg11[%c0_58, %c0_59, %c0_60] : memref<2x1x32xf32, #tpu.memory_space<vmem>>, vector<1x1x32xf32>
    %125 = vector.shape_cast %124 : vector<1x1x32xf32> to vector<1x32xf32>
    %126 = vector.broadcast %125 : vector<1x32xf32> to vector<9x32xf32>
    %127 = arith.addf %123, %126 : vector<9x32xf32>
    %128 = arith.addf %127, %111 : vector<9x32xf32>
    %c0_61 = arith.constant 0 : index
    %c0_62 = arith.constant 0 : index
    %c0_63 = arith.constant 0 : index
    %129 = vector.load %arg12[%c0_61, %c0_62, %c0_63] : memref<2x1x32xf32, #tpu.memory_space<vmem>>, vector<1x1x32xf32>
    %130 = vector.shape_cast %129 : vector<1x1x32xf32> to vector<1x32xf32>
    %c0_64 = arith.constant 0 : index
    %c0_65 = arith.constant 0 : index
    %c0_66 = arith.constant 0 : index
    %131 = vector.load %arg13[%c0_64, %c0_65, %c0_66] : memref<2x1x32xf32, #tpu.memory_space<vmem>>, vector<1x1x32xf32>
    %132 = vector.shape_cast %131 : vector<1x1x32xf32> to vector<1x32xf32>
    %cst_67 = arith.constant dense<0.000000e+00> : vector<9xf32>
    %133 = vector.multi_reduction <add>, %128, %cst_67 [1] : vector<9x32xf32> to vector<9xf32>
    %134 = vector.shape_cast %133 : vector<9xf32> to vector<9x1xf32>
    %cst_68 = arith.constant 3.200000e+01 : f32
    %135 = vector.broadcast %cst_68 : f32 to vector<9x1xf32>
    %136 = arith.divf %134, %135 : vector<9x1xf32>
    %137 = vector.broadcast %136 : vector<9x1xf32> to vector<9x32xf32>
    %138 = arith.subf %128, %137 : vector<9x32xf32>
    %139 = arith.mulf %138, %138 : vector<9x32xf32>
    %cst_69 = arith.constant dense<0.000000e+00> : vector<9xf32>
    %140 = vector.multi_reduction <add>, %139, %cst_69 [1] : vector<9x32xf32> to vector<9xf32>
    %141 = vector.shape_cast %140 : vector<9xf32> to vector<9x1xf32>
    %cst_70 = arith.constant 3.200000e+01 : f32
    %142 = vector.broadcast %cst_70 : f32 to vector<9x1xf32>
    %143 = arith.divf %141, %142 : vector<9x1xf32>
    %144 = vector.broadcast %136 : vector<9x1xf32> to vector<9x32xf32>
    %145 = arith.subf %128, %144 : vector<9x32xf32>
    %cst_71 = arith.constant 9.99999974E-6 : f32
    %146 = vector.broadcast %cst_71 : f32 to vector<9x1xf32>
    %147 = arith.addf %143, %146 : vector<9x1xf32>
    %148 = math.rsqrt %147 : vector<9x1xf32>
    %149 = vector.broadcast %148 : vector<9x1xf32> to vector<9x32xf32>
    %150 = arith.mulf %145, %149 : vector<9x32xf32>
    %151 = vector.broadcast %130 : vector<1x32xf32> to vector<9x32xf32>
    %152 = arith.mulf %150, %151 : vector<9x32xf32>
    %153 = vector.broadcast %132 : vector<1x32xf32> to vector<9x32xf32>
    %154 = arith.addf %152, %153 : vector<9x32xf32>
    %c1 = arith.constant 1 : index
    %c0_72 = arith.constant 0 : index
    %c0_73 = arith.constant 0 : index
    %155 = vector.load %arg2[%c1, %c0_72, %c0_73] : memref<2x32x96xf32, #tpu.memory_space<vmem>>, vector<1x32x96xf32>
    %156 = vector.shape_cast %155 : vector<1x32x96xf32> to vector<32x96xf32>
    %cst_74 = arith.constant dense<0.000000e+00> : vector<9x96xf32>
    %157 = tpu.matmul %154, %156, %cst_74 {dimension_numbers = #tpu.dot_dimension_numbers<[1], [0], [0], [1], [0, 0, 1, 1], [], []>, precision = #tpu.contract_precision<fp32>} : vector<9x32xf32>, vector<32x96xf32>, vector<9x96xf32> -> vector<9x96xf32>
    %c1_75 = arith.constant 1 : index
    %c0_76 = arith.constant 0 : index
    %c0_77 = arith.constant 0 : index
    %158 = vector.load %arg3[%c1_75, %c0_76, %c0_77] : memref<2x1x96xf32, #tpu.memory_space<vmem>>, vector<1x1x96xf32>
    %159 = vector.shape_cast %158 : vector<1x1x96xf32> to vector<1x96xf32>
    %160 = vector.broadcast %159 : vector<1x96xf32> to vector<9x96xf32>
    %161 = arith.addf %157, %160 : vector<9x96xf32>
    %162 = vector.extract_strided_slice %161 {offsets = [0, 0], sizes = [9, 8], strides = [1, 1]} : vector<9x96xf32> to vector<9x8xf32>
    %163 = vector.extract_strided_slice %161 {offsets = [0, 32], sizes = [9, 8], strides = [1, 1]} : vector<9x96xf32> to vector<9x8xf32>
    %164 = vector.extract_strided_slice %161 {offsets = [0, 64], sizes = [9, 8], strides = [1, 1]} : vector<9x96xf32> to vector<9x8xf32>
    %165 = tpu.transpose %163, [1, 0] : vector<9x8xf32> -> vector<8x9xf32>
    %cst_78 = arith.constant dense<0.000000e+00> : vector<9x9xf32>
    %166 = tpu.matmul %162, %165, %cst_78 {dimension_numbers = #tpu.dot_dimension_numbers<[1], [0], [0], [1], [0, 0, 1, 1], [], []>, precision = #tpu.contract_precision<fp32>} : vector<9x8xf32>, vector<8x9xf32>, vector<9x9xf32> -> vector<9x9xf32>
    %cst_79 = arith.constant 0.353553385 : f32
    %167 = vector.broadcast %cst_79 : f32 to vector<9x9xf32>
    %168 = arith.mulf %166, %167 : vector<9x9xf32>
    %cst_80 = arith.constant dense<0xFF800000> : vector<9xf32>
    %169 = vector.multi_reduction <maximumf>, %168, %cst_80 [1] : vector<9x9xf32> to vector<9xf32>
    %170 = vector.shape_cast %169 : vector<9xf32> to vector<9x1xf32>
    %171 = vector.broadcast %170 : vector<9x1xf32> to vector<9x9xf32>
    %172 = arith.subf %168, %171 : vector<9x9xf32>
    %173 = math.exp %172 : vector<9x9xf32>
    %cst_81 = arith.constant dense<0.000000e+00> : vector<9xf32>
    %174 = vector.multi_reduction <add>, %173, %cst_81 [1] : vector<9x9xf32> to vector<9xf32>
    %175 = vector.shape_cast %174 : vector<9xf32> to vector<9x1xf32>
    %176 = vector.broadcast %175 : vector<9x1xf32> to vector<9x9xf32>
    %177 = arith.divf %173, %176 : vector<9x9xf32>
    %cst_82 = arith.constant dense<0.000000e+00> : vector<9x8xf32>
    %178 = tpu.matmul %177, %164, %cst_82 {dimension_numbers = #tpu.dot_dimension_numbers<[1], [0], [0], [1], [0, 0, 1, 1], [], []>, precision = #tpu.contract_precision<fp32>} : vector<9x9xf32>, vector<9x8xf32>, vector<9x8xf32> -> vector<9x8xf32>
    %179 = vector.extract_strided_slice %161 {offsets = [0, 8], sizes = [9, 8], strides = [1, 1]} : vector<9x96xf32> to vector<9x8xf32>
    %180 = vector.extract_strided_slice %161 {offsets = [0, 40], sizes = [9, 8], strides = [1, 1]} : vector<9x96xf32> to vector<9x8xf32>
    %181 = vector.extract_strided_slice %161 {offsets = [0, 72], sizes = [9, 8], strides = [1, 1]} : vector<9x96xf32> to vector<9x8xf32>
    %182 = tpu.transpose %180, [1, 0] : vector<9x8xf32> -> vector<8x9xf32>
    %cst_83 = arith.constant dense<0.000000e+00> : vector<9x9xf32>
    %183 = tpu.matmul %179, %182, %cst_83 {dimension_numbers = #tpu.dot_dimension_numbers<[1], [0], [0], [1], [0, 0, 1, 1], [], []>, precision = #tpu.contract_precision<fp32>} : vector<9x8xf32>, vector<8x9xf32>, vector<9x9xf32> -> vector<9x9xf32>
    %cst_84 = arith.constant 0.353553385 : f32
    %184 = vector.broadcast %cst_84 : f32 to vector<9x9xf32>
    %185 = arith.mulf %183, %184 : vector<9x9xf32>
    %cst_85 = arith.constant dense<0xFF800000> : vector<9xf32>
    %186 = vector.multi_reduction <maximumf>, %185, %cst_85 [1] : vector<9x9xf32> to vector<9xf32>
    %187 = vector.shape_cast %186 : vector<9xf32> to vector<9x1xf32>
    %188 = vector.broadcast %187 : vector<9x1xf32> to vector<9x9xf32>
    %189 = arith.subf %185, %188 : vector<9x9xf32>
    %190 = math.exp %189 : vector<9x9xf32>
    %cst_86 = arith.constant dense<0.000000e+00> : vector<9xf32>
    %191 = vector.multi_reduction <add>, %190, %cst_86 [1] : vector<9x9xf32> to vector<9xf32>
    %192 = vector.shape_cast %191 : vector<9xf32> to vector<9x1xf32>
    %193 = vector.broadcast %192 : vector<9x1xf32> to vector<9x9xf32>
    %194 = arith.divf %190, %193 : vector<9x9xf32>
    %cst_87 = arith.constant dense<0.000000e+00> : vector<9x8xf32>
    %195 = tpu.matmul %194, %181, %cst_87 {dimension_numbers = #tpu.dot_dimension_numbers<[1], [0], [0], [1], [0, 0, 1, 1], [], []>, precision = #tpu.contract_precision<fp32>} : vector<9x9xf32>, vector<9x8xf32>, vector<9x8xf32> -> vector<9x8xf32>
    %196 = vector.extract_strided_slice %161 {offsets = [0, 16], sizes = [9, 8], strides = [1, 1]} : vector<9x96xf32> to vector<9x8xf32>
    %197 = vector.extract_strided_slice %161 {offsets = [0, 48], sizes = [9, 8], strides = [1, 1]} : vector<9x96xf32> to vector<9x8xf32>
    %198 = vector.extract_strided_slice %161 {offsets = [0, 80], sizes = [9, 8], strides = [1, 1]} : vector<9x96xf32> to vector<9x8xf32>
    %199 = tpu.transpose %197, [1, 0] : vector<9x8xf32> -> vector<8x9xf32>
    %cst_88 = arith.constant dense<0.000000e+00> : vector<9x9xf32>
    %200 = tpu.matmul %196, %199, %cst_88 {dimension_numbers = #tpu.dot_dimension_numbers<[1], [0], [0], [1], [0, 0, 1, 1], [], []>, precision = #tpu.contract_precision<fp32>} : vector<9x8xf32>, vector<8x9xf32>, vector<9x9xf32> -> vector<9x9xf32>
    %cst_89 = arith.constant 0.353553385 : f32
    %201 = vector.broadcast %cst_89 : f32 to vector<9x9xf32>
    %202 = arith.mulf %200, %201 : vector<9x9xf32>
    %cst_90 = arith.constant dense<0xFF800000> : vector<9xf32>
    %203 = vector.multi_reduction <maximumf>, %202, %cst_90 [1] : vector<9x9xf32> to vector<9xf32>
    %204 = vector.shape_cast %203 : vector<9xf32> to vector<9x1xf32>
    %205 = vector.broadcast %204 : vector<9x1xf32> to vector<9x9xf32>
    %206 = arith.subf %202, %205 : vector<9x9xf32>
    %207 = math.exp %206 : vector<9x9xf32>
    %cst_91 = arith.constant dense<0.000000e+00> : vector<9xf32>
    %208 = vector.multi_reduction <add>, %207, %cst_91 [1] : vector<9x9xf32> to vector<9xf32>
    %209 = vector.shape_cast %208 : vector<9xf32> to vector<9x1xf32>
    %210 = vector.broadcast %209 : vector<9x1xf32> to vector<9x9xf32>
    %211 = arith.divf %207, %210 : vector<9x9xf32>
    %cst_92 = arith.constant dense<0.000000e+00> : vector<9x8xf32>
    %212 = tpu.matmul %211, %198, %cst_92 {dimension_numbers = #tpu.dot_dimension_numbers<[1], [0], [0], [1], [0, 0, 1, 1], [], []>, precision = #tpu.contract_precision<fp32>} : vector<9x9xf32>, vector<9x8xf32>, vector<9x8xf32> -> vector<9x8xf32>
    %213 = vector.extract_strided_slice %161 {offsets = [0, 24], sizes = [9, 8], strides = [1, 1]} : vector<9x96xf32> to vector<9x8xf32>
    %214 = vector.extract_strided_slice %161 {offsets = [0, 56], sizes = [9, 8], strides = [1, 1]} : vector<9x96xf32> to vector<9x8xf32>
    %215 = vector.extract_strided_slice %161 {offsets = [0, 88], sizes = [9, 8], strides = [1, 1]} : vector<9x96xf32> to vector<9x8xf32>
    %216 = tpu.transpose %214, [1, 0] : vector<9x8xf32> -> vector<8x9xf32>
    %cst_93 = arith.constant dense<0.000000e+00> : vector<9x9xf32>
    %217 = tpu.matmul %213, %216, %cst_93 {dimension_numbers = #tpu.dot_dimension_numbers<[1], [0], [0], [1], [0, 0, 1, 1], [], []>, precision = #tpu.contract_precision<fp32>} : vector<9x8xf32>, vector<8x9xf32>, vector<9x9xf32> -> vector<9x9xf32>
    %cst_94 = arith.constant 0.353553385 : f32
    %218 = vector.broadcast %cst_94 : f32 to vector<9x9xf32>
    %219 = arith.mulf %217, %218 : vector<9x9xf32>
    %cst_95 = arith.constant dense<0xFF800000> : vector<9xf32>
    %220 = vector.multi_reduction <maximumf>, %219, %cst_95 [1] : vector<9x9xf32> to vector<9xf32>
    %221 = vector.shape_cast %220 : vector<9xf32> to vector<9x1xf32>
    %222 = vector.broadcast %221 : vector<9x1xf32> to vector<9x9xf32>
    %223 = arith.subf %219, %222 : vector<9x9xf32>
    %224 = math.exp %223 : vector<9x9xf32>
    %cst_96 = arith.constant dense<0.000000e+00> : vector<9xf32>
    %225 = vector.multi_reduction <add>, %224, %cst_96 [1] : vector<9x9xf32> to vector<9xf32>
    %226 = vector.shape_cast %225 : vector<9xf32> to vector<9x1xf32>
    %227 = vector.broadcast %226 : vector<9x1xf32> to vector<9x9xf32>
    %228 = arith.divf %224, %227 : vector<9x9xf32>
    %cst_97 = arith.constant dense<0.000000e+00> : vector<9x8xf32>
    %229 = tpu.matmul %228, %215, %cst_97 {dimension_numbers = #tpu.dot_dimension_numbers<[1], [0], [0], [1], [0, 0, 1, 1], [], []>, precision = #tpu.contract_precision<fp32>} : vector<9x9xf32>, vector<9x8xf32>, vector<9x8xf32> -> vector<9x8xf32>
    %230 = tpu.concatenate %178, %195, %212, %229 in 1 : vector<9x8xf32>, vector<9x8xf32>, vector<9x8xf32>, vector<9x8xf32> -> vector<9x32xf32>
    %c1_98 = arith.constant 1 : index
    %c0_99 = arith.constant 0 : index
    %c0_100 = arith.constant 0 : index
    %231 = vector.load %arg4[%c1_98, %c0_99, %c0_100] : memref<2x32x32xf32, #tpu.memory_space<vmem>>, vector<1x32x32xf32>
    %232 = vector.shape_cast %231 : vector<1x32x32xf32> to vector<32x32xf32>
    %cst_101 = arith.constant dense<0.000000e+00> : vector<9x32xf32>
    %233 = tpu.matmul %230, %232, %cst_101 {dimension_numbers = #tpu.dot_dimension_numbers<[1], [0], [0], [1], [0, 0, 1, 1], [], []>, precision = #tpu.contract_precision<fp32>} : vector<9x32xf32>, vector<32x32xf32>, vector<9x32xf32> -> vector<9x32xf32>
    %c1_102 = arith.constant 1 : index
    %c0_103 = arith.constant 0 : index
    %c0_104 = arith.constant 0 : index
    %234 = vector.load %arg5[%c1_102, %c0_103, %c0_104] : memref<2x1x32xf32, #tpu.memory_space<vmem>>, vector<1x1x32xf32>
    %235 = vector.shape_cast %234 : vector<1x1x32xf32> to vector<1x32xf32>
    %236 = vector.broadcast %235 : vector<1x32xf32> to vector<9x32xf32>
    %237 = arith.addf %233, %236 : vector<9x32xf32>
    %238 = arith.addf %237, %154 : vector<9x32xf32>
    %c1_105 = arith.constant 1 : index
    %c0_106 = arith.constant 0 : index
    %c0_107 = arith.constant 0 : index
    %239 = vector.load %arg6[%c1_105, %c0_106, %c0_107] : memref<2x1x32xf32, #tpu.memory_space<vmem>>, vector<1x1x32xf32>
    %240 = vector.shape_cast %239 : vector<1x1x32xf32> to vector<1x32xf32>
    %c1_108 = arith.constant 1 : index
    %c0_109 = arith.constant 0 : index
    %c0_110 = arith.constant 0 : index
    %241 = vector.load %arg7[%c1_108, %c0_109, %c0_110] : memref<2x1x32xf32, #tpu.memory_space<vmem>>, vector<1x1x32xf32>
    %242 = vector.shape_cast %241 : vector<1x1x32xf32> to vector<1x32xf32>
    %cst_111 = arith.constant dense<0.000000e+00> : vector<9xf32>
    %243 = vector.multi_reduction <add>, %238, %cst_111 [1] : vector<9x32xf32> to vector<9xf32>
    %244 = vector.shape_cast %243 : vector<9xf32> to vector<9x1xf32>
    %cst_112 = arith.constant 3.200000e+01 : f32
    %245 = vector.broadcast %cst_112 : f32 to vector<9x1xf32>
    %246 = arith.divf %244, %245 : vector<9x1xf32>
    %247 = vector.broadcast %246 : vector<9x1xf32> to vector<9x32xf32>
    %248 = arith.subf %238, %247 : vector<9x32xf32>
    %249 = arith.mulf %248, %248 : vector<9x32xf32>
    %cst_113 = arith.constant dense<0.000000e+00> : vector<9xf32>
    %250 = vector.multi_reduction <add>, %249, %cst_113 [1] : vector<9x32xf32> to vector<9xf32>
    %251 = vector.shape_cast %250 : vector<9xf32> to vector<9x1xf32>
    %cst_114 = arith.constant 3.200000e+01 : f32
    %252 = vector.broadcast %cst_114 : f32 to vector<9x1xf32>
    %253 = arith.divf %251, %252 : vector<9x1xf32>
    %254 = vector.broadcast %246 : vector<9x1xf32> to vector<9x32xf32>
    %255 = arith.subf %238, %254 : vector<9x32xf32>
    %cst_115 = arith.constant 9.99999974E-6 : f32
    %256 = vector.broadcast %cst_115 : f32 to vector<9x1xf32>
    %257 = arith.addf %253, %256 : vector<9x1xf32>
    %258 = math.rsqrt %257 : vector<9x1xf32>
    %259 = vector.broadcast %258 : vector<9x1xf32> to vector<9x32xf32>
    %260 = arith.mulf %255, %259 : vector<9x32xf32>
    %261 = vector.broadcast %240 : vector<1x32xf32> to vector<9x32xf32>
    %262 = arith.mulf %260, %261 : vector<9x32xf32>
    %263 = vector.broadcast %242 : vector<1x32xf32> to vector<9x32xf32>
    %264 = arith.addf %262, %263 : vector<9x32xf32>
    %c1_116 = arith.constant 1 : index
    %c0_117 = arith.constant 0 : index
    %c0_118 = arith.constant 0 : index
    %265 = vector.load %arg8[%c1_116, %c0_117, %c0_118] : memref<2x32x64xf32, #tpu.memory_space<vmem>>, vector<1x32x64xf32>
    %266 = vector.shape_cast %265 : vector<1x32x64xf32> to vector<32x64xf32>
    %cst_119 = arith.constant dense<0.000000e+00> : vector<9x64xf32>
    %267 = tpu.matmul %264, %266, %cst_119 {dimension_numbers = #tpu.dot_dimension_numbers<[1], [0], [0], [1], [0, 0, 1, 1], [], []>, precision = #tpu.contract_precision<fp32>} : vector<9x32xf32>, vector<32x64xf32>, vector<9x64xf32> -> vector<9x64xf32>
    %c1_120 = arith.constant 1 : index
    %c0_121 = arith.constant 0 : index
    %c0_122 = arith.constant 0 : index
    %268 = vector.load %arg9[%c1_120, %c0_121, %c0_122] : memref<2x1x64xf32, #tpu.memory_space<vmem>>, vector<1x1x64xf32>
    %269 = vector.shape_cast %268 : vector<1x1x64xf32> to vector<1x64xf32>
    %270 = vector.broadcast %269 : vector<1x64xf32> to vector<9x64xf32>
    %271 = arith.addf %267, %270 : vector<9x64xf32>
    %cst_123 = arith.constant 0.000000e+00 : f32
    %272 = vector.broadcast %cst_123 : f32 to vector<9x64xf32>
    %273 = arith.maximumf %271, %272 : vector<9x64xf32>
    %c1_124 = arith.constant 1 : index
    %c0_125 = arith.constant 0 : index
    %c0_126 = arith.constant 0 : index
    %274 = vector.load %arg10[%c1_124, %c0_125, %c0_126] : memref<2x64x32xf32, #tpu.memory_space<vmem>>, vector<1x64x32xf32>
    %275 = vector.shape_cast %274 : vector<1x64x32xf32> to vector<64x32xf32>
    %cst_127 = arith.constant dense<0.000000e+00> : vector<9x32xf32>
    %276 = tpu.matmul %273, %275, %cst_127 {dimension_numbers = #tpu.dot_dimension_numbers<[1], [0], [0], [1], [0, 0, 1, 1], [], []>, precision = #tpu.contract_precision<fp32>} : vector<9x64xf32>, vector<64x32xf32>, vector<9x32xf32> -> vector<9x32xf32>
    %c1_128 = arith.constant 1 : index
    %c0_129 = arith.constant 0 : index
    %c0_130 = arith.constant 0 : index
    %277 = vector.load %arg11[%c1_128, %c0_129, %c0_130] : memref<2x1x32xf32, #tpu.memory_space<vmem>>, vector<1x1x32xf32>
    %278 = vector.shape_cast %277 : vector<1x1x32xf32> to vector<1x32xf32>
    %279 = vector.broadcast %278 : vector<1x32xf32> to vector<9x32xf32>
    %280 = arith.addf %276, %279 : vector<9x32xf32>
    %281 = arith.addf %280, %264 : vector<9x32xf32>
    %c1_131 = arith.constant 1 : index
    %c0_132 = arith.constant 0 : index
    %c0_133 = arith.constant 0 : index
    %282 = vector.load %arg12[%c1_131, %c0_132, %c0_133] : memref<2x1x32xf32, #tpu.memory_space<vmem>>, vector<1x1x32xf32>
    %283 = vector.shape_cast %282 : vector<1x1x32xf32> to vector<1x32xf32>
    %c1_134 = arith.constant 1 : index
    %c0_135 = arith.constant 0 : index
    %c0_136 = arith.constant 0 : index
    %284 = vector.load %arg13[%c1_134, %c0_135, %c0_136] : memref<2x1x32xf32, #tpu.memory_space<vmem>>, vector<1x1x32xf32>
    %285 = vector.shape_cast %284 : vector<1x1x32xf32> to vector<1x32xf32>
    %cst_137 = arith.constant dense<0.000000e+00> : vector<9xf32>
    %286 = vector.multi_reduction <add>, %281, %cst_137 [1] : vector<9x32xf32> to vector<9xf32>
    %287 = vector.shape_cast %286 : vector<9xf32> to vector<9x1xf32>
    %cst_138 = arith.constant 3.200000e+01 : f32
    %288 = vector.broadcast %cst_138 : f32 to vector<9x1xf32>
    %289 = arith.divf %287, %288 : vector<9x1xf32>
    %290 = vector.broadcast %289 : vector<9x1xf32> to vector<9x32xf32>
    %291 = arith.subf %281, %290 : vector<9x32xf32>
    %292 = arith.mulf %291, %291 : vector<9x32xf32>
    %cst_139 = arith.constant dense<0.000000e+00> : vector<9xf32>
    %293 = vector.multi_reduction <add>, %292, %cst_139 [1] : vector<9x32xf32> to vector<9xf32>
    %294 = vector.shape_cast %293 : vector<9xf32> to vector<9x1xf32>
    %cst_140 = arith.constant 3.200000e+01 : f32
    %295 = vector.broadcast %cst_140 : f32 to vector<9x1xf32>
    %296 = arith.divf %294, %295 : vector<9x1xf32>
    %297 = vector.broadcast %289 : vector<9x1xf32> to vector<9x32xf32>
    %298 = arith.subf %281, %297 : vector<9x32xf32>
    %cst_141 = arith.constant 9.99999974E-6 : f32
    %299 = vector.broadcast %cst_141 : f32 to vector<9x1xf32>
    %300 = arith.addf %296, %299 : vector<9x1xf32>
    %301 = math.rsqrt %300 : vector<9x1xf32>
    %302 = vector.broadcast %301 : vector<9x1xf32> to vector<9x32xf32>
    %303 = arith.mulf %298, %302 : vector<9x32xf32>
    %304 = vector.broadcast %283 : vector<1x32xf32> to vector<9x32xf32>
    %305 = arith.mulf %303, %304 : vector<9x32xf32>
    %306 = vector.broadcast %285 : vector<1x32xf32> to vector<9x32xf32>
    %307 = arith.addf %305, %306 : vector<9x32xf32>
    %c0_142 = arith.constant 0 : index
    %c0_143 = arith.constant 0 : index
    %308 = vector.load %arg14[%c0_142, %c0_143] : memref<3x32xf32, #tpu.memory_space<vmem>>, vector<3x32xf32>
    %c0_144 = arith.constant 0 : index
    %c0_145 = arith.constant 0 : index
    %309 = vector.load %arg15[%c0_144, %c0_145] : memref<3x32xf32, #tpu.memory_space<vmem>>, vector<3x32xf32>
    %310 = arith.addf %308, %309 : vector<3x32xf32>
    %311 = vector.extract_strided_slice %307 {offsets = [0, 0], sizes = [1, 32], strides = [1, 1]} : vector<9x32xf32> to vector<1x32xf32>
    %312 = vector.broadcast %311 : vector<1x32xf32> to vector<3x32xf32>
    %313 = arith.addf %312, %310 : vector<3x32xf32>
    %c0_146 = arith.constant 0 : index
    %c0_147 = arith.constant 0 : index
    %c0_148 = arith.constant 0 : index
    %314 = vector.load %arg16[%c0_146, %c0_147, %c0_148] : memref<1x3x32xf32, #tpu.memory_space<vmem>>, vector<1x3x32xf32>
    %315 = vector.shape_cast %314 : vector<1x3x32xf32> to vector<3x32xf32>
    %316 = vector.shape_cast %313 : vector<3x32xf32> to vector<1x3x32xf32>
    tpu.vector_store %arg16[%c0_146, %c0_147, %c0_148], %316 {strides = array<i32>} : memref<1x3x32xf32, #tpu.memory_space<vmem>>, vector<1x3x32xf32>,
    return
  }
  func.func @transform_0(%arg0: i32) -> (i32, i32, i32) {
    %c0_i32 = arith.constant 0 : i32
    %c0_i32_0 = arith.constant 0 : i32
    %c0_i32_1 = arith.constant 0 : i32
    return %arg0, %c0_i32, %c0_i32_0 : i32, i32, i32
  }
  func.func @transform_1(%arg0: i32) -> (i32, i32, i32) {
    %c0_i32 = arith.constant 0 : i32
    %c0_i32_0 = arith.constant 0 : i32
    %c0_i32_1 = arith.constant 0 : i32
    %c0_i32_2 = arith.constant 0 : i32
    return %c0_i32, %c0_i32_0, %c0_i32_1 : i32, i32, i32
  }
  func.func @transform_2(%arg0: i32) -> (i32, i32, i32) {
    %c0_i32 = arith.constant 0 : i32
    %c0_i32_0 = arith.constant 0 : i32
    %c0_i32_1 = arith.constant 0 : i32
    %c0_i32_2 = arith.constant 0 : i32
    return %c0_i32, %c0_i32_0, %c0_i32_1 : i32, i32, i32
  }
  func.func @transform_3(%arg0: i32) -> (i32, i32, i32) {
    %c0_i32 = arith.constant 0 : i32
    %c0_i32_0 = arith.constant 0 : i32
    %c0_i32_1 = arith.constant 0 : i32
    %c0_i32_2 = arith.constant 0 : i32
    return %c0_i32, %c0_i32_0, %c0_i32_1 : i32, i32, i32
  }
  func.func @transform_4(%arg0: i32) -> (i32, i32, i32) {
    %c0_i32 = arith.constant 0 : i32
    %c0_i32_0 = arith.constant 0 : i32
    %c0_i32_1 = arith.constant 0 : i32
    %c0_i32_2 = arith.constant 0 : i32
    return %c0_i32, %c0_i32_0, %c0_i32_1 : i32, i32, i32
  }
  func.func @transform_5(%arg0: i32) -> (i32, i32, i32) {
    %c0_i32 = arith.constant 0 : i32
    %c0_i32_0 = arith.constant 0 : i32
    %c0_i32_1 = arith.constant 0 : i32
    %c0_i32_2 = arith.constant 0 : i32
    return %c0_i32, %c0_i32_0, %c0_i32_1 : i32, i32, i32
  }
  func.func @transform_6(%arg0: i32) -> (i32, i32, i32) {
    %c0_i32 = arith.constant 0 : i32
    %c0_i32_0 = arith.constant 0 : i32
    %c0_i32_1 = arith.constant 0 : i32
    %c0_i32_2 = arith.constant 0 : i32
    return %c0_i32, %c0_i32_0, %c0_i32_1 : i32, i32, i32
  }
  func.func @transform_7(%arg0: i32) -> (i32, i32, i32) {
    %c0_i32 = arith.constant 0 : i32
    %c0_i32_0 = arith.constant 0 : i32
    %c0_i32_1 = arith.constant 0 : i32
    %c0_i32_2 = arith.constant 0 : i32
    return %c0_i32, %c0_i32_0, %c0_i32_1 : i32, i32, i32
  }
  func.func @transform_8(%arg0: i32) -> (i32, i32, i32) {
    %c0_i32 = arith.constant 0 : i32
    %c0_i32_0 = arith.constant 0 : i32
    %c0_i32_1 = arith.constant 0 : i32
    %c0_i32_2 = arith.constant 0 : i32
    return %c0_i32, %c0_i32_0, %c0_i32_1 : i32, i32, i32
  }
  func.func @transform_9(%arg0: i32) -> (i32, i32, i32) {
    %c0_i32 = arith.constant 0 : i32
    %c0_i32_0 = arith.constant 0 : i32
    %c0_i32_1 = arith.constant 0 : i32
    %c0_i32_2 = arith.constant 0 : i32
    return %c0_i32, %c0_i32_0, %c0_i32_1 : i32, i32, i32
  }
  func.func @transform_10(%arg0: i32) -> (i32, i32, i32) {
    %c0_i32 = arith.constant 0 : i32
    %c0_i32_0 = arith.constant 0 : i32
    %c0_i32_1 = arith.constant 0 : i32
    %c0_i32_2 = arith.constant 0 : i32
    return %c0_i32, %c0_i32_0, %c0_i32_1 : i32, i32, i32
  }
  func.func @transform_11(%arg0: i32) -> (i32, i32, i32) {
    %c0_i32 = arith.constant 0 : i32
    %c0_i32_0 = arith.constant 0 : i32
    %c0_i32_1 = arith.constant 0 : i32
    %c0_i32_2 = arith.constant 0 : i32
    return %c0_i32, %c0_i32_0, %c0_i32_1 : i32, i32, i32
  }
  func.func @transform_12(%arg0: i32) -> (i32, i32, i32) {
    %c0_i32 = arith.constant 0 : i32
    %c0_i32_0 = arith.constant 0 : i32
    %c0_i32_1 = arith.constant 0 : i32
    %c0_i32_2 = arith.constant 0 : i32
    return %c0_i32, %c0_i32_0, %c0_i32_1 : i32, i32, i32
  }
  func.func @transform_13(%arg0: i32) -> (i32, i32) {
    %c0_i32 = arith.constant 0 : i32
    %c0_i32_0 = arith.constant 0 : i32
    %c0_i32_1 = arith.constant 0 : i32
    return %c0_i32, %c0_i32_0 : i32, i32
  }
  func.func @transform_14(%arg0: i32) -> (i32, i32) {
    %c0_i32 = arith.constant 0 : i32
    %c0_i32_0 = arith.constant 0 : i32
    %c0_i32_1 = arith.constant 0 : i32
    return %c0_i32, %c0_i32_0 : i32, i32
  }
  func.func @transform_15(%arg0: i32) -> (i32, i32, i32) {
    %c0_i32 = arith.constant 0 : i32
    %c0_i32_0 = arith.constant 0 : i32
    %c0_i32_1 = arith.constant 0 : i32
    return %arg0, %c0_i32, %c0_i32_0 : i32, i32, i32
  }
}

</mosaic_0001>

<llo_original>
// kernel: tpu_custom_call.1
$region0: #{tpu_custom_call.1}
  #allocation0 [shape = 'u32[]', space=smem, size = 0x4, offset = 0x4, fixed_abs, tag = 'smem constant byte address 0x4 - core index']
  #allocation1 [shape = 'u32[72,128]{1,0:T(1,128)}', space=vmem, size = 0x9000, scoped, tag = 'internal scratch']
  %s0 = inlined_call_operand.vmem [shape: f32[2,9,32], index: 0, kind: input, shape index: {}]
  %s1 = inlined_call_operand.vmem [shape: f32[2,32,96], index: 1, kind: input, shape index: {}]
  %s2 = inlined_call_operand.vmem [shape: f32[2,1,96], index: 2, kind: input, shape index: {}]
  %s3 = inlined_call_operand.vmem [shape: f32[2,32,32], index: 3, kind: input, shape index: {}]
  %s4 = inlined_call_operand.vmem [shape: f32[2,1,32], index: 4, kind: input, shape index: {}]
  %s5 = inlined_call_operand.vmem [shape: f32[2,1,32], index: 5, kind: input, shape index: {}]
  %s6 = inlined_call_operand.vmem [shape: f32[2,1,32], index: 6, kind: input, shape index: {}]
  %s7 = inlined_call_operand.vmem [shape: f32[2,32,64], index: 7, kind: input, shape index: {}]
  %s8 = inlined_call_operand.vmem [shape: f32[2,1,64], index: 8, kind: input, shape index: {}]
  %s9 = inlined_call_operand.vmem [shape: f32[2,64,32], index: 9, kind: input, shape index: {}]
  %s10 = inlined_call_operand.vmem [shape: f32[2,1,32], index: 10, kind: input, shape index: {}]
  %s11 = inlined_call_operand.vmem [shape: f32[2,1,32], index: 11, kind: input, shape index: {}]
  %s12 = inlined_call_operand.vmem [shape: f32[2,1,32], index: 12, kind: input, shape index: {}]
  %s13 = inlined_call_operand.vmem [shape: f32[3,32], index: 13, kind: input, shape index: {}]
  %s14 = inlined_call_operand.vmem [shape: f32[3,32], index: 14, kind: input, shape index: {}]
  %s15 = inlined_call_operand.vmem [shape: f32[2,3,32], index: 15, kind: output, shape index: {}]
  %s16 = sld [smem:[#allocation0]]
  $region93: #{tpu_custom_call.1} parent=0
    _
  %s18 = ssub.s32 1, %s16
  %s19 = scalar_select 0, %s18, %s16
  loop: start=0, step=1, limit=4
  $region2: #{tpu_custom_call.1} parent=0 // loop_pre_header
    _
  $region3: #{tpu_custom_call.1} parent=0 // loop_header
    %s21 = sphi 0, %s25
    %p22 = scmp.ge.s32.totalorder %s21, 4
    %s31 = sphi 0, %s33
    %s34 = sphi 0, %s31
    %s35 = sphi 0, %s34
    %s51 = sphi 0, %s35
    %s55 = sphi 0, %s55
    %s57 = sphi 0, %s55
    %s58 = sphi 0, %s57
    %s72 = sphi 0, %s58
    %s76 = sphi 0, %s76
    %s78 = sphi 0, %s76
    %s79 = sphi 0, %s78
    %s93 = sphi 0, %s79
    %s97 = sphi 0, %s97
    %s99 = sphi 0, %s97
    %s100 = sphi 0, %s99
    %s114 = sphi 0, %s100
    %s118 = sphi 0, %s118
    %s120 = sphi 0, %s118
    %s121 = sphi 0, %s120
    %s135 = sphi 0, %s121
    %s139 = sphi 0, %s139
    %s141 = sphi 0, %s139
    %s142 = sphi 0, %s141
    %s156 = sphi 0, %s142
    %s160 = sphi 0, %s160
    %s162 = sphi 0, %s160
    %s163 = sphi 0, %s162
    %s177 = sphi 0, %s163
    %s181 = sphi 0, %s181
    %s183 = sphi 0, %s181
    %s184 = sphi 0, %s183
    %s198 = sphi 0, %s184
    %s202 = sphi 0, %s202
    %s204 = sphi 0, %s202
    %s205 = sphi 0, %s204
    %s219 = sphi 0, %s205
    %s223 = sphi 0, %s223
    %s225 = sphi 0, %s223
    %s226 = sphi 0, %s225
    %s240 = sphi 0, %s226
    %s244 = sphi 0, %s244
    %s246 = sphi 0, %s244
    %s247 = sphi 0, %s246
    %s261 = sphi 0, %s247
    %s265 = sphi 0, %s265
    %s267 = sphi 0, %s265
    %s268 = sphi 0, %s267
    %s282 = sphi 0, %s268
    %s286 = sphi 0, %s286
    %s288 = sphi 0, %s286
    %s289 = sphi 0, %s288
    %s303 = sphi 0, %s289
    %s307 = sphi 0, %s307
    %s309 = sphi 0, %s307
    %s310 = sphi 0, %s309
    %s324 = sphi 0, %s310
    %s328 = sphi 0, %s328
    %s330 = sphi 0, %s328
    %s331 = sphi 0, %s330
    %s345 = sphi 0, %s331
    %s351 = sphi 0, %s353
    %s354 = sphi 0, %s351
    %s355 = sphi 0, %s354
    %s371 = sphi 0, %s355
  $region4: #{tpu_custom_call.1} parent=0 // loop_header_branch
    %24 = sbr.rel (%p22) target = $region8
  $region5: #{tpu_custom_call.1} parent=0 // loop_body
    %s26 = ssub.s32 %s21, 1
    %s27 = ssub.s32 %s21, 2
    %s28 = sadd.s32 %s21, 1
    %s29 = ssub.s32 %s21, %s28
    %p30 = scmp.eq.s32.totalorder %s29, 0
    %s32 = sadd.s32 %s31, 1
    %s33 = scalar_select %p30, %s31, %s32
    %p36 = pneg %p30
    %p37 = scmp.eq.s32.totalorder %s21, 1
    %p38 = por %p36, %p37
    %p39 = scmp.ne.s32.totalorder %s31, %s34
    %p40 = scmp.eq.s32.totalorder %s21, 0
    %p41 = por %p39, %p40
    %p42 = scmp.ne.s32.totalorder %s31, %s34
    %p43 = scmp.eq.s32.totalorder %s26, 1
    %p44 = por %p42, %p43
    %p45 = scmp.ne.s32.totalorder %s34, %s35
    %p46 = scmp.eq.s32.totalorder %s26, 0
    %p47 = por %p45, %p46
    %p48 = scmp.ne.s32.totalorder %s34, %s35
    %p49 = scmp.eq.s32.totalorder %s27, 1
    %p50 = por %p48, %p49
    %p52 = scmp.ne.s32.totalorder %s35, %s51
    %p53 = scmp.eq.s32.totalorder %s27, 0
    %p54 = por %p52, %p53
    %s56 = sadd.s32 %s55, 1
    %p59 = scmp.eq.s32.totalorder %s21, 1
    %p60 = scmp.ne.s32.totalorder %s55, %s57
    %p61 = scmp.eq.s32.totalorder %s21, 0
    %p62 = por %p60, %p61
    %p63 = scmp.ne.s32.totalorder %s55, %s57
    %p64 = scmp.eq.s32.totalorder %s26, 1
    %p65 = por %p63, %p64
    %p66 = scmp.ne.s32.totalorder %s57, %s58
    %p67 = scmp.eq.s32.totalorder %s26, 0
    %p68 = por %p66, %p67
    %p69 = scmp.ne.s32.totalorder %s57, %s58
    %p70 = scmp.eq.s32.totalorder %s27, 1
    %p71 = por %p69, %p70
    %p73 = scmp.ne.s32.totalorder %s58, %s72
    %p74 = scmp.eq.s32.totalorder %s27, 0
    %p75 = por %p73, %p74
    %s77 = sadd.s32 %s76, 1
    %p80 = scmp.eq.s32.totalorder %s21, 1
    %p81 = scmp.ne.s32.totalorder %s76, %s78
    %p82 = scmp.eq.s32.totalorder %s21, 0
    %p83 = por %p81, %p82
    %p84 = scmp.ne.s32.totalorder %s76, %s78
    %p85 = scmp.eq.s32.totalorder %s26, 1
    %p86 = por %p84, %p85
    %p87 = scmp.ne.s32.totalorder %s78, %s79
    %p88 = scmp.eq.s32.totalorder %s26, 0
    %p89 = por %p87, %p88
    %p90 = scmp.ne.s32.totalorder %s78, %s79
    %p91 = scmp.eq.s32.totalorder %s27, 1
    %p92 = por %p90, %p91
    %p94 = scmp.ne.s32.totalorder %s79, %s93
    %p95 = scmp.eq.s32.totalorder %s27, 0
    %p96 = por %p94, %p95
    %s98 = sadd.s32 %s97, 1
    %p101 = scmp.eq.s32.totalorder %s21, 1
    %p102 = scmp.ne.s32.totalorder %s97, %s99
    %p103 = scmp.eq.s32.totalorder %s21, 0
    %p104 = por %p102, %p103
    %p105 = scmp.ne.s32.totalorder %s97, %s99
    %p106 = scmp.eq.s32.totalorder %s26, 1
    %p107 = por %p105, %p106
    %p108 = scmp.ne.s32.totalorder %s99, %s100
    %p109 = scmp.eq.s32.totalorder %s26, 0
    %p110 = por %p108, %p109
    %p111 = scmp.ne.s32.totalorder %s99, %s100
    %p112 = scmp.eq.s32.totalorder %s27, 1
    %p113 = por %p111, %p112
    %p115 = scmp.ne.s32.totalorder %s100, %s114
    %p116 = scmp.eq.s32.totalorder %s27, 0
    %p117 = por %p115, %p116
    %s119 = sadd.s32 %s118, 1
    %p122 = scmp.eq.s32.totalorder %s21, 1
    %p123 = scmp.ne.s32.totalorder %s118, %s120
    %p124 = scmp.eq.s32.totalorder %s21, 0
    %p125 = por %p123, %p124
    %p126 = scmp.ne.s32.totalorder %s118, %s120
    %p127 = scmp.eq.s32.totalorder %s26, 1
    %p128 = por %p126, %p127
    %p129 = scmp.ne.s32.totalorder %s120, %s121
    %p130 = scmp.eq.s32.totalorder %s26, 0
    %p131 = por %p129, %p130
    %p132 = scmp.ne.s32.totalorder %s120, %s121
    %p133 = scmp.eq.s32.totalorder %s27, 1
    %p134 = por %p132, %p133
    %p136 = scmp.ne.s32.totalorder %s121, %s135
    %p137 = scmp.eq.s32.totalorder %s27, 0
    %p138 = por %p136, %p137
    %s140 = sadd.s32 %s139, 1
    %p143 = scmp.eq.s32.totalorder %s21, 1
    %p144 = scmp.ne.s32.totalorder %s139, %s141
    %p145 = scmp.eq.s32.totalorder %s21, 0
    %p146 = por %p144, %p145
    %p147 = scmp.ne.s32.totalorder %s139, %s141
    %p148 = scmp.eq.s32.totalorder %s26, 1
    %p149 = por %p147, %p148
    %p150 = scmp.ne.s32.totalorder %s141, %s142
    %p151 = scmp.eq.s32.totalorder %s26, 0
    %p152 = por %p150, %p151
    %p153 = scmp.ne.s32.totalorder %s141, %s142
    %p154 = scmp.eq.s32.totalorder %s27, 1
    %p155 = por %p153, %p154
    %p157 = scmp.ne.s32.totalorder %s142, %s156
    %p158 = scmp.eq.s32.totalorder %s27, 0
    %p159 = por %p157, %p158
    %s161 = sadd.s32 %s160, 1
    %p164 = scmp.eq.s32.totalorder %s21, 1
    %p165 = scmp.ne.s32.totalorder %s160, %s162
    %p166 = scmp.eq.s32.totalorder %s21, 0
    %p167 = por %p165, %p166
    %p168 = scmp.ne.s32.totalorder %s160, %s162
    %p169 = scmp.eq.s32.totalorder %s26, 1
    %p170 = por %p168, %p169
    %p171 = scmp.ne.s32.totalorder %s162, %s163
    %p172 = scmp.eq.s32.totalorder %s26, 0
    %p173 = por %p171, %p172
    %p174 = scmp.ne.s32.totalorder %s162, %s163
    %p175 = scmp.eq.s32.totalorder %s27, 1
    %p176 = por %p174, %p175
    %p178 = scmp.ne.s32.totalorder %s163, %s177
    %p179 = scmp.eq.s32.totalorder %s27, 0
    %p180 = por %p178, %p179
    %s182 = sadd.s32 %s181, 1
    %p185 = scmp.eq.s32.totalorder %s21, 1
    %p186 = scmp.ne.s32.totalorder %s181, %s183
    %p187 = scmp.eq.s32.totalorder %s21, 0
    %p188 = por %p186, %p187
    %p189 = scmp.ne.s32.totalorder %s181, %s183
    %p190 = scmp.eq.s32.totalorder %s26, 1
    %p191 = por %p189, %p190
    %p192 = scmp.ne.s32.totalorder %s183, %s184
    %p193 = scmp.eq.s32.totalorder %s26, 0
    %p194 = por %p192, %p193
    %p195 = scmp.ne.s32.totalorder %s183, %s184
    %p196 = scmp.eq.s32.totalorder %s27, 1
    %p197 = por %p195, %p196
    %p199 = scmp.ne.s32.totalorder %s184, %s198
    %p200 = scmp.eq.s32.totalorder %s27, 0
    %p201 = por %p199, %p200
    %s203 = sadd.s32 %s202, 1
    %p206 = scmp.eq.s32.totalorder %s21, 1
    %p207 = scmp.ne.s32.totalorder %s202, %s204
    %p208 = scmp.eq.s32.totalorder %s21, 0
    %p209 = por %p207, %p208
    %p210 = scmp.ne.s32.totalorder %s202, %s204
    %p211 = scmp.eq.s32.totalorder %s26, 1
    %p212 = por %p210, %p211
    %p213 = scmp.ne.s32.totalorder %s204, %s205
    %p214 = scmp.eq.s32.totalorder %s26, 0
    %p215 = por %p213, %p214
    %p216 = scmp.ne.s32.totalorder %s204, %s205
    %p217 = scmp.eq.s32.totalorder %s27, 1
    %p218 = por %p216, %p217
    %p220 = scmp.ne.s32.totalorder %s205, %s219
    %p221 = scmp.eq.s32.totalorder %s27, 0
    %p222 = por %p220, %p221
    %s224 = sadd.s32 %s223, 1
    %p227 = scmp.eq.s32.totalorder %s21, 1
    %p228 = scmp.ne.s32.totalorder %s223, %s225
    %p229 = scmp.eq.s32.totalorder %s21, 0
    %p230 = por %p228, %p229
    %p231 = scmp.ne.s32.totalorder %s223, %s225
    %p232 = scmp.eq.s32.totalorder %s26, 1
    %p233 = por %p231, %p232
    %p234 = scmp.ne.s32.totalorder %s225, %s226
    %p235 = scmp.eq.s32.totalorder %s26, 0
    %p236 = por %p234, %p235
    %p237 = scmp.ne.s32.totalorder %s225, %s226
    %p238 = scmp.eq.s32.totalorder %s27, 1
    %p239 = por %p237, %p238
    %p241 = scmp.ne.s32.totalorder %s226, %s240
    %p242 = scmp.eq.s32.totalorder %s27, 0
    %p243 = por %p241, %p242
    %s245 = sadd.s32 %s244, 1
    %p248 = scmp.eq.s32.totalorder %s21, 1
    %p249 = scmp.ne.s32.totalorder %s244, %s246
    %p250 = scmp.eq.s32.totalorder %s21, 0
    %p251 = por %p249, %p250
    %p252 = scmp.ne.s32.totalorder %s244, %s246
    %p253 = scmp.eq.s32.totalorder %s26, 1
    %p254 = por %p252, %p253
    %p255 = scmp.ne.s32.totalorder %s246, %s247
    %p256 = scmp.eq.s32.totalorder %s26, 0
    %p257 = por %p255, %p256
    %p258 = scmp.ne.s32.totalorder %s246, %s247
    %p259 = scmp.eq.s32.totalorder %s27, 1
    %p260 = por %p258, %p259
    %p262 = scmp.ne.s32.totalorder %s247, %s261
    %p263 = scmp.eq.s32.totalorder %s27, 0
    %p264 = por %p262, %p263
    %s266 = sadd.s32 %s265, 1
    %p269 = scmp.eq.s32.totalorder %s21, 1
    %p270 = scmp.ne.s32.totalorder %s265, %s267
    %p271 = scmp.eq.s32.totalorder %s21, 0
    %p272 = por %p270, %p271
    %p273 = scmp.ne.s32.totalorder %s265, %s267
    %p274 = scmp.eq.s32.totalorder %s26, 1
    %p275 = por %p273, %p274
    %p276 = scmp.ne.s32.totalorder %s267, %s268
    %p277 = scmp.eq.s32.totalorder %s26, 0
    %p278 = por %p276, %p277
    %p279 = scmp.ne.s32.totalorder %s267, %s268
    %p280 = scmp.eq.s32.totalorder %s27, 1
    %p281 = por %p279, %p280
    %p283 = scmp.ne.s32.totalorder %s268, %s282
    %p284 = scmp.eq.s32.totalorder %s27, 0
    %p285 = por %p283, %p284
    %s287 = sadd.s32 %s286, 1
    %p290 = scmp.eq.s32.totalorder %s21, 1
    %p291 = scmp.ne.s32.totalorder %s286, %s288
    %p292 = scmp.eq.s32.totalorder %s21, 0
    %p293 = por %p291, %p292
    %p294 = scmp.ne.s32.totalorder %s286, %s288
    %p295 = scmp.eq.s32.totalorder %s26, 1
    %p296 = por %p294, %p295
    %p297 = scmp.ne.s32.totalorder %s288, %s289
    %p298 = scmp.eq.s32.totalorder %s26, 0
    %p299 = por %p297, %p298
    %p300 = scmp.ne.s32.totalorder %s288, %s289
    %p301 = scmp.eq.s32.totalorder %s27, 1
    %p302 = por %p300, %p301
    %p304 = scmp.ne.s32.totalorder %s289, %s303
    %p305 = scmp.eq.s32.totalorder %s27, 0
    %p306 = por %p304, %p305
    %s308 = sadd.s32 %s307, 1
    %p311 = scmp.eq.s32.totalorder %s21, 1
    %p312 = scmp.ne.s32.totalorder %s307, %s309
    %p313 = scmp.eq.s32.totalorder %s21, 0
    %p314 = por %p312, %p313
    %p315 = scmp.ne.s32.totalorder %s307, %s309
    %p316 = scmp.eq.s32.totalorder %s26, 1
    %p317 = por %p315, %p316
    %p318 = scmp.ne.s32.totalorder %s309, %s310
    %p319 = scmp.eq.s32.totalorder %s26, 0
    %p320 = por %p318, %p319
    %p321 = scmp.ne.s32.totalorder %s309, %s310
    %p322 = scmp.eq.s32.totalorder %s27, 1
    %p323 = por %p321, %p322
    %p325 = scmp.ne.s32.totalorder %s310, %s324
    %p326 = scmp.eq.s32.totalorder %s27, 0
    %p327 = por %p325, %p326
    %s329 = sadd.s32 %s328, 1
    %p332 = scmp.eq.s32.totalorder %s21, 1
    %p333 = scmp.ne.s32.totalorder %s328, %s330
    %p334 = scmp.eq.s32.totalorder %s21, 0
    %p335 = por %p333, %p334
    %p336 = scmp.ne.s32.totalorder %s328, %s330
    %p337 = scmp.eq.s32.totalorder %s26, 1
    %p338 = por %p336, %p337
    %p339 = scmp.ne.s32.totalorder %s330, %s331
    %p340 = scmp.eq.s32.totalorder %s26, 0
    %p341 = por %p339, %p340
    %p342 = scmp.ne.s32.totalorder %s330, %s331
    %p343 = scmp.eq.s32.totalorder %s27, 1
    %p344 = por %p342, %p343
    %p346 = scmp.ne.s32.totalorder %s331, %s345
    %p347 = scmp.eq.s32.totalorder %s27, 0
    %p348 = por %p346, %p347
    %s349 = ssub.s32 %s21, %s28
    %p350 = scmp.eq.s32.totalorder %s349, 0
    %s352 = sadd.s32 %s351, 1
    %s353 = scalar_select %p350, %s351, %s352
    %p356 = pneg %p350
    %p357 = scmp.eq.s32.totalorder %s21, 1
    %p358 = por %p356, %p357
    %p359 = scmp.ne.s32.totalorder %s351, %s354
    %p360 = scmp.eq.s32.totalorder %s21, 0
    %p361 = por %p359, %p360
    %p362 = scmp.ne.s32.totalorder %s351, %s354
    %p363 = scmp.eq.s32.totalorder %s26, 1
    %p364 = por %p362, %p363
    %p365 = scmp.ne.s32.totalorder %s354, %s355
    %p366 = scmp.eq.s32.totalorder %s26, 0
    %p367 = por %p365, %p366
    %p368 = scmp.ne.s32.totalorder %s354, %s355
    %p369 = scmp.eq.s32.totalorder %s27, 1
    %p370 = por %p368, %p369
    %p372 = scmp.ne.s32.totalorder %s355, %s371
    %p373 = scmp.eq.s32.totalorder %s27, 0
    %p374 = por %p372, %p373
    %p375 = scmp.le.s32.totalorder 1, %s21
    %p376 = scmp.lt.s32.totalorder %s21, 3
    %p377 = pnand %p375, %p376
    %p378 = pneg %p377
    // Predicated region
    $region9: #{tpu_custom_call.1} parent=5 // pred_check
      _
    $region10: #{tpu_custom_call.1} parent=5 // pred_check_branch
      %380 = sbr.rel (%p377) target = $region12
    $region11: #{tpu_custom_call.1} parent=5 // pred_region
      %s381 = ssub.s32 %s21, 1
      // Predicated region
      $region13: #{tpu_custom_call.1} parent=11 // pred_check
        %p382 = pneg %p68
      $region14: #{tpu_custom_call.1} parent=11 // pred_check_branch
        %384 = sbr.rel (%p382) target = $region16
      $region15: #{tpu_custom_call.1} parent=11 // pred_region
        _
      $region16: #{tpu_custom_call.1} parent=11 // pred_fallthru
        _
      // Predicated region
      $region17: #{tpu_custom_call.1} parent=11 // pred_check
        %p385 = pneg %p89
      $region18: #{tpu_custom_call.1} parent=11 // pred_check_branch
        %387 = sbr.rel (%p385) target = $region20
      $region19: #{tpu_custom_call.1} parent=11 // pred_region
        _
      $region20: #{tpu_custom_call.1} parent=11 // pred_fallthru
        _
      // Predicated region
      $region21: #{tpu_custom_call.1} parent=11 // pred_check
        %p388 = pneg %p110
      $region22: #{tpu_custom_call.1} parent=11 // pred_check_branch
        %390 = sbr.rel (%p388) target = $region24
      $region23: #{tpu_custom_call.1} parent=11 // pred_region
        _
      $region24: #{tpu_custom_call.1} parent=11 // pred_fallthru
        _
      // Predicated region
      $region25: #{tpu_custom_call.1} parent=11 // pred_check
        %p391 = pneg %p131
      $region26: #{tpu_custom_call.1} parent=11 // pred_check_branch
        %393 = sbr.rel (%p391) target = $region28
      $region27: #{tpu_custom_call.1} parent=11 // pred_region
        _
      $region28: #{tpu_custom_call.1} parent=11 // pred_fallthru
        _
      // Predicated region
      $region29: #{tpu_custom_call.1} parent=11 // pred_check
        %p394 = pneg %p152
      $region30: #{tpu_custom_call.1} parent=11 // pred_check_branch
        %396 = sbr.rel (%p394) target = $region32
      $region31: #{tpu_custom_call.1} parent=11 // pred_region
        _
      $region32: #{tpu_custom_call.1} parent=11 // pred_fallthru
        _
      // Predicated region
      $region33: #{tpu_custom_call.1} parent=11 // pred_check
        %p397 = pneg %p173
      $region34: #{tpu_custom_call.1} parent=11 // pred_check_branch
        %399 = sbr.rel (%p397) target = $region36
      $region35: #{tpu_custom_call.1} parent=11 // pred_region
        _
      $region36: #{tpu_custom_call.1} parent=11 // pred_fallthru
        _
      // Predicated region
      $region37: #{tpu_custom_call.1} parent=11 // pred_check
        %p400 = pneg %p194
      $region38: #{tpu_custom_call.1} parent=11 // pred_check_branch
        %402 = sbr.rel (%p400) target = $region40
      $region39: #{tpu_custom_call.1} parent=11 // pred_region
        _
      $region40: #{tpu_custom_call.1} parent=11 // pred_fallthru
        _
      // Predicated region
      $region41: #{tpu_custom_call.1} parent=11 // pred_check
        %p403 = pneg %p215
      $region42: #{tpu_custom_call.1} parent=11 // pred_check_branch
        %405 = sbr.rel (%p403) target = $region44
      $region43: #{tpu_custom_call.1} parent=11 // pred_region
        _
      $region44: #{tpu_custom_call.1} parent=11 // pred_fallthru
        _
      // Predicated region
      $region45: #{tpu_custom_call.1} parent=11 // pred_check
        %p406 = pneg %p236
      $region46: #{tpu_custom_call.1} parent=11 // pred_check_branch
        %408 = sbr.rel (%p406) target = $region48
      $region47: #{tpu_custom_call.1} parent=11 // pred_region
        _
      $region48: #{tpu_custom_call.1} parent=11 // pred_fallthru
        _
      // Predicated region
      $region49: #{tpu_custom_call.1} parent=11 // pred_check
        %p409 = pneg %p257
      $region50: #{tpu_custom_call.1} parent=11 // pred_check_branch
        %411 = sbr.rel (%p409) target = $region52
      $region51: #{tpu_custom_call.1} parent=11 // pred_region
        _
      $region52: #{tpu_custom_call.1} parent=11 // pred_fallthru
        _
      // Predicated region
      $region53: #{tpu_custom_call.1} parent=11 // pred_check
        %p412 = pneg %p278
      $region54: #{tpu_custom_call.1} parent=11 // pred_check_branch
        %414 = sbr.rel (%p412) target = $region56
      $region55: #{tpu_custom_call.1} parent=11 // pred_region
        _
      $region56: #{tpu_custom_call.1} parent=11 // pred_fallthru
        _
      // Predicated region
      $region57: #{tpu_custom_call.1} parent=11 // pred_check
        %p415 = pneg %p299
      $region58: #{tpu_custom_call.1} parent=11 // pred_check_branch
        %417 = sbr.rel (%p415) target = $region60
      $region59: #{tpu_custom_call.1} parent=11 // pred_region
        _
      $region60: #{tpu_custom_call.1} parent=11 // pred_fallthru
        _
      // Predicated region
      $region61: #{tpu_custom_call.1} parent=11 // pred_check
        %p418 = pneg %p320
      $region62: #{tpu_custom_call.1} parent=11 // pred_check_branch
        %420 = sbr.rel (%p418) target = $region64
      $region63: #{tpu_custom_call.1} parent=11 // pred_region
        _
      $region64: #{tpu_custom_call.1} parent=11 // pred_fallthru
        _
      // Predicated region
      $region65: #{tpu_custom_call.1} parent=11 // pred_check
        %p421 = pneg %p341
      $region66: #{tpu_custom_call.1} parent=11 // pred_check_branch
        %423 = sbr.rel (%p421) target = $region68
      $region67: #{tpu_custom_call.1} parent=11 // pred_region
        _
      $region68: #{tpu_custom_call.1} parent=11 // pred_fallthru
        _
    $region12: #{tpu_custom_call.1} parent=5 // pred_fallthru
      _
    %p424 = scmp.lt.s32.totalorder %s21, 2
    // Predicated region
    $region69: #{tpu_custom_call.1} parent=5 // pred_check
      %p425 = pneg %p424
    $region70: #{tpu_custom_call.1} parent=5 // pred_check_branch
      %427 = sbr.rel (%p425) target = $region72
    $region71: #{tpu_custom_call.1} parent=5 // pred_region
      // Predicated region
      $region73: #{tpu_custom_call.1} parent=71 // pred_check
        %p428 = pneg %p41
      $region74: #{tpu_custom_call.1} parent=71 // pred_check_branch
        %430 = sbr.rel (%p428) target = $region76
      $region75: #{tpu_custom_call.1} parent=71 // pred_region
        %p431 = scmp.lt.s32.totalorder %s21, 1
        %s432 = scalar_select %p431, %s21, 1
        %s433 = smul.addr %s432, 2
        %s434 = smul.addr %s433, 8
        %s435 = scalar_lea.vmem %s0, %s434
      $region76: #{tpu_custom_call.1} parent=71 // pred_fallthru
        _
    $region72: #{tpu_custom_call.1} parent=5 // pred_fallthru
      _
    %p436 = scmp.le.s32.totalorder 1, %s21
    %p437 = scmp.lt.s32.totalorder %s21, 3
    %p438 = pnand %p436, %p437
    %p439 = pneg %p438
    // Predicated region
    $region77: #{tpu_custom_call.1} parent=5 // pred_check
      _
    $region78: #{tpu_custom_call.1} parent=5 // pred_check_branch
      %441 = sbr.rel (%p438) target = $region80
    $region79: #{tpu_custom_call.1} parent=5 // pred_region
      %s442 = ssub.s32 %s21, 1
      %p443 = scmp.lt.s32.totalorder %s26, 1
      %s444 = scalar_select %p443, %s26, 1
      %s445 = smul.addr %s444, 2
      %s446 = smul.addr %s445, 8
      %s447 = scalar_lea.vmem %s0, %s446
      %p448 = pneg %p47
      %p449 = pneg %p44
      %p450 = pneg %p68
      %p451 = pneg %p65
      %p452 = pneg %p89
      %p453 = pneg %p86
      %p454 = pneg %p110
      %p455 = pneg %p107
      %p456 = pneg %p131
      %p457 = pneg %p128
      %p458 = pneg %p152
      %p459 = pneg %p149
      %p460 = pneg %p173
      %p461 = pneg %p170
      %p462 = pneg %p194
      %p463 = pneg %p191
      %p464 = pneg %p215
      %p465 = pneg %p212
      %p466 = pneg %p236
      %p467 = pneg %p233
      %p468 = pneg %p257
      %p469 = pneg %p254
      %p470 = pneg %p278
      %p471 = pneg %p275
      %p472 = pneg %p299
      %p473 = pneg %p296
      %p474 = pneg %p320
      %p475 = pneg %p317
      %p476 = pneg %p341
      %p477 = pneg %p338
      %p478 = pneg %p367
      %p479 = pneg %p364
      %p480 = scmp.lt.s32.totalorder %s26, 1
      %s481 = scalar_select %p480, %s26, 1
      %s482 = smul.addr %s481, 4
      %s483 = scalar_lea.vmem %s15, %s482
      %p484 = scmp.lt.s32.totalorder %s26, 1
      %s485 = scalar_select %p484, %s26, 1
      %s486 = smul.addr %s485, 2
      %s487 = smul.addr %s486, 8
      %s488 = scalar_lea.vmem %s0, %s487
      %p489 = scmp.lt.s32.totalorder %s26, 1
      %s490 = scalar_select %p489, %s26, 1
      %s491 = smul.addr %s490, 4
      %s492 = scalar_lea.vmem %s15, %s491
      %v493 = vld [vmem:[%s488] sm:$0xff]
      %v494 = vld [vmem:[%s488 + $0x8] sm:$0x1]
      %v495 = vld [vmem:[%s1] sm:$0xff]
      %v496 = vld [vmem:[%s1 + $0x8] sm:$0xff]
      %v497 = vld [vmem:[%s1 + $0x10] sm:$0xff]
      %v498 = vld [vmem:[%s1 + $0x18] sm:$0xff]
      %v499 = vld [vmem:[%s2] sm:$0x1]
      %v501 = vperm.slane %v499, 0
      %vm503 = vcmask 261120
      %v505 = vsel %vm503, %v493, 0
      %v508 = vsel %vm503, %v494, 0
      %510 = vmatpush.msra.mxu0 0.0
      %511 = vmatpush.msra.mxu0 0.0
      %512 = vmatpush.msra.mxu0 0.0
      %513 = vmatpush.msra.mxu0 0.0
      %514 = vmatpush.msra.mxu0 0.0
      %515 = vmatpush.msra.mxu0 0.0
      %516 = vmatpush.msra.mxu0 0.0
      %517 = vmatpush.msra.mxu0 0.0
      %518 = vmatpush.msra.mxu0 0.0
      %519 = vmatpush.msra.mxu0 0.0
      %520 = vmatpush.msra.mxu0 0.0
      %521 = vmatpush.msra.mxu0 0.0
      %v522 = vand.u32 %v498, 4294901760
      %523 = vmatpush.msra.mxu0 %v522
      %v524 = vand.u32 %v497, 4294901760
      %525 = vmatpush.msra.mxu0 %v524
      %v526 = vand.u32 %v496, 4294901760
      %527 = vmatpush.msra.mxu0 %v526
      %v528 = vand.u32 %v495, 4294901760
      %529 = vmatpush.msra.mxu0 %v528
      %v530 = vand.u32 %v505, 4294901760
      %v531 = vsub.f32 %v505, %v530
      %v532 = vand.u32 %v531, 4294901760
      %v533 = vsub.f32 %v531, %v532
      %v534 = vand.u32 %v533, 4294901760
      %535 = vmatmul.f32.gmra.mxu0 %v534
      %v536 = vpop.f32.mrf.mxu0
      %v537 = vadd.f32 %v501, %v536
      %v538 = vand.u32 %v508, 4294901760
      %v539 = vsub.f32 %v508, %v538
      %v540 = vand.u32 %v539, 4294901760
      %v541 = vsub.f32 %v539, %v540
      %v542 = vand.u32 %v541, 4294901760
      %543 = vmatmul.f32.gmra.mxu0 %v542
      %v544 = vpop.f32.mrf.mxu0
      %v545 = vadd.f32 %v501, %v544
      %546 = vdwg.mxu0
      %547 = vmatpush.msra.mxu0 0.0
      %548 = vmatpush.msra.mxu0 0.0
      %549 = vmatpush.msra.mxu0 0.0
      %550 = vmatpush.msra.mxu0 0.0
      %551 = vmatpush.msra.mxu0 0.0
      %552 = vmatpush.msra.mxu0 0.0
      %553 = vmatpush.msra.mxu0 0.0
      %554 = vmatpush.msra.mxu0 0.0
      %555 = vmatpush.msra.mxu0 0.0
      %556 = vmatpush.msra.mxu0 0.0
      %557 = vmatpush.msra.mxu0 0.0
      %558 = vmatpush.msra.mxu0 0.0
      %v559 = vand.u32 %v498, 4294901760
      %v560 = vsub.f32 %v498, %v559
      %v561 = vand.u32 %v560, 4294901760
      %v562 = vsub.f32 %v560, %v561
      %v563 = vand.u32 %v562, 4294901760
      %564 = vmatpush.msra.mxu0 %v563
      %v565 = vand.u32 %v497, 4294901760
      %v566 = vsub.f32 %v497, %v565
      %v567 = vand.u32 %v566, 4294901760
      %v568 = vsub.f32 %v566, %v567
      %v569 = vand.u32 %v568, 4294901760
      %570 = vmatpush.msra.mxu0 %v569
      %v571 = vand.u32 %v496, 4294901760
      %v572 = vsub.f32 %v496, %v571
      %v573 = vand.u32 %v572, 4294901760
      %v574 = vsub.f32 %v572, %v573
      %v575 = vand.u32 %v574, 4294901760
      %576 = vmatpush.msra.mxu0 %v575
      %v577 = vand.u32 %v495, 4294901760
      %v578 = vsub.f32 %v495, %v577
      %v579 = vand.u32 %v578, 4294901760
      %v580 = vsub.f32 %v578, %v579
      %v581 = vand.u32 %v580, 4294901760
      %582 = vmatpush.msra.mxu0 %v581
      %v583 = vand.u32 %v505, 4294901760
      %584 = vmatmul.f32.gmra.mxu0 %v583
      %v585 = vpop.f32.mrf.mxu0
      %v586 = vadd.f32 %v537, %v585
      %v587 = vand.u32 %v508, 4294901760
      %588 = vmatmul.f32.gmra.mxu0 %v587
      %v589 = vpop.f32.mrf.mxu0
      %v590 = vadd.f32 %v545, %v589
      %591 = vdwg.mxu0
      %592 = vmatpush.msra.mxu0 0.0
      %593 = vmatpush.msra.mxu0 0.0
      %594 = vmatpush.msra.mxu0 0.0
      %595 = vmatpush.msra.mxu0 0.0
      %596 = vmatpush.msra.mxu0 0.0
      %597 = vmatpush.msra.mxu0 0.0
      %598 = vmatpush.msra.mxu0 0.0
      %599 = vmatpush.msra.mxu0 0.0
      %600 = vmatpush.msra.mxu0 0.0
      %601 = vmatpush.msra.mxu0 0.0
      %602 = vmatpush.msra.mxu0 0.0
      %603 = vmatpush.msra.mxu0 0.0
      %v604 = vand.u32 %v498, 4294901760
      %v605 = vsub.f32 %v498, %v604
      %606 = vmatpush.msra.mxu0 %v605
      %v607 = vand.u32 %v497, 4294901760
      %v608 = vsub.f32 %v497, %v607
      %609 = vmatpush.msra.mxu0 %v608
      %v610 = vand.u32 %v496, 4294901760
      %v611 = vsub.f32 %v496, %v610
      %612 = vmatpush.msra.mxu0 %v611
      %v613 = vand.u32 %v495, 4294901760
      %v614 = vsub.f32 %v495, %v613
      %615 = vmatpush.msra.mxu0 %v614
      %v616 = vand.u32 %v505, 4294901760
      %v617 = vsub.f32 %v505, %v616
      %618 = vmatmul.f32.gmra.mxu0 %v617
      %v619 = vpop.f32.mrf.mxu0
      %v620 = vadd.f32 %v586, %v619
      %v621 = vand.u32 %v508, 4294901760
      %v622 = vsub.f32 %v508, %v621
      %623 = vmatmul.f32.gmra.mxu0 %v622
      %v624 = vpop.f32.mrf.mxu0
      %v625 = vadd.f32 %v590, %v624
      %626 = vdwg.mxu0
      %627 = vmatpush.msra.mxu0 0.0
      %628 = vmatpush.msra.mxu0 0.0
      %629 = vmatpush.msra.mxu0 0.0
      %630 = vmatpush.msra.mxu0 0.0
      %631 = vmatpush.msra.mxu0 0.0
      %632 = vmatpush.msra.mxu0 0.0
      %633 = vmatpush.msra.mxu0 0.0
      %634 = vmatpush.msra.mxu0 0.0
      %635 = vmatpush.msra.mxu0 0.0
      %636 = vmatpush.msra.mxu0 0.0
      %637 = vmatpush.msra.mxu0 0.0
      %638 = vmatpush.msra.mxu0 0.0
      %v639 = vand.u32 %v498, 4294901760
      %640 = vmatpush.msra.mxu0 %v639
      %v641 = vand.u32 %v497, 4294901760
      %642 = vmatpush.msra.mxu0 %v641
      %v643 = vand.u32 %v496, 4294901760
      %644 = vmatpush.msra.mxu0 %v643
      %v645 = vand.u32 %v495, 4294901760
      %646 = vmatpush.msra.mxu0 %v645
      %v647 = vand.u32 %v505, 4294901760
      %v648 = vsub.f32 %v505, %v647
      %v649 = vand.u32 %v648, 4294901760
      %650 = vmatmul.f32.gmra.mxu0 %v649
      %v651 = vpop.f32.mrf.mxu0
      %v652 = vadd.f32 %v620, %v651
      %v653 = vand.u32 %v508, 4294901760
      %v654 = vsub.f32 %v508, %v653
      %v655 = vand.u32 %v654, 4294901760
      %656 = vmatmul.f32.gmra.mxu0 %v655
      %v657 = vpop.f32.mrf.mxu0
      %v658 = vadd.f32 %v625, %v657
      %659 = vdwg.mxu0
      %660 = vmatpush.msra.mxu0 0.0
      %661 = vmatpush.msra.mxu0 0.0
      %662 = vmatpush.msra.mxu0 0.0
      %663 = vmatpush.msra.mxu0 0.0
      %664 = vmatpush.msra.mxu0 0.0
      %665 = vmatpush.msra.mxu0 0.0
      %666 = vmatpush.msra.mxu0 0.0
      %667 = vmatpush.msra.mxu0 0.0
      %668 = vmatpush.msra.mxu0 0.0
      %669 = vmatpush.msra.mxu0 0.0
      %670 = vmatpush.msra.mxu0 0.0
      %671 = vmatpush.msra.mxu0 0.0
      %v672 = vand.u32 %v498, 4294901760
      %v673 = vsub.f32 %v498, %v672
      %v674 = vand.u32 %v673, 4294901760
      %675 = vmatpush.msra.mxu0 %v674
      %v676 = vand.u32 %v497, 4294901760
      %v677 = vsub.f32 %v497, %v676
      %v678 = vand.u32 %v677, 4294901760
      %679 = vmatpush.msra.mxu0 %v678
      %v680 = vand.u32 %v496, 4294901760
      %v681 = vsub.f32 %v496, %v680
      %v682 = vand.u32 %v681, 4294901760
      %683 = vmatpush.msra.mxu0 %v682
      %v684 = vand.u32 %v495, 4294901760
      %v685 = vsub.f32 %v495, %v684
      %v686 = vand.u32 %v685, 4294901760
      %687 = vmatpush.msra.mxu0 %v686
      %v688 = vand.u32 %v505, 4294901760
      %689 = vmatmul.f32.gmra.mxu0 %v688
      %v690 = vpop.f32.mrf.mxu0
      %v691 = vadd.f32 %v652, %v690
      %v692 = vand.u32 %v508, 4294901760
      %693 = vmatmul.f32.gmra.mxu0 %v692
      %v694 = vpop.f32.mrf.mxu0
      %v695 = vadd.f32 %v658, %v694
      %696 = vdwg.mxu0
      %697 = vmatpush.msra.mxu0 0.0
      %698 = vmatpush.msra.mxu0 0.0
      %699 = vmatpush.msra.mxu0 0.0
      %700 = vmatpush.msra.mxu0 0.0
      %701 = vmatpush.msra.mxu0 0.0
      %702 = vmatpush.msra.mxu0 0.0
      %703 = vmatpush.msra.mxu0 0.0
      %704 = vmatpush.msra.mxu0 0.0
      %705 = vmatpush.msra.mxu0 0.0
      %706 = vmatpush.msra.mxu0 0.0
      %707 = vmatpush.msra.mxu0 0.0
      %708 = vmatpush.msra.mxu0 0.0
      %v709 = vand.u32 %v498, 4294901760
      %710 = vmatpush.msra.mxu0 %v709
      %v711 = vand.u32 %v497, 4294901760
      %712 = vmatpush.msra.mxu0 %v711
      %v713 = vand.u32 %v496, 4294901760
      %714 = vmatpush.msra.mxu0 %v713
      %v715 = vand.u32 %v495, 4294901760
      %716 = vmatpush.msra.mxu0 %v715
      %v717 = vand.u32 %v505, 4294901760
      %718 = vmatmul.f32.gmra.mxu0 %v717
      %v719 = vpop.f32.mrf.mxu0
      %v720 = vadd.f32 %v691, %v719
      %v721 = vand.u32 %v508, 4294901760
      %722 = vmatmul.f32.gmra.mxu0 %v721
      %v723 = vpop.f32.mrf.mxu0
      %v724 = vadd.f32 %v695, %v723
      %725 = vdwg.mxu0
      %728 = vrot.lane.b32.xlu0 %v720, 96
      %v729 = vpop.permute.xlu0 %728
      %730 = vrot.lane.b32.xlu0 %v724, 96
      %v731 = vpop.permute.xlu0 %730
      %vm732 = vcmask 64512
      %v733 = vsel %vm732, %v720, 0
      %v735 = vsel %vm732, %v724, 0
      %v737 = vsel %vm732, %v729, 0
      %v739 = vsel %vm732, %v731, 0
      %741 = vmatpush.xpose.msra.mxu0 0.0
      %742 = vmatpush.xpose.msra.mxu0 0.0
      %743 = vmatpush.xpose.msra.mxu0 0.0
      %744 = vmatpush.xpose.msra.mxu0 0.0
      %745 = vmatpush.xpose.msra.mxu0 0.0
      %746 = vmatpush.xpose.msra.mxu0 0.0
      %747 = vmatpush.xpose.msra.mxu0 0.0
      %748 = vmatpush.xpose.msra.mxu0 0.0
      %749 = vmatpush.xpose.msra.mxu0 0.0
      %750 = vmatpush.xpose.msra.mxu0 0.0
      %751 = vmatpush.xpose.msra.mxu0 0.0
      %752 = vmatpush.xpose.msra.mxu0 0.0
      %753 = vmatpush.xpose.msra.mxu0 0.0
      %754 = vmatpush.xpose.msra.mxu0 0.0
      %v755 = vand.u32 %v739, 4294901760
      %756 = vmatpush.xpose.msra.mxu0 %v755
      %v757 = vand.u32 %v737, 4294901760
      %758 = vmatpush.xpose.msra.mxu0 %v757
      %v759 = vand.u32 %v733, 4294901760
      %v760 = vsub.f32 %v733, %v759
      %v761 = vand.u32 %v760, 4294901760
      %v762 = vsub.f32 %v760, %v761
      %v763 = vand.u32 %v762, 4294901760
      %764 = vmatmul.f32.gmra.mxu0 %v763
      %v765 = vpop.f32.mrf.mxu0
      %v766 = vadd.f32 0.0, %v765
      %v767 = vand.u32 %v735, 4294901760
      %v768 = vsub.f32 %v735, %v767
      %v769 = vand.u32 %v768, 4294901760
      %v770 = vsub.f32 %v768, %v769
      %v771 = vand.u32 %v770, 4294901760
      %772 = vmatmul.f32.gmra.mxu0 %v771
      %v773 = vpop.f32.mrf.mxu0
      %v774 = vadd.f32 0.0, %v773
      %775 = vdwg.mxu0
      %776 = vmatpush.xpose.msra.mxu0 0.0
      %777 = vmatpush.xpose.msra.mxu0 0.0
      %778 = vmatpush.xpose.msra.mxu0 0.0
      %779 = vmatpush.xpose.msra.mxu0 0.0
      %780 = vmatpush.xpose.msra.mxu0 0.0
      %781 = vmatpush.xpose.msra.mxu0 0.0
      %782 = vmatpush.xpose.msra.mxu0 0.0
      %783 = vmatpush.xpose.msra.mxu0 0.0
      %784 = vmatpush.xpose.msra.mxu0 0.0
      %785 = vmatpush.xpose.msra.mxu0 0.0
      %786 = vmatpush.xpose.msra.mxu0 0.0
      %787 = vmatpush.xpose.msra.mxu0 0.0
      %788 = vmatpush.xpose.msra.mxu0 0.0
      %789 = vmatpush.xpose.msra.mxu0 0.0
      %v790 = vand.u32 %v739, 4294901760
      %v791 = vsub.f32 %v739, %v790
      %v792 = vand.u32 %v791, 4294901760
      %v793 = vsub.f32 %v791, %v792
      %v794 = vand.u32 %v793, 4294901760
      %795 = vmatpush.xpose.msra.mxu0 %v794
      %v796 = vand.u32 %v737, 4294901760
      %v797 = vsub.f32 %v737, %v796
      %v798 = vand.u32 %v797, 4294901760
      %v799 = vsub.f32 %v797, %v798
      %v800 = vand.u32 %v799, 4294901760
      %801 = vmatpush.xpose.msra.mxu0 %v800
      %v802 = vand.u32 %v733, 4294901760
      %803 = vmatmul.f32.gmra.mxu0 %v802
      %v804 = vpop.f32.mrf.mxu0
      %v805 = vadd.f32 %v766, %v804
      %v806 = vand.u32 %v735, 4294901760
      %807 = vmatmul.f32.gmra.mxu0 %v806
      %v808 = vpop.f32.mrf.mxu0
      %v809 = vadd.f32 %v774, %v808
      %810 = vdwg.mxu0
      %811 = vmatpush.xpose.msra.mxu0 0.0
      %812 = vmatpush.xpose.msra.mxu0 0.0
      %813 = vmatpush.xpose.msra.mxu0 0.0
      %814 = vmatpush.xpose.msra.mxu0 0.0
      %815 = vmatpush.xpose.msra.mxu0 0.0
      %816 = vmatpush.xpose.msra.mxu0 0.0
      %817 = vmatpush.xpose.msra.mxu0 0.0
      %818 = vmatpush.xpose.msra.mxu0 0.0
      %819 = vmatpush.xpose.msra.mxu0 0.0
      %820 = vmatpush.xpose.msra.mxu0 0.0
      %821 = vmatpush.xpose.msra.mxu0 0.0
      %822 = vmatpush.xpose.msra.mxu0 0.0
      %823 = vmatpush.xpose.msra.mxu0 0.0
      %824 = vmatpush.xpose.msra.mxu0 0.0
      %v825 = vand.u32 %v739, 4294901760
      %v826 = vsub.f32 %v739, %v825
      %827 = vmatpush.xpose.msra.mxu0 %v826
      %v828 = vand.u32 %v737, 4294901760
      %v829 = vsub.f32 %v737, %v828
      %830 = vmatpush.xpose.msra.mxu0 %v829
      %v831 = vand.u32 %v733, 4294901760
      %v832 = vsub.f32 %v733, %v831
      %833 = vmatmul.f32.gmra.mxu0 %v832
      %v834 = vpop.f32.mrf.mxu0
      %v835 = vadd.f32 %v805, %v834
      %v836 = vand.u32 %v735, 4294901760
      %v837 = vsub.f32 %v735, %v836
      %838 = vmatmul.f32.gmra.mxu0 %v837
      %v839 = vpop.f32.mrf.mxu0
      %v840 = vadd.f32 %v809, %v839
      %841 = vdwg.mxu0
      %842 = vmatpush.xpose.msra.mxu0 0.0
      %843 = vmatpush.xpose.msra.mxu0 0.0
      %844 = vmatpush.xpose.msra.mxu0 0.0
      %845 = vmatpush.xpose.msra.mxu0 0.0
      %846 = vmatpush.xpose.msra.mxu0 0.0
      %847 = vmatpush.xpose.msra.mxu0 0.0
      %848 = vmatpush.xpose.msra.mxu0 0.0
      %849 = vmatpush.xpose.msra.mxu0 0.0
      %850 = vmatpush.xpose.msra.mxu0 0.0
      %851 = vmatpush.xpose.msra.mxu0 0.0
      %852 = vmatpush.xpose.msra.mxu0 0.0
      %853 = vmatpush.xpose.msra.mxu0 0.0
      %854 = vmatpush.xpose.msra.mxu0 0.0
      %855 = vmatpush.xpose.msra.mxu0 0.0
      %v856 = vand.u32 %v739, 4294901760
      %857 = vmatpush.xpose.msra.mxu0 %v856
      %v858 = vand.u32 %v737, 4294901760
      %859 = vmatpush.xpose.msra.mxu0 %v858
      %v860 = vand.u32 %v733, 4294901760
      %v861 = vsub.f32 %v733, %v860
      %v862 = vand.u32 %v861, 4294901760
      %863 = vmatmul.f32.gmra.mxu0 %v862
      %v864 = vpop.f32.mrf.mxu0
      %v865 = vadd.f32 %v835, %v864
      %v866 = vand.u32 %v735, 4294901760
      %v867 = vsub.f32 %v735, %v866
      %v868 = vand.u32 %v867, 4294901760
      %869 = vmatmul.f32.gmra.mxu0 %v868
      %v870 = vpop.f32.mrf.mxu0
      %v871 = vadd.f32 %v840, %v870
      %872 = vdwg.mxu0
      %873 = vmatpush.xpose.msra.mxu0 0.0
      %874 = vmatpush.xpose.msra.mxu0 0.0
      %875 = vmatpush.xpose.msra.mxu0 0.0
      %876 = vmatpush.xpose.msra.mxu0 0.0
      %877 = vmatpush.xpose.msra.mxu0 0.0
      %878 = vmatpush.xpose.msra.mxu0 0.0
      %879 = vmatpush.xpose.msra.mxu0 0.0
      %880 = vmatpush.xpose.msra.mxu0 0.0
      %881 = vmatpush.xpose.msra.mxu0 0.0
      %882 = vmatpush.xpose.msra.mxu0 0.0
      %883 = vmatpush.xpose.msra.mxu0 0.0
      %884 = vmatpush.xpose.msra.mxu0 0.0
      %885 = vmatpush.xpose.msra.mxu0 0.0
      %886 = vmatpush.xpose.msra.mxu0 0.0
      %v887 = vand.u32 %v739, 4294901760
      %v888 = vsub.f32 %v739, %v887
      %v889 = vand.u32 %v888, 4294901760
      %890 = vmatpush.xpose.msra.mxu0 %v889
      %v891 = vand.u32 %v737, 4294901760
      %v892 = vsub.f32 %v737, %v891
      %v893 = vand.u32 %v892, 4294901760
      %894 = vmatpush.xpose.msra.mxu0 %v893
      %v895 = vand.u32 %v733, 4294901760
      %896 = vmatmul.f32.gmra.mxu0 %v895
      %v897 = vpop.f32.mrf.mxu0
      %v898 = vadd.f32 %v865, %v897
      %v899 = vand.u32 %v735, 4294901760
      %900 = vmatmul.f32.gmra.mxu0 %v899
      %v901 = vpop.f32.mrf.mxu0
      %v902 = vadd.f32 %v871, %v901
      %903 = vdwg.mxu0
      %904 = vmatpush.xpose.msra.mxu0 0.0
      %905 = vmatpush.xpose.msra.mxu0 0.0
      %906 = vmatpush.xpose.msra.mxu0 0.0
      %907 = vmatpush.xpose.msra.mxu0 0.0
      %908 = vmatpush.xpose.msra.mxu0 0.0
      %909 = vmatpush.xpose.msra.mxu0 0.0
      %910 = vmatpush.xpose.msra.mxu0 0.0
      %911 = vmatpush.xpose.msra.mxu0 0.0
      %912 = vmatpush.xpose.msra.mxu0 0.0
      %913 = vmatpush.xpose.msra.mxu0 0.0
      %914 = vmatpush.xpose.msra.mxu0 0.0
      %915 = vmatpush.xpose.msra.mxu0 0.0
      %916 = vmatpush.xpose.msra.mxu0 0.0
      %917 = vmatpush.xpose.msra.mxu0 0.0
      %v918 = vand.u32 %v739, 4294901760
      %919 = vmatpush.xpose.msra.mxu0 %v918
      %v920 = vand.u32 %v737, 4294901760
      %921 = vmatpush.xpose.msra.mxu0 %v920
      %v922 = vand.u32 %v733, 4294901760
      %923 = vmatmul.f32.gmra.mxu0 %v922
      %v924 = vpop.f32.mrf.mxu0
      %v925 = vadd.f32 %v898, %v924
      %v926 = vand.u32 %v735, 4294901760
      %927 = vmatmul.f32.gmra.mxu0 %v926
      %v928 = vpop.f32.mrf.mxu0
      %v929 = vadd.f32 %v902, %v928
      %930 = vdwg.mxu0
      %v931 = vmul.f32 %v925, 0.35355338
      %v932 = vmul.f32 %v929, 0.35355338
      %vm933 = vcmask 72704
      %v934 = vsel %vm933, %v931, -inf
      %935 = vmax.xlane.f32.xlu0 %v934
      %v936 = vpop.xlane.xlu0 %935
      %vm937 = vcmask 65536
      %v938 = vsel %vm937, %v932, -inf
      %939 = vmax.xlane.f32.xlu0 %v938
      %v940 = vpop.xlane.xlu0 %939
      %v941 = vsub.f32 %v931, %v936
      %v942 = vsub.f32 %v932, %v940
      %v943 = vmul.f32 %v941, 1.442695
      %v944 = vpow.pop %v943
      %v945 = vmul.f32 %v942, 1.442695
      %v946 = vpow.pop %v945
      %v947 = vsel %vm933, %v944, 0.0
      %948 = vadd.xlane.f32.xlu0 %v947
      %v949 = vpop.xlane.xlu0 %948
      %v950 = vsel %vm937, %v946, 0.0
      %951 = vadd.xlane.f32.xlu0 %v950
      %v952 = vpop.xlane.xlu0 %951
      %v953 = vrcp.pop %v949
      %v954 = vmul.f32 %v949, %v953
      %v955 = vsub.f32 1.0, %v954
      %v956 = vmul.f32 %v953, %v955
      %v957 = vadd.f32 %v953, %v956
      %vm958 = vweird.f32 %v949
      %vm959 = vweird.f32 %v953
      %vm960 = vmor %vm958, %vm959
      %v961 = vsel %vm960, %v953, %v957
      %v962 = vand.u32 2147483647, %v949
      %vm963 = vcmp.eq.f32.partialorder %v962, 8.507059e+37
      %v964 = vand.u32 %v949, 2147483648
      %v965 = vor.u32 1.1754944e-38, %v964
      %v966 = vsel %vm963, %v965, %v961
      %v967 = vmul.f32 %v944, %v966
      %v968 = vrcp.pop %v952
      %v969 = vmul.f32 %v952, %v968
      %v970 = vsub.f32 1.0, %v969
      %v971 = vmul.f32 %v968, %v970
      %v972 = vadd.f32 %v968, %v971
      %vm973 = vweird.f32 %v952
      %vm974 = vweird.f32 %v968
      %vm975 = vmor %vm973, %vm974
      %v976 = vsel %vm975, %v968, %v972
      %v977 = vand.u32 2147483647, %v952
      %vm978 = vcmp.eq.f32.partialorder %v977, 8.507059e+37
      %v979 = vand.u32 %v952, 2147483648
      %v980 = vor.u32 1.1754944e-38, %v979
      %v981 = vsel %vm978, %v980, %v976
      %v982 = vmul.f32 %v946, %v981
      %983 = vrot.lane.b32.xlu0 %v720, 64
      %v984 = vpop.permute.xlu0 %983
      %985 = vrot.lane.b32.xlu0 %v724, 64
      %v986 = vpop.permute.xlu0 %985
      %v989 = vsel %vm933, %v967, 0
      %v992 = vsel %vm933, %v982, 0
      %vm994 = vcmask 1040384
      %v995 = vsel %vm994, %v986, 0
      %997 = vmatpush.msra.mxu0 0.0
      %998 = vmatpush.msra.mxu0 0.0
      %999 = vmatpush.msra.mxu0 0.0
      %1000 = vmatpush.msra.mxu0 0.0
      %1001 = vmatpush.msra.mxu0 0.0
      %1002 = vmatpush.msra.mxu0 0.0
      %1003 = vmatpush.msra.mxu0 0.0
      %1004 = vmatpush.msra.mxu0 0.0
      %1005 = vmatpush.msra.mxu0 0.0
      %1006 = vmatpush.msra.mxu0 0.0
      %1007 = vmatpush.msra.mxu0 0.0
      %1008 = vmatpush.msra.mxu0 0.0
      %1009 = vmatpush.msra.mxu0 0.0
      %1010 = vmatpush.msra.mxu0 0.0
      %v1011 = vand.u32 %v995, 4294901760
      %1012 = vmatpush.msra.mxu0 %v1011
      %v1013 = vand.u32 %v984, 4294901760
      %1014 = vmatpush.msra.mxu0 %v1013
      %v1015 = vand.u32 %v989, 4294901760
      %v1016 = vsub.f32 %v989, %v1015
      %v1017 = vand.u32 %v1016, 4294901760
      %v1018 = vsub.f32 %v1016, %v1017
      %v1019 = vand.u32 %v1018, 4294901760
      %1020 = vmatmul.f32.gmra.mxu0 %v1019
      %v1021 = vpop.f32.mrf.mxu0
      %v1022 = vadd.f32 0.0, %v1021
      %v1023 = vand.u32 %v992, 4294901760
      %v1024 = vsub.f32 %v992, %v1023
      %v1025 = vand.u32 %v1024, 4294901760
      %v1026 = vsub.f32 %v1024, %v1025
      %v1027 = vand.u32 %v1026, 4294901760
      %1028 = vmatmul.f32.gmra.mxu0 %v1027
      %v1029 = vpop.f32.mrf.mxu0
      %v1030 = vadd.f32 0.0, %v1029
      %1031 = vdwg.mxu0
      %1032 = vmatpush.msra.mxu0 0.0
      %1033 = vmatpush.msra.mxu0 0.0
      %1034 = vmatpush.msra.mxu0 0.0
      %1035 = vmatpush.msra.mxu0 0.0
      %1036 = vmatpush.msra.mxu0 0.0
      %1037 = vmatpush.msra.mxu0 0.0
      %1038 = vmatpush.msra.mxu0 0.0
      %1039 = vmatpush.msra.mxu0 0.0
      %1040 = vmatpush.msra.mxu0 0.0
      %1041 = vmatpush.msra.mxu0 0.0
      %1042 = vmatpush.msra.mxu0 0.0
      %1043 = vmatpush.msra.mxu0 0.0
      %1044 = vmatpush.msra.mxu0 0.0
      %1045 = vmatpush.msra.mxu0 0.0
      %v1046 = vand.u32 %v995, 4294901760
      %v1047 = vsub.f32 %v995, %v1046
      %v1048 = vand.u32 %v1047, 4294901760
      %v1049 = vsub.f32 %v1047, %v1048
      %v1050 = vand.u32 %v1049, 4294901760
      %1051 = vmatpush.msra.mxu0 %v1050
      %v1052 = vand.u32 %v984, 4294901760
      %v1053 = vsub.f32 %v984, %v1052
      %v1054 = vand.u32 %v1053, 4294901760
      %v1055 = vsub.f32 %v1053, %v1054
      %v1056 = vand.u32 %v1055, 4294901760
      %1057 = vmatpush.msra.mxu0 %v1056
      %v1058 = vand.u32 %v989, 4294901760
      %1059 = vmatmul.f32.gmra.mxu0 %v1058
      %v1060 = vpop.f32.mrf.mxu0
      %v1061 = vadd.f32 %v1022, %v1060
      %v1062 = vand.u32 %v992, 4294901760
      %1063 = vmatmul.f32.gmra.mxu0 %v1062
      %v1064 = vpop.f32.mrf.mxu0
      %v1065 = vadd.f32 %v1030, %v1064
      %1066 = vdwg.mxu0
      %1067 = vmatpush.msra.mxu0 0.0
      %1068 = vmatpush.msra.mxu0 0.0
      %1069 = vmatpush.msra.mxu0 0.0
      %1070 = vmatpush.msra.mxu0 0.0
      %1071 = vmatpush.msra.mxu0 0.0
      %1072 = vmatpush.msra.mxu0 0.0
      %1073 = vmatpush.msra.mxu0 0.0
      %1074 = vmatpush.msra.mxu0 0.0
      %1075 = vmatpush.msra.mxu0 0.0
      %1076 = vmatpush.msra.mxu0 0.0
      %1077 = vmatpush.msra.mxu0 0.0
      %1078 = vmatpush.msra.mxu0 0.0
      %1079 = vmatpush.msra.mxu0 0.0
      %1080 = vmatpush.msra.mxu0 0.0
      %v1081 = vand.u32 %v995, 4294901760
      %v1082 = vsub.f32 %v995, %v1081
      %1083 = vmatpush.msra.mxu0 %v1082
      %v1084 = vand.u32 %v984, 4294901760
      %v1085 = vsub.f32 %v984, %v1084
      %1086 = vmatpush.msra.mxu0 %v1085
      %v1087 = vand.u32 %v989, 4294901760
      %v1088 = vsub.f32 %v989, %v1087
      %1089 = vmatmul.f32.gmra.mxu0 %v1088
      %v1090 = vpop.f32.mrf.mxu0
      %v1091 = vadd.f32 %v1061, %v1090
      %v1092 = vand.u32 %v992, 4294901760
      %v1093 = vsub.f32 %v992, %v1092
      %1094 = vmatmul.f32.gmra.mxu0 %v1093
      %v1095 = vpop.f32.mrf.mxu0
      %v1096 = vadd.f32 %v1065, %v1095
      %1097 = vdwg.mxu0
      %1098 = vmatpush.msra.mxu0 0.0
      %1099 = vmatpush.msra.mxu0 0.0
      %1100 = vmatpush.msra.mxu0 0.0
      %1101 = vmatpush.msra.mxu0 0.0
      %1102 = vmatpush.msra.mxu0 0.0
      %1103 = vmatpush.msra.mxu0 0.0
      %1104 = vmatpush.msra.mxu0 0.0
      %1105 = vmatpush.msra.mxu0 0.0
      %1106 = vmatpush.msra.mxu0 0.0
      %1107 = vmatpush.msra.mxu0 0.0
      %1108 = vmatpush.msra.mxu0 0.0
      %1109 = vmatpush.msra.mxu0 0.0
      %1110 = vmatpush.msra.mxu0 0.0
      %1111 = vmatpush.msra.mxu0 0.0
      %v1112 = vand.u32 %v995, 4294901760
      %1113 = vmatpush.msra.mxu0 %v1112
      %v1114 = vand.u32 %v984, 4294901760
      %1115 = vmatpush.msra.mxu0 %v1114
      %v1116 = vand.u32 %v989, 4294901760
      %v1117 = vsub.f32 %v989, %v1116
      %v1118 = vand.u32 %v1117, 4294901760
      %1119 = vmatmul.f32.gmra.mxu0 %v1118
      %v1120 = vpop.f32.mrf.mxu0
      %v1121 = vadd.f32 %v1091, %v1120
      %v1122 = vand.u32 %v992, 4294901760
      %v1123 = vsub.f32 %v992, %v1122
      %v1124 = vand.u32 %v1123, 4294901760
      %1125 = vmatmul.f32.gmra.mxu0 %v1124
      %v1126 = vpop.f32.mrf.mxu0
      %v1127 = vadd.f32 %v1096, %v1126
      %1128 = vdwg.mxu0
      %1129 = vmatpush.msra.mxu0 0.0
      %1130 = vmatpush.msra.mxu0 0.0
      %1131 = vmatpush.msra.mxu0 0.0
      %1132 = vmatpush.msra.mxu0 0.0
      %1133 = vmatpush.msra.mxu0 0.0
      %1134 = vmatpush.msra.mxu0 0.0
      %1135 = vmatpush.msra.mxu0 0.0
      %1136 = vmatpush.msra.mxu0 0.0
      %1137 = vmatpush.msra.mxu0 0.0
      %1138 = vmatpush.msra.mxu0 0.0
      %1139 = vmatpush.msra.mxu0 0.0
      %1140 = vmatpush.msra.mxu0 0.0
      %1141 = vmatpush.msra.mxu0 0.0
      %1142 = vmatpush.msra.mxu0 0.0
      %v1143 = vand.u32 %v995, 4294901760
      %v1144 = vsub.f32 %v995, %v1143
      %v1145 = vand.u32 %v1144, 4294901760
      %1146 = vmatpush.msra.mxu0 %v1145
      %v1147 = vand.u32 %v984, 4294901760
      %v1148 = vsub.f32 %v984, %v1147
      %v1149 = vand.u32 %v1148, 4294901760
      %1150 = vmatpush.msra.mxu0 %v1149
      %v1151 = vand.u32 %v989, 4294901760
      %1152 = vmatmul.f32.gmra.mxu0 %v1151
      %v1153 = vpop.f32.mrf.mxu0
      %v1154 = vadd.f32 %v1121, %v1153
      %v1155 = vand.u32 %v992, 4294901760
      %1156 = vmatmul.f32.gmra.mxu0 %v1155
      %v1157 = vpop.f32.mrf.mxu0
      %v1158 = vadd.f32 %v1127, %v1157
      %1159 = vdwg.mxu0
      %1160 = vmatpush.msra.mxu0 0.0
      %1161 = vmatpush.msra.mxu0 0.0
      %1162 = vmatpush.msra.mxu0 0.0
      %1163 = vmatpush.msra.mxu0 0.0
      %1164 = vmatpush.msra.mxu0 0.0
      %1165 = vmatpush.msra.mxu0 0.0
      %1166 = vmatpush.msra.mxu0 0.0
      %1167 = vmatpush.msra.mxu0 0.0
      %1168 = vmatpush.msra.mxu0 0.0
      %1169 = vmatpush.msra.mxu0 0.0
      %1170 = vmatpush.msra.mxu0 0.0
      %1171 = vmatpush.msra.mxu0 0.0
      %1172 = vmatpush.msra.mxu0 0.0
      %1173 = vmatpush.msra.mxu0 0.0
      %v1174 = vand.u32 %v995, 4294901760
      %1175 = vmatpush.msra.mxu0 %v1174
      %v1176 = vand.u32 %v984, 4294901760
      %1177 = vmatpush.msra.mxu0 %v1176
      %v1178 = vand.u32 %v989, 4294901760
      %1179 = vmatmul.f32.gmra.mxu0 %v1178
      %v1180 = vpop.f32.mrf.mxu0
      %v1181 = vadd.f32 %v1154, %v1180
      %v1182 = vand.u32 %v992, 4294901760
      %1183 = vmatmul.f32.gmra.mxu0 %v1182
      %v1184 = vpop.f32.mrf.mxu0
      %v1185 = vadd.f32 %v1158, %v1184
      %1186 = vdwg.mxu0
      %1187 = vrot.lane.b32.xlu0 %v720, 120
      %v1188 = vpop.permute.xlu0 %1187
      %1189 = vrot.lane.b32.xlu0 %v724, 120
      %v1190 = vpop.permute.xlu0 %1189
      %1191 = vrot.lane.b32.xlu0 %v720, 88
      %v1192 = vpop.permute.xlu0 %1191
      %1193 = vrot.lane.b32.xlu0 %v724, 88
      %v1194 = vpop.permute.xlu0 %1193
      %v1195 = vsel %vm732, %v1188, 0
      %v1197 = vsel %vm732, %v1190, 0
      %v1199 = vsel %vm732, %v1192, 0
      %v1201 = vsel %vm732, %v1194, 0
      %1203 = vmatpush.xpose.msra.mxu0 0.0
      %1204 = vmatpush.xpose.msra.mxu0 0.0
      %1205 = vmatpush.xpose.msra.mxu0 0.0
      %1206 = vmatpush.xpose.msra.mxu0 0.0
      %1207 = vmatpush.xpose.msra.mxu0 0.0
      %1208 = vmatpush.xpose.msra.mxu0 0.0
      %1209 = vmatpush.xpose.msra.mxu0 0.0
      %1210 = vmatpush.xpose.msra.mxu0 0.0
      %1211 = vmatpush.xpose.msra.mxu0 0.0
      %1212 = vmatpush.xpose.msra.mxu0 0.0
      %1213 = vmatpush.xpose.msra.mxu0 0.0
      %1214 = vmatpush.xpose.msra.mxu0 0.0
      %1215 = vmatpush.xpose.msra.mxu0 0.0
      %1216 = vmatpush.xpose.msra.mxu0 0.0
      %v1217 = vand.u32 %v1201, 4294901760
      %1218 = vmatpush.xpose.msra.mxu0 %v1217
      %v1219 = vand.u32 %v1199, 4294901760
      %1220 = vmatpush.xpose.msra.mxu0 %v1219
      %v1221 = vand.u32 %v1195, 4294901760
      %v1222 = vsub.f32 %v1195, %v1221
      %v1223 = vand.u32 %v1222, 4294901760
      %v1224 = vsub.f32 %v1222, %v1223
      %v1225 = vand.u32 %v1224, 4294901760
      %1226 = vmatmul.f32.gmra.mxu0 %v1225
      %v1227 = vpop.f32.mrf.mxu0
      %v1228 = vadd.f32 0.0, %v1227
      %v1229 = vand.u32 %v1197, 4294901760
      %v1230 = vsub.f32 %v1197, %v1229
      %v1231 = vand.u32 %v1230, 4294901760
      %v1232 = vsub.f32 %v1230, %v1231
      %v1233 = vand.u32 %v1232, 4294901760
      %1234 = vmatmul.f32.gmra.mxu0 %v1233
      %v1235 = vpop.f32.mrf.mxu0
      %v1236 = vadd.f32 0.0, %v1235
      %1237 = vdwg.mxu0
      %1238 = vmatpush.xpose.msra.mxu0 0.0
      %1239 = vmatpush.xpose.msra.mxu0 0.0
      %1240 = vmatpush.xpose.msra.mxu0 0.0
      %1241 = vmatpush.xpose.msra.mxu0 0.0
      %1242 = vmatpush.xpose.msra.mxu0 0.0
      %1243 = vmatpush.xpose.msra.mxu0 0.0
      %1244 = vmatpush.xpose.msra.mxu0 0.0
      %1245 = vmatpush.xpose.msra.mxu0 0.0
      %1246 = vmatpush.xpose.msra.mxu0 0.0
      %1247 = vmatpush.xpose.msra.mxu0 0.0
      %1248 = vmatpush.xpose.msra.mxu0 0.0
      %1249 = vmatpush.xpose.msra.mxu0 0.0
      %1250 = vmatpush.xpose.msra.mxu0 0.0
      %1251 = vmatpush.xpose.msra.mxu0 0.0
      %v1252 = vand.u32 %v1201, 4294901760
      %v1253 = vsub.f32 %v1201, %v1252
      %v1254 = vand.u32 %v1253, 4294901760
      %v1255 = vsub.f32 %v1253, %v1254
      %v1256 = vand.u32 %v1255, 4294901760
      %1257 = vmatpush.xpose.msra.mxu0 %v1256
      %v1258 = vand.u32 %v1199, 4294901760
      %v1259 = vsub.f32 %v1199, %v1258
      %v1260 = vand.u32 %v1259, 4294901760
      %v1261 = vsub.f32 %v1259, %v1260
      %v1262 = vand.u32 %v1261, 4294901760
      %1263 = vmatpush.xpose.msra.mxu0 %v1262
      %v1264 = vand.u32 %v1195, 4294901760
      %1265 = vmatmul.f32.gmra.mxu0 %v1264
      %v1266 = vpop.f32.mrf.mxu0
      %v1267 = vadd.f32 %v1228, %v1266
      %v1268 = vand.u32 %v1197, 4294901760
      %1269 = vmatmul.f32.gmra.mxu0 %v1268
      %v1270 = vpop.f32.mrf.mxu0
      %v1271 = vadd.f32 %v1236, %v1270
      %1272 = vdwg.mxu0
      %1273 = vmatpush.xpose.msra.mxu0 0.0
      %1274 = vmatpush.xpose.msra.mxu0 0.0
      %1275 = vmatpush.xpose.msra.mxu0 0.0
      %1276 = vmatpush.xpose.msra.mxu0 0.0
      %1277 = vmatpush.xpose.msra.mxu0 0.0
      %1278 = vmatpush.xpose.msra.mxu0 0.0
      %1279 = vmatpush.xpose.msra.mxu0 0.0
      %1280 = vmatpush.xpose.msra.mxu0 0.0
      %1281 = vmatpush.xpose.msra.mxu0 0.0
      %1282 = vmatpush.xpose.msra.mxu0 0.0
      %1283 = vmatpush.xpose.msra.mxu0 0.0
      %1284 = vmatpush.xpose.msra.mxu0 0.0
      %1285 = vmatpush.xpose.msra.mxu0 0.0
      %1286 = vmatpush.xpose.msra.mxu0 0.0
      %v1287 = vand.u32 %v1201, 4294901760
      %v1288 = vsub.f32 %v1201, %v1287
      %1289 = vmatpush.xpose.msra.mxu0 %v1288
      %v1290 = vand.u32 %v1199, 4294901760
      %v1291 = vsub.f32 %v1199, %v1290
      %1292 = vmatpush.xpose.msra.mxu0 %v1291
      %v1293 = vand.u32 %v1195, 4294901760
      %v1294 = vsub.f32 %v1195, %v1293
      %1295 = vmatmul.f32.gmra.mxu0 %v1294
      %v1296 = vpop.f32.mrf.mxu0
      %v1297 = vadd.f32 %v1267, %v1296
      %v1298 = vand.u32 %v1197, 4294901760
      %v1299 = vsub.f32 %v1197, %v1298
      %1300 = vmatmul.f32.gmra.mxu0 %v1299
      %v1301 = vpop.f32.mrf.mxu0
      %v1302 = vadd.f32 %v1271, %v1301
      %1303 = vdwg.mxu0
      %1304 = vmatpush.xpose.msra.mxu0 0.0
      %1305 = vmatpush.xpose.msra.mxu0 0.0
      %1306 = vmatpush.xpose.msra.mxu0 0.0
      %1307 = vmatpush.xpose.msra.mxu0 0.0
      %1308 = vmatpush.xpose.msra.mxu0 0.0
      %1309 = vmatpush.xpose.msra.mxu0 0.0
      %1310 = vmatpush.xpose.msra.mxu0 0.0
      %1311 = vmatpush.xpose.msra.mxu0 0.0
      %1312 = vmatpush.xpose.msra.mxu0 0.0
      %1313 = vmatpush.xpose.msra.mxu0 0.0
      %1314 = vmatpush.xpose.msra.mxu0 0.0
      %1315 = vmatpush.xpose.msra.mxu0 0.0
      %1316 = vmatpush.xpose.msra.mxu0 0.0
      %1317 = vmatpush.xpose.msra.mxu0 0.0
      %v1318 = vand.u32 %v1201, 4294901760
      %1319 = vmatpush.xpose.msra.mxu0 %v1318
      %v1320 = vand.u32 %v1199, 4294901760
      %1321 = vmatpush.xpose.msra.mxu0 %v1320
      %v1322 = vand.u32 %v1195, 4294901760
      %v1323 = vsub.f32 %v1195, %v1322
      %v1324 = vand.u32 %v1323, 4294901760
      %1325 = vmatmul.f32.gmra.mxu0 %v1324
      %v1326 = vpop.f32.mrf.mxu0
      %v1327 = vadd.f32 %v1297, %v1326
      %v1328 = vand.u32 %v1197, 4294901760
      %v1329 = vsub.f32 %v1197, %v1328
      %v1330 = vand.u32 %v1329, 4294901760
      %1331 = vmatmul.f32.gmra.mxu0 %v1330
      %v1332 = vpop.f32.mrf.mxu0
      %v1333 = vadd.f32 %v1302, %v1332
      %1334 = vdwg.mxu0
      %1335 = vmatpush.xpose.msra.mxu0 0.0
      %1336 = vmatpush.xpose.msra.mxu0 0.0
      %1337 = vmatpush.xpose.msra.mxu0 0.0
      %1338 = vmatpush.xpose.msra.mxu0 0.0
      %1339 = vmatpush.xpose.msra.mxu0 0.0
      %1340 = vmatpush.xpose.msra.mxu0 0.0
      %1341 = vmatpush.xpose.msra.mxu0 0.0
      %1342 = vmatpush.xpose.msra.mxu0 0.0
      %1343 = vmatpush.xpose.msra.mxu0 0.0
      %1344 = vmatpush.xpose.msra.mxu0 0.0
      %1345 = vmatpush.xpose.msra.mxu0 0.0
      %1346 = vmatpush.xpose.msra.mxu0 0.0
      %1347 = vmatpush.xpose.msra.mxu0 0.0
      %1348 = vmatpush.xpose.msra.mxu0 0.0
      %v1349 = vand.u32 %v1201, 4294901760
      %v1350 = vsub.f32 %v1201, %v1349
      %v1351 = vand.u32 %v1350, 4294901760
      %1352 = vmatpush.xpose.msra.mxu0 %v1351
      %v1353 = vand.u32 %v1199, 4294901760
      %v1354 = vsub.f32 %v1199, %v1353
      %v1355 = vand.u32 %v1354, 4294901760
      %1356 = vmatpush.xpose.msra.mxu0 %v1355
      %v1357 = vand.u32 %v1195, 4294901760
      %1358 = vmatmul.f32.gmra.mxu0 %v1357
      %v1359 = vpop.f32.mrf.mxu0
      %v1360 = vadd.f32 %v1327, %v1359
      %v1361 = vand.u32 %v1197, 4294901760
      %1362 = vmatmul.f32.gmra.mxu0 %v1361
      %v1363 = vpop.f32.mrf.mxu0
      %v1364 = vadd.f32 %v1333, %v1363
      %1365 = vdwg.mxu0
      %1366 = vmatpush.xpose.msra.mxu0 0.0
      %1367 = vmatpush.xpose.msra.mxu0 0.0
      %1368 = vmatpush.xpose.msra.mxu0 0.0
      %1369 = vmatpush.xpose.msra.mxu0 0.0
      %1370 = vmatpush.xpose.msra.mxu0 0.0
      %1371 = vmatpush.xpose.msra.mxu0 0.0
      %1372 = vmatpush.xpose.msra.mxu0 0.0
      %1373 = vmatpush.xpose.msra.mxu0 0.0
      %1374 = vmatpush.xpose.msra.mxu0 0.0
      %1375 = vmatpush.xpose.msra.mxu0 0.0
      %1376 = vmatpush.xpose.msra.mxu0 0.0
      %1377 = vmatpush.xpose.msra.mxu0 0.0
      %1378 = vmatpush.xpose.msra.mxu0 0.0
      %1379 = vmatpush.xpose.msra.mxu0 0.0
      %v1380 = vand.u32 %v1201, 4294901760
      %1381 = vmatpush.xpose.msra.mxu0 %v1380
      %v1382 = vand.u32 %v1199, 4294901760
      %1383 = vmatpush.xpose.msra.mxu0 %v1382
      %v1384 = vand.u32 %v1195, 4294901760
      %1385 = vmatmul.f32.gmra.mxu0 %v1384
      %v1386 = vpop.f32.mrf.mxu0
      %v1387 = vadd.f32 %v1360, %v1386
      %v1388 = vand.u32 %v1197, 4294901760
      %1389 = vmatmul.f32.gmra.mxu0 %v1388
      %v1390 = vpop.f32.mrf.mxu0
      %v1391 = vadd.f32 %v1364, %v1390
      %1392 = vdwg.mxu0
      %v1393 = vmul.f32 %v1387, 0.35355338
      %v1394 = vmul.f32 %v1391, 0.35355338
      %v1395 = vsel %vm933, %v1393, -inf
      %1396 = vmax.xlane.f32.xlu0 %v1395
      %v1397 = vpop.xlane.xlu0 %1396
      %v1398 = vsel %vm937, %v1394, -inf
      %1399 = vmax.xlane.f32.xlu0 %v1398
      %v1400 = vpop.xlane.xlu0 %1399
      %v1401 = vsub.f32 %v1393, %v1397
      %v1402 = vsub.f32 %v1394, %v1400
      %v1403 = vmul.f32 %v1401, 1.442695
      %v1404 = vpow.pop %v1403
      %v1405 = vmul.f32 %v1402, 1.442695
      %v1406 = vpow.pop %v1405
      %v1407 = vsel %vm933, %v1404, 0.0
      %1408 = vadd.xlane.f32.xlu0 %v1407
      %v1409 = vpop.xlane.xlu0 %1408
      %v1410 = vsel %vm937, %v1406, 0.0
      %1411 = vadd.xlane.f32.xlu0 %v1410
      %v1412 = vpop.xlane.xlu0 %1411
      %v1413 = vrcp.pop %v1409
      %v1414 = vmul.f32 %v1409, %v1413
      %v1415 = vsub.f32 1.0, %v1414
      %v1416 = vmul.f32 %v1413, %v1415
      %v1417 = vadd.f32 %v1413, %v1416
      %vm1418 = vweird.f32 %v1409
      %vm1419 = vweird.f32 %v1413
      %vm1420 = vmor %vm1418, %vm1419
      %v1421 = vsel %vm1420, %v1413, %v1417
      %v1422 = vand.u32 2147483647, %v1409
      %vm1423 = vcmp.eq.f32.partialorder %v1422, 8.507059e+37
      %v1424 = vand.u32 %v1409, 2147483648
      %v1425 = vor.u32 1.1754944e-38, %v1424
      %v1426 = vsel %vm1423, %v1425, %v1421
      %v1427 = vmul.f32 %v1404, %v1426
      %v1428 = vrcp.pop %v1412
      %v1429 = vmul.f32 %v1412, %v1428
      %v1430 = vsub.f32 1.0, %v1429
      %v1431 = vmul.f32 %v1428, %v1430
      %v1432 = vadd.f32 %v1428, %v1431
      %vm1433 = vweird.f32 %v1412
      %vm1434 = vweird.f32 %v1428
      %vm1435 = vmor %vm1433, %vm1434
      %v1436 = vsel %vm1435, %v1428, %v1432
      %v1437 = vand.u32 2147483647, %v1412
      %vm1438 = vcmp.eq.f32.partialorder %v1437, 8.507059e+37
      %v1439 = vand.u32 %v1412, 2147483648
      %v1440 = vor.u32 1.1754944e-38, %v1439
      %v1441 = vsel %vm1438, %v1440, %v1436
      %v1442 = vmul.f32 %v1406, %v1441
      %1443 = vrot.lane.b32.xlu0 %v720, 56
      %v1444 = vpop.permute.xlu0 %1443
      %1445 = vrot.lane.b32.xlu0 %v724, 56
      %v1446 = vpop.permute.xlu0 %1445
      %v1449 = vsel %vm933, %v1427, 0
      %v1452 = vsel %vm933, %v1442, 0
      %v1454 = vsel %vm994, %v1446, 0
      %1456 = vmatpush.msra.mxu0 0.0
      %1457 = vmatpush.msra.mxu0 0.0
      %1458 = vmatpush.msra.mxu0 0.0
      %1459 = vmatpush.msra.mxu0 0.0
      %1460 = vmatpush.msra.mxu0 0.0
      %1461 = vmatpush.msra.mxu0 0.0
      %1462 = vmatpush.msra.mxu0 0.0
      %1463 = vmatpush.msra.mxu0 0.0
      %1464 = vmatpush.msra.mxu0 0.0
      %1465 = vmatpush.msra.mxu0 0.0
      %1466 = vmatpush.msra.mxu0 0.0
      %1467 = vmatpush.msra.mxu0 0.0
      %1468 = vmatpush.msra.mxu0 0.0
      %1469 = vmatpush.msra.mxu0 0.0
      %v1470 = vand.u32 %v1454, 4294901760
      %1471 = vmatpush.msra.mxu0 %v1470
      %v1472 = vand.u32 %v1444, 4294901760
      %1473 = vmatpush.msra.mxu0 %v1472
      %v1474 = vand.u32 %v1449, 4294901760
      %v1475 = vsub.f32 %v1449, %v1474
      %v1476 = vand.u32 %v1475, 4294901760
      %v1477 = vsub.f32 %v1475, %v1476
      %v1478 = vand.u32 %v1477, 4294901760
      %1479 = vmatmul.f32.gmra.mxu0 %v1478
      %v1480 = vpop.f32.mrf.mxu0
      %v1481 = vadd.f32 0.0, %v1480
      %v1482 = vand.u32 %v1452, 4294901760
      %v1483 = vsub.f32 %v1452, %v1482
      %v1484 = vand.u32 %v1483, 4294901760
      %v1485 = vsub.f32 %v1483, %v1484
      %v1486 = vand.u32 %v1485, 4294901760
      %1487 = vmatmul.f32.gmra.mxu0 %v1486
      %v1488 = vpop.f32.mrf.mxu0
      %v1489 = vadd.f32 0.0, %v1488
      %1490 = vdwg.mxu0
      %1491 = vmatpush.msra.mxu0 0.0
      %1492 = vmatpush.msra.mxu0 0.0
      %1493 = vmatpush.msra.mxu0 0.0
      %1494 = vmatpush.msra.mxu0 0.0
      %1495 = vmatpush.msra.mxu0 0.0
      %1496 = vmatpush.msra.mxu0 0.0
      %1497 = vmatpush.msra.mxu0 0.0
      %1498 = vmatpush.msra.mxu0 0.0
      %1499 = vmatpush.msra.mxu0 0.0
      %1500 = vmatpush.msra.mxu0 0.0
      %1501 = vmatpush.msra.mxu0 0.0
      %1502 = vmatpush.msra.mxu0 0.0
      %1503 = vmatpush.msra.mxu0 0.0
      %1504 = vmatpush.msra.mxu0 0.0
      %v1505 = vand.u32 %v1454, 4294901760
      %v1506 = vsub.f32 %v1454, %v1505
      %v1507 = vand.u32 %v1506, 4294901760
      %v1508 = vsub.f32 %v1506, %v1507
      %v1509 = vand.u32 %v1508, 4294901760
      %1510 = vmatpush.msra.mxu0 %v1509
      %v1511 = vand.u32 %v1444, 4294901760
      %v1512 = vsub.f32 %v1444, %v1511
      %v1513 = vand.u32 %v1512, 4294901760
      %v1514 = vsub.f32 %v1512, %v1513
      %v1515 = vand.u32 %v1514, 4294901760
      %1516 = vmatpush.msra.mxu0 %v1515
      %v1517 = vand.u32 %v1449, 4294901760
      %1518 = vmatmul.f32.gmra.mxu0 %v1517
      %v1519 = vpop.f32.mrf.mxu0
      %v1520 = vadd.f32 %v1481, %v1519
      %v1521 = vand.u32 %v1452, 4294901760
      %1522 = vmatmul.f32.gmra.mxu0 %v1521
      %v1523 = vpop.f32.mrf.mxu0
      %v1524 = vadd.f32 %v1489, %v1523
      %1525 = vdwg.mxu0
      %1526 = vmatpush.msra.mxu0 0.0
      %1527 = vmatpush.msra.mxu0 0.0
      %1528 = vmatpush.msra.mxu0 0.0
      %1529 = vmatpush.msra.mxu0 0.0
      %1530 = vmatpush.msra.mxu0 0.0
      %1531 = vmatpush.msra.mxu0 0.0
      %1532 = vmatpush.msra.mxu0 0.0
      %1533 = vmatpush.msra.mxu0 0.0
      %1534 = vmatpush.msra.mxu0 0.0
      %1535 = vmatpush.msra.mxu0 0.0
      %1536 = vmatpush.msra.mxu0 0.0
      %1537 = vmatpush.msra.mxu0 0.0
      %1538 = vmatpush.msra.mxu0 0.0
      %1539 = vmatpush.msra.mxu0 0.0
      %v1540 = vand.u32 %v1454, 4294901760
      %v1541 = vsub.f32 %v1454, %v1540
      %1542 = vmatpush.msra.mxu0 %v1541
      %v1543 = vand.u32 %v1444, 4294901760
      %v1544 = vsub.f32 %v1444, %v1543
      %1545 = vmatpush.msra.mxu0 %v1544
      %v1546 = vand.u32 %v1449, 4294901760
      %v1547 = vsub.f32 %v1449, %v1546
      %1548 = vmatmul.f32.gmra.mxu0 %v1547
      %v1549 = vpop.f32.mrf.mxu0
      %v1550 = vadd.f32 %v1520, %v1549
      %v1551 = vand.u32 %v1452, 4294901760
      %v1552 = vsub.f32 %v1452, %v1551
      %1553 = vmatmul.f32.gmra.mxu0 %v1552
      %v1554 = vpop.f32.mrf.mxu0
      %v1555 = vadd.f32 %v1524, %v1554
      %1556 = vdwg.mxu0
      %1557 = vmatpush.msra.mxu0 0.0
      %1558 = vmatpush.msra.mxu0 0.0
      %1559 = vmatpush.msra.mxu0 0.0
      %1560 = vmatpush.msra.mxu0 0.0
      %1561 = vmatpush.msra.mxu0 0.0
      %1562 = vmatpush.msra.mxu0 0.0
      %1563 = vmatpush.msra.mxu0 0.0
      %1564 = vmatpush.msra.mxu0 0.0
      %1565 = vmatpush.msra.mxu0 0.0
      %1566 = vmatpush.msra.mxu0 0.0
      %1567 = vmatpush.msra.mxu0 0.0
      %1568 = vmatpush.msra.mxu0 0.0
      %1569 = vmatpush.msra.mxu0 0.0
      %1570 = vmatpush.msra.mxu0 0.0
      %v1571 = vand.u32 %v1454, 4294901760
      %1572 = vmatpush.msra.mxu0 %v1571
      %v1573 = vand.u32 %v1444, 4294901760
      %1574 = vmatpush.msra.mxu0 %v1573
      %v1575 = vand.u32 %v1449, 4294901760
      %v1576 = vsub.f32 %v1449, %v1575
      %v1577 = vand.u32 %v1576, 4294901760
      %1578 = vmatmul.f32.gmra.mxu0 %v1577
      %v1579 = vpop.f32.mrf.mxu0
      %v1580 = vadd.f32 %v1550, %v1579
      %v1581 = vand.u32 %v1452, 4294901760
      %v1582 = vsub.f32 %v1452, %v1581
      %v1583 = vand.u32 %v1582, 4294901760
      %1584 = vmatmul.f32.gmra.mxu0 %v1583
      %v1585 = vpop.f32.mrf.mxu0
      %v1586 = vadd.f32 %v1555, %v1585
      %1587 = vdwg.mxu0
      %1588 = vmatpush.msra.mxu0 0.0
      %1589 = vmatpush.msra.mxu0 0.0
      %1590 = vmatpush.msra.mxu0 0.0
      %1591 = vmatpush.msra.mxu0 0.0
      %1592 = vmatpush.msra.mxu0 0.0
      %1593 = vmatpush.msra.mxu0 0.0
      %1594 = vmatpush.msra.mxu0 0.0
      %1595 = vmatpush.msra.mxu0 0.0
      %1596 = vmatpush.msra.mxu0 0.0
      %1597 = vmatpush.msra.mxu0 0.0
      %1598 = vmatpush.msra.mxu0 0.0
      %1599 = vmatpush.msra.mxu0 0.0
      %1600 = vmatpush.msra.mxu0 0.0
      %1601 = vmatpush.msra.mxu0 0.0
      %v1602 = vand.u32 %v1454, 4294901760
      %v1603 = vsub.f32 %v1454, %v1602
      %v1604 = vand.u32 %v1603, 4294901760
      %1605 = vmatpush.msra.mxu0 %v1604
      %v1606 = vand.u32 %v1444, 4294901760
      %v1607 = vsub.f32 %v1444, %v1606
      %v1608 = vand.u32 %v1607, 4294901760
      %1609 = vmatpush.msra.mxu0 %v1608
      %v1610 = vand.u32 %v1449, 4294901760
      %1611 = vmatmul.f32.gmra.mxu0 %v1610
      %v1612 = vpop.f32.mrf.mxu0
      %v1613 = vadd.f32 %v1580, %v1612
      %v1614 = vand.u32 %v1452, 4294901760
      %1615 = vmatmul.f32.gmra.mxu0 %v1614
      %v1616 = vpop.f32.mrf.mxu0
      %v1617 = vadd.f32 %v1586, %v1616
      %1618 = vdwg.mxu0
      %1619 = vmatpush.msra.mxu0 0.0
      %1620 = vmatpush.msra.mxu0 0.0
      %1621 = vmatpush.msra.mxu0 0.0
      %1622 = vmatpush.msra.mxu0 0.0
      %1623 = vmatpush.msra.mxu0 0.0
      %1624 = vmatpush.msra.mxu0 0.0
      %1625 = vmatpush.msra.mxu0 0.0
      %1626 = vmatpush.msra.mxu0 0.0
      %1627 = vmatpush.msra.mxu0 0.0
      %1628 = vmatpush.msra.mxu0 0.0
      %1629 = vmatpush.msra.mxu0 0.0
      %1630 = vmatpush.msra.mxu0 0.0
      %1631 = vmatpush.msra.mxu0 0.0
      %1632 = vmatpush.msra.mxu0 0.0
      %v1633 = vand.u32 %v1454, 4294901760
      %1634 = vmatpush.msra.mxu0 %v1633
      %v1635 = vand.u32 %v1444, 4294901760
      %1636 = vmatpush.msra.mxu0 %v1635
      %v1637 = vand.u32 %v1449, 4294901760
      %1638 = vmatmul.f32.gmra.mxu0 %v1637
      %v1639 = vpop.f32.mrf.mxu0
      %v1640 = vadd.f32 %v1613, %v1639
      %v1641 = vand.u32 %v1452, 4294901760
      %1642 = vmatmul.f32.gmra.mxu0 %v1641
      %v1643 = vpop.f32.mrf.mxu0
      %v1644 = vadd.f32 %v1617, %v1643
      %1645 = vdwg.mxu0
      %1646 = vrot.lane.b32.xlu0 %v720, 112
      %v1647 = vpop.permute.xlu0 %1646
      %1648 = vrot.lane.b32.xlu0 %v724, 112
      %v1649 = vpop.permute.xlu0 %1648
      %1650 = vrot.lane.b32.xlu0 %v720, 80
      %v1651 = vpop.permute.xlu0 %1650
      %1652 = vrot.lane.b32.xlu0 %v724, 80
      %v1653 = vpop.permute.xlu0 %1652
      %v1654 = vsel %vm732, %v1647, 0
      %v1656 = vsel %vm732, %v1649, 0
      %v1658 = vsel %vm732, %v1651, 0
      %v1660 = vsel %vm732, %v1653, 0
      %1662 = vmatpush.xpose.msra.mxu0 0.0
      %1663 = vmatpush.xpose.msra.mxu0 0.0
      %1664 = vmatpush.xpose.msra.mxu0 0.0
      %1665 = vmatpush.xpose.msra.mxu0 0.0
      %1666 = vmatpush.xpose.msra.mxu0 0.0
      %1667 = vmatpush.xpose.msra.mxu0 0.0
      %1668 = vmatpush.xpose.msra.mxu0 0.0
      %1669 = vmatpush.xpose.msra.mxu0 0.0
      %1670 = vmatpush.xpose.msra.mxu0 0.0
      %1671 = vmatpush.xpose.msra.mxu0 0.0
      %1672 = vmatpush.xpose.msra.mxu0 0.0
      %1673 = vmatpush.xpose.msra.mxu0 0.0
      %1674 = vmatpush.xpose.msra.mxu0 0.0
      %1675 = vmatpush.xpose.msra.mxu0 0.0
      %v1676 = vand.u32 %v1660, 4294901760
      %1677 = vmatpush.xpose.msra.mxu0 %v1676
      %v1678 = vand.u32 %v1658, 4294901760
      %1679 = vmatpush.xpose.msra.mxu0 %v1678
      %v1680 = vand.u32 %v1654, 4294901760
      %v1681 = vsub.f32 %v1654, %v1680
      %v1682 = vand.u32 %v1681, 4294901760
      %v1683 = vsub.f32 %v1681, %v1682
      %v1684 = vand.u32 %v1683, 4294901760
      %1685 = vmatmul.f32.gmra.mxu0 %v1684
      %v1686 = vpop.f32.mrf.mxu0
      %v1687 = vadd.f32 0.0, %v1686
      %v1688 = vand.u32 %v1656, 4294901760
      %v1689 = vsub.f32 %v1656, %v1688
      %v1690 = vand.u32 %v1689, 4294901760
      %v1691 = vsub.f32 %v1689, %v1690
      %v1692 = vand.u32 %v1691, 4294901760
      %1693 = vmatmul.f32.gmra.mxu0 %v1692
      %v1694 = vpop.f32.mrf.mxu0
      %v1695 = vadd.f32 0.0, %v1694
      %1696 = vdwg.mxu0
      %1697 = vmatpush.xpose.msra.mxu0 0.0
      %1698 = vmatpush.xpose.msra.mxu0 0.0
      %1699 = vmatpush.xpose.msra.mxu0 0.0
      %1700 = vmatpush.xpose.msra.mxu0 0.0
      %1701 = vmatpush.xpose.msra.mxu0 0.0
      %1702 = vmatpush.xpose.msra.mxu0 0.0
      %1703 = vmatpush.xpose.msra.mxu0 0.0
      %1704 = vmatpush.xpose.msra.mxu0 0.0
      %1705 = vmatpush.xpose.msra.mxu0 0.0
      %1706 = vmatpush.xpose.msra.mxu0 0.0
      %1707 = vmatpush.xpose.msra.mxu0 0.0
      %1708 = vmatpush.xpose.msra.mxu0 0.0
      %1709 = vmatpush.xpose.msra.mxu0 0.0
      %1710 = vmatpush.xpose.msra.mxu0 0.0
      %v1711 = vand.u32 %v1660, 4294901760
      %v1712 = vsub.f32 %v1660, %v1711
      %v1713 = vand.u32 %v1712, 4294901760
      %v1714 = vsub.f32 %v1712, %v1713
      %v1715 = vand.u32 %v1714, 4294901760
      %1716 = vmatpush.xpose.msra.mxu0 %v1715
      %v1717 = vand.u32 %v1658, 4294901760
      %v1718 = vsub.f32 %v1658, %v1717
      %v1719 = vand.u32 %v1718, 4294901760
      %v1720 = vsub.f32 %v1718, %v1719
      %v1721 = vand.u32 %v1720, 4294901760
      %1722 = vmatpush.xpose.msra.mxu0 %v1721
      %v1723 = vand.u32 %v1654, 4294901760
      %1724 = vmatmul.f32.gmra.mxu0 %v1723
      %v1725 = vpop.f32.mrf.mxu0
      %v1726 = vadd.f32 %v1687, %v1725
      %v1727 = vand.u32 %v1656, 4294901760
      %1728 = vmatmul.f32.gmra.mxu0 %v1727
      %v1729 = vpop.f32.mrf.mxu0
      %v1730 = vadd.f32 %v1695, %v1729
      %1731 = vdwg.mxu0
      %1732 = vmatpush.xpose.msra.mxu0 0.0
      %1733 = vmatpush.xpose.msra.mxu0 0.0
      %1734 = vmatpush.xpose.msra.mxu0 0.0
      %1735 = vmatpush.xpose.msra.mxu0 0.0
      %1736 = vmatpush.xpose.msra.mxu0 0.0
      %1737 = vmatpush.xpose.msra.mxu0 0.0
      %1738 = vmatpush.xpose.msra.mxu0 0.0
      %1739 = vmatpush.xpose.msra.mxu0 0.0
      %1740 = vmatpush.xpose.msra.mxu0 0.0
      %1741 = vmatpush.xpose.msra.mxu0 0.0
      %1742 = vmatpush.xpose.msra.mxu0 0.0
      %1743 = vmatpush.xpose.msra.mxu0 0.0
      %1744 = vmatpush.xpose.msra.mxu0 0.0
      %1745 = vmatpush.xpose.msra.mxu0 0.0
      %v1746 = vand.u32 %v1660, 4294901760
      %v1747 = vsub.f32 %v1660, %v1746
      %1748 = vmatpush.xpose.msra.mxu0 %v1747
      %v1749 = vand.u32 %v1658, 4294901760
      %v1750 = vsub.f32 %v1658, %v1749
      %1751 = vmatpush.xpose.msra.mxu0 %v1750
      %v1752 = vand.u32 %v1654, 4294901760
      %v1753 = vsub.f32 %v1654, %v1752
      %1754 = vmatmul.f32.gmra.mxu0 %v1753
      %v1755 = vpop.f32.mrf.mxu0
      %v1756 = vadd.f32 %v1726, %v1755
      %v1757 = vand.u32 %v1656, 4294901760
      %v1758 = vsub.f32 %v1656, %v1757
      %1759 = vmatmul.f32.gmra.mxu0 %v1758
      %v1760 = vpop.f32.mrf.mxu0
      %v1761 = vadd.f32 %v1730, %v1760
      %1762 = vdwg.mxu0
      %1763 = vmatpush.xpose.msra.mxu0 0.0
      %1764 = vmatpush.xpose.msra.mxu0 0.0
      %1765 = vmatpush.xpose.msra.mxu0 0.0
      %1766 = vmatpush.xpose.msra.mxu0 0.0
      %1767 = vmatpush.xpose.msra.mxu0 0.0
      %1768 = vmatpush.xpose.msra.mxu0 0.0
      %1769 = vmatpush.xpose.msra.mxu0 0.0
      %1770 = vmatpush.xpose.msra.mxu0 0.0
      %1771 = vmatpush.xpose.msra.mxu0 0.0
      %1772 = vmatpush.xpose.msra.mxu0 0.0
      %1773 = vmatpush.xpose.msra.mxu0 0.0
      %1774 = vmatpush.xpose.msra.mxu0 0.0
      %1775 = vmatpush.xpose.msra.mxu0 0.0
      %1776 = vmatpush.xpose.msra.mxu0 0.0
      %v1777 = vand.u32 %v1660, 4294901760
      %1778 = vmatpush.xpose.msra.mxu0 %v1777
      %v1779 = vand.u32 %v1658, 4294901760
      %1780 = vmatpush.xpose.msra.mxu0 %v1779
      %v1781 = vand.u32 %v1654, 4294901760
      %v1782 = vsub.f32 %v1654, %v1781
      %v1783 = vand.u32 %v1782, 4294901760
      %1784 = vmatmul.f32.gmra.mxu0 %v1783
      %v1785 = vpop.f32.mrf.mxu0
      %v1786 = vadd.f32 %v1756, %v1785
      %v1787 = vand.u32 %v1656, 4294901760
      %v1788 = vsub.f32 %v1656, %v1787
      %v1789 = vand.u32 %v1788, 4294901760
      %1790 = vmatmul.f32.gmra.mxu0 %v1789
      %v1791 = vpop.f32.mrf.mxu0
      %v1792 = vadd.f32 %v1761, %v1791
      %1793 = vdwg.mxu0
      %1794 = vmatpush.xpose.msra.mxu0 0.0
      %1795 = vmatpush.xpose.msra.mxu0 0.0
      %1796 = vmatpush.xpose.msra.mxu0 0.0
      %1797 = vmatpush.xpose.msra.mxu0 0.0
      %1798 = vmatpush.xpose.msra.mxu0 0.0
      %1799 = vmatpush.xpose.msra.mxu0 0.0
      %1800 = vmatpush.xpose.msra.mxu0 0.0
      %1801 = vmatpush.xpose.msra.mxu0 0.0
      %1802 = vmatpush.xpose.msra.mxu0 0.0
      %1803 = vmatpush.xpose.msra.mxu0 0.0
      %1804 = vmatpush.xpose.msra.mxu0 0.0
      %1805 = vmatpush.xpose.msra.mxu0 0.0
      %1806 = vmatpush.xpose.msra.mxu0 0.0
      %1807 = vmatpush.xpose.msra.mxu0 0.0
      %v1808 = vand.u32 %v1660, 4294901760
      %v1809 = vsub.f32 %v1660, %v1808
      %v1810 = vand.u32 %v1809, 4294901760
      %1811 = vmatpush.xpose.msra.mxu0 %v1810
      %v1812 = vand.u32 %v1658, 4294901760
      %v1813 = vsub.f32 %v1658, %v1812
      %v1814 = vand.u32 %v1813, 4294901760
      %1815 = vmatpush.xpose.msra.mxu0 %v1814
      %v1816 = vand.u32 %v1654, 4294901760
      %1817 = vmatmul.f32.gmra.mxu0 %v1816
      %v1818 = vpop.f32.mrf.mxu0
      %v1819 = vadd.f32 %v1786, %v1818
      %v1820 = vand.u32 %v1656, 4294901760
      %1821 = vmatmul.f32.gmra.mxu0 %v1820
      %v1822 = vpop.f32.mrf.mxu0
      %v1823 = vadd.f32 %v1792, %v1822
      %1824 = vdwg.mxu0
      %1825 = vmatpush.xpose.msra.mxu0 0.0
      %1826 = vmatpush.xpose.msra.mxu0 0.0
      %1827 = vmatpush.xpose.msra.mxu0 0.0
      %1828 = vmatpush.xpose.msra.mxu0 0.0
      %1829 = vmatpush.xpose.msra.mxu0 0.0
      %1830 = vmatpush.xpose.msra.mxu0 0.0
      %1831 = vmatpush.xpose.msra.mxu0 0.0
      %1832 = vmatpush.xpose.msra.mxu0 0.0
      %1833 = vmatpush.xpose.msra.mxu0 0.0
      %1834 = vmatpush.xpose.msra.mxu0 0.0
      %1835 = vmatpush.xpose.msra.mxu0 0.0
      %1836 = vmatpush.xpose.msra.mxu0 0.0
      %1837 = vmatpush.xpose.msra.mxu0 0.0
      %1838 = vmatpush.xpose.msra.mxu0 0.0
      %v1839 = vand.u32 %v1660, 4294901760
      %1840 = vmatpush.xpose.msra.mxu0 %v1839
      %v1841 = vand.u32 %v1658, 4294901760
      %1842 = vmatpush.xpose.msra.mxu0 %v1841
      %v1843 = vand.u32 %v1654, 4294901760
      %1844 = vmatmul.f32.gmra.mxu0 %v1843
      %v1845 = vpop.f32.mrf.mxu0
      %v1846 = vadd.f32 %v1819, %v1845
      %v1847 = vand.u32 %v1656, 4294901760
      %1848 = vmatmul.f32.gmra.mxu0 %v1847
      %v1849 = vpop.f32.mrf.mxu0
      %v1850 = vadd.f32 %v1823, %v1849
      %1851 = vdwg.mxu0
      %v1852 = vmul.f32 %v1846, 0.35355338
      %v1853 = vmul.f32 %v1850, 0.35355338
      %v1854 = vsel %vm933, %v1852, -inf
      %1855 = vmax.xlane.f32.xlu0 %v1854
      %v1856 = vpop.xlane.xlu0 %1855
      %v1857 = vsel %vm937, %v1853, -inf
      %1858 = vmax.xlane.f32.xlu0 %v1857
      %v1859 = vpop.xlane.xlu0 %1858
      %v1860 = vsub.f32 %v1852, %v1856
      %v1861 = vsub.f32 %v1853, %v1859
      %v1862 = vmul.f32 %v1860, 1.442695
      %v1863 = vpow.pop %v1862
      %v1864 = vmul.f32 %v1861, 1.442695
      %v1865 = vpow.pop %v1864
      %v1866 = vsel %vm933, %v1863, 0.0
      %1867 = vadd.xlane.f32.xlu0 %v1866
      %v1868 = vpop.xlane.xlu0 %1867
      %v1869 = vsel %vm937, %v1865, 0.0
      %1870 = vadd.xlane.f32.xlu0 %v1869
      %v1871 = vpop.xlane.xlu0 %1870
      %v1872 = vrcp.pop %v1868
      %v1873 = vmul.f32 %v1868, %v1872
      %v1874 = vsub.f32 1.0, %v1873
      %v1875 = vmul.f32 %v1872, %v1874
      %v1876 = vadd.f32 %v1872, %v1875
      %vm1877 = vweird.f32 %v1868
      %vm1878 = vweird.f32 %v1872
      %vm1879 = vmor %vm1877, %vm1878
      %v1880 = vsel %vm1879, %v1872, %v1876
      %v1881 = vand.u32 2147483647, %v1868
      %vm1882 = vcmp.eq.f32.partialorder %v1881, 8.507059e+37
      %v1883 = vand.u32 %v1868, 2147483648
      %v1884 = vor.u32 1.1754944e-38, %v1883
      %v1885 = vsel %vm1882, %v1884, %v1880
      %v1886 = vmul.f32 %v1863, %v1885
      %v1887 = vrcp.pop %v1871
      %v1888 = vmul.f32 %v1871, %v1887
      %v1889 = vsub.f32 1.0, %v1888
      %v1890 = vmul.f32 %v1887, %v1889
      %v1891 = vadd.f32 %v1887, %v1890
      %vm1892 = vweird.f32 %v1871
      %vm1893 = vweird.f32 %v1887
      %vm1894 = vmor %vm1892, %vm1893
      %v1895 = vsel %vm1894, %v1887, %v1891
      %v1896 = vand.u32 2147483647, %v1871
      %vm1897 = vcmp.eq.f32.partialorder %v1896, 8.507059e+37
      %v1898 = vand.u32 %v1871, 2147483648
      %v1899 = vor.u32 1.1754944e-38, %v1898
      %v1900 = vsel %vm1897, %v1899, %v1895
      %v1901 = vmul.f32 %v1865, %v1900
      %1902 = vrot.lane.b32.xlu0 %v720, 48
      %v1903 = vpop.permute.xlu0 %1902
      %1904 = vrot.lane.b32.xlu0 %v724, 48
      %v1905 = vpop.permute.xlu0 %1904
      %v1908 = vsel %vm933, %v1886, 0
      %v1911 = vsel %vm933, %v1901, 0
      %v1913 = vsel %vm994, %v1905, 0
      %1915 = vmatpush.msra.mxu0 0.0
      %1916 = vmatpush.msra.mxu0 0.0
      %1917 = vmatpush.msra.mxu0 0.0
      %1918 = vmatpush.msra.mxu0 0.0
      %1919 = vmatpush.msra.mxu0 0.0
      %1920 = vmatpush.msra.mxu0 0.0
      %1921 = vmatpush.msra.mxu0 0.0
      %1922 = vmatpush.msra.mxu0 0.0
      %1923 = vmatpush.msra.mxu0 0.0
      %1924 = vmatpush.msra.mxu0 0.0
      %1925 = vmatpush.msra.mxu0 0.0
      %1926 = vmatpush.msra.mxu0 0.0
      %1927 = vmatpush.msra.mxu0 0.0
      %1928 = vmatpush.msra.mxu0 0.0
      %v1929 = vand.u32 %v1913, 4294901760
      %1930 = vmatpush.msra.mxu0 %v1929
      %v1931 = vand.u32 %v1903, 4294901760
      %1932 = vmatpush.msra.mxu0 %v1931
      %v1933 = vand.u32 %v1908, 4294901760
      %v1934 = vsub.f32 %v1908, %v1933
      %v1935 = vand.u32 %v1934, 4294901760
      %v1936 = vsub.f32 %v1934, %v1935
      %v1937 = vand.u32 %v1936, 4294901760
      %1938 = vmatmul.f32.gmra.mxu0 %v1937
      %v1939 = vpop.f32.mrf.mxu0
      %v1940 = vadd.f32 0.0, %v1939
      %v1941 = vand.u32 %v1911, 4294901760
      %v1942 = vsub.f32 %v1911, %v1941
      %v1943 = vand.u32 %v1942, 4294901760
      %v1944 = vsub.f32 %v1942, %v1943
      %v1945 = vand.u32 %v1944, 4294901760
      %1946 = vmatmul.f32.gmra.mxu0 %v1945
      %v1947 = vpop.f32.mrf.mxu0
      %v1948 = vadd.f32 0.0, %v1947
      %1949 = vdwg.mxu0
      %1950 = vmatpush.msra.mxu0 0.0
      %1951 = vmatpush.msra.mxu0 0.0
      %1952 = vmatpush.msra.mxu0 0.0
      %1953 = vmatpush.msra.mxu0 0.0
      %1954 = vmatpush.msra.mxu0 0.0
      %1955 = vmatpush.msra.mxu0 0.0
      %1956 = vmatpush.msra.mxu0 0.0
      %1957 = vmatpush.msra.mxu0 0.0
      %1958 = vmatpush.msra.mxu0 0.0
      %1959 = vmatpush.msra.mxu0 0.0
      %1960 = vmatpush.msra.mxu0 0.0
      %1961 = vmatpush.msra.mxu0 0.0
      %1962 = vmatpush.msra.mxu0 0.0
      %1963 = vmatpush.msra.mxu0 0.0
      %v1964 = vand.u32 %v1913, 4294901760
      %v1965 = vsub.f32 %v1913, %v1964
      %v1966 = vand.u32 %v1965, 4294901760
      %v1967 = vsub.f32 %v1965, %v1966
      %v1968 = vand.u32 %v1967, 4294901760
      %1969 = vmatpush.msra.mxu0 %v1968
      %v1970 = vand.u32 %v1903, 4294901760
      %v1971 = vsub.f32 %v1903, %v1970
      %v1972 = vand.u32 %v1971, 4294901760
      %v1973 = vsub.f32 %v1971, %v1972
      %v1974 = vand.u32 %v1973, 4294901760
      %1975 = vmatpush.msra.mxu0 %v1974
      %v1976 = vand.u32 %v1908, 4294901760
      %1977 = vmatmul.f32.gmra.mxu0 %v1976
      %v1978 = vpop.f32.mrf.mxu0
      %v1979 = vadd.f32 %v1940, %v1978
      %v1980 = vand.u32 %v1911, 4294901760
      %1981 = vmatmul.f32.gmra.mxu0 %v1980
      %v1982 = vpop.f32.mrf.mxu0
      %v1983 = vadd.f32 %v1948, %v1982
      %1984 = vdwg.mxu0
      %1985 = vmatpush.msra.mxu0 0.0
      %1986 = vmatpush.msra.mxu0 0.0
      %1987 = vmatpush.msra.mxu0 0.0
      %1988 = vmatpush.msra.mxu0 0.0
      %1989 = vmatpush.msra.mxu0 0.0
      %1990 = vmatpush.msra.mxu0 0.0
      %1991 = vmatpush.msra.mxu0 0.0
      %1992 = vmatpush.msra.mxu0 0.0
      %1993 = vmatpush.msra.mxu0 0.0
      %1994 = vmatpush.msra.mxu0 0.0
      %1995 = vmatpush.msra.mxu0 0.0
      %1996 = vmatpush.msra.mxu0 0.0
      %1997 = vmatpush.msra.mxu0 0.0
      %1998 = vmatpush.msra.mxu0 0.0
      %v1999 = vand.u32 %v1913, 4294901760
      %v2000 = vsub.f32 %v1913, %v1999
      %2001 = vmatpush.msra.mxu0 %v2000
      %v2002 = vand.u32 %v1903, 4294901760
      %v2003 = vsub.f32 %v1903, %v2002
      %2004 = vmatpush.msra.mxu0 %v2003
      %v2005 = vand.u32 %v1908, 4294901760
      %v2006 = vsub.f32 %v1908, %v2005
      %2007 = vmatmul.f32.gmra.mxu0 %v2006
      %v2008 = vpop.f32.mrf.mxu0
      %v2009 = vadd.f32 %v1979, %v2008
      %v2010 = vand.u32 %v1911, 4294901760
      %v2011 = vsub.f32 %v1911, %v2010
      %2012 = vmatmul.f32.gmra.mxu0 %v2011
      %v2013 = vpop.f32.mrf.mxu0
      %v2014 = vadd.f32 %v1983, %v2013
      %2015 = vdwg.mxu0
      %2016 = vmatpush.msra.mxu0 0.0
      %2017 = vmatpush.msra.mxu0 0.0
      %2018 = vmatpush.msra.mxu0 0.0
      %2019 = vmatpush.msra.mxu0 0.0
      %2020 = vmatpush.msra.mxu0 0.0
      %2021 = vmatpush.msra.mxu0 0.0
      %2022 = vmatpush.msra.mxu0 0.0
      %2023 = vmatpush.msra.mxu0 0.0
      %2024 = vmatpush.msra.mxu0 0.0
      %2025 = vmatpush.msra.mxu0 0.0
      %2026 = vmatpush.msra.mxu0 0.0
      %2027 = vmatpush.msra.mxu0 0.0
      %2028 = vmatpush.msra.mxu0 0.0
      %2029 = vmatpush.msra.mxu0 0.0
      %v2030 = vand.u32 %v1913, 4294901760
      %2031 = vmatpush.msra.mxu0 %v2030
      %v2032 = vand.u32 %v1903, 4294901760
      %2033 = vmatpush.msra.mxu0 %v2032
      %v2034 = vand.u32 %v1908, 4294901760
      %v2035 = vsub.f32 %v1908, %v2034
      %v2036 = vand.u32 %v2035, 4294901760
      %2037 = vmatmul.f32.gmra.mxu0 %v2036
      %v2038 = vpop.f32.mrf.mxu0
      %v2039 = vadd.f32 %v2009, %v2038
      %v2040 = vand.u32 %v1911, 4294901760
      %v2041 = vsub.f32 %v1911, %v2040
      %v2042 = vand.u32 %v2041, 4294901760
      %2043 = vmatmul.f32.gmra.mxu0 %v2042
      %v2044 = vpop.f32.mrf.mxu0
      %v2045 = vadd.f32 %v2014, %v2044
      %2046 = vdwg.mxu0
      %2047 = vmatpush.msra.mxu0 0.0
      %2048 = vmatpush.msra.mxu0 0.0
      %2049 = vmatpush.msra.mxu0 0.0
      %2050 = vmatpush.msra.mxu0 0.0
      %2051 = vmatpush.msra.mxu0 0.0
      %2052 = vmatpush.msra.mxu0 0.0
      %2053 = vmatpush.msra.mxu0 0.0
      %2054 = vmatpush.msra.mxu0 0.0
      %2055 = vmatpush.msra.mxu0 0.0
      %2056 = vmatpush.msra.mxu0 0.0
      %2057 = vmatpush.msra.mxu0 0.0
      %2058 = vmatpush.msra.mxu0 0.0
      %2059 = vmatpush.msra.mxu0 0.0
      %2060 = vmatpush.msra.mxu0 0.0
      %v2061 = vand.u32 %v1913, 4294901760
      %v2062 = vsub.f32 %v1913, %v2061
      %v2063 = vand.u32 %v2062, 4294901760
      %2064 = vmatpush.msra.mxu0 %v2063
      %v2065 = vand.u32 %v1903, 4294901760
      %v2066 = vsub.f32 %v1903, %v2065
      %v2067 = vand.u32 %v2066, 4294901760
      %2068 = vmatpush.msra.mxu0 %v2067
      %v2069 = vand.u32 %v1908, 4294901760
      %2070 = vmatmul.f32.gmra.mxu0 %v2069
      %v2071 = vpop.f32.mrf.mxu0
      %v2072 = vadd.f32 %v2039, %v2071
      %v2073 = vand.u32 %v1911, 4294901760
      %2074 = vmatmul.f32.gmra.mxu0 %v2073
      %v2075 = vpop.f32.mrf.mxu0
      %v2076 = vadd.f32 %v2045, %v2075
      %2077 = vdwg.mxu0
      %2078 = vmatpush.msra.mxu0 0.0
      %2079 = vmatpush.msra.mxu0 0.0
      %2080 = vmatpush.msra.mxu0 0.0
      %2081 = vmatpush.msra.mxu0 0.0
      %2082 = vmatpush.msra.mxu0 0.0
      %2083 = vmatpush.msra.mxu0 0.0
      %2084 = vmatpush.msra.mxu0 0.0
      %2085 = vmatpush.msra.mxu0 0.0
      %2086 = vmatpush.msra.mxu0 0.0
      %2087 = vmatpush.msra.mxu0 0.0
      %2088 = vmatpush.msra.mxu0 0.0
      %2089 = vmatpush.msra.mxu0 0.0
      %2090 = vmatpush.msra.mxu0 0.0
      %2091 = vmatpush.msra.mxu0 0.0
      %v2092 = vand.u32 %v1913, 4294901760
      %2093 = vmatpush.msra.mxu0 %v2092
      %v2094 = vand.u32 %v1903, 4294901760
      %2095 = vmatpush.msra.mxu0 %v2094
      %v2096 = vand.u32 %v1908, 4294901760
      %2097 = vmatmul.f32.gmra.mxu0 %v2096
      %v2098 = vpop.f32.mrf.mxu0
      %v2099 = vadd.f32 %v2072, %v2098
      %v2100 = vand.u32 %v1911, 4294901760
      %2101 = vmatmul.f32.gmra.mxu0 %v2100
      %v2102 = vpop.f32.mrf.mxu0
      %v2103 = vadd.f32 %v2076, %v2102
      %2104 = vdwg.mxu0
      %2105 = vrot.lane.b32.xlu0 %v720, 104
      %v2106 = vpop.permute.xlu0 %2105
      %2107 = vrot.lane.b32.xlu0 %v724, 104
      %v2108 = vpop.permute.xlu0 %2107
      %2109 = vrot.lane.b32.xlu0 %v720, 72
      %v2110 = vpop.permute.xlu0 %2109
      %2111 = vrot.lane.b32.xlu0 %v724, 72
      %v2112 = vpop.permute.xlu0 %2111
      %v2113 = vsel %vm732, %v2106, 0
      %v2115 = vsel %vm732, %v2108, 0
      %v2117 = vsel %vm732, %v2110, 0
      %v2119 = vsel %vm732, %v2112, 0
      %2121 = vmatpush.xpose.msra.mxu0 0.0
      %2122 = vmatpush.xpose.msra.mxu0 0.0
      %2123 = vmatpush.xpose.msra.mxu0 0.0
      %2124 = vmatpush.xpose.msra.mxu0 0.0
      %2125 = vmatpush.xpose.msra.mxu0 0.0
      %2126 = vmatpush.xpose.msra.mxu0 0.0
      %2127 = vmatpush.xpose.msra.mxu0 0.0
      %2128 = vmatpush.xpose.msra.mxu0 0.0
      %2129 = vmatpush.xpose.msra.mxu0 0.0
      %2130 = vmatpush.xpose.msra.mxu0 0.0
      %2131 = vmatpush.xpose.msra.mxu0 0.0
      %2132 = vmatpush.xpose.msra.mxu0 0.0
      %2133 = vmatpush.xpose.msra.mxu0 0.0
      %2134 = vmatpush.xpose.msra.mxu0 0.0
      %v2135 = vand.u32 %v2119, 4294901760
      %2136 = vmatpush.xpose.msra.mxu0 %v2135
      %v2137 = vand.u32 %v2117, 4294901760
      %2138 = vmatpush.xpose.msra.mxu0 %v2137
      %v2139 = vand.u32 %v2113, 4294901760
      %v2140 = vsub.f32 %v2113, %v2139
      %v2141 = vand.u32 %v2140, 4294901760
      %v2142 = vsub.f32 %v2140, %v2141
      %v2143 = vand.u32 %v2142, 4294901760
      %2144 = vmatmul.f32.gmra.mxu0 %v2143
      %v2145 = vpop.f32.mrf.mxu0
      %v2146 = vadd.f32 0.0, %v2145
      %v2147 = vand.u32 %v2115, 4294901760
      %v2148 = vsub.f32 %v2115, %v2147
      %v2149 = vand.u32 %v2148, 4294901760
      %v2150 = vsub.f32 %v2148, %v2149
      %v2151 = vand.u32 %v2150, 4294901760
      %2152 = vmatmul.f32.gmra.mxu0 %v2151
      %v2153 = vpop.f32.mrf.mxu0
      %v2154 = vadd.f32 0.0, %v2153
      %2155 = vdwg.mxu0
      %2156 = vmatpush.xpose.msra.mxu0 0.0
      %2157 = vmatpush.xpose.msra.mxu0 0.0
      %2158 = vmatpush.xpose.msra.mxu0 0.0
      %2159 = vmatpush.xpose.msra.mxu0 0.0
      %2160 = vmatpush.xpose.msra.mxu0 0.0
      %2161 = vmatpush.xpose.msra.mxu0 0.0
      %2162 = vmatpush.xpose.msra.mxu0 0.0
      %2163 = vmatpush.xpose.msra.mxu0 0.0
      %2164 = vmatpush.xpose.msra.mxu0 0.0
      %2165 = vmatpush.xpose.msra.mxu0 0.0
      %2166 = vmatpush.xpose.msra.mxu0 0.0
      %2167 = vmatpush.xpose.msra.mxu0 0.0
      %2168 = vmatpush.xpose.msra.mxu0 0.0
      %2169 = vmatpush.xpose.msra.mxu0 0.0
      %v2170 = vand.u32 %v2119, 4294901760
      %v2171 = vsub.f32 %v2119, %v2170
      %v2172 = vand.u32 %v2171, 4294901760
      %v2173 = vsub.f32 %v2171, %v2172
      %v2174 = vand.u32 %v2173, 4294901760
      %2175 = vmatpush.xpose.msra.mxu0 %v2174
      %v2176 = vand.u32 %v2117, 4294901760
      %v2177 = vsub.f32 %v2117, %v2176
      %v2178 = vand.u32 %v2177, 4294901760
      %v2179 = vsub.f32 %v2177, %v2178
      %v2180 = vand.u32 %v2179, 4294901760
      %2181 = vmatpush.xpose.msra.mxu0 %v2180
      %v2182 = vand.u32 %v2113, 4294901760
      %2183 = vmatmul.f32.gmra.mxu0 %v2182
      %v2184 = vpop.f32.mrf.mxu0
      %v2185 = vadd.f32 %v2146, %v2184
      %v2186 = vand.u32 %v2115, 4294901760
      %2187 = vmatmul.f32.gmra.mxu0 %v2186
      %v2188 = vpop.f32.mrf.mxu0
      %v2189 = vadd.f32 %v2154, %v2188
      %2190 = vdwg.mxu0
      %2191 = vmatpush.xpose.msra.mxu0 0.0
      %2192 = vmatpush.xpose.msra.mxu0 0.0
      %2193 = vmatpush.xpose.msra.mxu0 0.0
      %2194 = vmatpush.xpose.msra.mxu0 0.0
      %2195 = vmatpush.xpose.msra.mxu0 0.0
      %2196 = vmatpush.xpose.msra.mxu0 0.0
      %2197 = vmatpush.xpose.msra.mxu0 0.0
      %2198 = vmatpush.xpose.msra.mxu0 0.0
      %2199 = vmatpush.xpose.msra.mxu0 0.0
      %2200 = vmatpush.xpose.msra.mxu0 0.0
      %2201 = vmatpush.xpose.msra.mxu0 0.0
      %2202 = vmatpush.xpose.msra.mxu0 0.0
      %2203 = vmatpush.xpose.msra.mxu0 0.0
      %2204 = vmatpush.xpose.msra.mxu0 0.0
      %v2205 = vand.u32 %v2119, 4294901760
      %v2206 = vsub.f32 %v2119, %v2205
      %2207 = vmatpush.xpose.msra.mxu0 %v2206
      %v2208 = vand.u32 %v2117, 4294901760
      %v2209 = vsub.f32 %v2117, %v2208
      %2210 = vmatpush.xpose.msra.mxu0 %v2209
      %v2211 = vand.u32 %v2113, 4294901760
      %v2212 = vsub.f32 %v2113, %v2211
      %2213 = vmatmul.f32.gmra.mxu0 %v2212
      %v2214 = vpop.f32.mrf.mxu0
      %v2215 = vadd.f32 %v2185, %v2214
      %v2216 = vand.u32 %v2115, 4294901760
      %v2217 = vsub.f32 %v2115, %v2216
      %2218 = vmatmul.f32.gmra.mxu0 %v2217
      %v2219 = vpop.f32.mrf.mxu0
      %v2220 = vadd.f32 %v2189, %v2219
      %2221 = vdwg.mxu0
      %2222 = vmatpush.xpose.msra.mxu0 0.0
      %2223 = vmatpush.xpose.msra.mxu0 0.0
      %2224 = vmatpush.xpose.msra.mxu0 0.0
      %2225 = vmatpush.xpose.msra.mxu0 0.0
      %2226 = vmatpush.xpose.msra.mxu0 0.0
      %2227 = vmatpush.xpose.msra.mxu0 0.0
      %2228 = vmatpush.xpose.msra.mxu0 0.0
      %2229 = vmatpush.xpose.msra.mxu0 0.0
      %2230 = vmatpush.xpose.msra.mxu0 0.0
      %2231 = vmatpush.xpose.msra.mxu0 0.0
      %2232 = vmatpush.xpose.msra.mxu0 0.0
      %2233 = vmatpush.xpose.msra.mxu0 0.0
      %2234 = vmatpush.xpose.msra.mxu0 0.0
      %2235 = vmatpush.xpose.msra.mxu0 0.0
      %v2236 = vand.u32 %v2119, 4294901760
      %2237 = vmatpush.xpose.msra.mxu0 %v2236
      %v2238 = vand.u32 %v2117, 4294901760
      %2239 = vmatpush.xpose.msra.mxu0 %v2238
      %v2240 = vand.u32 %v2113, 4294901760
      %v2241 = vsub.f32 %v2113, %v2240
      %v2242 = vand.u32 %v2241, 4294901760
      %2243 = vmatmul.f32.gmra.mxu0 %v2242
      %v2244 = vpop.f32.mrf.mxu0
      %v2245 = vadd.f32 %v2215, %v2244
      %v2246 = vand.u32 %v2115, 4294901760
      %v2247 = vsub.f32 %v2115, %v2246
      %v2248 = vand.u32 %v2247, 4294901760
      %2249 = vmatmul.f32.gmra.mxu0 %v2248
      %v2250 = vpop.f32.mrf.mxu0
      %v2251 = vadd.f32 %v2220, %v2250
      %2252 = vdwg.mxu0
      %2253 = vmatpush.xpose.msra.mxu0 0.0
      %2254 = vmatpush.xpose.msra.mxu0 0.0
      %2255 = vmatpush.xpose.msra.mxu0 0.0
      %2256 = vmatpush.xpose.msra.mxu0 0.0
      %2257 = vmatpush.xpose.msra.mxu0 0.0
      %2258 = vmatpush.xpose.msra.mxu0 0.0
      %2259 = vmatpush.xpose.msra.mxu0 0.0
      %2260 = vmatpush.xpose.msra.mxu0 0.0
      %2261 = vmatpush.xpose.msra.mxu0 0.0
      %2262 = vmatpush.xpose.msra.mxu0 0.0
      %2263 = vmatpush.xpose.msra.mxu0 0.0
      %2264 = vmatpush.xpose.msra.mxu0 0.0
      %2265 = vmatpush.xpose.msra.mxu0 0.0
      %2266 = vmatpush.xpose.msra.mxu0 0.0
      %v2267 = vand.u32 %v2119, 4294901760
      %v2268 = vsub.f32 %v2119, %v2267
      %v2269 = vand.u32 %v2268, 4294901760
      %2270 = vmatpush.xpose.msra.mxu0 %v2269
      %v2271 = vand.u32 %v2117, 4294901760
      %v2272 = vsub.f32 %v2117, %v2271
      %v2273 = vand.u32 %v2272, 4294901760
      %2274 = vmatpush.xpose.msra.mxu0 %v2273
      %v2275 = vand.u32 %v2113, 4294901760
      %2276 = vmatmul.f32.gmra.mxu0 %v2275
      %v2277 = vpop.f32.mrf.mxu0
      %v2278 = vadd.f32 %v2245, %v2277
      %v2279 = vand.u32 %v2115, 4294901760
      %2280 = vmatmul.f32.gmra.mxu0 %v2279
      %v2281 = vpop.f32.mrf.mxu0
      %v2282 = vadd.f32 %v2251, %v2281
      %2283 = vdwg.mxu0
      %2284 = vmatpush.xpose.msra.mxu0 0.0
      %2285 = vmatpush.xpose.msra.mxu0 0.0
      %2286 = vmatpush.xpose.msra.mxu0 0.0
      %2287 = vmatpush.xpose.msra.mxu0 0.0
      %2288 = vmatpush.xpose.msra.mxu0 0.0
      %2289 = vmatpush.xpose.msra.mxu0 0.0
      %2290 = vmatpush.xpose.msra.mxu0 0.0
      %2291 = vmatpush.xpose.msra.mxu0 0.0
      %2292 = vmatpush.xpose.msra.mxu0 0.0
      %2293 = vmatpush.xpose.msra.mxu0 0.0
      %2294 = vmatpush.xpose.msra.mxu0 0.0
      %2295 = vmatpush.xpose.msra.mxu0 0.0
      %2296 = vmatpush.xpose.msra.mxu0 0.0
      %2297 = vmatpush.xpose.msra.mxu0 0.0
      %v2298 = vand.u32 %v2119, 4294901760
      %2299 = vmatpush.xpose.msra.mxu0 %v2298
      %v2300 = vand.u32 %v2117, 4294901760
      %2301 = vmatpush.xpose.msra.mxu0 %v2300
      %v2302 = vand.u32 %v2113, 4294901760
      %2303 = vmatmul.f32.gmra.mxu0 %v2302
      %v2304 = vpop.f32.mrf.mxu0
      %v2305 = vadd.f32 %v2278, %v2304
      %v2306 = vand.u32 %v2115, 4294901760
      %2307 = vmatmul.f32.gmra.mxu0 %v2306
      %v2308 = vpop.f32.mrf.mxu0
      %v2309 = vadd.f32 %v2282, %v2308
      %2310 = vdwg.mxu0
      %v2311 = vmul.f32 %v2305, 0.35355338
      %v2312 = vmul.f32 %v2309, 0.35355338
      %v2313 = vsel %vm933, %v2311, -inf
      %2314 = vmax.xlane.f32.xlu0 %v2313
      %v2315 = vpop.xlane.xlu0 %2314
      %v2316 = vsel %vm937, %v2312, -inf
      %2317 = vmax.xlane.f32.xlu0 %v2316
      %v2318 = vpop.xlane.xlu0 %2317
      %v2319 = vsub.f32 %v2311, %v2315
      %v2320 = vsub.f32 %v2312, %v2318
      %v2321 = vmul.f32 %v2319, 1.442695
      %v2322 = vpow.pop %v2321
      %v2323 = vmul.f32 %v2320, 1.442695
      %v2324 = vpow.pop %v2323
      %v2325 = vsel %vm933, %v2322, 0.0
      %2326 = vadd.xlane.f32.xlu0 %v2325
      %v2327 = vpop.xlane.xlu0 %2326
      %v2328 = vsel %vm937, %v2324, 0.0
      %2329 = vadd.xlane.f32.xlu0 %v2328
      %v2330 = vpop.xlane.xlu0 %2329
      %v2331 = vrcp.pop %v2327
      %v2332 = vmul.f32 %v2327, %v2331
      %v2333 = vsub.f32 1.0, %v2332
      %v2334 = vmul.f32 %v2331, %v2333
      %v2335 = vadd.f32 %v2331, %v2334
      %vm2336 = vweird.f32 %v2327
      %vm2337 = vweird.f32 %v2331
      %vm2338 = vmor %vm2336, %vm2337
      %v2339 = vsel %vm2338, %v2331, %v2335
      %v2340 = vand.u32 2147483647, %v2327
      %vm2341 = vcmp.eq.f32.partialorder %v2340, 8.507059e+37
      %v2342 = vand.u32 %v2327, 2147483648
      %v2343 = vor.u32 1.1754944e-38, %v2342
      %v2344 = vsel %vm2341, %v2343, %v2339
      %v2345 = vmul.f32 %v2322, %v2344
      %v2346 = vrcp.pop %v2330
      %v2347 = vmul.f32 %v2330, %v2346
      %v2348 = vsub.f32 1.0, %v2347
      %v2349 = vmul.f32 %v2346, %v2348
      %v2350 = vadd.f32 %v2346, %v2349
      %vm2351 = vweird.f32 %v2330
      %vm2352 = vweird.f32 %v2346
      %vm2353 = vmor %vm2351, %vm2352
      %v2354 = vsel %vm2353, %v2346, %v2350
      %v2355 = vand.u32 2147483647, %v2330
      %vm2356 = vcmp.eq.f32.partialorder %v2355, 8.507059e+37
      %v2357 = vand.u32 %v2330, 2147483648
      %v2358 = vor.u32 1.1754944e-38, %v2357
      %v2359 = vsel %vm2356, %v2358, %v2354
      %v2360 = vmul.f32 %v2324, %v2359
      %2361 = vrot.lane.b32.xlu0 %v720, 40
      %v2362 = vpop.permute.xlu0 %2361
      %2363 = vrot.lane.b32.xlu0 %v724, 40
      %v2364 = vpop.permute.xlu0 %2363
      %v2367 = vsel %vm933, %v2345, 0
      %v2370 = vsel %vm933, %v2360, 0
      %v2372 = vsel %vm994, %v2364, 0
      %2374 = vmatpush.msra.mxu0 0.0
      %2375 = vmatpush.msra.mxu0 0.0
      %2376 = vmatpush.msra.mxu0 0.0
      %2377 = vmatpush.msra.mxu0 0.0
      %2378 = vmatpush.msra.mxu0 0.0
      %2379 = vmatpush.msra.mxu0 0.0
      %2380 = vmatpush.msra.mxu0 0.0
      %2381 = vmatpush.msra.mxu0 0.0
      %2382 = vmatpush.msra.mxu0 0.0
      %2383 = vmatpush.msra.mxu0 0.0
      %2384 = vmatpush.msra.mxu0 0.0
      %2385 = vmatpush.msra.mxu0 0.0
      %2386 = vmatpush.msra.mxu0 0.0
      %2387 = vmatpush.msra.mxu0 0.0
      %v2388 = vand.u32 %v2372, 4294901760
      %2389 = vmatpush.msra.mxu0 %v2388
      %v2390 = vand.u32 %v2362, 4294901760
      %2391 = vmatpush.msra.mxu0 %v2390
      %v2392 = vand.u32 %v2367, 4294901760
      %v2393 = vsub.f32 %v2367, %v2392
      %v2394 = vand.u32 %v2393, 4294901760
      %v2395 = vsub.f32 %v2393, %v2394
      %v2396 = vand.u32 %v2395, 4294901760
      %2397 = vmatmul.f32.gmra.mxu0 %v2396
      %v2398 = vpop.f32.mrf.mxu0
      %v2399 = vadd.f32 0.0, %v2398
      %v2400 = vand.u32 %v2370, 4294901760
      %v2401 = vsub.f32 %v2370, %v2400
      %v2402 = vand.u32 %v2401, 4294901760
      %v2403 = vsub.f32 %v2401, %v2402
      %v2404 = vand.u32 %v2403, 4294901760
      %2405 = vmatmul.f32.gmra.mxu0 %v2404
      %v2406 = vpop.f32.mrf.mxu0
      %v2407 = vadd.f32 0.0, %v2406
      %2408 = vdwg.mxu0
      %2409 = vmatpush.msra.mxu0 0.0
      %2410 = vmatpush.msra.mxu0 0.0
      %2411 = vmatpush.msra.mxu0 0.0
      %2412 = vmatpush.msra.mxu0 0.0
      %2413 = vmatpush.msra.mxu0 0.0
      %2414 = vmatpush.msra.mxu0 0.0
      %2415 = vmatpush.msra.mxu0 0.0
      %2416 = vmatpush.msra.mxu0 0.0
      %2417 = vmatpush.msra.mxu0 0.0
      %2418 = vmatpush.msra.mxu0 0.0
      %2419 = vmatpush.msra.mxu0 0.0
      %2420 = vmatpush.msra.mxu0 0.0
      %2421 = vmatpush.msra.mxu0 0.0
      %2422 = vmatpush.msra.mxu0 0.0
      %v2423 = vand.u32 %v2372, 4294901760
      %v2424 = vsub.f32 %v2372, %v2423
      %v2425 = vand.u32 %v2424, 4294901760
      %v2426 = vsub.f32 %v2424, %v2425
      %v2427 = vand.u32 %v2426, 4294901760
      %2428 = vmatpush.msra.mxu0 %v2427
      %v2429 = vand.u32 %v2362, 4294901760
      %v2430 = vsub.f32 %v2362, %v2429
      %v2431 = vand.u32 %v2430, 4294901760
      %v2432 = vsub.f32 %v2430, %v2431
      %v2433 = vand.u32 %v2432, 4294901760
      %2434 = vmatpush.msra.mxu0 %v2433
      %v2435 = vand.u32 %v2367, 4294901760
      %2436 = vmatmul.f32.gmra.mxu0 %v2435
      %v2437 = vpop.f32.mrf.mxu0
      %v2438 = vadd.f32 %v2399, %v2437
      %v2439 = vand.u32 %v2370, 4294901760
      %2440 = vmatmul.f32.gmra.mxu0 %v2439
      %v2441 = vpop.f32.mrf.mxu0
      %v2442 = vadd.f32 %v2407, %v2441
      %2443 = vdwg.mxu0
      %2444 = vmatpush.msra.mxu0 0.0
      %2445 = vmatpush.msra.mxu0 0.0
      %2446 = vmatpush.msra.mxu0 0.0
      %2447 = vmatpush.msra.mxu0 0.0
      %2448 = vmatpush.msra.mxu0 0.0
      %2449 = vmatpush.msra.mxu0 0.0
      %2450 = vmatpush.msra.mxu0 0.0
      %2451 = vmatpush.msra.mxu0 0.0
      %2452 = vmatpush.msra.mxu0 0.0
      %2453 = vmatpush.msra.mxu0 0.0
      %2454 = vmatpush.msra.mxu0 0.0
      %2455 = vmatpush.msra.mxu0 0.0
      %2456 = vmatpush.msra.mxu0 0.0
      %2457 = vmatpush.msra.mxu0 0.0
      %v2458 = vand.u32 %v2372, 4294901760
      %v2459 = vsub.f32 %v2372, %v2458
      %2460 = vmatpush.msra.mxu0 %v2459
      %v2461 = vand.u32 %v2362, 4294901760
      %v2462 = vsub.f32 %v2362, %v2461
      %2463 = vmatpush.msra.mxu0 %v2462
      %v2464 = vand.u32 %v2367, 4294901760
      %v2465 = vsub.f32 %v2367, %v2464
      %2466 = vmatmul.f32.gmra.mxu0 %v2465
      %v2467 = vpop.f32.mrf.mxu0
      %v2468 = vadd.f32 %v2438, %v2467
      %v2469 = vand.u32 %v2370, 4294901760
      %v2470 = vsub.f32 %v2370, %v2469
      %2471 = vmatmul.f32.gmra.mxu0 %v2470
      %v2472 = vpop.f32.mrf.mxu0
      %v2473 = vadd.f32 %v2442, %v2472
      %2474 = vdwg.mxu0
      %2475 = vmatpush.msra.mxu0 0.0
      %2476 = vmatpush.msra.mxu0 0.0
      %2477 = vmatpush.msra.mxu0 0.0
      %2478 = vmatpush.msra.mxu0 0.0
      %2479 = vmatpush.msra.mxu0 0.0
      %2480 = vmatpush.msra.mxu0 0.0
      %2481 = vmatpush.msra.mxu0 0.0
      %2482 = vmatpush.msra.mxu0 0.0
      %2483 = vmatpush.msra.mxu0 0.0
      %2484 = vmatpush.msra.mxu0 0.0
      %2485 = vmatpush.msra.mxu0 0.0
      %2486 = vmatpush.msra.mxu0 0.0
      %2487 = vmatpush.msra.mxu0 0.0
      %2488 = vmatpush.msra.mxu0 0.0
      %v2489 = vand.u32 %v2372, 4294901760
      %2490 = vmatpush.msra.mxu0 %v2489
      %v2491 = vand.u32 %v2362, 4294901760
      %2492 = vmatpush.msra.mxu0 %v2491
      %v2493 = vand.u32 %v2367, 4294901760
      %v2494 = vsub.f32 %v2367, %v2493
      %v2495 = vand.u32 %v2494, 4294901760
      %2496 = vmatmul.f32.gmra.mxu0 %v2495
      %v2497 = vpop.f32.mrf.mxu0
      %v2498 = vadd.f32 %v2468, %v2497
      %v2499 = vand.u32 %v2370, 4294901760
      %v2500 = vsub.f32 %v2370, %v2499
      %v2501 = vand.u32 %v2500, 4294901760
      %2502 = vmatmul.f32.gmra.mxu0 %v2501
      %v2503 = vpop.f32.mrf.mxu0
      %v2504 = vadd.f32 %v2473, %v2503
      %2505 = vdwg.mxu0
      %2506 = vmatpush.msra.mxu0 0.0
      %2507 = vmatpush.msra.mxu0 0.0
      %2508 = vmatpush.msra.mxu0 0.0
      %2509 = vmatpush.msra.mxu0 0.0
      %2510 = vmatpush.msra.mxu0 0.0
      %2511 = vmatpush.msra.mxu0 0.0
      %2512 = vmatpush.msra.mxu0 0.0
      %2513 = vmatpush.msra.mxu0 0.0
      %2514 = vmatpush.msra.mxu0 0.0
      %2515 = vmatpush.msra.mxu0 0.0
      %2516 = vmatpush.msra.mxu0 0.0
      %2517 = vmatpush.msra.mxu0 0.0
      %2518 = vmatpush.msra.mxu0 0.0
      %2519 = vmatpush.msra.mxu0 0.0
      %v2520 = vand.u32 %v2372, 4294901760
      %v2521 = vsub.f32 %v2372, %v2520
      %v2522 = vand.u32 %v2521, 4294901760
      %2523 = vmatpush.msra.mxu0 %v2522
      %v2524 = vand.u32 %v2362, 4294901760
      %v2525 = vsub.f32 %v2362, %v2524
      %v2526 = vand.u32 %v2525, 4294901760
      %2527 = vmatpush.msra.mxu0 %v2526
      %v2528 = vand.u32 %v2367, 4294901760
      %2529 = vmatmul.f32.gmra.mxu0 %v2528
      %v2530 = vpop.f32.mrf.mxu0
      %v2531 = vadd.f32 %v2498, %v2530
      %v2532 = vand.u32 %v2370, 4294901760
      %2533 = vmatmul.f32.gmra.mxu0 %v2532
      %v2534 = vpop.f32.mrf.mxu0
      %v2535 = vadd.f32 %v2504, %v2534
      %2536 = vdwg.mxu0
      %2537 = vmatpush.msra.mxu0 0.0
      %2538 = vmatpush.msra.mxu0 0.0
      %2539 = vmatpush.msra.mxu0 0.0
      %2540 = vmatpush.msra.mxu0 0.0
      %2541 = vmatpush.msra.mxu0 0.0
      %2542 = vmatpush.msra.mxu0 0.0
      %2543 = vmatpush.msra.mxu0 0.0
      %2544 = vmatpush.msra.mxu0 0.0
      %2545 = vmatpush.msra.mxu0 0.0
      %2546 = vmatpush.msra.mxu0 0.0
      %2547 = vmatpush.msra.mxu0 0.0
      %2548 = vmatpush.msra.mxu0 0.0
      %2549 = vmatpush.msra.mxu0 0.0
      %2550 = vmatpush.msra.mxu0 0.0
      %v2551 = vand.u32 %v2372, 4294901760
      %2552 = vmatpush.msra.mxu0 %v2551
      %v2553 = vand.u32 %v2362, 4294901760
      %2554 = vmatpush.msra.mxu0 %v2553
      %v2555 = vand.u32 %v2367, 4294901760
      %2556 = vmatmul.f32.gmra.mxu0 %v2555
      %v2557 = vpop.f32.mrf.mxu0
      %v2558 = vadd.f32 %v2531, %v2557
      %v2559 = vand.u32 %v2370, 4294901760
      %2560 = vmatmul.f32.gmra.mxu0 %v2559
      %v2561 = vpop.f32.mrf.mxu0
      %v2562 = vadd.f32 %v2535, %v2561
      %2563 = vdwg.mxu0
      %2566 = vrot.lane.b32.xlu0 %v1640, 8
      %v2567 = vpop.permute.xlu0 %2566
      %2568 = vrot.lane.b32.xlu0 %v1644, 8
      %v2569 = vpop.permute.xlu0 %2568
      %2574 = vrot.lane.b32.xlu0 %v2099, 16
      %v2575 = vpop.permute.xlu0 %2574
      %2576 = vrot.lane.b32.xlu0 %v2103, 16
      %v2577 = vpop.permute.xlu0 %2576
      %2582 = vrot.lane.b32.xlu0 %v2558, 24
      %v2583 = vpop.permute.xlu0 %2582
      %2584 = vrot.lane.b32.xlu0 %v2562, 24
      %v2585 = vpop.permute.xlu0 %2584
      %v2588 = vsel %vm732, %v1181, %v2567
      %v2589 = vsel %vm732, %v1185, %v2569
      %vm2590 = vcmask 130048
      %v2591 = vsel %vm2590, %v2588, %v2575
      %v2592 = vsel %vm2590, %v2589, %v2577
      %vm2593 = vcmask 195584
      %v2594 = vsel %vm2593, %v2591, %v2583
      %v2595 = vsel %vm2593, %v2592, %v2585
      %v2596 = vld [vmem:[%s3] sm:$0xff]
      %v2597 = vld [vmem:[%s3 + $0x8] sm:$0xff]
      %v2598 = vld [vmem:[%s3 + $0x10] sm:$0xff]
      %v2599 = vld [vmem:[%s3 + $0x18] sm:$0xff]
      %v2600 = vld [vmem:[%s4] sm:$0x1]
      %v2602 = vperm.slane %v2600, 0
      %v2605 = vsel %vm503, %v2594, 0
      %v2608 = vsel %vm503, %v2595, 0
      %2610 = vmatpush.msra.mxu0 0.0
      %2611 = vmatpush.msra.mxu0 0.0
      %2612 = vmatpush.msra.mxu0 0.0
      %2613 = vmatpush.msra.mxu0 0.0
      %2614 = vmatpush.msra.mxu0 0.0
      %2615 = vmatpush.msra.mxu0 0.0
      %2616 = vmatpush.msra.mxu0 0.0
      %2617 = vmatpush.msra.mxu0 0.0
      %2618 = vmatpush.msra.mxu0 0.0
      %2619 = vmatpush.msra.mxu0 0.0
      %2620 = vmatpush.msra.mxu0 0.0
      %2621 = vmatpush.msra.mxu0 0.0
      %v2622 = vand.u32 %v2599, 4294901760
      %2623 = vmatpush.msra.mxu0 %v2622
      %v2624 = vand.u32 %v2598, 4294901760
      %2625 = vmatpush.msra.mxu0 %v2624
      %v2626 = vand.u32 %v2597, 4294901760
      %2627 = vmatpush.msra.mxu0 %v2626
      %v2628 = vand.u32 %v2596, 4294901760
      %2629 = vmatpush.msra.mxu0 %v2628
      %v2630 = vand.u32 %v2605, 4294901760
      %v2631 = vsub.f32 %v2605, %v2630
      %v2632 = vand.u32 %v2631, 4294901760
      %v2633 = vsub.f32 %v2631, %v2632
      %v2634 = vand.u32 %v2633, 4294901760
      %2635 = vmatmul.f32.gmra.mxu0 %v2634
      %v2636 = vpop.f32.mrf.mxu0
      %v2637 = vadd.f32 %v2602, %v2636
      %v2638 = vand.u32 %v2608, 4294901760
      %v2639 = vsub.f32 %v2608, %v2638
      %v2640 = vand.u32 %v2639, 4294901760
      %v2641 = vsub.f32 %v2639, %v2640
      %v2642 = vand.u32 %v2641, 4294901760
      %2643 = vmatmul.f32.gmra.mxu0 %v2642
      %v2644 = vpop.f32.mrf.mxu0
      %v2645 = vadd.f32 %v2602, %v2644
      %2646 = vdwg.mxu0
      %2647 = vmatpush.msra.mxu0 0.0
      %2648 = vmatpush.msra.mxu0 0.0
      %2649 = vmatpush.msra.mxu0 0.0
      %2650 = vmatpush.msra.mxu0 0.0
      %2651 = vmatpush.msra.mxu0 0.0
      %2652 = vmatpush.msra.mxu0 0.0
      %2653 = vmatpush.msra.mxu0 0.0
      %2654 = vmatpush.msra.mxu0 0.0
      %2655 = vmatpush.msra.mxu0 0.0
      %2656 = vmatpush.msra.mxu0 0.0
      %2657 = vmatpush.msra.mxu0 0.0
      %2658 = vmatpush.msra.mxu0 0.0
      %v2659 = vand.u32 %v2599, 4294901760
      %v2660 = vsub.f32 %v2599, %v2659
      %v2661 = vand.u32 %v2660, 4294901760
      %v2662 = vsub.f32 %v2660, %v2661
      %v2663 = vand.u32 %v2662, 4294901760
      %2664 = vmatpush.msra.mxu0 %v2663
      %v2665 = vand.u32 %v2598, 4294901760
      %v2666 = vsub.f32 %v2598, %v2665
      %v2667 = vand.u32 %v2666, 4294901760
      %v2668 = vsub.f32 %v2666, %v2667
      %v2669 = vand.u32 %v2668, 4294901760
      %2670 = vmatpush.msra.mxu0 %v2669
      %v2671 = vand.u32 %v2597, 4294901760
      %v2672 = vsub.f32 %v2597, %v2671
      %v2673 = vand.u32 %v2672, 4294901760
      %v2674 = vsub.f32 %v2672, %v2673
      %v2675 = vand.u32 %v2674, 4294901760
      %2676 = vmatpush.msra.mxu0 %v2675
      %v2677 = vand.u32 %v2596, 4294901760
      %v2678 = vsub.f32 %v2596, %v2677
      %v2679 = vand.u32 %v2678, 4294901760
      %v2680 = vsub.f32 %v2678, %v2679
      %v2681 = vand.u32 %v2680, 4294901760
      %2682 = vmatpush.msra.mxu0 %v2681
      %v2683 = vand.u32 %v2605, 4294901760
      %2684 = vmatmul.f32.gmra.mxu0 %v2683
      %v2685 = vpop.f32.mrf.mxu0
      %v2686 = vadd.f32 %v2637, %v2685
      %v2687 = vand.u32 %v2608, 4294901760
      %2688 = vmatmul.f32.gmra.mxu0 %v2687
      %v2689 = vpop.f32.mrf.mxu0
      %v2690 = vadd.f32 %v2645, %v2689
      %2691 = vdwg.mxu0
      %2692 = vmatpush.msra.mxu0 0.0
      %2693 = vmatpush.msra.mxu0 0.0
      %2694 = vmatpush.msra.mxu0 0.0
      %2695 = vmatpush.msra.mxu0 0.0
      %2696 = vmatpush.msra.mxu0 0.0
      %2697 = vmatpush.msra.mxu0 0.0
      %2698 = vmatpush.msra.mxu0 0.0
      %2699 = vmatpush.msra.mxu0 0.0
      %2700 = vmatpush.msra.mxu0 0.0
      %2701 = vmatpush.msra.mxu0 0.0
      %2702 = vmatpush.msra.mxu0 0.0
      %2703 = vmatpush.msra.mxu0 0.0
      %v2704 = vand.u32 %v2599, 4294901760
      %v2705 = vsub.f32 %v2599, %v2704
      %2706 = vmatpush.msra.mxu0 %v2705
      %v2707 = vand.u32 %v2598, 4294901760
      %v2708 = vsub.f32 %v2598, %v2707
      %2709 = vmatpush.msra.mxu0 %v2708
      %v2710 = vand.u32 %v2597, 4294901760
      %v2711 = vsub.f32 %v2597, %v2710
      %2712 = vmatpush.msra.mxu0 %v2711
      %v2713 = vand.u32 %v2596, 4294901760
      %v2714 = vsub.f32 %v2596, %v2713
      %2715 = vmatpush.msra.mxu0 %v2714
      %v2716 = vand.u32 %v2605, 4294901760
      %v2717 = vsub.f32 %v2605, %v2716
      %2718 = vmatmul.f32.gmra.mxu0 %v2717
      %v2719 = vpop.f32.mrf.mxu0
      %v2720 = vadd.f32 %v2686, %v2719
      %v2721 = vand.u32 %v2608, 4294901760
      %v2722 = vsub.f32 %v2608, %v2721
      %2723 = vmatmul.f32.gmra.mxu0 %v2722
      %v2724 = vpop.f32.mrf.mxu0
      %v2725 = vadd.f32 %v2690, %v2724
      %2726 = vdwg.mxu0
      %2727 = vmatpush.msra.mxu0 0.0
      %2728 = vmatpush.msra.mxu0 0.0
      %2729 = vmatpush.msra.mxu0 0.0
      %2730 = vmatpush.msra.mxu0 0.0
      %2731 = vmatpush.msra.mxu0 0.0
      %2732 = vmatpush.msra.mxu0 0.0
      %2733 = vmatpush.msra.mxu0 0.0
      %2734 = vmatpush.msra.mxu0 0.0
      %2735 = vmatpush.msra.mxu0 0.0
      %2736 = vmatpush.msra.mxu0 0.0
      %2737 = vmatpush.msra.mxu0 0.0
      %2738 = vmatpush.msra.mxu0 0.0
      %v2739 = vand.u32 %v2599, 4294901760
      %2740 = vmatpush.msra.mxu0 %v2739
      %v2741 = vand.u32 %v2598, 4294901760
      %2742 = vmatpush.msra.mxu0 %v2741
      %v2743 = vand.u32 %v2597, 4294901760
      %2744 = vmatpush.msra.mxu0 %v2743
      %v2745 = vand.u32 %v2596, 4294901760
      %2746 = vmatpush.msra.mxu0 %v2745
      %v2747 = vand.u32 %v2605, 4294901760
      %v2748 = vsub.f32 %v2605, %v2747
      %v2749 = vand.u32 %v2748, 4294901760
      %2750 = vmatmul.f32.gmra.mxu0 %v2749
      %v2751 = vpop.f32.mrf.mxu0
      %v2752 = vadd.f32 %v2720, %v2751
      %v2753 = vand.u32 %v2608, 4294901760
      %v2754 = vsub.f32 %v2608, %v2753
      %v2755 = vand.u32 %v2754, 4294901760
      %2756 = vmatmul.f32.gmra.mxu0 %v2755
      %v2757 = vpop.f32.mrf.mxu0
      %v2758 = vadd.f32 %v2725, %v2757
      %2759 = vdwg.mxu0
      %2760 = vmatpush.msra.mxu0 0.0
      %2761 = vmatpush.msra.mxu0 0.0
      %2762 = vmatpush.msra.mxu0 0.0
      %2763 = vmatpush.msra.mxu0 0.0
      %2764 = vmatpush.msra.mxu0 0.0
      %2765 = vmatpush.msra.mxu0 0.0
      %2766 = vmatpush.msra.mxu0 0.0
      %2767 = vmatpush.msra.mxu0 0.0
      %2768 = vmatpush.msra.mxu0 0.0
      %2769 = vmatpush.msra.mxu0 0.0
      %2770 = vmatpush.msra.mxu0 0.0
      %2771 = vmatpush.msra.mxu0 0.0
      %v2772 = vand.u32 %v2599, 4294901760
      %v2773 = vsub.f32 %v2599, %v2772
      %v2774 = vand.u32 %v2773, 4294901760
      %2775 = vmatpush.msra.mxu0 %v2774
      %v2776 = vand.u32 %v2598, 4294901760
      %v2777 = vsub.f32 %v2598, %v2776
      %v2778 = vand.u32 %v2777, 4294901760
      %2779 = vmatpush.msra.mxu0 %v2778
      %v2780 = vand.u32 %v2597, 4294901760
      %v2781 = vsub.f32 %v2597, %v2780
      %v2782 = vand.u32 %v2781, 4294901760
      %2783 = vmatpush.msra.mxu0 %v2782
      %v2784 = vand.u32 %v2596, 4294901760
      %v2785 = vsub.f32 %v2596, %v2784
      %v2786 = vand.u32 %v2785, 4294901760
      %2787 = vmatpush.msra.mxu0 %v2786
      %v2788 = vand.u32 %v2605, 4294901760
      %2789 = vmatmul.f32.gmra.mxu0 %v2788
      %v2790 = vpop.f32.mrf.mxu0
      %v2791 = vadd.f32 %v2752, %v2790
      %v2792 = vand.u32 %v2608, 4294901760
      %2793 = vmatmul.f32.gmra.mxu0 %v2792
      %v2794 = vpop.f32.mrf.mxu0
      %v2795 = vadd.f32 %v2758, %v2794
      %2796 = vdwg.mxu0
      %2797 = vmatpush.msra.mxu0 0.0
      %2798 = vmatpush.msra.mxu0 0.0
      %2799 = vmatpush.msra.mxu0 0.0
      %2800 = vmatpush.msra.mxu0 0.0
      %2801 = vmatpush.msra.mxu0 0.0
      %2802 = vmatpush.msra.mxu0 0.0
      %2803 = vmatpush.msra.mxu0 0.0
      %2804 = vmatpush.msra.mxu0 0.0
      %2805 = vmatpush.msra.mxu0 0.0
      %2806 = vmatpush.msra.mxu0 0.0
      %2807 = vmatpush.msra.mxu0 0.0
      %2808 = vmatpush.msra.mxu0 0.0
      %v2809 = vand.u32 %v2599, 4294901760
      %2810 = vmatpush.msra.mxu0 %v2809
      %v2811 = vand.u32 %v2598, 4294901760
      %2812 = vmatpush.msra.mxu0 %v2811
      %v2813 = vand.u32 %v2597, 4294901760
      %2814 = vmatpush.msra.mxu0 %v2813
      %v2815 = vand.u32 %v2596, 4294901760
      %2816 = vmatpush.msra.mxu0 %v2815
      %v2817 = vand.u32 %v2605, 4294901760
      %2818 = vmatmul.f32.gmra.mxu0 %v2817
      %v2819 = vpop.f32.mrf.mxu0
      %v2820 = vadd.f32 %v2791, %v2819
      %v2821 = vand.u32 %v2608, 4294901760
      %2822 = vmatmul.f32.gmra.mxu0 %v2821
      %v2823 = vpop.f32.mrf.mxu0
      %v2824 = vadd.f32 %v2795, %v2823
      %2825 = vdwg.mxu0
      %v2826 = vadd.f32 %v2820, %v493
      %v2827 = vadd.f32 %v2824, %v494
      %v2828 = vld [vmem:[%s5] sm:$0x1]
      %v2829 = vld [vmem:[%s6] sm:$0x1]
      %v2830 = vsel %vm503, %v2826, 0.0
      %2831 = vadd.xlane.f32.xlu0 %v2830
      %v2832 = vpop.xlane.xlu0 %2831
      %vm2833 = vcmask 253952
      %v2834 = vsel %vm2833, %v2827, 0.0
      %2835 = vadd.xlane.f32.xlu0 %v2834
      %v2836 = vpop.xlane.xlu0 %2835
      %v2837 = vrcp.pop 32.0
      %v2838 = vmul.f32 32.0, %v2837
      %v2839 = vsub.f32 1.0, %v2838
      %v2840 = vmul.f32 %v2837, %v2839
      %v2841 = vadd.f32 %v2837, %v2840
      %vm2842 = vweird.f32 %v2837
      %v2843 = vsel %vm2842, %v2837, %v2841
      %v2844 = vmul.f32 %v2832, %v2843
      %v2845 = vmul.f32 %v2836, %v2843
      %v2846 = vsub.f32 %v2826, %v2844
      %v2847 = vsub.f32 %v2827, %v2845
      %v2848 = vmul.f32 %v2846, %v2846
      %v2849 = vmul.f32 %v2847, %v2847
      %v2850 = vsel %vm503, %v2848, 0.0
      %2851 = vadd.xlane.f32.xlu0 %v2850
      %v2852 = vpop.xlane.xlu0 %2851
      %v2853 = vsel %vm2833, %v2849, 0.0
      %2854 = vadd.xlane.f32.xlu0 %v2853
      %v2855 = vpop.xlane.xlu0 %2854
      %v2856 = vmul.f32 %v2852, %v2843
      %v2857 = vmul.f32 %v2855, %v2843
      %v2858 = vadd.f32 %v2856, 1e-05
      %v2859 = vadd.f32 %v2857, 1e-05
      %v2860 = vrsqrt.pop %v2858
      %v2861 = vmul.f32 %v2860, %v2858
      %v2862 = vmul.f32 %v2861, %v2860
      %v2863 = vmul.f32 0.5, %v2862
      %v2864 = vsub.f32 1.5, %v2863
      %v2865 = vmul.f32 %v2860, %v2864
      %vm2866 = vweird.f32 %v2858
      %vm2867 = vweird.f32 %v2860
      %vm2868 = vmor %vm2866, %vm2867
      %v2869 = vsel %vm2868, %v2860, %v2865
      %v2870 = vrsqrt.pop %v2859
      %v2871 = vmul.f32 %v2870, %v2859
      %v2872 = vmul.f32 %v2871, %v2870
      %v2873 = vmul.f32 0.5, %v2872
      %v2874 = vsub.f32 1.5, %v2873
      %v2875 = vmul.f32 %v2870, %v2874
      %vm2876 = vweird.f32 %v2859
      %vm2877 = vweird.f32 %v2870
      %vm2878 = vmor %vm2876, %vm2877
      %v2879 = vsel %vm2878, %v2870, %v2875
      %v2880 = vmul.f32 %v2846, %v2869
      %v2881 = vmul.f32 %v2847, %v2879
      %v2883 = vperm.slane %v2828, 0
      %v2885 = vmul.f32 %v2880, %v2883
      %v2886 = vmul.f32 %v2881, %v2883
      %v2888 = vperm.slane %v2829, 0
      %v2890 = vadd.f32 %v2885, %v2888
      %v2891 = vadd.f32 %v2886, %v2888
      %v2892 = vld [vmem:[%s7] sm:$0xff]
      %v2893 = vld [vmem:[%s7 + $0x8] sm:$0xff]
      %v2894 = vld [vmem:[%s7 + $0x10] sm:$0xff]
      %v2895 = vld [vmem:[%s7 + $0x18] sm:$0xff]
      %v2896 = vld [vmem:[%s8] sm:$0x1]
      %v2898 = vperm.slane %v2896, 0
      %v2901 = vsel %vm503, %v2890, 0
      %v2904 = vsel %vm503, %v2891, 0
      %2906 = vmatpush.msra.mxu0 0.0
      %2907 = vmatpush.msra.mxu0 0.0
      %2908 = vmatpush.msra.mxu0 0.0
      %2909 = vmatpush.msra.mxu0 0.0
      %2910 = vmatpush.msra.mxu0 0.0
      %2911 = vmatpush.msra.mxu0 0.0
      %2912 = vmatpush.msra.mxu0 0.0
      %2913 = vmatpush.msra.mxu0 0.0
      %2914 = vmatpush.msra.mxu0 0.0
      %2915 = vmatpush.msra.mxu0 0.0
      %2916 = vmatpush.msra.mxu0 0.0
      %2917 = vmatpush.msra.mxu0 0.0
      %v2918 = vand.u32 %v2895, 4294901760
      %2919 = vmatpush.msra.mxu0 %v2918
      %v2920 = vand.u32 %v2894, 4294901760
      %2921 = vmatpush.msra.mxu0 %v2920
      %v2922 = vand.u32 %v2893, 4294901760
      %2923 = vmatpush.msra.mxu0 %v2922
      %v2924 = vand.u32 %v2892, 4294901760
      %2925 = vmatpush.msra.mxu0 %v2924
      %v2926 = vand.u32 %v2901, 4294901760
      %v2927 = vsub.f32 %v2901, %v2926
      %v2928 = vand.u32 %v2927, 4294901760
      %v2929 = vsub.f32 %v2927, %v2928
      %v2930 = vand.u32 %v2929, 4294901760
      %2931 = vmatmul.f32.gmra.mxu0 %v2930
      %v2932 = vpop.f32.mrf.mxu0
      %v2933 = vadd.f32 %v2898, %v2932
      %v2934 = vand.u32 %v2904, 4294901760
      %v2935 = vsub.f32 %v2904, %v2934
      %v2936 = vand.u32 %v2935, 4294901760
      %v2937 = vsub.f32 %v2935, %v2936
      %v2938 = vand.u32 %v2937, 4294901760
      %2939 = vmatmul.f32.gmra.mxu0 %v2938
      %v2940 = vpop.f32.mrf.mxu0
      %v2941 = vadd.f32 %v2898, %v2940
      %2942 = vdwg.mxu0
      %2943 = vmatpush.msra.mxu0 0.0
      %2944 = vmatpush.msra.mxu0 0.0
      %2945 = vmatpush.msra.mxu0 0.0
      %2946 = vmatpush.msra.mxu0 0.0
      %2947 = vmatpush.msra.mxu0 0.0
      %2948 = vmatpush.msra.mxu0 0.0
      %2949 = vmatpush.msra.mxu0 0.0
      %2950 = vmatpush.msra.mxu0 0.0
      %2951 = vmatpush.msra.mxu0 0.0
      %2952 = vmatpush.msra.mxu0 0.0
      %2953 = vmatpush.msra.mxu0 0.0
      %2954 = vmatpush.msra.mxu0 0.0
      %v2955 = vand.u32 %v2895, 4294901760
      %v2956 = vsub.f32 %v2895, %v2955
      %v2957 = vand.u32 %v2956, 4294901760
      %v2958 = vsub.f32 %v2956, %v2957
      %v2959 = vand.u32 %v2958, 4294901760
      %2960 = vmatpush.msra.mxu0 %v2959
      %v2961 = vand.u32 %v2894, 4294901760
      %v2962 = vsub.f32 %v2894, %v2961
      %v2963 = vand.u32 %v2962, 4294901760
      %v2964 = vsub.f32 %v2962, %v2963
      %v2965 = vand.u32 %v2964, 4294901760
      %2966 = vmatpush.msra.mxu0 %v2965
      %v2967 = vand.u32 %v2893, 4294901760
      %v2968 = vsub.f32 %v2893, %v2967
      %v2969 = vand.u32 %v2968, 4294901760
      %v2970 = vsub.f32 %v2968, %v2969
      %v2971 = vand.u32 %v2970, 4294901760
      %2972 = vmatpush.msra.mxu0 %v2971
      %v2973 = vand.u32 %v2892, 4294901760
      %v2974 = vsub.f32 %v2892, %v2973
      %v2975 = vand.u32 %v2974, 4294901760
      %v2976 = vsub.f32 %v2974, %v2975
      %v2977 = vand.u32 %v2976, 4294901760
      %2978 = vmatpush.msra.mxu0 %v2977
      %v2979 = vand.u32 %v2901, 4294901760
      %2980 = vmatmul.f32.gmra.mxu0 %v2979
      %v2981 = vpop.f32.mrf.mxu0
      %v2982 = vadd.f32 %v2933, %v2981
      %v2983 = vand.u32 %v2904, 4294901760
      %2984 = vmatmul.f32.gmra.mxu0 %v2983
      %v2985 = vpop.f32.mrf.mxu0
      %v2986 = vadd.f32 %v2941, %v2985
      %2987 = vdwg.mxu0
      %2988 = vmatpush.msra.mxu0 0.0
      %2989 = vmatpush.msra.mxu0 0.0
      %2990 = vmatpush.msra.mxu0 0.0
      %2991 = vmatpush.msra.mxu0 0.0
      %2992 = vmatpush.msra.mxu0 0.0
      %2993 = vmatpush.msra.mxu0 0.0
      %2994 = vmatpush.msra.mxu0 0.0
      %2995 = vmatpush.msra.mxu0 0.0
      %2996 = vmatpush.msra.mxu0 0.0
      %2997 = vmatpush.msra.mxu0 0.0
      %2998 = vmatpush.msra.mxu0 0.0
      %2999 = vmatpush.msra.mxu0 0.0
      %v3000 = vand.u32 %v2895, 4294901760
      %v3001 = vsub.f32 %v2895, %v3000
      %3002 = vmatpush.msra.mxu0 %v3001
      %v3003 = vand.u32 %v2894, 4294901760
      %v3004 = vsub.f32 %v2894, %v3003
      %3005 = vmatpush.msra.mxu0 %v3004
      %v3006 = vand.u32 %v2893, 4294901760
      %v3007 = vsub.f32 %v2893, %v3006
      %3008 = vmatpush.msra.mxu0 %v3007
      %v3009 = vand.u32 %v2892, 4294901760
      %v3010 = vsub.f32 %v2892, %v3009
      %3011 = vmatpush.msra.mxu0 %v3010
      %v3012 = vand.u32 %v2901, 4294901760
      %v3013 = vsub.f32 %v2901, %v3012
      %3014 = vmatmul.f32.gmra.mxu0 %v3013
      %v3015 = vpop.f32.mrf.mxu0
      %v3016 = vadd.f32 %v2982, %v3015
      %v3017 = vand.u32 %v2904, 4294901760
      %v3018 = vsub.f32 %v2904, %v3017
      %3019 = vmatmul.f32.gmra.mxu0 %v3018
      %v3020 = vpop.f32.mrf.mxu0
      %v3021 = vadd.f32 %v2986, %v3020
      %3022 = vdwg.mxu0
      %3023 = vmatpush.msra.mxu0 0.0
      %3024 = vmatpush.msra.mxu0 0.0
      %3025 = vmatpush.msra.mxu0 0.0
      %3026 = vmatpush.msra.mxu0 0.0
      %3027 = vmatpush.msra.mxu0 0.0
      %3028 = vmatpush.msra.mxu0 0.0
      %3029 = vmatpush.msra.mxu0 0.0
      %3030 = vmatpush.msra.mxu0 0.0
      %3031 = vmatpush.msra.mxu0 0.0
      %3032 = vmatpush.msra.mxu0 0.0
      %3033 = vmatpush.msra.mxu0 0.0
      %3034 = vmatpush.msra.mxu0 0.0
      %v3035 = vand.u32 %v2895, 4294901760
      %3036 = vmatpush.msra.mxu0 %v3035
      %v3037 = vand.u32 %v2894, 4294901760
      %3038 = vmatpush.msra.mxu0 %v3037
      %v3039 = vand.u32 %v2893, 4294901760
      %3040 = vmatpush.msra.mxu0 %v3039
      %v3041 = vand.u32 %v2892, 4294901760
      %3042 = vmatpush.msra.mxu0 %v3041
      %v3043 = vand.u32 %v2901, 4294901760
      %v3044 = vsub.f32 %v2901, %v3043
      %v3045 = vand.u32 %v3044, 4294901760
      %3046 = vmatmul.f32.gmra.mxu0 %v3045
      %v3047 = vpop.f32.mrf.mxu0
      %v3048 = vadd.f32 %v3016, %v3047
      %v3049 = vand.u32 %v2904, 4294901760
      %v3050 = vsub.f32 %v2904, %v3049
      %v3051 = vand.u32 %v3050, 4294901760
      %3052 = vmatmul.f32.gmra.mxu0 %v3051
      %v3053 = vpop.f32.mrf.mxu0
      %v3054 = vadd.f32 %v3021, %v3053
      %3055 = vdwg.mxu0
      %3056 = vmatpush.msra.mxu0 0.0
      %3057 = vmatpush.msra.mxu0 0.0
      %3058 = vmatpush.msra.mxu0 0.0
      %3059 = vmatpush.msra.mxu0 0.0
      %3060 = vmatpush.msra.mxu0 0.0
      %3061 = vmatpush.msra.mxu0 0.0
      %3062 = vmatpush.msra.mxu0 0.0
      %3063 = vmatpush.msra.mxu0 0.0
      %3064 = vmatpush.msra.mxu0 0.0
      %3065 = vmatpush.msra.mxu0 0.0
      %3066 = vmatpush.msra.mxu0 0.0
      %3067 = vmatpush.msra.mxu0 0.0
      %v3068 = vand.u32 %v2895, 4294901760
      %v3069 = vsub.f32 %v2895, %v3068
      %v3070 = vand.u32 %v3069, 4294901760
      %3071 = vmatpush.msra.mxu0 %v3070
      %v3072 = vand.u32 %v2894, 4294901760
      %v3073 = vsub.f32 %v2894, %v3072
      %v3074 = vand.u32 %v3073, 4294901760
      %3075 = vmatpush.msra.mxu0 %v3074
      %v3076 = vand.u32 %v2893, 4294901760
      %v3077 = vsub.f32 %v2893, %v3076
      %v3078 = vand.u32 %v3077, 4294901760
      %3079 = vmatpush.msra.mxu0 %v3078
      %v3080 = vand.u32 %v2892, 4294901760
      %v3081 = vsub.f32 %v2892, %v3080
      %v3082 = vand.u32 %v3081, 4294901760
      %3083 = vmatpush.msra.mxu0 %v3082
      %v3084 = vand.u32 %v2901, 4294901760
      %3085 = vmatmul.f32.gmra.mxu0 %v3084
      %v3086 = vpop.f32.mrf.mxu0
      %v3087 = vadd.f32 %v3048, %v3086
      %v3088 = vand.u32 %v2904, 4294901760
      %3089 = vmatmul.f32.gmra.mxu0 %v3088
      %v3090 = vpop.f32.mrf.mxu0
      %v3091 = vadd.f32 %v3054, %v3090
      %3092 = vdwg.mxu0
      %3093 = vmatpush.msra.mxu0 0.0
      %3094 = vmatpush.msra.mxu0 0.0
      %3095 = vmatpush.msra.mxu0 0.0
      %3096 = vmatpush.msra.mxu0 0.0
      %3097 = vmatpush.msra.mxu0 0.0
      %3098 = vmatpush.msra.mxu0 0.0
      %3099 = vmatpush.msra.mxu0 0.0
      %3100 = vmatpush.msra.mxu0 0.0
      %3101 = vmatpush.msra.mxu0 0.0
      %3102 = vmatpush.msra.mxu0 0.0
      %3103 = vmatpush.msra.mxu0 0.0
      %3104 = vmatpush.msra.mxu0 0.0
      %v3105 = vand.u32 %v2895, 4294901760
      %3106 = vmatpush.msra.mxu0 %v3105
      %v3107 = vand.u32 %v2894, 4294901760
      %3108 = vmatpush.msra.mxu0 %v3107
      %v3109 = vand.u32 %v2893, 4294901760
      %3110 = vmatpush.msra.mxu0 %v3109
      %v3111 = vand.u32 %v2892, 4294901760
      %3112 = vmatpush.msra.mxu0 %v3111
      %v3113 = vand.u32 %v2901, 4294901760
      %3114 = vmatmul.f32.gmra.mxu0 %v3113
      %v3115 = vpop.f32.mrf.mxu0
      %v3116 = vadd.f32 %v3087, %v3115
      %v3117 = vand.u32 %v2904, 4294901760
      %3118 = vmatmul.f32.gmra.mxu0 %v3117
      %v3119 = vpop.f32.mrf.mxu0
      %v3120 = vadd.f32 %v3091, %v3119
      %3121 = vdwg.mxu0
      %v3122 = vmax.f32 %v3116, 0.0
      %v3123 = vmax.f32 %v3120, 0.0
      %v3124 = vld [vmem:[%s9] sm:$0xff]
      %v3125 = vld [vmem:[%s9 + $0x8] sm:$0xff]
      %v3126 = vld [vmem:[%s9 + $0x10] sm:$0xff]
      %v3127 = vld [vmem:[%s9 + $0x18] sm:$0xff]
      %v3128 = vld [vmem:[%s9 + $0x20] sm:$0xff]
      %v3129 = vld [vmem:[%s9 + $0x28] sm:$0xff]
      %v3130 = vld [vmem:[%s9 + $0x30] sm:$0xff]
      %v3131 = vld [vmem:[%s9 + $0x38] sm:$0xff]
      %v3132 = vld [vmem:[%s10] sm:$0x1]
      %v3134 = vperm.slane %v3132, 0
      %vm3136 = vcmask 523264
      %v3138 = vsel %vm3136, %v3122, 0
      %v3141 = vsel %vm3136, %v3123, 0
      %3143 = vmatpush.msra.mxu0 0.0
      %3144 = vmatpush.msra.mxu0 0.0
      %3145 = vmatpush.msra.mxu0 0.0
      %3146 = vmatpush.msra.mxu0 0.0
      %3147 = vmatpush.msra.mxu0 0.0
      %3148 = vmatpush.msra.mxu0 0.0
      %3149 = vmatpush.msra.mxu0 0.0
      %3150 = vmatpush.msra.mxu0 0.0
      %v3151 = vand.u32 %v3131, 4294901760
      %3152 = vmatpush.msra.mxu0 %v3151
      %v3153 = vand.u32 %v3130, 4294901760
      %3154 = vmatpush.msra.mxu0 %v3153
      %v3155 = vand.u32 %v3129, 4294901760
      %3156 = vmatpush.msra.mxu0 %v3155
      %v3157 = vand.u32 %v3128, 4294901760
      %3158 = vmatpush.msra.mxu0 %v3157
      %v3159 = vand.u32 %v3127, 4294901760
      %3160 = vmatpush.msra.mxu0 %v3159
      %v3161 = vand.u32 %v3126, 4294901760
      %3162 = vmatpush.msra.mxu0 %v3161
      %v3163 = vand.u32 %v3125, 4294901760
      %3164 = vmatpush.msra.mxu0 %v3163
      %v3165 = vand.u32 %v3124, 4294901760
      %3166 = vmatpush.msra.mxu0 %v3165
      %v3167 = vand.u32 %v3138, 4294901760
      %v3168 = vsub.f32 %v3138, %v3167
      %v3169 = vand.u32 %v3168, 4294901760
      %v3170 = vsub.f32 %v3168, %v3169
      %v3171 = vand.u32 %v3170, 4294901760
      %3172 = vmatmul.f32.gmra.mxu0 %v3171
      %v3173 = vpop.f32.mrf.mxu0
      %v3174 = vadd.f32 %v3134, %v3173
      %v3175 = vand.u32 %v3141, 4294901760
      %v3176 = vsub.f32 %v3141, %v3175
      %v3177 = vand.u32 %v3176, 4294901760
      %v3178 = vsub.f32 %v3176, %v3177
      %v3179 = vand.u32 %v3178, 4294901760
      %3180 = vmatmul.f32.gmra.mxu0 %v3179
      %v3181 = vpop.f32.mrf.mxu0
      %v3182 = vadd.f32 %v3134, %v3181
      %3183 = vdwg.mxu0
      %3184 = vmatpush.msra.mxu0 0.0
      %3185 = vmatpush.msra.mxu0 0.0
      %3186 = vmatpush.msra.mxu0 0.0
      %3187 = vmatpush.msra.mxu0 0.0
      %3188 = vmatpush.msra.mxu0 0.0
      %3189 = vmatpush.msra.mxu0 0.0
      %3190 = vmatpush.msra.mxu0 0.0
      %3191 = vmatpush.msra.mxu0 0.0
      %v3192 = vand.u32 %v3131, 4294901760
      %v3193 = vsub.f32 %v3131, %v3192
      %v3194 = vand.u32 %v3193, 4294901760
      %v3195 = vsub.f32 %v3193, %v3194
      %v3196 = vand.u32 %v3195, 4294901760
      %3197 = vmatpush.msra.mxu0 %v3196
      %v3198 = vand.u32 %v3130, 4294901760
      %v3199 = vsub.f32 %v3130, %v3198
      %v3200 = vand.u32 %v3199, 4294901760
      %v3201 = vsub.f32 %v3199, %v3200
      %v3202 = vand.u32 %v3201, 4294901760
      %3203 = vmatpush.msra.mxu0 %v3202
      %v3204 = vand.u32 %v3129, 4294901760
      %v3205 = vsub.f32 %v3129, %v3204
      %v3206 = vand.u32 %v3205, 4294901760
      %v3207 = vsub.f32 %v3205, %v3206
      %v3208 = vand.u32 %v3207, 4294901760
      %3209 = vmatpush.msra.mxu0 %v3208
      %v3210 = vand.u32 %v3128, 4294901760
      %v3211 = vsub.f32 %v3128, %v3210
      %v3212 = vand.u32 %v3211, 4294901760
      %v3213 = vsub.f32 %v3211, %v3212
      %v3214 = vand.u32 %v3213, 4294901760
      %3215 = vmatpush.msra.mxu0 %v3214
      %v3216 = vand.u32 %v3127, 4294901760
      %v3217 = vsub.f32 %v3127, %v3216
      %v3218 = vand.u32 %v3217, 4294901760
      %v3219 = vsub.f32 %v3217, %v3218
      %v3220 = vand.u32 %v3219, 4294901760
      %3221 = vmatpush.msra.mxu0 %v3220
      %v3222 = vand.u32 %v3126, 4294901760
      %v3223 = vsub.f32 %v3126, %v3222
      %v3224 = vand.u32 %v3223, 4294901760
      %v3225 = vsub.f32 %v3223, %v3224
      %v3226 = vand.u32 %v3225, 4294901760
      %3227 = vmatpush.msra.mxu0 %v3226
      %v3228 = vand.u32 %v3125, 4294901760
      %v3229 = vsub.f32 %v3125, %v3228
      %v3230 = vand.u32 %v3229, 4294901760
      %v3231 = vsub.f32 %v3229, %v3230
      %v3232 = vand.u32 %v3231, 4294901760
      %3233 = vmatpush.msra.mxu0 %v3232
      %v3234 = vand.u32 %v3124, 4294901760
      %v3235 = vsub.f32 %v3124, %v3234
      %v3236 = vand.u32 %v3235, 4294901760
      %v3237 = vsub.f32 %v3235, %v3236
      %v3238 = vand.u32 %v3237, 4294901760
      %3239 = vmatpush.msra.mxu0 %v3238
      %v3240 = vand.u32 %v3138, 4294901760
      %3241 = vmatmul.f32.gmra.mxu0 %v3240
      %v3242 = vpop.f32.mrf.mxu0
      %v3243 = vadd.f32 %v3174, %v3242
      %v3244 = vand.u32 %v3141, 4294901760
      %3245 = vmatmul.f32.gmra.mxu0 %v3244
      %v3246 = vpop.f32.mrf.mxu0
      %v3247 = vadd.f32 %v3182, %v3246
      %3248 = vdwg.mxu0
      %3249 = vmatpush.msra.mxu0 0.0
      %3250 = vmatpush.msra.mxu0 0.0
      %3251 = vmatpush.msra.mxu0 0.0
      %3252 = vmatpush.msra.mxu0 0.0
      %3253 = vmatpush.msra.mxu0 0.0
      %3254 = vmatpush.msra.mxu0 0.0
      %3255 = vmatpush.msra.mxu0 0.0
      %3256 = vmatpush.msra.mxu0 0.0
      %v3257 = vand.u32 %v3131, 4294901760
      %v3258 = vsub.f32 %v3131, %v3257
      %3259 = vmatpush.msra.mxu0 %v3258
      %v3260 = vand.u32 %v3130, 4294901760
      %v3261 = vsub.f32 %v3130, %v3260
      %3262 = vmatpush.msra.mxu0 %v3261
      %v3263 = vand.u32 %v3129, 4294901760
      %v3264 = vsub.f32 %v3129, %v3263
      %3265 = vmatpush.msra.mxu0 %v3264
      %v3266 = vand.u32 %v3128, 4294901760
      %v3267 = vsub.f32 %v3128, %v3266
      %3268 = vmatpush.msra.mxu0 %v3267
      %v3269 = vand.u32 %v3127, 4294901760
      %v3270 = vsub.f32 %v3127, %v3269
      %3271 = vmatpush.msra.mxu0 %v3270
      %v3272 = vand.u32 %v3126, 4294901760
      %v3273 = vsub.f32 %v3126, %v3272
      %3274 = vmatpush.msra.mxu0 %v3273
      %v3275 = vand.u32 %v3125, 4294901760
      %v3276 = vsub.f32 %v3125, %v3275
      %3277 = vmatpush.msra.mxu0 %v3276
      %v3278 = vand.u32 %v3124, 4294901760
      %v3279 = vsub.f32 %v3124, %v3278
      %3280 = vmatpush.msra.mxu0 %v3279
      %v3281 = vand.u32 %v3138, 4294901760
      %v3282 = vsub.f32 %v3138, %v3281
      %3283 = vmatmul.f32.gmra.mxu0 %v3282
      %v3284 = vpop.f32.mrf.mxu0
      %v3285 = vadd.f32 %v3243, %v3284
      %v3286 = vand.u32 %v3141, 4294901760
      %v3287 = vsub.f32 %v3141, %v3286
      %3288 = vmatmul.f32.gmra.mxu0 %v3287
      %v3289 = vpop.f32.mrf.mxu0
      %v3290 = vadd.f32 %v3247, %v3289
      %3291 = vdwg.mxu0
      %3292 = vmatpush.msra.mxu0 0.0
      %3293 = vmatpush.msra.mxu0 0.0
      %3294 = vmatpush.msra.mxu0 0.0
      %3295 = vmatpush.msra.mxu0 0.0
      %3296 = vmatpush.msra.mxu0 0.0
      %3297 = vmatpush.msra.mxu0 0.0
      %3298 = vmatpush.msra.mxu0 0.0
      %3299 = vmatpush.msra.mxu0 0.0
      %v3300 = vand.u32 %v3131, 4294901760
      %3301 = vmatpush.msra.mxu0 %v3300
      %v3302 = vand.u32 %v3130, 4294901760
      %3303 = vmatpush.msra.mxu0 %v3302
      %v3304 = vand.u32 %v3129, 4294901760
      %3305 = vmatpush.msra.mxu0 %v3304
      %v3306 = vand.u32 %v3128, 4294901760
      %3307 = vmatpush.msra.mxu0 %v3306
      %v3308 = vand.u32 %v3127, 4294901760
      %3309 = vmatpush.msra.mxu0 %v3308
      %v3310 = vand.u32 %v3126, 4294901760
      %3311 = vmatpush.msra.mxu0 %v3310
      %v3312 = vand.u32 %v3125, 4294901760
      %3313 = vmatpush.msra.mxu0 %v3312
      %v3314 = vand.u32 %v3124, 4294901760
      %3315 = vmatpush.msra.mxu0 %v3314
      %v3316 = vand.u32 %v3138, 4294901760
      %v3317 = vsub.f32 %v3138, %v3316
      %v3318 = vand.u32 %v3317, 4294901760
      %3319 = vmatmul.f32.gmra.mxu0 %v3318
      %v3320 = vpop.f32.mrf.mxu0
      %v3321 = vadd.f32 %v3285, %v3320
      %v3322 = vand.u32 %v3141, 4294901760
      %v3323 = vsub.f32 %v3141, %v3322
      %v3324 = vand.u32 %v3323, 4294901760
      %3325 = vmatmul.f32.gmra.mxu0 %v3324
      %v3326 = vpop.f32.mrf.mxu0
      %v3327 = vadd.f32 %v3290, %v3326
      %3328 = vdwg.mxu0
      %3329 = vmatpush.msra.mxu0 0.0
      %3330 = vmatpush.msra.mxu0 0.0
      %3331 = vmatpush.msra.mxu0 0.0
      %3332 = vmatpush.msra.mxu0 0.0
      %3333 = vmatpush.msra.mxu0 0.0
      %3334 = vmatpush.msra.mxu0 0.0
      %3335 = vmatpush.msra.mxu0 0.0
      %3336 = vmatpush.msra.mxu0 0.0
      %v3337 = vand.u32 %v3131, 4294901760
      %v3338 = vsub.f32 %v3131, %v3337
      %v3339 = vand.u32 %v3338, 4294901760
      %3340 = vmatpush.msra.mxu0 %v3339
      %v3341 = vand.u32 %v3130, 4294901760
      %v3342 = vsub.f32 %v3130, %v3341
      %v3343 = vand.u32 %v3342, 4294901760
      %3344 = vmatpush.msra.mxu0 %v3343
      %v3345 = vand.u32 %v3129, 4294901760
      %v3346 = vsub.f32 %v3129, %v3345
      %v3347 = vand.u32 %v3346, 4294901760
      %3348 = vmatpush.msra.mxu0 %v3347
      %v3349 = vand.u32 %v3128, 4294901760
      %v3350 = vsub.f32 %v3128, %v3349
      %v3351 = vand.u32 %v3350, 4294901760
      %3352 = vmatpush.msra.mxu0 %v3351
      %v3353 = vand.u32 %v3127, 4294901760
      %v3354 = vsub.f32 %v3127, %v3353
      %v3355 = vand.u32 %v3354, 4294901760
      %3356 = vmatpush.msra.mxu0 %v3355
      %v3357 = vand.u32 %v3126, 4294901760
      %v3358 = vsub.f32 %v3126, %v3357
      %v3359 = vand.u32 %v3358, 4294901760
      %3360 = vmatpush.msra.mxu0 %v3359
      %v3361 = vand.u32 %v3125, 4294901760
      %v3362 = vsub.f32 %v3125, %v3361
      %v3363 = vand.u32 %v3362, 4294901760
      %3364 = vmatpush.msra.mxu0 %v3363
      %v3365 = vand.u32 %v3124, 4294901760
      %v3366 = vsub.f32 %v3124, %v3365
      %v3367 = vand.u32 %v3366, 4294901760
      %3368 = vmatpush.msra.mxu0 %v3367
      %v3369 = vand.u32 %v3138, 4294901760
      %3370 = vmatmul.f32.gmra.mxu0 %v3369
      %v3371 = vpop.f32.mrf.mxu0
      %v3372 = vadd.f32 %v3321, %v3371
      %v3373 = vand.u32 %v3141, 4294901760
      %3374 = vmatmul.f32.gmra.mxu0 %v3373
      %v3375 = vpop.f32.mrf.mxu0
      %v3376 = vadd.f32 %v3327, %v3375
      %3377 = vdwg.mxu0
      %3378 = vmatpush.msra.mxu0 0.0
      %3379 = vmatpush.msra.mxu0 0.0
      %3380 = vmatpush.msra.mxu0 0.0
      %3381 = vmatpush.msra.mxu0 0.0
      %3382 = vmatpush.msra.mxu0 0.0
      %3383 = vmatpush.msra.mxu0 0.0
      %3384 = vmatpush.msra.mxu0 0.0
      %3385 = vmatpush.msra.mxu0 0.0
      %v3386 = vand.u32 %v3131, 4294901760
      %3387 = vmatpush.msra.mxu0 %v3386
      %v3388 = vand.u32 %v3130, 4294901760
      %3389 = vmatpush.msra.mxu0 %v3388
      %v3390 = vand.u32 %v3129, 4294901760
      %3391 = vmatpush.msra.mxu0 %v3390
      %v3392 = vand.u32 %v3128, 4294901760
      %3393 = vmatpush.msra.mxu0 %v3392
      %v3394 = vand.u32 %v3127, 4294901760
      %3395 = vmatpush.msra.mxu0 %v3394
      %v3396 = vand.u32 %v3126, 4294901760
      %3397 = vmatpush.msra.mxu0 %v3396
      %v3398 = vand.u32 %v3125, 4294901760
      %3399 = vmatpush.msra.mxu0 %v3398
      %v3400 = vand.u32 %v3124, 4294901760
      %3401 = vmatpush.msra.mxu0 %v3400
      %v3402 = vand.u32 %v3138, 4294901760
      %3403 = vmatmul.f32.gmra.mxu0 %v3402
      %v3404 = vpop.f32.mrf.mxu0
      %v3405 = vadd.f32 %v3372, %v3404
      %v3406 = vand.u32 %v3141, 4294901760
      %3407 = vmatmul.f32.gmra.mxu0 %v3406
      %v3408 = vpop.f32.mrf.mxu0
      %v3409 = vadd.f32 %v3376, %v3408
      %3410 = vdwg.mxu0
      %v3411 = vadd.f32 %v3405, %v2890
      %v3412 = vadd.f32 %v3409, %v2891
      %v3413 = vld [vmem:[%s11] sm:$0x1]
      %v3414 = vld [vmem:[%s12] sm:$0x1]
      %v3415 = vsel %vm503, %v3411, 0.0
      %3416 = vadd.xlane.f32.xlu0 %v3415
      %v3417 = vpop.xlane.xlu0 %3416
      %v3418 = vsel %vm2833, %v3412, 0.0
      %3419 = vadd.xlane.f32.xlu0 %v3418
      %v3420 = vpop.xlane.xlu0 %3419
      %v3421 = vmul.f32 %v3417, %v2843
      %v3422 = vmul.f32 %v3420, %v2843
      %v3423 = vsub.f32 %v3411, %v3421
      %v3424 = vsub.f32 %v3412, %v3422
      %v3425 = vmul.f32 %v3423, %v3423
      %v3426 = vmul.f32 %v3424, %v3424
      %v3427 = vsel %vm503, %v3425, 0.0
      %3428 = vadd.xlane.f32.xlu0 %v3427
      %v3429 = vpop.xlane.xlu0 %3428
      %v3430 = vsel %vm2833, %v3426, 0.0
      %3431 = vadd.xlane.f32.xlu0 %v3430
      %v3432 = vpop.xlane.xlu0 %3431
      %v3433 = vmul.f32 %v3429, %v2843
      %v3434 = vmul.f32 %v3432, %v2843
      %v3435 = vadd.f32 %v3433, 1e-05
      %v3436 = vadd.f32 %v3434, 1e-05
      %v3437 = vrsqrt.pop %v3435
      %v3438 = vmul.f32 %v3437, %v3435
      %v3439 = vmul.f32 %v3438, %v3437
      %v3440 = vmul.f32 0.5, %v3439
      %v3441 = vsub.f32 1.5, %v3440
      %v3442 = vmul.f32 %v3437, %v3441
      %vm3443 = vweird.f32 %v3435
      %vm3444 = vweird.f32 %v3437
      %vm3445 = vmor %vm3443, %vm3444
      %v3446 = vsel %vm3445, %v3437, %v3442
      %v3447 = vrsqrt.pop %v3436
      %v3448 = vmul.f32 %v3447, %v3436
      %v3449 = vmul.f32 %v3448, %v3447
      %v3450 = vmul.f32 0.5, %v3449
      %v3451 = vsub.f32 1.5, %v3450
      %v3452 = vmul.f32 %v3447, %v3451
      %vm3453 = vweird.f32 %v3436
      %vm3454 = vweird.f32 %v3447
      %vm3455 = vmor %vm3453, %vm3454
      %v3456 = vsel %vm3455, %v3447, %v3452
      %v3457 = vmul.f32 %v3423, %v3446
      %v3458 = vmul.f32 %v3424, %v3456
      %v3460 = vperm.slane %v3413, 0
      %v3462 = vmul.f32 %v3457, %v3460
      %v3463 = vmul.f32 %v3458, %v3460
      %v3465 = vperm.slane %v3414, 0
      %v3467 = vadd.f32 %v3462, %v3465
      %v3468 = vadd.f32 %v3463, %v3465
      %s3469 = scalar_lea.vmem %s1, 32
      %v3470 = vld [vmem:[%s3469] sm:$0xff]
      %v3471 = vld [vmem:[%s3469 + $0x8] sm:$0xff]
      %v3472 = vld [vmem:[%s3469 + $0x10] sm:$0xff]
      %v3473 = vld [vmem:[%s3469 + $0x18] sm:$0xff]
      %s3474 = scalar_lea.vmem %s2, 1
      %v3475 = vld [vmem:[%s3474] sm:$0x1]
      %v3477 = vperm.slane %v3475, 0
      %v3480 = vsel %vm503, %v3467, 0
      %v3483 = vsel %vm503, %v3468, 0
      %3485 = vmatpush.msra.mxu0 0.0
      %3486 = vmatpush.msra.mxu0 0.0
      %3487 = vmatpush.msra.mxu0 0.0
      %3488 = vmatpush.msra.mxu0 0.0
      %3489 = vmatpush.msra.mxu0 0.0
      %3490 = vmatpush.msra.mxu0 0.0
      %3491 = vmatpush.msra.mxu0 0.0
      %3492 = vmatpush.msra.mxu0 0.0
      %3493 = vmatpush.msra.mxu0 0.0
      %3494 = vmatpush.msra.mxu0 0.0
      %3495 = vmatpush.msra.mxu0 0.0
      %3496 = vmatpush.msra.mxu0 0.0
      %v3497 = vand.u32 %v3473, 4294901760
      %3498 = vmatpush.msra.mxu0 %v3497
      %v3499 = vand.u32 %v3472, 4294901760
      %3500 = vmatpush.msra.mxu0 %v3499
      %v3501 = vand.u32 %v3471, 4294901760
      %3502 = vmatpush.msra.mxu0 %v3501
      %v3503 = vand.u32 %v3470, 4294901760
      %3504 = vmatpush.msra.mxu0 %v3503
      %v3505 = vand.u32 %v3480, 4294901760
      %v3506 = vsub.f32 %v3480, %v3505
      %v3507 = vand.u32 %v3506, 4294901760
      %v3508 = vsub.f32 %v3506, %v3507
      %v3509 = vand.u32 %v3508, 4294901760
      %3510 = vmatmul.f32.gmra.mxu0 %v3509
      %v3511 = vpop.f32.mrf.mxu0
      %v3512 = vadd.f32 %v3477, %v3511
      %v3513 = vand.u32 %v3483, 4294901760
      %v3514 = vsub.f32 %v3483, %v3513
      %v3515 = vand.u32 %v3514, 4294901760
      %v3516 = vsub.f32 %v3514, %v3515
      %v3517 = vand.u32 %v3516, 4294901760
      %3518 = vmatmul.f32.gmra.mxu0 %v3517
      %v3519 = vpop.f32.mrf.mxu0
      %v3520 = vadd.f32 %v3477, %v3519
      %3521 = vdwg.mxu0
      %3522 = vmatpush.msra.mxu0 0.0
      %3523 = vmatpush.msra.mxu0 0.0
      %3524 = vmatpush.msra.mxu0 0.0
      %3525 = vmatpush.msra.mxu0 0.0
      %3526 = vmatpush.msra.mxu0 0.0
      %3527 = vmatpush.msra.mxu0 0.0
      %3528 = vmatpush.msra.mxu0 0.0
      %3529 = vmatpush.msra.mxu0 0.0
      %3530 = vmatpush.msra.mxu0 0.0
      %3531 = vmatpush.msra.mxu0 0.0
      %3532 = vmatpush.msra.mxu0 0.0
      %3533 = vmatpush.msra.mxu0 0.0
      %v3534 = vand.u32 %v3473, 4294901760
      %v3535 = vsub.f32 %v3473, %v3534
      %v3536 = vand.u32 %v3535, 4294901760
      %v3537 = vsub.f32 %v3535, %v3536
      %v3538 = vand.u32 %v3537, 4294901760
      %3539 = vmatpush.msra.mxu0 %v3538
      %v3540 = vand.u32 %v3472, 4294901760
      %v3541 = vsub.f32 %v3472, %v3540
      %v3542 = vand.u32 %v3541, 4294901760
      %v3543 = vsub.f32 %v3541, %v3542
      %v3544 = vand.u32 %v3543, 4294901760
      %3545 = vmatpush.msra.mxu0 %v3544
      %v3546 = vand.u32 %v3471, 4294901760
      %v3547 = vsub.f32 %v3471, %v3546
      %v3548 = vand.u32 %v3547, 4294901760
      %v3549 = vsub.f32 %v3547, %v3548
      %v3550 = vand.u32 %v3549, 4294901760
      %3551 = vmatpush.msra.mxu0 %v3550
      %v3552 = vand.u32 %v3470, 4294901760
      %v3553 = vsub.f32 %v3470, %v3552
      %v3554 = vand.u32 %v3553, 4294901760
      %v3555 = vsub.f32 %v3553, %v3554
      %v3556 = vand.u32 %v3555, 4294901760
      %3557 = vmatpush.msra.mxu0 %v3556
      %v3558 = vand.u32 %v3480, 4294901760
      %3559 = vmatmul.f32.gmra.mxu0 %v3558
      %v3560 = vpop.f32.mrf.mxu0
      %v3561 = vadd.f32 %v3512, %v3560
      %v3562 = vand.u32 %v3483, 4294901760
      %3563 = vmatmul.f32.gmra.mxu0 %v3562
      %v3564 = vpop.f32.mrf.mxu0
      %v3565 = vadd.f32 %v3520, %v3564
      %3566 = vdwg.mxu0
      %3567 = vmatpush.msra.mxu0 0.0
      %3568 = vmatpush.msra.mxu0 0.0
      %3569 = vmatpush.msra.mxu0 0.0
      %3570 = vmatpush.msra.mxu0 0.0
      %3571 = vmatpush.msra.mxu0 0.0
      %3572 = vmatpush.msra.mxu0 0.0
      %3573 = vmatpush.msra.mxu0 0.0
      %3574 = vmatpush.msra.mxu0 0.0
      %3575 = vmatpush.msra.mxu0 0.0
      %3576 = vmatpush.msra.mxu0 0.0
      %3577 = vmatpush.msra.mxu0 0.0
      %3578 = vmatpush.msra.mxu0 0.0
      %v3579 = vand.u32 %v3473, 4294901760
      %v3580 = vsub.f32 %v3473, %v3579
      %3581 = vmatpush.msra.mxu0 %v3580
      %v3582 = vand.u32 %v3472, 4294901760
      %v3583 = vsub.f32 %v3472, %v3582
      %3584 = vmatpush.msra.mxu0 %v3583
      %v3585 = vand.u32 %v3471, 4294901760
      %v3586 = vsub.f32 %v3471, %v3585
      %3587 = vmatpush.msra.mxu0 %v3586
      %v3588 = vand.u32 %v3470, 4294901760
      %v3589 = vsub.f32 %v3470, %v3588
      %3590 = vmatpush.msra.mxu0 %v3589
      %v3591 = vand.u32 %v3480, 4294901760
      %v3592 = vsub.f32 %v3480, %v3591
      %3593 = vmatmul.f32.gmra.mxu0 %v3592
      %v3594 = vpop.f32.mrf.mxu0
      %v3595 = vadd.f32 %v3561, %v3594
      %v3596 = vand.u32 %v3483, 4294901760
      %v3597 = vsub.f32 %v3483, %v3596
      %3598 = vmatmul.f32.gmra.mxu0 %v3597
      %v3599 = vpop.f32.mrf.mxu0
      %v3600 = vadd.f32 %v3565, %v3599
      %3601 = vdwg.mxu0
      %3602 = vmatpush.msra.mxu0 0.0
      %3603 = vmatpush.msra.mxu0 0.0
      %3604 = vmatpush.msra.mxu0 0.0
      %3605 = vmatpush.msra.mxu0 0.0
      %3606 = vmatpush.msra.mxu0 0.0
      %3607 = vmatpush.msra.mxu0 0.0
      %3608 = vmatpush.msra.mxu0 0.0
      %3609 = vmatpush.msra.mxu0 0.0
      %3610 = vmatpush.msra.mxu0 0.0
      %3611 = vmatpush.msra.mxu0 0.0
      %3612 = vmatpush.msra.mxu0 0.0
      %3613 = vmatpush.msra.mxu0 0.0
      %v3614 = vand.u32 %v3473, 4294901760
      %3615 = vmatpush.msra.mxu0 %v3614
      %v3616 = vand.u32 %v3472, 4294901760
      %3617 = vmatpush.msra.mxu0 %v3616
      %v3618 = vand.u32 %v3471, 4294901760
      %3619 = vmatpush.msra.mxu0 %v3618
      %v3620 = vand.u32 %v3470, 4294901760
      %3621 = vmatpush.msra.mxu0 %v3620
      %v3622 = vand.u32 %v3480, 4294901760
      %v3623 = vsub.f32 %v3480, %v3622
      %v3624 = vand.u32 %v3623, 4294901760
      %3625 = vmatmul.f32.gmra.mxu0 %v3624
      %v3626 = vpop.f32.mrf.mxu0
      %v3627 = vadd.f32 %v3595, %v3626
      %v3628 = vand.u32 %v3483, 4294901760
      %v3629 = vsub.f32 %v3483, %v3628
      %v3630 = vand.u32 %v3629, 4294901760
      %3631 = vmatmul.f32.gmra.mxu0 %v3630
      %v3632 = vpop.f32.mrf.mxu0
      %v3633 = vadd.f32 %v3600, %v3632
      %3634 = vdwg.mxu0
      %3635 = vmatpush.msra.mxu0 0.0
      %3636 = vmatpush.msra.mxu0 0.0
      %3637 = vmatpush.msra.mxu0 0.0
      %3638 = vmatpush.msra.mxu0 0.0
      %3639 = vmatpush.msra.mxu0 0.0
      %3640 = vmatpush.msra.mxu0 0.0
      %3641 = vmatpush.msra.mxu0 0.0
      %3642 = vmatpush.msra.mxu0 0.0
      %3643 = vmatpush.msra.mxu0 0.0
      %3644 = vmatpush.msra.mxu0 0.0
      %3645 = vmatpush.msra.mxu0 0.0
      %3646 = vmatpush.msra.mxu0 0.0
      %v3647 = vand.u32 %v3473, 4294901760
      %v3648 = vsub.f32 %v3473, %v3647
      %v3649 = vand.u32 %v3648, 4294901760
      %3650 = vmatpush.msra.mxu0 %v3649
      %v3651 = vand.u32 %v3472, 4294901760
      %v3652 = vsub.f32 %v3472, %v3651
      %v3653 = vand.u32 %v3652, 4294901760
      %3654 = vmatpush.msra.mxu0 %v3653
      %v3655 = vand.u32 %v3471, 4294901760
      %v3656 = vsub.f32 %v3471, %v3655
      %v3657 = vand.u32 %v3656, 4294901760
      %3658 = vmatpush.msra.mxu0 %v3657
      %v3659 = vand.u32 %v3470, 4294901760
      %v3660 = vsub.f32 %v3470, %v3659
      %v3661 = vand.u32 %v3660, 4294901760
      %3662 = vmatpush.msra.mxu0 %v3661
      %v3663 = vand.u32 %v3480, 4294901760
      %3664 = vmatmul.f32.gmra.mxu0 %v3663
      %v3665 = vpop.f32.mrf.mxu0
      %v3666 = vadd.f32 %v3627, %v3665
      %v3667 = vand.u32 %v3483, 4294901760
      %3668 = vmatmul.f32.gmra.mxu0 %v3667
      %v3669 = vpop.f32.mrf.mxu0
      %v3670 = vadd.f32 %v3633, %v3669
      %3671 = vdwg.mxu0
      %3672 = vmatpush.msra.mxu0 0.0
      %3673 = vmatpush.msra.mxu0 0.0
      %3674 = vmatpush.msra.mxu0 0.0
      %3675 = vmatpush.msra.mxu0 0.0
      %3676 = vmatpush.msra.mxu0 0.0
      %3677 = vmatpush.msra.mxu0 0.0
      %3678 = vmatpush.msra.mxu0 0.0
      %3679 = vmatpush.msra.mxu0 0.0
      %3680 = vmatpush.msra.mxu0 0.0
      %3681 = vmatpush.msra.mxu0 0.0
      %3682 = vmatpush.msra.mxu0 0.0
      %3683 = vmatpush.msra.mxu0 0.0
      %v3684 = vand.u32 %v3473, 4294901760
      %3685 = vmatpush.msra.mxu0 %v3684
      %v3686 = vand.u32 %v3472, 4294901760
      %3687 = vmatpush.msra.mxu0 %v3686
      %v3688 = vand.u32 %v3471, 4294901760
      %3689 = vmatpush.msra.mxu0 %v3688
      %v3690 = vand.u32 %v3470, 4294901760
      %3691 = vmatpush.msra.mxu0 %v3690
      %v3692 = vand.u32 %v3480, 4294901760
      %3693 = vmatmul.f32.gmra.mxu0 %v3692
      %v3694 = vpop.f32.mrf.mxu0
      %v3695 = vadd.f32 %v3666, %v3694
      %v3696 = vand.u32 %v3483, 4294901760
      %3697 = vmatmul.f32.gmra.mxu0 %v3696
      %v3698 = vpop.f32.mrf.mxu0
      %v3699 = vadd.f32 %v3670, %v3698
      %3700 = vdwg.mxu0
      %3703 = vrot.lane.b32.xlu0 %v3695, 96
      %v3704 = vpop.permute.xlu0 %3703
      %3705 = vrot.lane.b32.xlu0 %v3699, 96
      %v3706 = vpop.permute.xlu0 %3705
      %v3707 = vsel %vm732, %v3695, 0
      %v3709 = vsel %vm732, %v3699, 0
      %v3711 = vsel %vm732, %v3704, 0
      %v3713 = vsel %vm732, %v3706, 0
      %3715 = vmatpush.xpose.msra.mxu0 0.0
      %3716 = vmatpush.xpose.msra.mxu0 0.0
      %3717 = vmatpush.xpose.msra.mxu0 0.0
      %3718 = vmatpush.xpose.msra.mxu0 0.0
      %3719 = vmatpush.xpose.msra.mxu0 0.0
      %3720 = vmatpush.xpose.msra.mxu0 0.0
      %3721 = vmatpush.xpose.msra.mxu0 0.0
      %3722 = vmatpush.xpose.msra.mxu0 0.0
      %3723 = vmatpush.xpose.msra.mxu0 0.0
      %3724 = vmatpush.xpose.msra.mxu0 0.0
      %3725 = vmatpush.xpose.msra.mxu0 0.0
      %3726 = vmatpush.xpose.msra.mxu0 0.0
      %3727 = vmatpush.xpose.msra.mxu0 0.0
      %3728 = vmatpush.xpose.msra.mxu0 0.0
      %v3729 = vand.u32 %v3713, 4294901760
      %3730 = vmatpush.xpose.msra.mxu0 %v3729
      %v3731 = vand.u32 %v3711, 4294901760
      %3732 = vmatpush.xpose.msra.mxu0 %v3731
      %v3733 = vand.u32 %v3707, 4294901760
      %v3734 = vsub.f32 %v3707, %v3733
      %v3735 = vand.u32 %v3734, 4294901760
      %v3736 = vsub.f32 %v3734, %v3735
      %v3737 = vand.u32 %v3736, 4294901760
      %3738 = vmatmul.f32.gmra.mxu0 %v3737
      %v3739 = vpop.f32.mrf.mxu0
      %v3740 = vadd.f32 0.0, %v3739
      %v3741 = vand.u32 %v3709, 4294901760
      %v3742 = vsub.f32 %v3709, %v3741
      %v3743 = vand.u32 %v3742, 4294901760
      %v3744 = vsub.f32 %v3742, %v3743
      %v3745 = vand.u32 %v3744, 4294901760
      %3746 = vmatmul.f32.gmra.mxu0 %v3745
      %v3747 = vpop.f32.mrf.mxu0
      %v3748 = vadd.f32 0.0, %v3747
      %3749 = vdwg.mxu0
      %3750 = vmatpush.xpose.msra.mxu0 0.0
      %3751 = vmatpush.xpose.msra.mxu0 0.0
      %3752 = vmatpush.xpose.msra.mxu0 0.0
      %3753 = vmatpush.xpose.msra.mxu0 0.0
      %3754 = vmatpush.xpose.msra.mxu0 0.0
      %3755 = vmatpush.xpose.msra.mxu0 0.0
      %3756 = vmatpush.xpose.msra.mxu0 0.0
      %3757 = vmatpush.xpose.msra.mxu0 0.0
      %3758 = vmatpush.xpose.msra.mxu0 0.0
      %3759 = vmatpush.xpose.msra.mxu0 0.0
      %3760 = vmatpush.xpose.msra.mxu0 0.0
      %3761 = vmatpush.xpose.msra.mxu0 0.0
      %3762 = vmatpush.xpose.msra.mxu0 0.0
      %3763 = vmatpush.xpose.msra.mxu0 0.0
      %v3764 = vand.u32 %v3713, 4294901760
      %v3765 = vsub.f32 %v3713, %v3764
      %v3766 = vand.u32 %v3765, 4294901760
      %v3767 = vsub.f32 %v3765, %v3766
      %v3768 = vand.u32 %v3767, 4294901760
      %3769 = vmatpush.xpose.msra.mxu0 %v3768
      %v3770 = vand.u32 %v3711, 4294901760
      %v3771 = vsub.f32 %v3711, %v3770
      %v3772 = vand.u32 %v3771, 4294901760
      %v3773 = vsub.f32 %v3771, %v3772
      %v3774 = vand.u32 %v3773, 4294901760
      %3775 = vmatpush.xpose.msra.mxu0 %v3774
      %v3776 = vand.u32 %v3707, 4294901760
      %3777 = vmatmul.f32.gmra.mxu0 %v3776
      %v3778 = vpop.f32.mrf.mxu0
      %v3779 = vadd.f32 %v3740, %v3778
      %v3780 = vand.u32 %v3709, 4294901760
      %3781 = vmatmul.f32.gmra.mxu0 %v3780
      %v3782 = vpop.f32.mrf.mxu0
      %v3783 = vadd.f32 %v3748, %v3782
      %3784 = vdwg.mxu0
      %3785 = vmatpush.xpose.msra.mxu0 0.0
      %3786 = vmatpush.xpose.msra.mxu0 0.0
      %3787 = vmatpush.xpose.msra.mxu0 0.0
      %3788 = vmatpush.xpose.msra.mxu0 0.0
      %3789 = vmatpush.xpose.msra.mxu0 0.0
      %3790 = vmatpush.xpose.msra.mxu0 0.0
      %3791 = vmatpush.xpose.msra.mxu0 0.0
      %3792 = vmatpush.xpose.msra.mxu0 0.0
      %3793 = vmatpush.xpose.msra.mxu0 0.0
      %3794 = vmatpush.xpose.msra.mxu0 0.0
      %3795 = vmatpush.xpose.msra.mxu0 0.0
      %3796 = vmatpush.xpose.msra.mxu0 0.0
      %3797 = vmatpush.xpose.msra.mxu0 0.0
      %3798 = vmatpush.xpose.msra.mxu0 0.0
      %v3799 = vand.u32 %v3713, 4294901760
      %v3800 = vsub.f32 %v3713, %v3799
      %3801 = vmatpush.xpose.msra.mxu0 %v3800
      %v3802 = vand.u32 %v3711, 4294901760
      %v3803 = vsub.f32 %v3711, %v3802
      %3804 = vmatpush.xpose.msra.mxu0 %v3803
      %v3805 = vand.u32 %v3707, 4294901760
      %v3806 = vsub.f32 %v3707, %v3805
      %3807 = vmatmul.f32.gmra.mxu0 %v3806
      %v3808 = vpop.f32.mrf.mxu0
      %v3809 = vadd.f32 %v3779, %v3808
      %v3810 = vand.u32 %v3709, 4294901760
      %v3811 = vsub.f32 %v3709, %v3810
      %3812 = vmatmul.f32.gmra.mxu0 %v3811
      %v3813 = vpop.f32.mrf.mxu0
      %v3814 = vadd.f32 %v3783, %v3813
      %3815 = vdwg.mxu0
      %3816 = vmatpush.xpose.msra.mxu0 0.0
      %3817 = vmatpush.xpose.msra.mxu0 0.0
      %3818 = vmatpush.xpose.msra.mxu0 0.0
      %3819 = vmatpush.xpose.msra.mxu0 0.0
      %3820 = vmatpush.xpose.msra.mxu0 0.0
      %3821 = vmatpush.xpose.msra.mxu0 0.0
      %3822 = vmatpush.xpose.msra.mxu0 0.0
      %3823 = vmatpush.xpose.msra.mxu0 0.0
      %3824 = vmatpush.xpose.msra.mxu0 0.0
      %3825 = vmatpush.xpose.msra.mxu0 0.0
      %3826 = vmatpush.xpose.msra.mxu0 0.0
      %3827 = vmatpush.xpose.msra.mxu0 0.0
      %3828 = vmatpush.xpose.msra.mxu0 0.0
      %3829 = vmatpush.xpose.msra.mxu0 0.0
      %v3830 = vand.u32 %v3713, 4294901760
      %3831 = vmatpush.xpose.msra.mxu0 %v3830
      %v3832 = vand.u32 %v3711, 4294901760
      %3833 = vmatpush.xpose.msra.mxu0 %v3832
      %v3834 = vand.u32 %v3707, 4294901760
      %v3835 = vsub.f32 %v3707, %v3834
      %v3836 = vand.u32 %v3835, 4294901760
      %3837 = vmatmul.f32.gmra.mxu0 %v3836
      %v3838 = vpop.f32.mrf.mxu0
      %v3839 = vadd.f32 %v3809, %v3838
      %v3840 = vand.u32 %v3709, 4294901760
      %v3841 = vsub.f32 %v3709, %v3840
      %v3842 = vand.u32 %v3841, 4294901760
      %3843 = vmatmul.f32.gmra.mxu0 %v3842
      %v3844 = vpop.f32.mrf.mxu0
      %v3845 = vadd.f32 %v3814, %v3844
      %3846 = vdwg.mxu0
      %3847 = vmatpush.xpose.msra.mxu0 0.0
      %3848 = vmatpush.xpose.msra.mxu0 0.0
      %3849 = vmatpush.xpose.msra.mxu0 0.0
      %3850 = vmatpush.xpose.msra.mxu0 0.0
      %3851 = vmatpush.xpose.msra.mxu0 0.0
      %3852 = vmatpush.xpose.msra.mxu0 0.0
      %3853 = vmatpush.xpose.msra.mxu0 0.0
      %3854 = vmatpush.xpose.msra.mxu0 0.0
      %3855 = vmatpush.xpose.msra.mxu0 0.0
      %3856 = vmatpush.xpose.msra.mxu0 0.0
      %3857 = vmatpush.xpose.msra.mxu0 0.0
      %3858 = vmatpush.xpose.msra.mxu0 0.0
      %3859 = vmatpush.xpose.msra.mxu0 0.0
      %3860 = vmatpush.xpose.msra.mxu0 0.0
      %v3861 = vand.u32 %v3713, 4294901760
      %v3862 = vsub.f32 %v3713, %v3861
      %v3863 = vand.u32 %v3862, 4294901760
      %3864 = vmatpush.xpose.msra.mxu0 %v3863
      %v3865 = vand.u32 %v3711, 4294901760
      %v3866 = vsub.f32 %v3711, %v3865
      %v3867 = vand.u32 %v3866, 4294901760
      %3868 = vmatpush.xpose.msra.mxu0 %v3867
      %v3869 = vand.u32 %v3707, 4294901760
      %3870 = vmatmul.f32.gmra.mxu0 %v3869
      %v3871 = vpop.f32.mrf.mxu0
      %v3872 = vadd.f32 %v3839, %v3871
      %v3873 = vand.u32 %v3709, 4294901760
      %3874 = vmatmul.f32.gmra.mxu0 %v3873
      %v3875 = vpop.f32.mrf.mxu0
      %v3876 = vadd.f32 %v3845, %v3875
      %3877 = vdwg.mxu0
      %3878 = vmatpush.xpose.msra.mxu0 0.0
      %3879 = vmatpush.xpose.msra.mxu0 0.0
      %3880 = vmatpush.xpose.msra.mxu0 0.0
      %3881 = vmatpush.xpose.msra.mxu0 0.0
      %3882 = vmatpush.xpose.msra.mxu0 0.0
      %3883 = vmatpush.xpose.msra.mxu0 0.0
      %3884 = vmatpush.xpose.msra.mxu0 0.0
      %3885 = vmatpush.xpose.msra.mxu0 0.0
      %3886 = vmatpush.xpose.msra.mxu0 0.0
      %3887 = vmatpush.xpose.msra.mxu0 0.0
      %3888 = vmatpush.xpose.msra.mxu0 0.0
      %3889 = vmatpush.xpose.msra.mxu0 0.0
      %3890 = vmatpush.xpose.msra.mxu0 0.0
      %3891 = vmatpush.xpose.msra.mxu0 0.0
      %v3892 = vand.u32 %v3713, 4294901760
      %3893 = vmatpush.xpose.msra.mxu0 %v3892
      %v3894 = vand.u32 %v3711, 4294901760
      %3895 = vmatpush.xpose.msra.mxu0 %v3894
      %v3896 = vand.u32 %v3707, 4294901760
      %3897 = vmatmul.f32.gmra.mxu0 %v3896
      %v3898 = vpop.f32.mrf.mxu0
      %v3899 = vadd.f32 %v3872, %v3898
      %v3900 = vand.u32 %v3709, 4294901760
      %3901 = vmatmul.f32.gmra.mxu0 %v3900
      %v3902 = vpop.f32.mrf.mxu0
      %v3903 = vadd.f32 %v3876, %v3902
      %3904 = vdwg.mxu0
      %v3905 = vmul.f32 %v3899, 0.35355338
      %v3906 = vmul.f32 %v3903, 0.35355338
      %v3907 = vsel %vm933, %v3905, -inf
      %3908 = vmax.xlane.f32.xlu0 %v3907
      %v3909 = vpop.xlane.xlu0 %3908
      %v3910 = vsel %vm937, %v3906, -inf
      %3911 = vmax.xlane.f32.xlu0 %v3910
      %v3912 = vpop.xlane.xlu0 %3911
      %v3913 = vsub.f32 %v3905, %v3909
      %v3914 = vsub.f32 %v3906, %v3912
      %v3915 = vmul.f32 %v3913, 1.442695
      %v3916 = vpow.pop %v3915
      %v3917 = vmul.f32 %v3914, 1.442695
      %v3918 = vpow.pop %v3917
      %v3919 = vsel %vm933, %v3916, 0.0
      %3920 = vadd.xlane.f32.xlu0 %v3919
      %v3921 = vpop.xlane.xlu0 %3920
      %v3922 = vsel %vm937, %v3918, 0.0
      %3923 = vadd.xlane.f32.xlu0 %v3922
      %v3924 = vpop.xlane.xlu0 %3923
      %v3925 = vrcp.pop %v3921
      %v3926 = vmul.f32 %v3921, %v3925
      %v3927 = vsub.f32 1.0, %v3926
      %v3928 = vmul.f32 %v3925, %v3927
      %v3929 = vadd.f32 %v3925, %v3928
      %vm3930 = vweird.f32 %v3921
      %vm3931 = vweird.f32 %v3925
      %vm3932 = vmor %vm3930, %vm3931
      %v3933 = vsel %vm3932, %v3925, %v3929
      %v3934 = vand.u32 2147483647, %v3921
      %vm3935 = vcmp.eq.f32.partialorder %v3934, 8.507059e+37
      %v3936 = vand.u32 %v3921, 2147483648
      %v3937 = vor.u32 1.1754944e-38, %v3936
      %v3938 = vsel %vm3935, %v3937, %v3933
      %v3939 = vmul.f32 %v3916, %v3938
      %v3940 = vrcp.pop %v3924
      %v3941 = vmul.f32 %v3924, %v3940
      %v3942 = vsub.f32 1.0, %v3941
      %v3943 = vmul.f32 %v3940, %v3942
      %v3944 = vadd.f32 %v3940, %v3943
      %vm3945 = vweird.f32 %v3924
      %vm3946 = vweird.f32 %v3940
      %vm3947 = vmor %vm3945, %vm3946
      %v3948 = vsel %vm3947, %v3940, %v3944
      %v3949 = vand.u32 2147483647, %v3924
      %vm3950 = vcmp.eq.f32.partialorder %v3949, 8.507059e+37
      %v3951 = vand.u32 %v3924, 2147483648
      %v3952 = vor.u32 1.1754944e-38, %v3951
      %v3953 = vsel %vm3950, %v3952, %v3948
      %v3954 = vmul.f32 %v3918, %v3953
      %3955 = vrot.lane.b32.xlu0 %v3695, 64
      %v3956 = vpop.permute.xlu0 %3955
      %3957 = vrot.lane.b32.xlu0 %v3699, 64
      %v3958 = vpop.permute.xlu0 %3957
      %v3961 = vsel %vm933, %v3939, 0
      %v3964 = vsel %vm933, %v3954, 0
      %v3966 = vsel %vm994, %v3958, 0
      %3968 = vmatpush.msra.mxu0 0.0
      %3969 = vmatpush.msra.mxu0 0.0
      %3970 = vmatpush.msra.mxu0 0.0
      %3971 = vmatpush.msra.mxu0 0.0
      %3972 = vmatpush.msra.mxu0 0.0
      %3973 = vmatpush.msra.mxu0 0.0
      %3974 = vmatpush.msra.mxu0 0.0
      %3975 = vmatpush.msra.mxu0 0.0
      %3976 = vmatpush.msra.mxu0 0.0
      %3977 = vmatpush.msra.mxu0 0.0
      %3978 = vmatpush.msra.mxu0 0.0
      %3979 = vmatpush.msra.mxu0 0.0
      %3980 = vmatpush.msra.mxu0 0.0
      %3981 = vmatpush.msra.mxu0 0.0
      %v3982 = vand.u32 %v3966, 4294901760
      %3983 = vmatpush.msra.mxu0 %v3982
      %v3984 = vand.u32 %v3956, 4294901760
      %3985 = vmatpush.msra.mxu0 %v3984
      %v3986 = vand.u32 %v3961, 4294901760
      %v3987 = vsub.f32 %v3961, %v3986
      %v3988 = vand.u32 %v3987, 4294901760
      %v3989 = vsub.f32 %v3987, %v3988
      %v3990 = vand.u32 %v3989, 4294901760
      %3991 = vmatmul.f32.gmra.mxu0 %v3990
      %v3992 = vpop.f32.mrf.mxu0
      %v3993 = vadd.f32 0.0, %v3992
      %v3994 = vand.u32 %v3964, 4294901760
      %v3995 = vsub.f32 %v3964, %v3994
      %v3996 = vand.u32 %v3995, 4294901760
      %v3997 = vsub.f32 %v3995, %v3996
      %v3998 = vand.u32 %v3997, 4294901760
      %3999 = vmatmul.f32.gmra.mxu0 %v3998
      %v4000 = vpop.f32.mrf.mxu0
      %v4001 = vadd.f32 0.0, %v4000
      %4002 = vdwg.mxu0
      %4003 = vmatpush.msra.mxu0 0.0
      %4004 = vmatpush.msra.mxu0 0.0
      %4005 = vmatpush.msra.mxu0 0.0
      %4006 = vmatpush.msra.mxu0 0.0
      %4007 = vmatpush.msra.mxu0 0.0
      %4008 = vmatpush.msra.mxu0 0.0
      %4009 = vmatpush.msra.mxu0 0.0
      %4010 = vmatpush.msra.mxu0 0.0
      %4011 = vmatpush.msra.mxu0 0.0
      %4012 = vmatpush.msra.mxu0 0.0
      %4013 = vmatpush.msra.mxu0 0.0
      %4014 = vmatpush.msra.mxu0 0.0
      %4015 = vmatpush.msra.mxu0 0.0
      %4016 = vmatpush.msra.mxu0 0.0
      %v4017 = vand.u32 %v3966, 4294901760
      %v4018 = vsub.f32 %v3966, %v4017
      %v4019 = vand.u32 %v4018, 4294901760
      %v4020 = vsub.f32 %v4018, %v4019
      %v4021 = vand.u32 %v4020, 4294901760
      %4022 = vmatpush.msra.mxu0 %v4021
      %v4023 = vand.u32 %v3956, 4294901760
      %v4024 = vsub.f32 %v3956, %v4023
      %v4025 = vand.u32 %v4024, 4294901760
      %v4026 = vsub.f32 %v4024, %v4025
      %v4027 = vand.u32 %v4026, 4294901760
      %4028 = vmatpush.msra.mxu0 %v4027
      %v4029 = vand.u32 %v3961, 4294901760
      %4030 = vmatmul.f32.gmra.mxu0 %v4029
      %v4031 = vpop.f32.mrf.mxu0
      %v4032 = vadd.f32 %v3993, %v4031
      %v4033 = vand.u32 %v3964, 4294901760
      %4034 = vmatmul.f32.gmra.mxu0 %v4033
      %v4035 = vpop.f32.mrf.mxu0
      %v4036 = vadd.f32 %v4001, %v4035
      %4037 = vdwg.mxu0
      %4038 = vmatpush.msra.mxu0 0.0
      %4039 = vmatpush.msra.mxu0 0.0
      %4040 = vmatpush.msra.mxu0 0.0
      %4041 = vmatpush.msra.mxu0 0.0
      %4042 = vmatpush.msra.mxu0 0.0
      %4043 = vmatpush.msra.mxu0 0.0
      %4044 = vmatpush.msra.mxu0 0.0
      %4045 = vmatpush.msra.mxu0 0.0
      %4046 = vmatpush.msra.mxu0 0.0
      %4047 = vmatpush.msra.mxu0 0.0
      %4048 = vmatpush.msra.mxu0 0.0
      %4049 = vmatpush.msra.mxu0 0.0
      %4050 = vmatpush.msra.mxu0 0.0
      %4051 = vmatpush.msra.mxu0 0.0
      %v4052 = vand.u32 %v3966, 4294901760
      %v4053 = vsub.f32 %v3966, %v4052
      %4054 = vmatpush.msra.mxu0 %v4053
      %v4055 = vand.u32 %v3956, 4294901760
      %v4056 = vsub.f32 %v3956, %v4055
      %4057 = vmatpush.msra.mxu0 %v4056
      %v4058 = vand.u32 %v3961, 4294901760
      %v4059 = vsub.f32 %v3961, %v4058
      %4060 = vmatmul.f32.gmra.mxu0 %v4059
      %v4061 = vpop.f32.mrf.mxu0
      %v4062 = vadd.f32 %v4032, %v4061
      %v4063 = vand.u32 %v3964, 4294901760
      %v4064 = vsub.f32 %v3964, %v4063
      %4065 = vmatmul.f32.gmra.mxu0 %v4064
      %v4066 = vpop.f32.mrf.mxu0
      %v4067 = vadd.f32 %v4036, %v4066
      %4068 = vdwg.mxu0
      %4069 = vmatpush.msra.mxu0 0.0
      %4070 = vmatpush.msra.mxu0 0.0
      %4071 = vmatpush.msra.mxu0 0.0
      %4072 = vmatpush.msra.mxu0 0.0
      %4073 = vmatpush.msra.mxu0 0.0
      %4074 = vmatpush.msra.mxu0 0.0
      %4075 = vmatpush.msra.mxu0 0.0
      %4076 = vmatpush.msra.mxu0 0.0
      %4077 = vmatpush.msra.mxu0 0.0
      %4078 = vmatpush.msra.mxu0 0.0
      %4079 = vmatpush.msra.mxu0 0.0
      %4080 = vmatpush.msra.mxu0 0.0
      %4081 = vmatpush.msra.mxu0 0.0
      %4082 = vmatpush.msra.mxu0 0.0
      %v4083 = vand.u32 %v3966, 4294901760
      %4084 = vmatpush.msra.mxu0 %v4083
      %v4085 = vand.u32 %v3956, 4294901760
      %4086 = vmatpush.msra.mxu0 %v4085
      %v4087 = vand.u32 %v3961, 4294901760
      %v4088 = vsub.f32 %v3961, %v4087
      %v4089 = vand.u32 %v4088, 4294901760
      %4090 = vmatmul.f32.gmra.mxu0 %v4089
      %v4091 = vpop.f32.mrf.mxu0
      %v4092 = vadd.f32 %v4062, %v4091
      %v4093 = vand.u32 %v3964, 4294901760
      %v4094 = vsub.f32 %v3964, %v4093
      %v4095 = vand.u32 %v4094, 4294901760
      %4096 = vmatmul.f32.gmra.mxu0 %v4095
      %v4097 = vpop.f32.mrf.mxu0
      %v4098 = vadd.f32 %v4067, %v4097
      %4099 = vdwg.mxu0
      %4100 = vmatpush.msra.mxu0 0.0
      %4101 = vmatpush.msra.mxu0 0.0
      %4102 = vmatpush.msra.mxu0 0.0
      %4103 = vmatpush.msra.mxu0 0.0
      %4104 = vmatpush.msra.mxu0 0.0
      %4105 = vmatpush.msra.mxu0 0.0
      %4106 = vmatpush.msra.mxu0 0.0
      %4107 = vmatpush.msra.mxu0 0.0
      %4108 = vmatpush.msra.mxu0 0.0
      %4109 = vmatpush.msra.mxu0 0.0
      %4110 = vmatpush.msra.mxu0 0.0
      %4111 = vmatpush.msra.mxu0 0.0
      %4112 = vmatpush.msra.mxu0 0.0
      %4113 = vmatpush.msra.mxu0 0.0
      %v4114 = vand.u32 %v3966, 4294901760
      %v4115 = vsub.f32 %v3966, %v4114
      %v4116 = vand.u32 %v4115, 4294901760
      %4117 = vmatpush.msra.mxu0 %v4116
      %v4118 = vand.u32 %v3956, 4294901760
      %v4119 = vsub.f32 %v3956, %v4118
      %v4120 = vand.u32 %v4119, 4294901760
      %4121 = vmatpush.msra.mxu0 %v4120
      %v4122 = vand.u32 %v3961, 4294901760
      %4123 = vmatmul.f32.gmra.mxu0 %v4122
      %v4124 = vpop.f32.mrf.mxu0
      %v4125 = vadd.f32 %v4092, %v4124
      %v4126 = vand.u32 %v3964, 4294901760
      %4127 = vmatmul.f32.gmra.mxu0 %v4126
      %v4128 = vpop.f32.mrf.mxu0
      %v4129 = vadd.f32 %v4098, %v4128
      %4130 = vdwg.mxu0
      %4131 = vmatpush.msra.mxu0 0.0
      %4132 = vmatpush.msra.mxu0 0.0
      %4133 = vmatpush.msra.mxu0 0.0
      %4134 = vmatpush.msra.mxu0 0.0
      %4135 = vmatpush.msra.mxu0 0.0
      %4136 = vmatpush.msra.mxu0 0.0
      %4137 = vmatpush.msra.mxu0 0.0
      %4138 = vmatpush.msra.mxu0 0.0
      %4139 = vmatpush.msra.mxu0 0.0
      %4140 = vmatpush.msra.mxu0 0.0
      %4141 = vmatpush.msra.mxu0 0.0
      %4142 = vmatpush.msra.mxu0 0.0
      %4143 = vmatpush.msra.mxu0 0.0
      %4144 = vmatpush.msra.mxu0 0.0
      %v4145 = vand.u32 %v3966, 4294901760
      %4146 = vmatpush.msra.mxu0 %v4145
      %v4147 = vand.u32 %v3956, 4294901760
      %4148 = vmatpush.msra.mxu0 %v4147
      %v4149 = vand.u32 %v3961, 4294901760
      %4150 = vmatmul.f32.gmra.mxu0 %v4149
      %v4151 = vpop.f32.mrf.mxu0
      %v4152 = vadd.f32 %v4125, %v4151
      %v4153 = vand.u32 %v3964, 4294901760
      %4154 = vmatmul.f32.gmra.mxu0 %v4153
      %v4155 = vpop.f32.mrf.mxu0
      %v4156 = vadd.f32 %v4129, %v4155
      %4157 = vdwg.mxu0
      %4158 = vrot.lane.b32.xlu0 %v3695, 120
      %v4159 = vpop.permute.xlu0 %4158
      %4160 = vrot.lane.b32.xlu0 %v3699, 120
      %v4161 = vpop.permute.xlu0 %4160
      %4162 = vrot.lane.b32.xlu0 %v3695, 88
      %v4163 = vpop.permute.xlu0 %4162
      %4164 = vrot.lane.b32.xlu0 %v3699, 88
      %v4165 = vpop.permute.xlu0 %4164
      %v4166 = vsel %vm732, %v4159, 0
      %v4168 = vsel %vm732, %v4161, 0
      %v4170 = vsel %vm732, %v4163, 0
      %v4172 = vsel %vm732, %v4165, 0
      %4174 = vmatpush.xpose.msra.mxu0 0.0
      %4175 = vmatpush.xpose.msra.mxu0 0.0
      %4176 = vmatpush.xpose.msra.mxu0 0.0
      %4177 = vmatpush.xpose.msra.mxu0 0.0
      %4178 = vmatpush.xpose.msra.mxu0 0.0
      %4179 = vmatpush.xpose.msra.mxu0 0.0
      %4180 = vmatpush.xpose.msra.mxu0 0.0
      %4181 = vmatpush.xpose.msra.mxu0 0.0
      %4182 = vmatpush.xpose.msra.mxu0 0.0
      %4183 = vmatpush.xpose.msra.mxu0 0.0
      %4184 = vmatpush.xpose.msra.mxu0 0.0
      %4185 = vmatpush.xpose.msra.mxu0 0.0
      %4186 = vmatpush.xpose.msra.mxu0 0.0
      %4187 = vmatpush.xpose.msra.mxu0 0.0
      %v4188 = vand.u32 %v4172, 4294901760
      %4189 = vmatpush.xpose.msra.mxu0 %v4188
      %v4190 = vand.u32 %v4170, 4294901760
      %4191 = vmatpush.xpose.msra.mxu0 %v4190
      %v4192 = vand.u32 %v4166, 4294901760
      %v4193 = vsub.f32 %v4166, %v4192
      %v4194 = vand.u32 %v4193, 4294901760
      %v4195 = vsub.f32 %v4193, %v4194
      %v4196 = vand.u32 %v4195, 4294901760
      %4197 = vmatmul.f32.gmra.mxu0 %v4196
      %v4198 = vpop.f32.mrf.mxu0
      %v4199 = vadd.f32 0.0, %v4198
      %v4200 = vand.u32 %v4168, 4294901760
      %v4201 = vsub.f32 %v4168, %v4200
      %v4202 = vand.u32 %v4201, 4294901760
      %v4203 = vsub.f32 %v4201, %v4202
      %v4204 = vand.u32 %v4203, 4294901760
      %4205 = vmatmul.f32.gmra.mxu0 %v4204
      %v4206 = vpop.f32.mrf.mxu0
      %v4207 = vadd.f32 0.0, %v4206
      %4208 = vdwg.mxu0
      %4209 = vmatpush.xpose.msra.mxu0 0.0
      %4210 = vmatpush.xpose.msra.mxu0 0.0
      %4211 = vmatpush.xpose.msra.mxu0 0.0
      %4212 = vmatpush.xpose.msra.mxu0 0.0
      %4213 = vmatpush.xpose.msra.mxu0 0.0
      %4214 = vmatpush.xpose.msra.mxu0 0.0
      %4215 = vmatpush.xpose.msra.mxu0 0.0
      %4216 = vmatpush.xpose.msra.mxu0 0.0
      %4217 = vmatpush.xpose.msra.mxu0 0.0
      %4218 = vmatpush.xpose.msra.mxu0 0.0
      %4219 = vmatpush.xpose.msra.mxu0 0.0
      %4220 = vmatpush.xpose.msra.mxu0 0.0
      %4221 = vmatpush.xpose.msra.mxu0 0.0
      %4222 = vmatpush.xpose.msra.mxu0 0.0
      %v4223 = vand.u32 %v4172, 4294901760
      %v4224 = vsub.f32 %v4172, %v4223
      %v4225 = vand.u32 %v4224, 4294901760
      %v4226 = vsub.f32 %v4224, %v4225
      %v4227 = vand.u32 %v4226, 4294901760
      %4228 = vmatpush.xpose.msra.mxu0 %v4227
      %v4229 = vand.u32 %v4170, 4294901760
      %v4230 = vsub.f32 %v4170, %v4229
      %v4231 = vand.u32 %v4230, 4294901760
      %v4232 = vsub.f32 %v4230, %v4231
      %v4233 = vand.u32 %v4232, 4294901760
      %4234 = vmatpush.xpose.msra.mxu0 %v4233
      %v4235 = vand.u32 %v4166, 4294901760
      %4236 = vmatmul.f32.gmra.mxu0 %v4235
      %v4237 = vpop.f32.mrf.mxu0
      %v4238 = vadd.f32 %v4199, %v4237
      %v4239 = vand.u32 %v4168, 4294901760
      %4240 = vmatmul.f32.gmra.mxu0 %v4239
      %v4241 = vpop.f32.mrf.mxu0
      %v4242 = vadd.f32 %v4207, %v4241
      %4243 = vdwg.mxu0
      %4244 = vmatpush.xpose.msra.mxu0 0.0
      %4245 = vmatpush.xpose.msra.mxu0 0.0
      %4246 = vmatpush.xpose.msra.mxu0 0.0
      %4247 = vmatpush.xpose.msra.mxu0 0.0
      %4248 = vmatpush.xpose.msra.mxu0 0.0
      %4249 = vmatpush.xpose.msra.mxu0 0.0
      %4250 = vmatpush.xpose.msra.mxu0 0.0
      %4251 = vmatpush.xpose.msra.mxu0 0.0
      %4252 = vmatpush.xpose.msra.mxu0 0.0
      %4253 = vmatpush.xpose.msra.mxu0 0.0
      %4254 = vmatpush.xpose.msra.mxu0 0.0
      %4255 = vmatpush.xpose.msra.mxu0 0.0
      %4256 = vmatpush.xpose.msra.mxu0 0.0
      %4257 = vmatpush.xpose.msra.mxu0 0.0
      %v4258 = vand.u32 %v4172, 4294901760
      %v4259 = vsub.f32 %v4172, %v4258
      %4260 = vmatpush.xpose.msra.mxu0 %v4259
      %v4261 = vand.u32 %v4170, 4294901760
      %v4262 = vsub.f32 %v4170, %v4261
      %4263 = vmatpush.xpose.msra.mxu0 %v4262
      %v4264 = vand.u32 %v4166, 4294901760
      %v4265 = vsub.f32 %v4166, %v4264
      %4266 = vmatmul.f32.gmra.mxu0 %v4265
      %v4267 = vpop.f32.mrf.mxu0
      %v4268 = vadd.f32 %v4238, %v4267
      %v4269 = vand.u32 %v4168, 4294901760
      %v4270 = vsub.f32 %v4168, %v4269
      %4271 = vmatmul.f32.gmra.mxu0 %v4270
      %v4272 = vpop.f32.mrf.mxu0
      %v4273 = vadd.f32 %v4242, %v4272
      %4274 = vdwg.mxu0
      %4275 = vmatpush.xpose.msra.mxu0 0.0
      %4276 = vmatpush.xpose.msra.mxu0 0.0
      %4277 = vmatpush.xpose.msra.mxu0 0.0
      %4278 = vmatpush.xpose.msra.mxu0 0.0
      %4279 = vmatpush.xpose.msra.mxu0 0.0
      %4280 = vmatpush.xpose.msra.mxu0 0.0
      %4281 = vmatpush.xpose.msra.mxu0 0.0
      %4282 = vmatpush.xpose.msra.mxu0 0.0
      %4283 = vmatpush.xpose.msra.mxu0 0.0
      %4284 = vmatpush.xpose.msra.mxu0 0.0
      %4285 = vmatpush.xpose.msra.mxu0 0.0
      %4286 = vmatpush.xpose.msra.mxu0 0.0
      %4287 = vmatpush.xpose.msra.mxu0 0.0
      %4288 = vmatpush.xpose.msra.mxu0 0.0
      %v4289 = vand.u32 %v4172, 4294901760
      %4290 = vmatpush.xpose.msra.mxu0 %v4289
      %v4291 = vand.u32 %v4170, 4294901760
      %4292 = vmatpush.xpose.msra.mxu0 %v4291
      %v4293 = vand.u32 %v4166, 4294901760
      %v4294 = vsub.f32 %v4166, %v4293
      %v4295 = vand.u32 %v4294, 4294901760
      %4296 = vmatmul.f32.gmra.mxu0 %v4295
      %v4297 = vpop.f32.mrf.mxu0
      %v4298 = vadd.f32 %v4268, %v4297
      %v4299 = vand.u32 %v4168, 4294901760
      %v4300 = vsub.f32 %v4168, %v4299
      %v4301 = vand.u32 %v4300, 4294901760
      %4302 = vmatmul.f32.gmra.mxu0 %v4301
      %v4303 = vpop.f32.mrf.mxu0
      %v4304 = vadd.f32 %v4273, %v4303
      %4305 = vdwg.mxu0
      %4306 = vmatpush.xpose.msra.mxu0 0.0
      %4307 = vmatpush.xpose.msra.mxu0 0.0
      %4308 = vmatpush.xpose.msra.mxu0 0.0
      %4309 = vmatpush.xpose.msra.mxu0 0.0
      %4310 = vmatpush.xpose.msra.mxu0 0.0
      %4311 = vmatpush.xpose.msra.mxu0 0.0
      %4312 = vmatpush.xpose.msra.mxu0 0.0
      %4313 = vmatpush.xpose.msra.mxu0 0.0
      %4314 = vmatpush.xpose.msra.mxu0 0.0
      %4315 = vmatpush.xpose.msra.mxu0 0.0
      %4316 = vmatpush.xpose.msra.mxu0 0.0
      %4317 = vmatpush.xpose.msra.mxu0 0.0
      %4318 = vmatpush.xpose.msra.mxu0 0.0
      %4319 = vmatpush.xpose.msra.mxu0 0.0
      %v4320 = vand.u32 %v4172, 4294901760
      %v4321 = vsub.f32 %v4172, %v4320
      %v4322 = vand.u32 %v4321, 4294901760
      %4323 = vmatpush.xpose.msra.mxu0 %v4322
      %v4324 = vand.u32 %v4170, 4294901760
      %v4325 = vsub.f32 %v4170, %v4324
      %v4326 = vand.u32 %v4325, 4294901760
      %4327 = vmatpush.xpose.msra.mxu0 %v4326
      %v4328 = vand.u32 %v4166, 4294901760
      %4329 = vmatmul.f32.gmra.mxu0 %v4328
      %v4330 = vpop.f32.mrf.mxu0
      %v4331 = vadd.f32 %v4298, %v4330
      %v4332 = vand.u32 %v4168, 4294901760
      %4333 = vmatmul.f32.gmra.mxu0 %v4332
      %v4334 = vpop.f32.mrf.mxu0
      %v4335 = vadd.f32 %v4304, %v4334
      %4336 = vdwg.mxu0
      %4337 = vmatpush.xpose.msra.mxu0 0.0
      %4338 = vmatpush.xpose.msra.mxu0 0.0
      %4339 = vmatpush.xpose.msra.mxu0 0.0
      %4340 = vmatpush.xpose.msra.mxu0 0.0
      %4341 = vmatpush.xpose.msra.mxu0 0.0
      %4342 = vmatpush.xpose.msra.mxu0 0.0
      %4343 = vmatpush.xpose.msra.mxu0 0.0
      %4344 = vmatpush.xpose.msra.mxu0 0.0
      %4345 = vmatpush.xpose.msra.mxu0 0.0
      %4346 = vmatpush.xpose.msra.mxu0 0.0
      %4347 = vmatpush.xpose.msra.mxu0 0.0
      %4348 = vmatpush.xpose.msra.mxu0 0.0
      %4349 = vmatpush.xpose.msra.mxu0 0.0
      %4350 = vmatpush.xpose.msra.mxu0 0.0
      %v4351 = vand.u32 %v4172, 4294901760
      %4352 = vmatpush.xpose.msra.mxu0 %v4351
      %v4353 = vand.u32 %v4170, 4294901760
      %4354 = vmatpush.xpose.msra.mxu0 %v4353
      %v4355 = vand.u32 %v4166, 4294901760
      %4356 = vmatmul.f32.gmra.mxu0 %v4355
      %v4357 = vpop.f32.mrf.mxu0
      %v4358 = vadd.f32 %v4331, %v4357
      %v4359 = vand.u32 %v4168, 4294901760
      %4360 = vmatmul.f32.gmra.mxu0 %v4359
      %v4361 = vpop.f32.mrf.mxu0
      %v4362 = vadd.f32 %v4335, %v4361
      %4363 = vdwg.mxu0
      %v4364 = vmul.f32 %v4358, 0.35355338
      %v4365 = vmul.f32 %v4362, 0.35355338
      %v4366 = vsel %vm933, %v4364, -inf
      %4367 = vmax.xlane.f32.xlu0 %v4366
      %v4368 = vpop.xlane.xlu0 %4367
      %v4369 = vsel %vm937, %v4365, -inf
      %4370 = vmax.xlane.f32.xlu0 %v4369
      %v4371 = vpop.xlane.xlu0 %4370
      %v4372 = vsub.f32 %v4364, %v4368
      %v4373 = vsub.f32 %v4365, %v4371
      %v4374 = vmul.f32 %v4372, 1.442695
      %v4375 = vpow.pop %v4374
      %v4376 = vmul.f32 %v4373, 1.442695
      %v4377 = vpow.pop %v4376
      %v4378 = vsel %vm933, %v4375, 0.0
      %4379 = vadd.xlane.f32.xlu0 %v4378
      %v4380 = vpop.xlane.xlu0 %4379
      %v4381 = vsel %vm937, %v4377, 0.0
      %4382 = vadd.xlane.f32.xlu0 %v4381
      %v4383 = vpop.xlane.xlu0 %4382
      %v4384 = vrcp.pop %v4380
      %v4385 = vmul.f32 %v4380, %v4384
      %v4386 = vsub.f32 1.0, %v4385
      %v4387 = vmul.f32 %v4384, %v4386
      %v4388 = vadd.f32 %v4384, %v4387
      %vm4389 = vweird.f32 %v4380
      %vm4390 = vweird.f32 %v4384
      %vm4391 = vmor %vm4389, %vm4390
      %v4392 = vsel %vm4391, %v4384, %v4388
      %v4393 = vand.u32 2147483647, %v4380
      %vm4394 = vcmp.eq.f32.partialorder %v4393, 8.507059e+37
      %v4395 = vand.u32 %v4380, 2147483648
      %v4396 = vor.u32 1.1754944e-38, %v4395
      %v4397 = vsel %vm4394, %v4396, %v4392
      %v4398 = vmul.f32 %v4375, %v4397
      %v4399 = vrcp.pop %v4383
      %v4400 = vmul.f32 %v4383, %v4399
      %v4401 = vsub.f32 1.0, %v4400
      %v4402 = vmul.f32 %v4399, %v4401
      %v4403 = vadd.f32 %v4399, %v4402
      %vm4404 = vweird.f32 %v4383
      %vm4405 = vweird.f32 %v4399
      %vm4406 = vmor %vm4404, %vm4405
      %v4407 = vsel %vm4406, %v4399, %v4403
      %v4408 = vand.u32 2147483647, %v4383
      %vm4409 = vcmp.eq.f32.partialorder %v4408, 8.507059e+37
      %v4410 = vand.u32 %v4383, 2147483648
      %v4411 = vor.u32 1.1754944e-38, %v4410
      %v4412 = vsel %vm4409, %v4411, %v4407
      %v4413 = vmul.f32 %v4377, %v4412
      %4414 = vrot.lane.b32.xlu0 %v3695, 56
      %v4415 = vpop.permute.xlu0 %4414
      %4416 = vrot.lane.b32.xlu0 %v3699, 56
      %v4417 = vpop.permute.xlu0 %4416
      %v4420 = vsel %vm933, %v4398, 0
      %v4423 = vsel %vm933, %v4413, 0
      %v4425 = vsel %vm994, %v4417, 0
      %4427 = vmatpush.msra.mxu0 0.0
      %4428 = vmatpush.msra.mxu0 0.0
      %4429 = vmatpush.msra.mxu0 0.0
      %4430 = vmatpush.msra.mxu0 0.0
      %4431 = vmatpush.msra.mxu0 0.0
      %4432 = vmatpush.msra.mxu0 0.0
      %4433 = vmatpush.msra.mxu0 0.0
      %4434 = vmatpush.msra.mxu0 0.0
      %4435 = vmatpush.msra.mxu0 0.0
      %4436 = vmatpush.msra.mxu0 0.0
      %4437 = vmatpush.msra.mxu0 0.0
      %4438 = vmatpush.msra.mxu0 0.0
      %4439 = vmatpush.msra.mxu0 0.0
      %4440 = vmatpush.msra.mxu0 0.0
      %v4441 = vand.u32 %v4425, 4294901760
      %4442 = vmatpush.msra.mxu0 %v4441
      %v4443 = vand.u32 %v4415, 4294901760
      %4444 = vmatpush.msra.mxu0 %v4443
      %v4445 = vand.u32 %v4420, 4294901760
      %v4446 = vsub.f32 %v4420, %v4445
      %v4447 = vand.u32 %v4446, 4294901760
      %v4448 = vsub.f32 %v4446, %v4447
      %v4449 = vand.u32 %v4448, 4294901760
      %4450 = vmatmul.f32.gmra.mxu0 %v4449
      %v4451 = vpop.f32.mrf.mxu0
      %v4452 = vadd.f32 0.0, %v4451
      %v4453 = vand.u32 %v4423, 4294901760
      %v4454 = vsub.f32 %v4423, %v4453
      %v4455 = vand.u32 %v4454, 4294901760
      %v4456 = vsub.f32 %v4454, %v4455
      %v4457 = vand.u32 %v4456, 4294901760
      %4458 = vmatmul.f32.gmra.mxu0 %v4457
      %v4459 = vpop.f32.mrf.mxu0
      %v4460 = vadd.f32 0.0, %v4459
      %4461 = vdwg.mxu0
      %4462 = vmatpush.msra.mxu0 0.0
      %4463 = vmatpush.msra.mxu0 0.0
      %4464 = vmatpush.msra.mxu0 0.0
      %4465 = vmatpush.msra.mxu0 0.0
      %4466 = vmatpush.msra.mxu0 0.0
      %4467 = vmatpush.msra.mxu0 0.0
      %4468 = vmatpush.msra.mxu0 0.0
      %4469 = vmatpush.msra.mxu0 0.0
      %4470 = vmatpush.msra.mxu0 0.0
      %4471 = vmatpush.msra.mxu0 0.0
      %4472 = vmatpush.msra.mxu0 0.0
      %4473 = vmatpush.msra.mxu0 0.0
      %4474 = vmatpush.msra.mxu0 0.0
      %4475 = vmatpush.msra.mxu0 0.0
      %v4476 = vand.u32 %v4425, 4294901760
      %v4477 = vsub.f32 %v4425, %v4476
      %v4478 = vand.u32 %v4477, 4294901760
      %v4479 = vsub.f32 %v4477, %v4478
      %v4480 = vand.u32 %v4479, 4294901760
      %4481 = vmatpush.msra.mxu0 %v4480
      %v4482 = vand.u32 %v4415, 4294901760
      %v4483 = vsub.f32 %v4415, %v4482
      %v4484 = vand.u32 %v4483, 4294901760
      %v4485 = vsub.f32 %v4483, %v4484
      %v4486 = vand.u32 %v4485, 4294901760
      %4487 = vmatpush.msra.mxu0 %v4486
      %v4488 = vand.u32 %v4420, 4294901760
      %4489 = vmatmul.f32.gmra.mxu0 %v4488
      %v4490 = vpop.f32.mrf.mxu0
      %v4491 = vadd.f32 %v4452, %v4490
      %v4492 = vand.u32 %v4423, 4294901760
      %4493 = vmatmul.f32.gmra.mxu0 %v4492
      %v4494 = vpop.f32.mrf.mxu0
      %v4495 = vadd.f32 %v4460, %v4494
      %4496 = vdwg.mxu0
      %4497 = vmatpush.msra.mxu0 0.0
      %4498 = vmatpush.msra.mxu0 0.0
      %4499 = vmatpush.msra.mxu0 0.0
      %4500 = vmatpush.msra.mxu0 0.0
      %4501 = vmatpush.msra.mxu0 0.0
      %4502 = vmatpush.msra.mxu0 0.0
      %4503 = vmatpush.msra.mxu0 0.0
      %4504 = vmatpush.msra.mxu0 0.0
      %4505 = vmatpush.msra.mxu0 0.0
      %4506 = vmatpush.msra.mxu0 0.0
      %4507 = vmatpush.msra.mxu0 0.0
      %4508 = vmatpush.msra.mxu0 0.0
      %4509 = vmatpush.msra.mxu0 0.0
      %4510 = vmatpush.msra.mxu0 0.0
      %v4511 = vand.u32 %v4425, 4294901760
      %v4512 = vsub.f32 %v4425, %v4511
      %4513 = vmatpush.msra.mxu0 %v4512
      %v4514 = vand.u32 %v4415, 4294901760
      %v4515 = vsub.f32 %v4415, %v4514
      %4516 = vmatpush.msra.mxu0 %v4515
      %v4517 = vand.u32 %v4420, 4294901760
      %v4518 = vsub.f32 %v4420, %v4517
      %4519 = vmatmul.f32.gmra.mxu0 %v4518
      %v4520 = vpop.f32.mrf.mxu0
      %v4521 = vadd.f32 %v4491, %v4520
      %v4522 = vand.u32 %v4423, 4294901760
      %v4523 = vsub.f32 %v4423, %v4522
      %4524 = vmatmul.f32.gmra.mxu0 %v4523
      %v4525 = vpop.f32.mrf.mxu0
      %v4526 = vadd.f32 %v4495, %v4525
      %4527 = vdwg.mxu0
      %4528 = vmatpush.msra.mxu0 0.0
      %4529 = vmatpush.msra.mxu0 0.0
      %4530 = vmatpush.msra.mxu0 0.0
      %4531 = vmatpush.msra.mxu0 0.0
      %4532 = vmatpush.msra.mxu0 0.0
      %4533 = vmatpush.msra.mxu0 0.0
      %4534 = vmatpush.msra.mxu0 0.0
      %4535 = vmatpush.msra.mxu0 0.0
      %4536 = vmatpush.msra.mxu0 0.0
      %4537 = vmatpush.msra.mxu0 0.0
      %4538 = vmatpush.msra.mxu0 0.0
      %4539 = vmatpush.msra.mxu0 0.0
      %4540 = vmatpush.msra.mxu0 0.0
      %4541 = vmatpush.msra.mxu0 0.0
      %v4542 = vand.u32 %v4425, 4294901760
      %4543 = vmatpush.msra.mxu0 %v4542
      %v4544 = vand.u32 %v4415, 4294901760
      %4545 = vmatpush.msra.mxu0 %v4544
      %v4546 = vand.u32 %v4420, 4294901760
      %v4547 = vsub.f32 %v4420, %v4546
      %v4548 = vand.u32 %v4547, 4294901760
      %4549 = vmatmul.f32.gmra.mxu0 %v4548
      %v4550 = vpop.f32.mrf.mxu0
      %v4551 = vadd.f32 %v4521, %v4550
      %v4552 = vand.u32 %v4423, 4294901760
      %v4553 = vsub.f32 %v4423, %v4552
      %v4554 = vand.u32 %v4553, 4294901760
      %4555 = vmatmul.f32.gmra.mxu0 %v4554
      %v4556 = vpop.f32.mrf.mxu0
      %v4557 = vadd.f32 %v4526, %v4556
      %4558 = vdwg.mxu0
      %4559 = vmatpush.msra.mxu0 0.0
      %4560 = vmatpush.msra.mxu0 0.0
      %4561 = vmatpush.msra.mxu0 0.0
      %4562 = vmatpush.msra.mxu0 0.0
      %4563 = vmatpush.msra.mxu0 0.0
      %4564 = vmatpush.msra.mxu0 0.0
      %4565 = vmatpush.msra.mxu0 0.0
      %4566 = vmatpush.msra.mxu0 0.0
      %4567 = vmatpush.msra.mxu0 0.0
      %4568 = vmatpush.msra.mxu0 0.0
      %4569 = vmatpush.msra.mxu0 0.0
      %4570 = vmatpush.msra.mxu0 0.0
      %4571 = vmatpush.msra.mxu0 0.0
      %4572 = vmatpush.msra.mxu0 0.0
      %v4573 = vand.u32 %v4425, 4294901760
      %v4574 = vsub.f32 %v4425, %v4573
      %v4575 = vand.u32 %v4574, 4294901760
      %4576 = vmatpush.msra.mxu0 %v4575
      %v4577 = vand.u32 %v4415, 4294901760
      %v4578 = vsub.f32 %v4415, %v4577
      %v4579 = vand.u32 %v4578, 4294901760
      %4580 = vmatpush.msra.mxu0 %v4579
      %v4581 = vand.u32 %v4420, 4294901760
      %4582 = vmatmul.f32.gmra.mxu0 %v4581
      %v4583 = vpop.f32.mrf.mxu0
      %v4584 = vadd.f32 %v4551, %v4583
      %v4585 = vand.u32 %v4423, 4294901760
      %4586 = vmatmul.f32.gmra.mxu0 %v4585
      %v4587 = vpop.f32.mrf.mxu0
      %v4588 = vadd.f32 %v4557, %v4587
      %4589 = vdwg.mxu0
      %4590 = vmatpush.msra.mxu0 0.0
      %4591 = vmatpush.msra.mxu0 0.0
      %4592 = vmatpush.msra.mxu0 0.0
      %4593 = vmatpush.msra.mxu0 0.0
      %4594 = vmatpush.msra.mxu0 0.0
      %4595 = vmatpush.msra.mxu0 0.0
      %4596 = vmatpush.msra.mxu0 0.0
      %4597 = vmatpush.msra.mxu0 0.0
      %4598 = vmatpush.msra.mxu0 0.0
      %4599 = vmatpush.msra.mxu0 0.0
      %4600 = vmatpush.msra.mxu0 0.0
      %4601 = vmatpush.msra.mxu0 0.0
      %4602 = vmatpush.msra.mxu0 0.0
      %4603 = vmatpush.msra.mxu0 0.0
      %v4604 = vand.u32 %v4425, 4294901760
      %4605 = vmatpush.msra.mxu0 %v4604
      %v4606 = vand.u32 %v4415, 4294901760
      %4607 = vmatpush.msra.mxu0 %v4606
      %v4608 = vand.u32 %v4420, 4294901760
      %4609 = vmatmul.f32.gmra.mxu0 %v4608
      %v4610 = vpop.f32.mrf.mxu0
      %v4611 = vadd.f32 %v4584, %v4610
      %v4612 = vand.u32 %v4423, 4294901760
      %4613 = vmatmul.f32.gmra.mxu0 %v4612
      %v4614 = vpop.f32.mrf.mxu0
      %v4615 = vadd.f32 %v4588, %v4614
      %4616 = vdwg.mxu0
      %4617 = vrot.lane.b32.xlu0 %v3695, 112
      %v4618 = vpop.permute.xlu0 %4617
      %4619 = vrot.lane.b32.xlu0 %v3699, 112
      %v4620 = vpop.permute.xlu0 %4619
      %4621 = vrot.lane.b32.xlu0 %v3695, 80
      %v4622 = vpop.permute.xlu0 %4621
      %4623 = vrot.lane.b32.xlu0 %v3699, 80
      %v4624 = vpop.permute.xlu0 %4623
      %v4625 = vsel %vm732, %v4618, 0
      %v4627 = vsel %vm732, %v4620, 0
      %v4629 = vsel %vm732, %v4622, 0
      %v4631 = vsel %vm732, %v4624, 0
      %4633 = vmatpush.xpose.msra.mxu0 0.0
      %4634 = vmatpush.xpose.msra.mxu0 0.0
      %4635 = vmatpush.xpose.msra.mxu0 0.0
      %4636 = vmatpush.xpose.msra.mxu0 0.0
      %4637 = vmatpush.xpose.msra.mxu0 0.0
      %4638 = vmatpush.xpose.msra.mxu0 0.0
      %4639 = vmatpush.xpose.msra.mxu0 0.0
      %4640 = vmatpush.xpose.msra.mxu0 0.0
      %4641 = vmatpush.xpose.msra.mxu0 0.0
      %4642 = vmatpush.xpose.msra.mxu0 0.0
      %4643 = vmatpush.xpose.msra.mxu0 0.0
      %4644 = vmatpush.xpose.msra.mxu0 0.0
      %4645 = vmatpush.xpose.msra.mxu0 0.0
      %4646 = vmatpush.xpose.msra.mxu0 0.0
      %v4647 = vand.u32 %v4631, 4294901760
      %4648 = vmatpush.xpose.msra.mxu0 %v4647
      %v4649 = vand.u32 %v4629, 4294901760
      %4650 = vmatpush.xpose.msra.mxu0 %v4649
      %v4651 = vand.u32 %v4625, 4294901760
      %v4652 = vsub.f32 %v4625, %v4651
      %v4653 = vand.u32 %v4652, 4294901760
      %v4654 = vsub.f32 %v4652, %v4653
      %v4655 = vand.u32 %v4654, 4294901760
      %4656 = vmatmul.f32.gmra.mxu0 %v4655
      %v4657 = vpop.f32.mrf.mxu0
      %v4658 = vadd.f32 0.0, %v4657
      %v4659 = vand.u32 %v4627, 4294901760
      %v4660 = vsub.f32 %v4627, %v4659
      %v4661 = vand.u32 %v4660, 4294901760
      %v4662 = vsub.f32 %v4660, %v4661
      %v4663 = vand.u32 %v4662, 4294901760
      %4664 = vmatmul.f32.gmra.mxu0 %v4663
      %v4665 = vpop.f32.mrf.mxu0
      %v4666 = vadd.f32 0.0, %v4665
      %4667 = vdwg.mxu0
      %4668 = vmatpush.xpose.msra.mxu0 0.0
      %4669 = vmatpush.xpose.msra.mxu0 0.0
      %4670 = vmatpush.xpose.msra.mxu0 0.0
      %4671 = vmatpush.xpose.msra.mxu0 0.0
      %4672 = vmatpush.xpose.msra.mxu0 0.0
      %4673 = vmatpush.xpose.msra.mxu0 0.0
      %4674 = vmatpush.xpose.msra.mxu0 0.0
      %4675 = vmatpush.xpose.msra.mxu0 0.0
      %4676 = vmatpush.xpose.msra.mxu0 0.0
      %4677 = vmatpush.xpose.msra.mxu0 0.0
      %4678 = vmatpush.xpose.msra.mxu0 0.0
      %4679 = vmatpush.xpose.msra.mxu0 0.0
      %4680 = vmatpush.xpose.msra.mxu0 0.0
      %4681 = vmatpush.xpose.msra.mxu0 0.0
      %v4682 = vand.u32 %v4631, 4294901760
      %v4683 = vsub.f32 %v4631, %v4682
      %v4684 = vand.u32 %v4683, 4294901760
      %v4685 = vsub.f32 %v4683, %v4684
      %v4686 = vand.u32 %v4685, 4294901760
      %4687 = vmatpush.xpose.msra.mxu0 %v4686
      %v4688 = vand.u32 %v4629, 4294901760
      %v4689 = vsub.f32 %v4629, %v4688
      %v4690 = vand.u32 %v4689, 4294901760
      %v4691 = vsub.f32 %v4689, %v4690
      %v4692 = vand.u32 %v4691, 4294901760
      %4693 = vmatpush.xpose.msra.mxu0 %v4692
      %v4694 = vand.u32 %v4625, 4294901760
      %4695 = vmatmul.f32.gmra.mxu0 %v4694
      %v4696 = vpop.f32.mrf.mxu0
      %v4697 = vadd.f32 %v4658, %v4696
      %v4698 = vand.u32 %v4627, 4294901760
      %4699 = vmatmul.f32.gmra.mxu0 %v4698
      %v4700 = vpop.f32.mrf.mxu0
      %v4701 = vadd.f32 %v4666, %v4700
      %4702 = vdwg.mxu0
      %4703 = vmatpush.xpose.msra.mxu0 0.0
      %4704 = vmatpush.xpose.msra.mxu0 0.0
      %4705 = vmatpush.xpose.msra.mxu0 0.0
      %4706 = vmatpush.xpose.msra.mxu0 0.0
      %4707 = vmatpush.xpose.msra.mxu0 0.0
      %4708 = vmatpush.xpose.msra.mxu0 0.0
      %4709 = vmatpush.xpose.msra.mxu0 0.0
      %4710 = vmatpush.xpose.msra.mxu0 0.0
      %4711 = vmatpush.xpose.msra.mxu0 0.0
      %4712 = vmatpush.xpose.msra.mxu0 0.0
      %4713 = vmatpush.xpose.msra.mxu0 0.0
      %4714 = vmatpush.xpose.msra.mxu0 0.0
      %4715 = vmatpush.xpose.msra.mxu0 0.0
      %4716 = vmatpush.xpose.msra.mxu0 0.0
      %v4717 = vand.u32 %v4631, 4294901760
      %v4718 = vsub.f32 %v4631, %v4717
      %4719 = vmatpush.xpose.msra.mxu0 %v4718
      %v4720 = vand.u32 %v4629, 4294901760
      %v4721 = vsub.f32 %v4629, %v4720
      %4722 = vmatpush.xpose.msra.mxu0 %v4721
      %v4723 = vand.u32 %v4625, 4294901760
      %v4724 = vsub.f32 %v4625, %v4723
      %4725 = vmatmul.f32.gmra.mxu0 %v4724
      %v4726 = vpop.f32.mrf.mxu0
      %v4727 = vadd.f32 %v4697, %v4726
      %v4728 = vand.u32 %v4627, 4294901760
      %v4729 = vsub.f32 %v4627, %v4728
      %4730 = vmatmul.f32.gmra.mxu0 %v4729
      %v4731 = vpop.f32.mrf.mxu0
      %v4732 = vadd.f32 %v4701, %v4731
      %4733 = vdwg.mxu0
      %4734 = vmatpush.xpose.msra.mxu0 0.0
      %4735 = vmatpush.xpose.msra.mxu0 0.0
      %4736 = vmatpush.xpose.msra.mxu0 0.0
      %4737 = vmatpush.xpose.msra.mxu0 0.0
      %4738 = vmatpush.xpose.msra.mxu0 0.0
      %4739 = vmatpush.xpose.msra.mxu0 0.0
      %4740 = vmatpush.xpose.msra.mxu0 0.0
      %4741 = vmatpush.xpose.msra.mxu0 0.0
      %4742 = vmatpush.xpose.msra.mxu0 0.0
      %4743 = vmatpush.xpose.msra.mxu0 0.0
      %4744 = vmatpush.xpose.msra.mxu0 0.0
      %4745 = vmatpush.xpose.msra.mxu0 0.0
      %4746 = vmatpush.xpose.msra.mxu0 0.0
      %4747 = vmatpush.xpose.msra.mxu0 0.0
      %v4748 = vand.u32 %v4631, 4294901760
      %4749 = vmatpush.xpose.msra.mxu0 %v4748
      %v4750 = vand.u32 %v4629, 4294901760
      %4751 = vmatpush.xpose.msra.mxu0 %v4750
      %v4752 = vand.u32 %v4625, 4294901760
      %v4753 = vsub.f32 %v4625, %v4752
      %v4754 = vand.u32 %v4753, 4294901760
      %4755 = vmatmul.f32.gmra.mxu0 %v4754
      %v4756 = vpop.f32.mrf.mxu0
      %v4757 = vadd.f32 %v4727, %v4756
      %v4758 = vand.u32 %v4627, 4294901760
      %v4759 = vsub.f32 %v4627, %v4758
      %v4760 = vand.u32 %v4759, 4294901760
      %4761 = vmatmul.f32.gmra.mxu0 %v4760
      %v4762 = vpop.f32.mrf.mxu0
      %v4763 = vadd.f32 %v4732, %v4762
      %4764 = vdwg.mxu0
      %4765 = vmatpush.xpose.msra.mxu0 0.0
      %4766 = vmatpush.xpose.msra.mxu0 0.0
      %4767 = vmatpush.xpose.msra.mxu0 0.0
      %4768 = vmatpush.xpose.msra.mxu0 0.0
      %4769 = vmatpush.xpose.msra.mxu0 0.0
      %4770 = vmatpush.xpose.msra.mxu0 0.0
      %4771 = vmatpush.xpose.msra.mxu0 0.0
      %4772 = vmatpush.xpose.msra.mxu0 0.0
      %4773 = vmatpush.xpose.msra.mxu0 0.0
      %4774 = vmatpush.xpose.msra.mxu0 0.0
      %4775 = vmatpush.xpose.msra.mxu0 0.0
      %4776 = vmatpush.xpose.msra.mxu0 0.0
      %4777 = vmatpush.xpose.msra.mxu0 0.0
      %4778 = vmatpush.xpose.msra.mxu0 0.0
      %v4779 = vand.u32 %v4631, 4294901760
      %v4780 = vsub.f32 %v4631, %v4779
      %v4781 = vand.u32 %v4780, 4294901760
      %4782 = vmatpush.xpose.msra.mxu0 %v4781
      %v4783 = vand.u32 %v4629, 4294901760
      %v4784 = vsub.f32 %v4629, %v4783
      %v4785 = vand.u32 %v4784, 4294901760
      %4786 = vmatpush.xpose.msra.mxu0 %v4785
      %v4787 = vand.u32 %v4625, 4294901760
      %4788 = vmatmul.f32.gmra.mxu0 %v4787
      %v4789 = vpop.f32.mrf.mxu0
      %v4790 = vadd.f32 %v4757, %v4789
      %v4791 = vand.u32 %v4627, 4294901760
      %4792 = vmatmul.f32.gmra.mxu0 %v4791
      %v4793 = vpop.f32.mrf.mxu0
      %v4794 = vadd.f32 %v4763, %v4793
      %4795 = vdwg.mxu0
      %4796 = vmatpush.xpose.msra.mxu0 0.0
      %4797 = vmatpush.xpose.msra.mxu0 0.0
      %4798 = vmatpush.xpose.msra.mxu0 0.0
      %4799 = vmatpush.xpose.msra.mxu0 0.0
      %4800 = vmatpush.xpose.msra.mxu0 0.0
      %4801 = vmatpush.xpose.msra.mxu0 0.0
      %4802 = vmatpush.xpose.msra.mxu0 0.0
      %4803 = vmatpush.xpose.msra.mxu0 0.0
      %4804 = vmatpush.xpose.msra.mxu0 0.0
      %4805 = vmatpush.xpose.msra.mxu0 0.0
      %4806 = vmatpush.xpose.msra.mxu0 0.0
      %4807 = vmatpush.xpose.msra.mxu0 0.0
      %4808 = vmatpush.xpose.msra.mxu0 0.0
      %4809 = vmatpush.xpose.msra.mxu0 0.0
      %v4810 = vand.u32 %v4631, 4294901760
      %4811 = vmatpush.xpose.msra.mxu0 %v4810
      %v4812 = vand.u32 %v4629, 4294901760
      %4813 = vmatpush.xpose.msra.mxu0 %v4812
      %v4814 = vand.u32 %v4625, 4294901760
      %4815 = vmatmul.f32.gmra.mxu0 %v4814
      %v4816 = vpop.f32.mrf.mxu0
      %v4817 = vadd.f32 %v4790, %v4816
      %v4818 = vand.u32 %v4627, 4294901760
      %4819 = vmatmul.f32.gmra.mxu0 %v4818
      %v4820 = vpop.f32.mrf.mxu0
      %v4821 = vadd.f32 %v4794, %v4820
      %4822 = vdwg.mxu0
      %v4823 = vmul.f32 %v4817, 0.35355338
      %v4824 = vmul.f32 %v4821, 0.35355338
      %v4825 = vsel %vm933, %v4823, -inf
      %4826 = vmax.xlane.f32.xlu0 %v4825
      %v4827 = vpop.xlane.xlu0 %4826
      %v4828 = vsel %vm937, %v4824, -inf
      %4829 = vmax.xlane.f32.xlu0 %v4828
      %v4830 = vpop.xlane.xlu0 %4829
      %v4831 = vsub.f32 %v4823, %v4827
      %v4832 = vsub.f32 %v4824, %v4830
      %v4833 = vmul.f32 %v4831, 1.442695
      %v4834 = vpow.pop %v4833
      %v4835 = vmul.f32 %v4832, 1.442695
      %v4836 = vpow.pop %v4835
      %v4837 = vsel %vm933, %v4834, 0.0
      %4838 = vadd.xlane.f32.xlu0 %v4837
      %v4839 = vpop.xlane.xlu0 %4838
      %v4840 = vsel %vm937, %v4836, 0.0
      %4841 = vadd.xlane.f32.xlu0 %v4840
      %v4842 = vpop.xlane.xlu0 %4841
      %v4843 = vrcp.pop %v4839
      %v4844 = vmul.f32 %v4839, %v4843
      %v4845 = vsub.f32 1.0, %v4844
      %v4846 = vmul.f32 %v4843, %v4845
      %v4847 = vadd.f32 %v4843, %v4846
      %vm4848 = vweird.f32 %v4839
      %vm4849 = vweird.f32 %v4843
      %vm4850 = vmor %vm4848, %vm4849
      %v4851 = vsel %vm4850, %v4843, %v4847
      %v4852 = vand.u32 2147483647, %v4839
      %vm4853 = vcmp.eq.f32.partialorder %v4852, 8.507059e+37
      %v4854 = vand.u32 %v4839, 2147483648
      %v4855 = vor.u32 1.1754944e-38, %v4854
      %v4856 = vsel %vm4853, %v4855, %v4851
      %v4857 = vmul.f32 %v4834, %v4856
      %v4858 = vrcp.pop %v4842
      %v4859 = vmul.f32 %v4842, %v4858
      %v4860 = vsub.f32 1.0, %v4859
      %v4861 = vmul.f32 %v4858, %v4860
      %v4862 = vadd.f32 %v4858, %v4861
      %vm4863 = vweird.f32 %v4842
      %vm4864 = vweird.f32 %v4858
      %vm4865 = vmor %vm4863, %vm4864
      %v4866 = vsel %vm4865, %v4858, %v4862
      %v4867 = vand.u32 2147483647, %v4842
      %vm4868 = vcmp.eq.f32.partialorder %v4867, 8.507059e+37
      %v4869 = vand.u32 %v4842, 2147483648
      %v4870 = vor.u32 1.1754944e-38, %v4869
      %v4871 = vsel %vm4868, %v4870, %v4866
      %v4872 = vmul.f32 %v4836, %v4871
      %4873 = vrot.lane.b32.xlu0 %v3695, 48
      %v4874 = vpop.permute.xlu0 %4873
      %4875 = vrot.lane.b32.xlu0 %v3699, 48
      %v4876 = vpop.permute.xlu0 %4875
      %v4879 = vsel %vm933, %v4857, 0
      %v4882 = vsel %vm933, %v4872, 0
      %v4884 = vsel %vm994, %v4876, 0
      %4886 = vmatpush.msra.mxu0 0.0
      %4887 = vmatpush.msra.mxu0 0.0
      %4888 = vmatpush.msra.mxu0 0.0
      %4889 = vmatpush.msra.mxu0 0.0
      %4890 = vmatpush.msra.mxu0 0.0
      %4891 = vmatpush.msra.mxu0 0.0
      %4892 = vmatpush.msra.mxu0 0.0
      %4893 = vmatpush.msra.mxu0 0.0
      %4894 = vmatpush.msra.mxu0 0.0
      %4895 = vmatpush.msra.mxu0 0.0
      %4896 = vmatpush.msra.mxu0 0.0
      %4897 = vmatpush.msra.mxu0 0.0
      %4898 = vmatpush.msra.mxu0 0.0
      %4899 = vmatpush.msra.mxu0 0.0
      %v4900 = vand.u32 %v4884, 4294901760
      %4901 = vmatpush.msra.mxu0 %v4900
      %v4902 = vand.u32 %v4874, 4294901760
      %4903 = vmatpush.msra.mxu0 %v4902
      %v4904 = vand.u32 %v4879, 4294901760
      %v4905 = vsub.f32 %v4879, %v4904
      %v4906 = vand.u32 %v4905, 4294901760
      %v4907 = vsub.f32 %v4905, %v4906
      %v4908 = vand.u32 %v4907, 4294901760
      %4909 = vmatmul.f32.gmra.mxu0 %v4908
      %v4910 = vpop.f32.mrf.mxu0
      %v4911 = vadd.f32 0.0, %v4910
      %v4912 = vand.u32 %v4882, 4294901760
      %v4913 = vsub.f32 %v4882, %v4912
      %v4914 = vand.u32 %v4913, 4294901760
      %v4915 = vsub.f32 %v4913, %v4914
      %v4916 = vand.u32 %v4915, 4294901760
      %4917 = vmatmul.f32.gmra.mxu0 %v4916
      %v4918 = vpop.f32.mrf.mxu0
      %v4919 = vadd.f32 0.0, %v4918
      %4920 = vdwg.mxu0
      %4921 = vmatpush.msra.mxu0 0.0
      %4922 = vmatpush.msra.mxu0 0.0
      %4923 = vmatpush.msra.mxu0 0.0
      %4924 = vmatpush.msra.mxu0 0.0
      %4925 = vmatpush.msra.mxu0 0.0
      %4926 = vmatpush.msra.mxu0 0.0
      %4927 = vmatpush.msra.mxu0 0.0
      %4928 = vmatpush.msra.mxu0 0.0
      %4929 = vmatpush.msra.mxu0 0.0
      %4930 = vmatpush.msra.mxu0 0.0
      %4931 = vmatpush.msra.mxu0 0.0
      %4932 = vmatpush.msra.mxu0 0.0
      %4933 = vmatpush.msra.mxu0 0.0
      %4934 = vmatpush.msra.mxu0 0.0
      %v4935 = vand.u32 %v4884, 4294901760
      %v4936 = vsub.f32 %v4884, %v4935
      %v4937 = vand.u32 %v4936, 4294901760
      %v4938 = vsub.f32 %v4936, %v4937
      %v4939 = vand.u32 %v4938, 4294901760
      %4940 = vmatpush.msra.mxu0 %v4939
      %v4941 = vand.u32 %v4874, 4294901760
      %v4942 = vsub.f32 %v4874, %v4941
      %v4943 = vand.u32 %v4942, 4294901760
      %v4944 = vsub.f32 %v4942, %v4943
      %v4945 = vand.u32 %v4944, 4294901760
      %4946 = vmatpush.msra.mxu0 %v4945
      %v4947 = vand.u32 %v4879, 4294901760
      %4948 = vmatmul.f32.gmra.mxu0 %v4947
      %v4949 = vpop.f32.mrf.mxu0
      %v4950 = vadd.f32 %v4911, %v4949
      %v4951 = vand.u32 %v4882, 4294901760
      %4952 = vmatmul.f32.gmra.mxu0 %v4951
      %v4953 = vpop.f32.mrf.mxu0
      %v4954 = vadd.f32 %v4919, %v4953
      %4955 = vdwg.mxu0
      %4956 = vmatpush.msra.mxu0 0.0
      %4957 = vmatpush.msra.mxu0 0.0
      %4958 = vmatpush.msra.mxu0 0.0
      %4959 = vmatpush.msra.mxu0 0.0
      %4960 = vmatpush.msra.mxu0 0.0
      %4961 = vmatpush.msra.mxu0 0.0
      %4962 = vmatpush.msra.mxu0 0.0
      %4963 = vmatpush.msra.mxu0 0.0
      %4964 = vmatpush.msra.mxu0 0.0
      %4965 = vmatpush.msra.mxu0 0.0
      %4966 = vmatpush.msra.mxu0 0.0
      %4967 = vmatpush.msra.mxu0 0.0
      %4968 = vmatpush.msra.mxu0 0.0
      %4969 = vmatpush.msra.mxu0 0.0
      %v4970 = vand.u32 %v4884, 4294901760
      %v4971 = vsub.f32 %v4884, %v4970
      %4972 = vmatpush.msra.mxu0 %v4971
      %v4973 = vand.u32 %v4874, 4294901760
      %v4974 = vsub.f32 %v4874, %v4973
      %4975 = vmatpush.msra.mxu0 %v4974
      %v4976 = vand.u32 %v4879, 4294901760
      %v4977 = vsub.f32 %v4879, %v4976
      %4978 = vmatmul.f32.gmra.mxu0 %v4977
      %v4979 = vpop.f32.mrf.mxu0
      %v4980 = vadd.f32 %v4950, %v4979
      %v4981 = vand.u32 %v4882, 4294901760
      %v4982 = vsub.f32 %v4882, %v4981
      %4983 = vmatmul.f32.gmra.mxu0 %v4982
      %v4984 = vpop.f32.mrf.mxu0
      %v4985 = vadd.f32 %v4954, %v4984
      %4986 = vdwg.mxu0
      %4987 = vmatpush.msra.mxu0 0.0
      %4988 = vmatpush.msra.mxu0 0.0
      %4989 = vmatpush.msra.mxu0 0.0
      %4990 = vmatpush.msra.mxu0 0.0
      %4991 = vmatpush.msra.mxu0 0.0
      %4992 = vmatpush.msra.mxu0 0.0
      %4993 = vmatpush.msra.mxu0 0.0
      %4994 = vmatpush.msra.mxu0 0.0
      %4995 = vmatpush.msra.mxu0 0.0
      %4996 = vmatpush.msra.mxu0 0.0
      %4997 = vmatpush.msra.mxu0 0.0
      %4998 = vmatpush.msra.mxu0 0.0
      %4999 = vmatpush.msra.mxu0 0.0
      %5000 = vmatpush.msra.mxu0 0.0
      %v5001 = vand.u32 %v4884, 4294901760
      %5002 = vmatpush.msra.mxu0 %v5001
      %v5003 = vand.u32 %v4874, 4294901760
      %5004 = vmatpush.msra.mxu0 %v5003
      %v5005 = vand.u32 %v4879, 4294901760
      %v5006 = vsub.f32 %v4879, %v5005
      %v5007 = vand.u32 %v5006, 4294901760
      %5008 = vmatmul.f32.gmra.mxu0 %v5007
      %v5009 = vpop.f32.mrf.mxu0
      %v5010 = vadd.f32 %v4980, %v5009
      %v5011 = vand.u32 %v4882, 4294901760
      %v5012 = vsub.f32 %v4882, %v5011
      %v5013 = vand.u32 %v5012, 4294901760
      %5014 = vmatmul.f32.gmra.mxu0 %v5013
      %v5015 = vpop.f32.mrf.mxu0
      %v5016 = vadd.f32 %v4985, %v5015
      %5017 = vdwg.mxu0
      %5018 = vmatpush.msra.mxu0 0.0
      %5019 = vmatpush.msra.mxu0 0.0
      %5020 = vmatpush.msra.mxu0 0.0
      %5021 = vmatpush.msra.mxu0 0.0
      %5022 = vmatpush.msra.mxu0 0.0
      %5023 = vmatpush.msra.mxu0 0.0
      %5024 = vmatpush.msra.mxu0 0.0
      %5025 = vmatpush.msra.mxu0 0.0
      %5026 = vmatpush.msra.mxu0 0.0
      %5027 = vmatpush.msra.mxu0 0.0
      %5028 = vmatpush.msra.mxu0 0.0
      %5029 = vmatpush.msra.mxu0 0.0
      %5030 = vmatpush.msra.mxu0 0.0
      %5031 = vmatpush.msra.mxu0 0.0
      %v5032 = vand.u32 %v4884, 4294901760
      %v5033 = vsub.f32 %v4884, %v5032
      %v5034 = vand.u32 %v5033, 4294901760
      %5035 = vmatpush.msra.mxu0 %v5034
      %v5036 = vand.u32 %v4874, 4294901760
      %v5037 = vsub.f32 %v4874, %v5036
      %v5038 = vand.u32 %v5037, 4294901760
      %5039 = vmatpush.msra.mxu0 %v5038
      %v5040 = vand.u32 %v4879, 4294901760
      %5041 = vmatmul.f32.gmra.mxu0 %v5040
      %v5042 = vpop.f32.mrf.mxu0
      %v5043 = vadd.f32 %v5010, %v5042
      %v5044 = vand.u32 %v4882, 4294901760
      %5045 = vmatmul.f32.gmra.mxu0 %v5044
      %v5046 = vpop.f32.mrf.mxu0
      %v5047 = vadd.f32 %v5016, %v5046
      %5048 = vdwg.mxu0
      %5049 = vmatpush.msra.mxu0 0.0
      %5050 = vmatpush.msra.mxu0 0.0
      %5051 = vmatpush.msra.mxu0 0.0
      %5052 = vmatpush.msra.mxu0 0.0
      %5053 = vmatpush.msra.mxu0 0.0
      %5054 = vmatpush.msra.mxu0 0.0
      %5055 = vmatpush.msra.mxu0 0.0
      %5056 = vmatpush.msra.mxu0 0.0
      %5057 = vmatpush.msra.mxu0 0.0
      %5058 = vmatpush.msra.mxu0 0.0
      %5059 = vmatpush.msra.mxu0 0.0
      %5060 = vmatpush.msra.mxu0 0.0
      %5061 = vmatpush.msra.mxu0 0.0
      %5062 = vmatpush.msra.mxu0 0.0
      %v5063 = vand.u32 %v4884, 4294901760
      %5064 = vmatpush.msra.mxu0 %v5063
      %v5065 = vand.u32 %v4874, 4294901760
      %5066 = vmatpush.msra.mxu0 %v5065
      %v5067 = vand.u32 %v4879, 4294901760
      %5068 = vmatmul.f32.gmra.mxu0 %v5067
      %v5069 = vpop.f32.mrf.mxu0
      %v5070 = vadd.f32 %v5043, %v5069
      %v5071 = vand.u32 %v4882, 4294901760
      %5072 = vmatmul.f32.gmra.mxu0 %v5071
      %v5073 = vpop.f32.mrf.mxu0
      %v5074 = vadd.f32 %v5047, %v5073
      %5075 = vdwg.mxu0
      %5076 = vrot.lane.b32.xlu0 %v3695, 104
      %v5077 = vpop.permute.xlu0 %5076
      %5078 = vrot.lane.b32.xlu0 %v3699, 104
      %v5079 = vpop.permute.xlu0 %5078
      %5080 = vrot.lane.b32.xlu0 %v3695, 72
      %v5081 = vpop.permute.xlu0 %5080
      %5082 = vrot.lane.b32.xlu0 %v3699, 72
      %v5083 = vpop.permute.xlu0 %5082
      %v5084 = vsel %vm732, %v5077, 0
      %v5086 = vsel %vm732, %v5079, 0
      %v5088 = vsel %vm732, %v5081, 0
      %v5090 = vsel %vm732, %v5083, 0
      %5092 = vmatpush.xpose.msra.mxu0 0.0
      %5093 = vmatpush.xpose.msra.mxu0 0.0
      %5094 = vmatpush.xpose.msra.mxu0 0.0
      %5095 = vmatpush.xpose.msra.mxu0 0.0
      %5096 = vmatpush.xpose.msra.mxu0 0.0
      %5097 = vmatpush.xpose.msra.mxu0 0.0
      %5098 = vmatpush.xpose.msra.mxu0 0.0
      %5099 = vmatpush.xpose.msra.mxu0 0.0
      %5100 = vmatpush.xpose.msra.mxu0 0.0
      %5101 = vmatpush.xpose.msra.mxu0 0.0
      %5102 = vmatpush.xpose.msra.mxu0 0.0
      %5103 = vmatpush.xpose.msra.mxu0 0.0
      %5104 = vmatpush.xpose.msra.mxu0 0.0
      %5105 = vmatpush.xpose.msra.mxu0 0.0
      %v5106 = vand.u32 %v5090, 4294901760
      %5107 = vmatpush.xpose.msra.mxu0 %v5106
      %v5108 = vand.u32 %v5088, 4294901760
      %5109 = vmatpush.xpose.msra.mxu0 %v5108
      %v5110 = vand.u32 %v5084, 4294901760
      %v5111 = vsub.f32 %v5084, %v5110
      %v5112 = vand.u32 %v5111, 4294901760
      %v5113 = vsub.f32 %v5111, %v5112
      %v5114 = vand.u32 %v5113, 4294901760
      %5115 = vmatmul.f32.gmra.mxu0 %v5114
      %v5116 = vpop.f32.mrf.mxu0
      %v5117 = vadd.f32 0.0, %v5116
      %v5118 = vand.u32 %v5086, 4294901760
      %v5119 = vsub.f32 %v5086, %v5118
      %v5120 = vand.u32 %v5119, 4294901760
      %v5121 = vsub.f32 %v5119, %v5120
      %v5122 = vand.u32 %v5121, 4294901760
      %5123 = vmatmul.f32.gmra.mxu0 %v5122
      %v5124 = vpop.f32.mrf.mxu0
      %v5125 = vadd.f32 0.0, %v5124
      %5126 = vdwg.mxu0
      %5127 = vmatpush.xpose.msra.mxu0 0.0
      %5128 = vmatpush.xpose.msra.mxu0 0.0
      %5129 = vmatpush.xpose.msra.mxu0 0.0
      %5130 = vmatpush.xpose.msra.mxu0 0.0
      %5131 = vmatpush.xpose.msra.mxu0 0.0
      %5132 = vmatpush.xpose.msra.mxu0 0.0
      %5133 = vmatpush.xpose.msra.mxu0 0.0
      %5134 = vmatpush.xpose.msra.mxu0 0.0
      %5135 = vmatpush.xpose.msra.mxu0 0.0
      %5136 = vmatpush.xpose.msra.mxu0 0.0
      %5137 = vmatpush.xpose.msra.mxu0 0.0
      %5138 = vmatpush.xpose.msra.mxu0 0.0
      %5139 = vmatpush.xpose.msra.mxu0 0.0
      %5140 = vmatpush.xpose.msra.mxu0 0.0
      %v5141 = vand.u32 %v5090, 4294901760
      %v5142 = vsub.f32 %v5090, %v5141
      %v5143 = vand.u32 %v5142, 4294901760
      %v5144 = vsub.f32 %v5142, %v5143
      %v5145 = vand.u32 %v5144, 4294901760
      %5146 = vmatpush.xpose.msra.mxu0 %v5145
      %v5147 = vand.u32 %v5088, 4294901760
      %v5148 = vsub.f32 %v5088, %v5147
      %v5149 = vand.u32 %v5148, 4294901760
      %v5150 = vsub.f32 %v5148, %v5149
      %v5151 = vand.u32 %v5150, 4294901760
      %5152 = vmatpush.xpose.msra.mxu0 %v5151
      %v5153 = vand.u32 %v5084, 4294901760
      %5154 = vmatmul.f32.gmra.mxu0 %v5153
      %v5155 = vpop.f32.mrf.mxu0
      %v5156 = vadd.f32 %v5117, %v5155
      %v5157 = vand.u32 %v5086, 4294901760
      %5158 = vmatmul.f32.gmra.mxu0 %v5157
      %v5159 = vpop.f32.mrf.mxu0
      %v5160 = vadd.f32 %v5125, %v5159
      %5161 = vdwg.mxu0
      %5162 = vmatpush.xpose.msra.mxu0 0.0
      %5163 = vmatpush.xpose.msra.mxu0 0.0
      %5164 = vmatpush.xpose.msra.mxu0 0.0
      %5165 = vmatpush.xpose.msra.mxu0 0.0
      %5166 = vmatpush.xpose.msra.mxu0 0.0
      %5167 = vmatpush.xpose.msra.mxu0 0.0
      %5168 = vmatpush.xpose.msra.mxu0 0.0
      %5169 = vmatpush.xpose.msra.mxu0 0.0
      %5170 = vmatpush.xpose.msra.mxu0 0.0
      %5171 = vmatpush.xpose.msra.mxu0 0.0
      %5172 = vmatpush.xpose.msra.mxu0 0.0
      %5173 = vmatpush.xpose.msra.mxu0 0.0
      %5174 = vmatpush.xpose.msra.mxu0 0.0
      %5175 = vmatpush.xpose.msra.mxu0 0.0
      %v5176 = vand.u32 %v5090, 4294901760
      %v5177 = vsub.f32 %v5090, %v5176
      %5178 = vmatpush.xpose.msra.mxu0 %v5177
      %v5179 = vand.u32 %v5088, 4294901760
      %v5180 = vsub.f32 %v5088, %v5179
      %5181 = vmatpush.xpose.msra.mxu0 %v5180
      %v5182 = vand.u32 %v5084, 4294901760
      %v5183 = vsub.f32 %v5084, %v5182
      %5184 = vmatmul.f32.gmra.mxu0 %v5183
      %v5185 = vpop.f32.mrf.mxu0
      %v5186 = vadd.f32 %v5156, %v5185
      %v5187 = vand.u32 %v5086, 4294901760
      %v5188 = vsub.f32 %v5086, %v5187
      %5189 = vmatmul.f32.gmra.mxu0 %v5188
      %v5190 = vpop.f32.mrf.mxu0
      %v5191 = vadd.f32 %v5160, %v5190
      %5192 = vdwg.mxu0
      %5193 = vmatpush.xpose.msra.mxu0 0.0
      %5194 = vmatpush.xpose.msra.mxu0 0.0
      %5195 = vmatpush.xpose.msra.mxu0 0.0
      %5196 = vmatpush.xpose.msra.mxu0 0.0
      %5197 = vmatpush.xpose.msra.mxu0 0.0
      %5198 = vmatpush.xpose.msra.mxu0 0.0
      %5199 = vmatpush.xpose.msra.mxu0 0.0
      %5200 = vmatpush.xpose.msra.mxu0 0.0
      %5201 = vmatpush.xpose.msra.mxu0 0.0
      %5202 = vmatpush.xpose.msra.mxu0 0.0
      %5203 = vmatpush.xpose.msra.mxu0 0.0
      %5204 = vmatpush.xpose.msra.mxu0 0.0
      %5205 = vmatpush.xpose.msra.mxu0 0.0
      %5206 = vmatpush.xpose.msra.mxu0 0.0
      %v5207 = vand.u32 %v5090, 4294901760
      %5208 = vmatpush.xpose.msra.mxu0 %v5207
      %v5209 = vand.u32 %v5088, 4294901760
      %5210 = vmatpush.xpose.msra.mxu0 %v5209
      %v5211 = vand.u32 %v5084, 4294901760
      %v5212 = vsub.f32 %v5084, %v5211
      %v5213 = vand.u32 %v5212, 4294901760
      %5214 = vmatmul.f32.gmra.mxu0 %v5213
      %v5215 = vpop.f32.mrf.mxu0
      %v5216 = vadd.f32 %v5186, %v5215
      %v5217 = vand.u32 %v5086, 4294901760
      %v5218 = vsub.f32 %v5086, %v5217
      %v5219 = vand.u32 %v5218, 4294901760
      %5220 = vmatmul.f32.gmra.mxu0 %v5219
      %v5221 = vpop.f32.mrf.mxu0
      %v5222 = vadd.f32 %v5191, %v5221
      %5223 = vdwg.mxu0
      %5224 = vmatpush.xpose.msra.mxu0 0.0
      %5225 = vmatpush.xpose.msra.mxu0 0.0
      %5226 = vmatpush.xpose.msra.mxu0 0.0
      %5227 = vmatpush.xpose.msra.mxu0 0.0
      %5228 = vmatpush.xpose.msra.mxu0 0.0
      %5229 = vmatpush.xpose.msra.mxu0 0.0
      %5230 = vmatpush.xpose.msra.mxu0 0.0
      %5231 = vmatpush.xpose.msra.mxu0 0.0
      %5232 = vmatpush.xpose.msra.mxu0 0.0
      %5233 = vmatpush.xpose.msra.mxu0 0.0
      %5234 = vmatpush.xpose.msra.mxu0 0.0
      %5235 = vmatpush.xpose.msra.mxu0 0.0
      %5236 = vmatpush.xpose.msra.mxu0 0.0
      %5237 = vmatpush.xpose.msra.mxu0 0.0
      %v5238 = vand.u32 %v5090, 4294901760
      %v5239 = vsub.f32 %v5090, %v5238
      %v5240 = vand.u32 %v5239, 4294901760
      %5241 = vmatpush.xpose.msra.mxu0 %v5240
      %v5242 = vand.u32 %v5088, 4294901760
      %v5243 = vsub.f32 %v5088, %v5242
      %v5244 = vand.u32 %v5243, 4294901760
      %5245 = vmatpush.xpose.msra.mxu0 %v5244
      %v5246 = vand.u32 %v5084, 4294901760
      %5247 = vmatmul.f32.gmra.mxu0 %v5246
      %v5248 = vpop.f32.mrf.mxu0
      %v5249 = vadd.f32 %v5216, %v5248
      %v5250 = vand.u32 %v5086, 4294901760
      %5251 = vmatmul.f32.gmra.mxu0 %v5250
      %v5252 = vpop.f32.mrf.mxu0
      %v5253 = vadd.f32 %v5222, %v5252
      %5254 = vdwg.mxu0
      %5255 = vmatpush.xpose.msra.mxu0 0.0
      %5256 = vmatpush.xpose.msra.mxu0 0.0
      %5257 = vmatpush.xpose.msra.mxu0 0.0
      %5258 = vmatpush.xpose.msra.mxu0 0.0
      %5259 = vmatpush.xpose.msra.mxu0 0.0
      %5260 = vmatpush.xpose.msra.mxu0 0.0
      %5261 = vmatpush.xpose.msra.mxu0 0.0
      %5262 = vmatpush.xpose.msra.mxu0 0.0
      %5263 = vmatpush.xpose.msra.mxu0 0.0
      %5264 = vmatpush.xpose.msra.mxu0 0.0
      %5265 = vmatpush.xpose.msra.mxu0 0.0
      %5266 = vmatpush.xpose.msra.mxu0 0.0
      %5267 = vmatpush.xpose.msra.mxu0 0.0
      %5268 = vmatpush.xpose.msra.mxu0 0.0
      %v5269 = vand.u32 %v5090, 4294901760
      %5270 = vmatpush.xpose.msra.mxu0 %v5269
      %v5271 = vand.u32 %v5088, 4294901760
      %5272 = vmatpush.xpose.msra.mxu0 %v5271
      %v5273 = vand.u32 %v5084, 4294901760
      %5274 = vmatmul.f32.gmra.mxu0 %v5273
      %v5275 = vpop.f32.mrf.mxu0
      %v5276 = vadd.f32 %v5249, %v5275
      %v5277 = vand.u32 %v5086, 4294901760
      %5278 = vmatmul.f32.gmra.mxu0 %v5277
      %v5279 = vpop.f32.mrf.mxu0
      %v5280 = vadd.f32 %v5253, %v5279
      %5281 = vdwg.mxu0
      %v5282 = vmul.f32 %v5276, 0.35355338
      %v5283 = vmul.f32 %v5280, 0.35355338
      %v5284 = vsel %vm933, %v5282, -inf
      %5285 = vmax.xlane.f32.xlu0 %v5284
      %v5286 = vpop.xlane.xlu0 %5285
      %v5287 = vsel %vm937, %v5283, -inf
      %5288 = vmax.xlane.f32.xlu0 %v5287
      %v5289 = vpop.xlane.xlu0 %5288
      %v5290 = vsub.f32 %v5282, %v5286
      %v5291 = vsub.f32 %v5283, %v5289
      %v5292 = vmul.f32 %v5290, 1.442695
      %v5293 = vpow.pop %v5292
      %v5294 = vmul.f32 %v5291, 1.442695
      %v5295 = vpow.pop %v5294
      %v5296 = vsel %vm933, %v5293, 0.0
      %5297 = vadd.xlane.f32.xlu0 %v5296
      %v5298 = vpop.xlane.xlu0 %5297
      %v5299 = vsel %vm937, %v5295, 0.0
      %5300 = vadd.xlane.f32.xlu0 %v5299
      %v5301 = vpop.xlane.xlu0 %5300
      %v5302 = vrcp.pop %v5298
      %v5303 = vmul.f32 %v5298, %v5302
      %v5304 = vsub.f32 1.0, %v5303
      %v5305 = vmul.f32 %v5302, %v5304
      %v5306 = vadd.f32 %v5302, %v5305
      %vm5307 = vweird.f32 %v5298
      %vm5308 = vweird.f32 %v5302
      %vm5309 = vmor %vm5307, %vm5308
      %v5310 = vsel %vm5309, %v5302, %v5306
      %v5311 = vand.u32 2147483647, %v5298
      %vm5312 = vcmp.eq.f32.partialorder %v5311, 8.507059e+37
      %v5313 = vand.u32 %v5298, 2147483648
      %v5314 = vor.u32 1.1754944e-38, %v5313
      %v5315 = vsel %vm5312, %v5314, %v5310
      %v5316 = vmul.f32 %v5293, %v5315
      %v5317 = vrcp.pop %v5301
      %v5318 = vmul.f32 %v5301, %v5317
      %v5319 = vsub.f32 1.0, %v5318
      %v5320 = vmul.f32 %v5317, %v5319
      %v5321 = vadd.f32 %v5317, %v5320
      %vm5322 = vweird.f32 %v5301
      %vm5323 = vweird.f32 %v5317
      %vm5324 = vmor %vm5322, %vm5323
      %v5325 = vsel %vm5324, %v5317, %v5321
      %v5326 = vand.u32 2147483647, %v5301
      %vm5327 = vcmp.eq.f32.partialorder %v5326, 8.507059e+37
      %v5328 = vand.u32 %v5301, 2147483648
      %v5329 = vor.u32 1.1754944e-38, %v5328
      %v5330 = vsel %vm5327, %v5329, %v5325
      %v5331 = vmul.f32 %v5295, %v5330
      %5332 = vrot.lane.b32.xlu0 %v3695, 40
      %v5333 = vpop.permute.xlu0 %5332
      %5334 = vrot.lane.b32.xlu0 %v3699, 40
      %v5335 = vpop.permute.xlu0 %5334
      %v5338 = vsel %vm933, %v5316, 0
      %v5341 = vsel %vm933, %v5331, 0
      %v5343 = vsel %vm994, %v5335, 0
      %5345 = vmatpush.msra.mxu0 0.0
      %5346 = vmatpush.msra.mxu0 0.0
      %5347 = vmatpush.msra.mxu0 0.0
      %5348 = vmatpush.msra.mxu0 0.0
      %5349 = vmatpush.msra.mxu0 0.0
      %5350 = vmatpush.msra.mxu0 0.0
      %5351 = vmatpush.msra.mxu0 0.0
      %5352 = vmatpush.msra.mxu0 0.0
      %5353 = vmatpush.msra.mxu0 0.0
      %5354 = vmatpush.msra.mxu0 0.0
      %5355 = vmatpush.msra.mxu0 0.0
      %5356 = vmatpush.msra.mxu0 0.0
      %5357 = vmatpush.msra.mxu0 0.0
      %5358 = vmatpush.msra.mxu0 0.0
      %v5359 = vand.u32 %v5343, 4294901760
      %5360 = vmatpush.msra.mxu0 %v5359
      %v5361 = vand.u32 %v5333, 4294901760
      %5362 = vmatpush.msra.mxu0 %v5361
      %v5363 = vand.u32 %v5338, 4294901760
      %v5364 = vsub.f32 %v5338, %v5363
      %v5365 = vand.u32 %v5364, 4294901760
      %v5366 = vsub.f32 %v5364, %v5365
      %v5367 = vand.u32 %v5366, 4294901760
      %5368 = vmatmul.f32.gmra.mxu0 %v5367
      %v5369 = vpop.f32.mrf.mxu0
      %v5370 = vadd.f32 0.0, %v5369
      %v5371 = vand.u32 %v5341, 4294901760
      %v5372 = vsub.f32 %v5341, %v5371
      %v5373 = vand.u32 %v5372, 4294901760
      %v5374 = vsub.f32 %v5372, %v5373
      %v5375 = vand.u32 %v5374, 4294901760
      %5376 = vmatmul.f32.gmra.mxu0 %v5375
      %v5377 = vpop.f32.mrf.mxu0
      %v5378 = vadd.f32 0.0, %v5377
      %5379 = vdwg.mxu0
      %5380 = vmatpush.msra.mxu0 0.0
      %5381 = vmatpush.msra.mxu0 0.0
      %5382 = vmatpush.msra.mxu0 0.0
      %5383 = vmatpush.msra.mxu0 0.0
      %5384 = vmatpush.msra.mxu0 0.0
      %5385 = vmatpush.msra.mxu0 0.0
      %5386 = vmatpush.msra.mxu0 0.0
      %5387 = vmatpush.msra.mxu0 0.0
      %5388 = vmatpush.msra.mxu0 0.0
      %5389 = vmatpush.msra.mxu0 0.0
      %5390 = vmatpush.msra.mxu0 0.0
      %5391 = vmatpush.msra.mxu0 0.0
      %5392 = vmatpush.msra.mxu0 0.0
      %5393 = vmatpush.msra.mxu0 0.0
      %v5394 = vand.u32 %v5343, 4294901760
      %v5395 = vsub.f32 %v5343, %v5394
      %v5396 = vand.u32 %v5395, 4294901760
      %v5397 = vsub.f32 %v5395, %v5396
      %v5398 = vand.u32 %v5397, 4294901760
      %5399 = vmatpush.msra.mxu0 %v5398
      %v5400 = vand.u32 %v5333, 4294901760
      %v5401 = vsub.f32 %v5333, %v5400
      %v5402 = vand.u32 %v5401, 4294901760
      %v5403 = vsub.f32 %v5401, %v5402
      %v5404 = vand.u32 %v5403, 4294901760
      %5405 = vmatpush.msra.mxu0 %v5404
      %v5406 = vand.u32 %v5338, 4294901760
      %5407 = vmatmul.f32.gmra.mxu0 %v5406
      %v5408 = vpop.f32.mrf.mxu0
      %v5409 = vadd.f32 %v5370, %v5408
      %v5410 = vand.u32 %v5341, 4294901760
      %5411 = vmatmul.f32.gmra.mxu0 %v5410
      %v5412 = vpop.f32.mrf.mxu0
      %v5413 = vadd.f32 %v5378, %v5412
      %5414 = vdwg.mxu0
      %5415 = vmatpush.msra.mxu0 0.0
      %5416 = vmatpush.msra.mxu0 0.0
      %5417 = vmatpush.msra.mxu0 0.0
      %5418 = vmatpush.msra.mxu0 0.0
      %5419 = vmatpush.msra.mxu0 0.0
      %5420 = vmatpush.msra.mxu0 0.0
      %5421 = vmatpush.msra.mxu0 0.0
      %5422 = vmatpush.msra.mxu0 0.0
      %5423 = vmatpush.msra.mxu0 0.0
      %5424 = vmatpush.msra.mxu0 0.0
      %5425 = vmatpush.msra.mxu0 0.0
      %5426 = vmatpush.msra.mxu0 0.0
      %5427 = vmatpush.msra.mxu0 0.0
      %5428 = vmatpush.msra.mxu0 0.0
      %v5429 = vand.u32 %v5343, 4294901760
      %v5430 = vsub.f32 %v5343, %v5429
      %5431 = vmatpush.msra.mxu0 %v5430
      %v5432 = vand.u32 %v5333, 4294901760
      %v5433 = vsub.f32 %v5333, %v5432
      %5434 = vmatpush.msra.mxu0 %v5433
      %v5435 = vand.u32 %v5338, 4294901760
      %v5436 = vsub.f32 %v5338, %v5435
      %5437 = vmatmul.f32.gmra.mxu0 %v5436
      %v5438 = vpop.f32.mrf.mxu0
      %v5439 = vadd.f32 %v5409, %v5438
      %v5440 = vand.u32 %v5341, 4294901760
      %v5441 = vsub.f32 %v5341, %v5440
      %5442 = vmatmul.f32.gmra.mxu0 %v5441
      %v5443 = vpop.f32.mrf.mxu0
      %v5444 = vadd.f32 %v5413, %v5443
      %5445 = vdwg.mxu0
      %5446 = vmatpush.msra.mxu0 0.0
      %5447 = vmatpush.msra.mxu0 0.0
      %5448 = vmatpush.msra.mxu0 0.0
      %5449 = vmatpush.msra.mxu0 0.0
      %5450 = vmatpush.msra.mxu0 0.0
      %5451 = vmatpush.msra.mxu0 0.0
      %5452 = vmatpush.msra.mxu0 0.0
      %5453 = vmatpush.msra.mxu0 0.0
      %5454 = vmatpush.msra.mxu0 0.0
      %5455 = vmatpush.msra.mxu0 0.0
      %5456 = vmatpush.msra.mxu0 0.0
      %5457 = vmatpush.msra.mxu0 0.0
      %5458 = vmatpush.msra.mxu0 0.0
      %5459 = vmatpush.msra.mxu0 0.0
      %v5460 = vand.u32 %v5343, 4294901760
      %5461 = vmatpush.msra.mxu0 %v5460
      %v5462 = vand.u32 %v5333, 4294901760
      %5463 = vmatpush.msra.mxu0 %v5462
      %v5464 = vand.u32 %v5338, 4294901760
      %v5465 = vsub.f32 %v5338, %v5464
      %v5466 = vand.u32 %v5465, 4294901760
      %5467 = vmatmul.f32.gmra.mxu0 %v5466
      %v5468 = vpop.f32.mrf.mxu0
      %v5469 = vadd.f32 %v5439, %v5468
      %v5470 = vand.u32 %v5341, 4294901760
      %v5471 = vsub.f32 %v5341, %v5470
      %v5472 = vand.u32 %v5471, 4294901760
      %5473 = vmatmul.f32.gmra.mxu0 %v5472
      %v5474 = vpop.f32.mrf.mxu0
      %v5475 = vadd.f32 %v5444, %v5474
      %5476 = vdwg.mxu0
      %5477 = vmatpush.msra.mxu0 0.0
      %5478 = vmatpush.msra.mxu0 0.0
      %5479 = vmatpush.msra.mxu0 0.0
      %5480 = vmatpush.msra.mxu0 0.0
      %5481 = vmatpush.msra.mxu0 0.0
      %5482 = vmatpush.msra.mxu0 0.0
      %5483 = vmatpush.msra.mxu0 0.0
      %5484 = vmatpush.msra.mxu0 0.0
      %5485 = vmatpush.msra.mxu0 0.0
      %5486 = vmatpush.msra.mxu0 0.0
      %5487 = vmatpush.msra.mxu0 0.0
      %5488 = vmatpush.msra.mxu0 0.0
      %5489 = vmatpush.msra.mxu0 0.0
      %5490 = vmatpush.msra.mxu0 0.0
      %v5491 = vand.u32 %v5343, 4294901760
      %v5492 = vsub.f32 %v5343, %v5491
      %v5493 = vand.u32 %v5492, 4294901760
      %5494 = vmatpush.msra.mxu0 %v5493
      %v5495 = vand.u32 %v5333, 4294901760
      %v5496 = vsub.f32 %v5333, %v5495
      %v5497 = vand.u32 %v5496, 4294901760
      %5498 = vmatpush.msra.mxu0 %v5497
      %v5499 = vand.u32 %v5338, 4294901760
      %5500 = vmatmul.f32.gmra.mxu0 %v5499
      %v5501 = vpop.f32.mrf.mxu0
      %v5502 = vadd.f32 %v5469, %v5501
      %v5503 = vand.u32 %v5341, 4294901760
      %5504 = vmatmul.f32.gmra.mxu0 %v5503
      %v5505 = vpop.f32.mrf.mxu0
      %v5506 = vadd.f32 %v5475, %v5505
      %5507 = vdwg.mxu0
      %5508 = vmatpush.msra.mxu0 0.0
      %5509 = vmatpush.msra.mxu0 0.0
      %5510 = vmatpush.msra.mxu0 0.0
      %5511 = vmatpush.msra.mxu0 0.0
      %5512 = vmatpush.msra.mxu0 0.0
      %5513 = vmatpush.msra.mxu0 0.0
      %5514 = vmatpush.msra.mxu0 0.0
      %5515 = vmatpush.msra.mxu0 0.0
      %5516 = vmatpush.msra.mxu0 0.0
      %5517 = vmatpush.msra.mxu0 0.0
      %5518 = vmatpush.msra.mxu0 0.0
      %5519 = vmatpush.msra.mxu0 0.0
      %5520 = vmatpush.msra.mxu0 0.0
      %5521 = vmatpush.msra.mxu0 0.0
      %v5522 = vand.u32 %v5343, 4294901760
      %5523 = vmatpush.msra.mxu0 %v5522
      %v5524 = vand.u32 %v5333, 4294901760
      %5525 = vmatpush.msra.mxu0 %v5524
      %v5526 = vand.u32 %v5338, 4294901760
      %5527 = vmatmul.f32.gmra.mxu0 %v5526
      %v5528 = vpop.f32.mrf.mxu0
      %v5529 = vadd.f32 %v5502, %v5528
      %v5530 = vand.u32 %v5341, 4294901760
      %5531 = vmatmul.f32.gmra.mxu0 %v5530
      %v5532 = vpop.f32.mrf.mxu0
      %v5533 = vadd.f32 %v5506, %v5532
      %5534 = vdwg.mxu0
      %5537 = vrot.lane.b32.xlu0 %v4611, 8
      %v5538 = vpop.permute.xlu0 %5537
      %5539 = vrot.lane.b32.xlu0 %v4615, 8
      %v5540 = vpop.permute.xlu0 %5539
      %5545 = vrot.lane.b32.xlu0 %v5070, 16
      %v5546 = vpop.permute.xlu0 %5545
      %5547 = vrot.lane.b32.xlu0 %v5074, 16
      %v5548 = vpop.permute.xlu0 %5547
      %5553 = vrot.lane.b32.xlu0 %v5529, 24
      %v5554 = vpop.permute.xlu0 %5553
      %5555 = vrot.lane.b32.xlu0 %v5533, 24
      %v5556 = vpop.permute.xlu0 %5555
      %v5559 = vsel %vm732, %v4152, %v5538
      %v5560 = vsel %vm732, %v4156, %v5540
      %v5561 = vsel %vm2590, %v5559, %v5546
      %v5562 = vsel %vm2590, %v5560, %v5548
      %v5563 = vsel %vm2593, %v5561, %v5554
      %v5564 = vsel %vm2593, %v5562, %v5556
      %s5565 = scalar_lea.vmem %s3, 32
      %v5566 = vld [vmem:[%s5565] sm:$0xff]
      %v5567 = vld [vmem:[%s5565 + $0x8] sm:$0xff]
      %v5568 = vld [vmem:[%s5565 + $0x10] sm:$0xff]
      %v5569 = vld [vmem:[%s5565 + $0x18] sm:$0xff]
      %s5570 = scalar_lea.vmem %s4, 1
      %v5571 = vld [vmem:[%s5570] sm:$0x1]
      %v5573 = vperm.slane %v5571, 0
      %v5576 = vsel %vm503, %v5563, 0
      %v5579 = vsel %vm503, %v5564, 0
      %5581 = vmatpush.msra.mxu0 0.0
      %5582 = vmatpush.msra.mxu0 0.0
      %5583 = vmatpush.msra.mxu0 0.0
      %5584 = vmatpush.msra.mxu0 0.0
      %5585 = vmatpush.msra.mxu0 0.0
      %5586 = vmatpush.msra.mxu0 0.0
      %5587 = vmatpush.msra.mxu0 0.0
      %5588 = vmatpush.msra.mxu0 0.0
      %5589 = vmatpush.msra.mxu0 0.0
      %5590 = vmatpush.msra.mxu0 0.0
      %5591 = vmatpush.msra.mxu0 0.0
      %5592 = vmatpush.msra.mxu0 0.0
      %v5593 = vand.u32 %v5569, 4294901760
      %5594 = vmatpush.msra.mxu0 %v5593
      %v5595 = vand.u32 %v5568, 4294901760
      %5596 = vmatpush.msra.mxu0 %v5595
      %v5597 = vand.u32 %v5567, 4294901760
      %5598 = vmatpush.msra.mxu0 %v5597
      %v5599 = vand.u32 %v5566, 4294901760
      %5600 = vmatpush.msra.mxu0 %v5599
      %v5601 = vand.u32 %v5576, 4294901760
      %v5602 = vsub.f32 %v5576, %v5601
      %v5603 = vand.u32 %v5602, 4294901760
      %v5604 = vsub.f32 %v5602, %v5603
      %v5605 = vand.u32 %v5604, 4294901760
      %5606 = vmatmul.f32.gmra.mxu0 %v5605
      %v5607 = vpop.f32.mrf.mxu0
      %v5608 = vadd.f32 %v5573, %v5607
      %v5609 = vand.u32 %v5579, 4294901760
      %v5610 = vsub.f32 %v5579, %v5609
      %v5611 = vand.u32 %v5610, 4294901760
      %v5612 = vsub.f32 %v5610, %v5611
      %v5613 = vand.u32 %v5612, 4294901760
      %5614 = vmatmul.f32.gmra.mxu0 %v5613
      %v5615 = vpop.f32.mrf.mxu0
      %v5616 = vadd.f32 %v5573, %v5615
      %5617 = vdwg.mxu0
      %5618 = vmatpush.msra.mxu0 0.0
      %5619 = vmatpush.msra.mxu0 0.0
      %5620 = vmatpush.msra.mxu0 0.0
      %5621 = vmatpush.msra.mxu0 0.0
      %5622 = vmatpush.msra.mxu0 0.0
      %5623 = vmatpush.msra.mxu0 0.0
      %5624 = vmatpush.msra.mxu0 0.0
      %5625 = vmatpush.msra.mxu0 0.0
      %5626 = vmatpush.msra.mxu0 0.0
      %5627 = vmatpush.msra.mxu0 0.0
      %5628 = vmatpush.msra.mxu0 0.0
      %5629 = vmatpush.msra.mxu0 0.0
      %v5630 = vand.u32 %v5569, 4294901760
      %v5631 = vsub.f32 %v5569, %v5630
      %v5632 = vand.u32 %v5631, 4294901760
      %v5633 = vsub.f32 %v5631, %v5632
      %v5634 = vand.u32 %v5633, 4294901760
      %5635 = vmatpush.msra.mxu0 %v5634
      %v5636 = vand.u32 %v5568, 4294901760
      %v5637 = vsub.f32 %v5568, %v5636
      %v5638 = vand.u32 %v5637, 4294901760
      %v5639 = vsub.f32 %v5637, %v5638
      %v5640 = vand.u32 %v5639, 4294901760
      %5641 = vmatpush.msra.mxu0 %v5640
      %v5642 = vand.u32 %v5567, 4294901760
      %v5643 = vsub.f32 %v5567, %v5642
      %v5644 = vand.u32 %v5643, 4294901760
      %v5645 = vsub.f32 %v5643, %v5644
      %v5646 = vand.u32 %v5645, 4294901760
      %5647 = vmatpush.msra.mxu0 %v5646
      %v5648 = vand.u32 %v5566, 4294901760
      %v5649 = vsub.f32 %v5566, %v5648
      %v5650 = vand.u32 %v5649, 4294901760
      %v5651 = vsub.f32 %v5649, %v5650
      %v5652 = vand.u32 %v5651, 4294901760
      %5653 = vmatpush.msra.mxu0 %v5652
      %v5654 = vand.u32 %v5576, 4294901760
      %5655 = vmatmul.f32.gmra.mxu0 %v5654
      %v5656 = vpop.f32.mrf.mxu0
      %v5657 = vadd.f32 %v5608, %v5656
      %v5658 = vand.u32 %v5579, 4294901760
      %5659 = vmatmul.f32.gmra.mxu0 %v5658
      %v5660 = vpop.f32.mrf.mxu0
      %v5661 = vadd.f32 %v5616, %v5660
      %5662 = vdwg.mxu0
      %5663 = vmatpush.msra.mxu0 0.0
      %5664 = vmatpush.msra.mxu0 0.0
      %5665 = vmatpush.msra.mxu0 0.0
      %5666 = vmatpush.msra.mxu0 0.0
      %5667 = vmatpush.msra.mxu0 0.0
      %5668 = vmatpush.msra.mxu0 0.0
      %5669 = vmatpush.msra.mxu0 0.0
      %5670 = vmatpush.msra.mxu0 0.0
      %5671 = vmatpush.msra.mxu0 0.0
      %5672 = vmatpush.msra.mxu0 0.0
      %5673 = vmatpush.msra.mxu0 0.0
      %5674 = vmatpush.msra.mxu0 0.0
      %v5675 = vand.u32 %v5569, 4294901760
      %v5676 = vsub.f32 %v5569, %v5675
      %5677 = vmatpush.msra.mxu0 %v5676
      %v5678 = vand.u32 %v5568, 4294901760
      %v5679 = vsub.f32 %v5568, %v5678
      %5680 = vmatpush.msra.mxu0 %v5679
      %v5681 = vand.u32 %v5567, 4294901760
      %v5682 = vsub.f32 %v5567, %v5681
      %5683 = vmatpush.msra.mxu0 %v5682
      %v5684 = vand.u32 %v5566, 4294901760
      %v5685 = vsub.f32 %v5566, %v5684
      %5686 = vmatpush.msra.mxu0 %v5685
      %v5687 = vand.u32 %v5576, 4294901760
      %v5688 = vsub.f32 %v5576, %v5687
      %5689 = vmatmul.f32.gmra.mxu0 %v5688
      %v5690 = vpop.f32.mrf.mxu0
      %v5691 = vadd.f32 %v5657, %v5690
      %v5692 = vand.u32 %v5579, 4294901760
      %v5693 = vsub.f32 %v5579, %v5692
      %5694 = vmatmul.f32.gmra.mxu0 %v5693
      %v5695 = vpop.f32.mrf.mxu0
      %v5696 = vadd.f32 %v5661, %v5695
      %5697 = vdwg.mxu0
      %5698 = vmatpush.msra.mxu0 0.0
      %5699 = vmatpush.msra.mxu0 0.0
      %5700 = vmatpush.msra.mxu0 0.0
      %5701 = vmatpush.msra.mxu0 0.0
      %5702 = vmatpush.msra.mxu0 0.0
      %5703 = vmatpush.msra.mxu0 0.0
      %5704 = vmatpush.msra.mxu0 0.0
      %5705 = vmatpush.msra.mxu0 0.0
      %5706 = vmatpush.msra.mxu0 0.0
      %5707 = vmatpush.msra.mxu0 0.0
      %5708 = vmatpush.msra.mxu0 0.0
      %5709 = vmatpush.msra.mxu0 0.0
      %v5710 = vand.u32 %v5569, 4294901760
      %5711 = vmatpush.msra.mxu0 %v5710
      %v5712 = vand.u32 %v5568, 4294901760
      %5713 = vmatpush.msra.mxu0 %v5712
      %v5714 = vand.u32 %v5567, 4294901760
      %5715 = vmatpush.msra.mxu0 %v5714
      %v5716 = vand.u32 %v5566, 4294901760
      %5717 = vmatpush.msra.mxu0 %v5716
      %v5718 = vand.u32 %v5576, 4294901760
      %v5719 = vsub.f32 %v5576, %v5718
      %v5720 = vand.u32 %v5719, 4294901760
      %5721 = vmatmul.f32.gmra.mxu0 %v5720
      %v5722 = vpop.f32.mrf.mxu0
      %v5723 = vadd.f32 %v5691, %v5722
      %v5724 = vand.u32 %v5579, 4294901760
      %v5725 = vsub.f32 %v5579, %v5724
      %v5726 = vand.u32 %v5725, 4294901760
      %5727 = vmatmul.f32.gmra.mxu0 %v5726
      %v5728 = vpop.f32.mrf.mxu0
      %v5729 = vadd.f32 %v5696, %v5728
      %5730 = vdwg.mxu0
      %5731 = vmatpush.msra.mxu0 0.0
      %5732 = vmatpush.msra.mxu0 0.0
      %5733 = vmatpush.msra.mxu0 0.0
      %5734 = vmatpush.msra.mxu0 0.0
      %5735 = vmatpush.msra.mxu0 0.0
      %5736 = vmatpush.msra.mxu0 0.0
      %5737 = vmatpush.msra.mxu0 0.0
      %5738 = vmatpush.msra.mxu0 0.0
      %5739 = vmatpush.msra.mxu0 0.0
      %5740 = vmatpush.msra.mxu0 0.0
      %5741 = vmatpush.msra.mxu0 0.0
      %5742 = vmatpush.msra.mxu0 0.0
      %v5743 = vand.u32 %v5569, 4294901760
      %v5744 = vsub.f32 %v5569, %v5743
      %v5745 = vand.u32 %v5744, 4294901760
      %5746 = vmatpush.msra.mxu0 %v5745
      %v5747 = vand.u32 %v5568, 4294901760
      %v5748 = vsub.f32 %v5568, %v5747
      %v5749 = vand.u32 %v5748, 4294901760
      %5750 = vmatpush.msra.mxu0 %v5749
      %v5751 = vand.u32 %v5567, 4294901760
      %v5752 = vsub.f32 %v5567, %v5751
      %v5753 = vand.u32 %v5752, 4294901760
      %5754 = vmatpush.msra.mxu0 %v5753
      %v5755 = vand.u32 %v5566, 4294901760
      %v5756 = vsub.f32 %v5566, %v5755
      %v5757 = vand.u32 %v5756, 4294901760
      %5758 = vmatpush.msra.mxu0 %v5757
      %v5759 = vand.u32 %v5576, 4294901760
      %5760 = vmatmul.f32.gmra.mxu0 %v5759
      %v5761 = vpop.f32.mrf.mxu0
      %v5762 = vadd.f32 %v5723, %v5761
      %v5763 = vand.u32 %v5579, 4294901760
      %5764 = vmatmul.f32.gmra.mxu0 %v5763
      %v5765 = vpop.f32.mrf.mxu0
      %v5766 = vadd.f32 %v5729, %v5765
      %5767 = vdwg.mxu0
      %5768 = vmatpush.msra.mxu0 0.0
      %5769 = vmatpush.msra.mxu0 0.0
      %5770 = vmatpush.msra.mxu0 0.0
      %5771 = vmatpush.msra.mxu0 0.0
      %5772 = vmatpush.msra.mxu0 0.0
      %5773 = vmatpush.msra.mxu0 0.0
      %5774 = vmatpush.msra.mxu0 0.0
      %5775 = vmatpush.msra.mxu0 0.0
      %5776 = vmatpush.msra.mxu0 0.0
      %5777 = vmatpush.msra.mxu0 0.0
      %5778 = vmatpush.msra.mxu0 0.0
      %5779 = vmatpush.msra.mxu0 0.0
      %v5780 = vand.u32 %v5569, 4294901760
      %5781 = vmatpush.msra.mxu0 %v5780
      %v5782 = vand.u32 %v5568, 4294901760
      %5783 = vmatpush.msra.mxu0 %v5782
      %v5784 = vand.u32 %v5567, 4294901760
      %5785 = vmatpush.msra.mxu0 %v5784
      %v5786 = vand.u32 %v5566, 4294901760
      %5787 = vmatpush.msra.mxu0 %v5786
      %v5788 = vand.u32 %v5576, 4294901760
      %5789 = vmatmul.f32.gmra.mxu0 %v5788
      %v5790 = vpop.f32.mrf.mxu0
      %v5791 = vadd.f32 %v5762, %v5790
      %v5792 = vand.u32 %v5579, 4294901760
      %5793 = vmatmul.f32.gmra.mxu0 %v5792
      %v5794 = vpop.f32.mrf.mxu0
      %v5795 = vadd.f32 %v5766, %v5794
      %5796 = vdwg.mxu0
      %v5797 = vadd.f32 %v5791, %v3467
      %v5798 = vadd.f32 %v5795, %v3468
      %s5799 = scalar_lea.vmem %s5, 1
      %v5800 = vld [vmem:[%s5799] sm:$0x1]
      %s5801 = scalar_lea.vmem %s6, 1
      %v5802 = vld [vmem:[%s5801] sm:$0x1]
      %v5803 = vsel %vm503, %v5797, 0.0
      %5804 = vadd.xlane.f32.xlu0 %v5803
      %v5805 = vpop.xlane.xlu0 %5804
      %v5806 = vsel %vm2833, %v5798, 0.0
      %5807 = vadd.xlane.f32.xlu0 %v5806
      %v5808 = vpop.xlane.xlu0 %5807
      %v5809 = vmul.f32 %v5805, %v2843
      %v5810 = vmul.f32 %v5808, %v2843
      %v5811 = vsub.f32 %v5797, %v5809
      %v5812 = vsub.f32 %v5798, %v5810
      %v5813 = vmul.f32 %v5811, %v5811
      %v5814 = vmul.f32 %v5812, %v5812
      %v5815 = vsel %vm503, %v5813, 0.0
      %5816 = vadd.xlane.f32.xlu0 %v5815
      %v5817 = vpop.xlane.xlu0 %5816
      %v5818 = vsel %vm2833, %v5814, 0.0
      %5819 = vadd.xlane.f32.xlu0 %v5818
      %v5820 = vpop.xlane.xlu0 %5819
      %v5821 = vmul.f32 %v5817, %v2843
      %v5822 = vmul.f32 %v5820, %v2843
      %v5823 = vadd.f32 %v5821, 1e-05
      %v5824 = vadd.f32 %v5822, 1e-05
      %v5825 = vrsqrt.pop %v5823
      %v5826 = vmul.f32 %v5825, %v5823
      %v5827 = vmul.f32 %v5826, %v5825
      %v5828 = vmul.f32 0.5, %v5827
      %v5829 = vsub.f32 1.5, %v5828
      %v5830 = vmul.f32 %v5825, %v5829
      %vm5831 = vweird.f32 %v5823
      %vm5832 = vweird.f32 %v5825
      %vm5833 = vmor %vm5831, %vm5832
      %v5834 = vsel %vm5833, %v5825, %v5830
      %v5835 = vrsqrt.pop %v5824
      %v5836 = vmul.f32 %v5835, %v5824
      %v5837 = vmul.f32 %v5836, %v5835
      %v5838 = vmul.f32 0.5, %v5837
      %v5839 = vsub.f32 1.5, %v5838
      %v5840 = vmul.f32 %v5835, %v5839
      %vm5841 = vweird.f32 %v5824
      %vm5842 = vweird.f32 %v5835
      %vm5843 = vmor %vm5841, %vm5842
      %v5844 = vsel %vm5843, %v5835, %v5840
      %v5845 = vmul.f32 %v5811, %v5834
      %v5846 = vmul.f32 %v5812, %v5844
      %v5848 = vperm.slane %v5800, 0
      %v5850 = vmul.f32 %v5845, %v5848
      %v5851 = vmul.f32 %v5846, %v5848
      %v5853 = vperm.slane %v5802, 0
      %v5855 = vadd.f32 %v5850, %v5853
      %v5856 = vadd.f32 %v5851, %v5853
      %s5857 = scalar_lea.vmem %s7, 32
      %v5858 = vld [vmem:[%s5857] sm:$0xff]
      %v5859 = vld [vmem:[%s5857 + $0x8] sm:$0xff]
      %v5860 = vld [vmem:[%s5857 + $0x10] sm:$0xff]
      %v5861 = vld [vmem:[%s5857 + $0x18] sm:$0xff]
      %s5862 = scalar_lea.vmem %s8, 1
      %v5863 = vld [vmem:[%s5862] sm:$0x1]
      %v5865 = vperm.slane %v5863, 0
      %v5868 = vsel %vm503, %v5855, 0
      %v5871 = vsel %vm503, %v5856, 0
      %5873 = vmatpush.msra.mxu0 0.0
      %5874 = vmatpush.msra.mxu0 0.0
      %5875 = vmatpush.msra.mxu0 0.0
      %5876 = vmatpush.msra.mxu0 0.0
      %5877 = vmatpush.msra.mxu0 0.0
      %5878 = vmatpush.msra.mxu0 0.0
      %5879 = vmatpush.msra.mxu0 0.0
      %5880 = vmatpush.msra.mxu0 0.0
      %5881 = vmatpush.msra.mxu0 0.0
      %5882 = vmatpush.msra.mxu0 0.0
      %5883 = vmatpush.msra.mxu0 0.0
      %5884 = vmatpush.msra.mxu0 0.0
      %v5885 = vand.u32 %v5861, 4294901760
      %5886 = vmatpush.msra.mxu0 %v5885
      %v5887 = vand.u32 %v5860, 4294901760
      %5888 = vmatpush.msra.mxu0 %v5887
      %v5889 = vand.u32 %v5859, 4294901760
      %5890 = vmatpush.msra.mxu0 %v5889
      %v5891 = vand.u32 %v5858, 4294901760
      %5892 = vmatpush.msra.mxu0 %v5891
      %v5893 = vand.u32 %v5868, 4294901760
      %v5894 = vsub.f32 %v5868, %v5893
      %v5895 = vand.u32 %v5894, 4294901760
      %v5896 = vsub.f32 %v5894, %v5895
      %v5897 = vand.u32 %v5896, 4294901760
      %5898 = vmatmul.f32.gmra.mxu0 %v5897
      %v5899 = vpop.f32.mrf.mxu0
      %v5900 = vadd.f32 %v5865, %v5899
      %v5901 = vand.u32 %v5871, 4294901760
      %v5902 = vsub.f32 %v5871, %v5901
      %v5903 = vand.u32 %v5902, 4294901760
      %v5904 = vsub.f32 %v5902, %v5903
      %v5905 = vand.u32 %v5904, 4294901760
      %5906 = vmatmul.f32.gmra.mxu0 %v5905
      %v5907 = vpop.f32.mrf.mxu0
      %v5908 = vadd.f32 %v5865, %v5907
      %5909 = vdwg.mxu0
      %5910 = vmatpush.msra.mxu0 0.0
      %5911 = vmatpush.msra.mxu0 0.0
      %5912 = vmatpush.msra.mxu0 0.0
      %5913 = vmatpush.msra.mxu0 0.0
      %5914 = vmatpush.msra.mxu0 0.0
      %5915 = vmatpush.msra.mxu0 0.0
      %5916 = vmatpush.msra.mxu0 0.0
      %5917 = vmatpush.msra.mxu0 0.0
      %5918 = vmatpush.msra.mxu0 0.0
      %5919 = vmatpush.msra.mxu0 0.0
      %5920 = vmatpush.msra.mxu0 0.0
      %5921 = vmatpush.msra.mxu0 0.0
      %v5922 = vand.u32 %v5861, 4294901760
      %v5923 = vsub.f32 %v5861, %v5922
      %v5924 = vand.u32 %v5923, 4294901760
      %v5925 = vsub.f32 %v5923, %v5924
      %v5926 = vand.u32 %v5925, 4294901760
      %5927 = vmatpush.msra.mxu0 %v5926
      %v5928 = vand.u32 %v5860, 4294901760
      %v5929 = vsub.f32 %v5860, %v5928
      %v5930 = vand.u32 %v5929, 4294901760
      %v5931 = vsub.f32 %v5929, %v5930
      %v5932 = vand.u32 %v5931, 4294901760
      %5933 = vmatpush.msra.mxu0 %v5932
      %v5934 = vand.u32 %v5859, 4294901760
      %v5935 = vsub.f32 %v5859, %v5934
      %v5936 = vand.u32 %v5935, 4294901760
      %v5937 = vsub.f32 %v5935, %v5936
      %v5938 = vand.u32 %v5937, 4294901760
      %5939 = vmatpush.msra.mxu0 %v5938
      %v5940 = vand.u32 %v5858, 4294901760
      %v5941 = vsub.f32 %v5858, %v5940
      %v5942 = vand.u32 %v5941, 4294901760
      %v5943 = vsub.f32 %v5941, %v5942
      %v5944 = vand.u32 %v5943, 4294901760
      %5945 = vmatpush.msra.mxu0 %v5944
      %v5946 = vand.u32 %v5868, 4294901760
      %5947 = vmatmul.f32.gmra.mxu0 %v5946
      %v5948 = vpop.f32.mrf.mxu0
      %v5949 = vadd.f32 %v5900, %v5948
      %v5950 = vand.u32 %v5871, 4294901760
      %5951 = vmatmul.f32.gmra.mxu0 %v5950
      %v5952 = vpop.f32.mrf.mxu0
      %v5953 = vadd.f32 %v5908, %v5952
      %5954 = vdwg.mxu0
      %5955 = vmatpush.msra.mxu0 0.0
      %5956 = vmatpush.msra.mxu0 0.0
      %5957 = vmatpush.msra.mxu0 0.0
      %5958 = vmatpush.msra.mxu0 0.0
      %5959 = vmatpush.msra.mxu0 0.0
      %5960 = vmatpush.msra.mxu0 0.0
      %5961 = vmatpush.msra.mxu0 0.0
      %5962 = vmatpush.msra.mxu0 0.0
      %5963 = vmatpush.msra.mxu0 0.0
      %5964 = vmatpush.msra.mxu0 0.0
      %5965 = vmatpush.msra.mxu0 0.0
      %5966 = vmatpush.msra.mxu0 0.0
      %v5967 = vand.u32 %v5861, 4294901760
      %v5968 = vsub.f32 %v5861, %v5967
      %5969 = vmatpush.msra.mxu0 %v5968
      %v5970 = vand.u32 %v5860, 4294901760
      %v5971 = vsub.f32 %v5860, %v5970
      %5972 = vmatpush.msra.mxu0 %v5971
      %v5973 = vand.u32 %v5859, 4294901760
      %v5974 = vsub.f32 %v5859, %v5973
      %5975 = vmatpush.msra.mxu0 %v5974
      %v5976 = vand.u32 %v5858, 4294901760
      %v5977 = vsub.f32 %v5858, %v5976
      %5978 = vmatpush.msra.mxu0 %v5977
      %v5979 = vand.u32 %v5868, 4294901760
      %v5980 = vsub.f32 %v5868, %v5979
      %5981 = vmatmul.f32.gmra.mxu0 %v5980
      %v5982 = vpop.f32.mrf.mxu0
      %v5983 = vadd.f32 %v5949, %v5982
      %v5984 = vand.u32 %v5871, 4294901760
      %v5985 = vsub.f32 %v5871, %v5984
      %5986 = vmatmul.f32.gmra.mxu0 %v5985
      %v5987 = vpop.f32.mrf.mxu0
      %v5988 = vadd.f32 %v5953, %v5987
      %5989 = vdwg.mxu0
      %5990 = vmatpush.msra.mxu0 0.0
      %5991 = vmatpush.msra.mxu0 0.0
      %5992 = vmatpush.msra.mxu0 0.0
      %5993 = vmatpush.msra.mxu0 0.0
      %5994 = vmatpush.msra.mxu0 0.0
      %5995 = vmatpush.msra.mxu0 0.0
      %5996 = vmatpush.msra.mxu0 0.0
      %5997 = vmatpush.msra.mxu0 0.0
      %5998 = vmatpush.msra.mxu0 0.0
      %5999 = vmatpush.msra.mxu0 0.0
      %6000 = vmatpush.msra.mxu0 0.0
      %6001 = vmatpush.msra.mxu0 0.0
      %v6002 = vand.u32 %v5861, 4294901760
      %6003 = vmatpush.msra.mxu0 %v6002
      %v6004 = vand.u32 %v5860, 4294901760
      %6005 = vmatpush.msra.mxu0 %v6004
      %v6006 = vand.u32 %v5859, 4294901760
      %6007 = vmatpush.msra.mxu0 %v6006
      %v6008 = vand.u32 %v5858, 4294901760
      %6009 = vmatpush.msra.mxu0 %v6008
      %v6010 = vand.u32 %v5868, 4294901760
      %v6011 = vsub.f32 %v5868, %v6010
      %v6012 = vand.u32 %v6011, 4294901760
      %6013 = vmatmul.f32.gmra.mxu0 %v6012
      %v6014 = vpop.f32.mrf.mxu0
      %v6015 = vadd.f32 %v5983, %v6014
      %v6016 = vand.u32 %v5871, 4294901760
      %v6017 = vsub.f32 %v5871, %v6016
      %v6018 = vand.u32 %v6017, 4294901760
      %6019 = vmatmul.f32.gmra.mxu0 %v6018
      %v6020 = vpop.f32.mrf.mxu0
      %v6021 = vadd.f32 %v5988, %v6020
      %6022 = vdwg.mxu0
      %6023 = vmatpush.msra.mxu0 0.0
      %6024 = vmatpush.msra.mxu0 0.0
      %6025 = vmatpush.msra.mxu0 0.0
      %6026 = vmatpush.msra.mxu0 0.0
      %6027 = vmatpush.msra.mxu0 0.0
      %6028 = vmatpush.msra.mxu0 0.0
      %6029 = vmatpush.msra.mxu0 0.0
      %6030 = vmatpush.msra.mxu0 0.0
      %6031 = vmatpush.msra.mxu0 0.0
      %6032 = vmatpush.msra.mxu0 0.0
      %6033 = vmatpush.msra.mxu0 0.0
      %6034 = vmatpush.msra.mxu0 0.0
      %v6035 = vand.u32 %v5861, 4294901760
      %v6036 = vsub.f32 %v5861, %v6035
      %v6037 = vand.u32 %v6036, 4294901760
      %6038 = vmatpush.msra.mxu0 %v6037
      %v6039 = vand.u32 %v5860, 4294901760
      %v6040 = vsub.f32 %v5860, %v6039
      %v6041 = vand.u32 %v6040, 4294901760
      %6042 = vmatpush.msra.mxu0 %v6041
      %v6043 = vand.u32 %v5859, 4294901760
      %v6044 = vsub.f32 %v5859, %v6043
      %v6045 = vand.u32 %v6044, 4294901760
      %6046 = vmatpush.msra.mxu0 %v6045
      %v6047 = vand.u32 %v5858, 4294901760
      %v6048 = vsub.f32 %v5858, %v6047
      %v6049 = vand.u32 %v6048, 4294901760
      %6050 = vmatpush.msra.mxu0 %v6049
      %v6051 = vand.u32 %v5868, 4294901760
      %6052 = vmatmul.f32.gmra.mxu0 %v6051
      %v6053 = vpop.f32.mrf.mxu0
      %v6054 = vadd.f32 %v6015, %v6053
      %v6055 = vand.u32 %v5871, 4294901760
      %6056 = vmatmul.f32.gmra.mxu0 %v6055
      %v6057 = vpop.f32.mrf.mxu0
      %v6058 = vadd.f32 %v6021, %v6057
      %6059 = vdwg.mxu0
      %6060 = vmatpush.msra.mxu0 0.0
      %6061 = vmatpush.msra.mxu0 0.0
      %6062 = vmatpush.msra.mxu0 0.0
      %6063 = vmatpush.msra.mxu0 0.0
      %6064 = vmatpush.msra.mxu0 0.0
      %6065 = vmatpush.msra.mxu0 0.0
      %6066 = vmatpush.msra.mxu0 0.0
      %6067 = vmatpush.msra.mxu0 0.0
      %6068 = vmatpush.msra.mxu0 0.0
      %6069 = vmatpush.msra.mxu0 0.0
      %6070 = vmatpush.msra.mxu0 0.0
      %6071 = vmatpush.msra.mxu0 0.0
      %v6072 = vand.u32 %v5861, 4294901760
      %6073 = vmatpush.msra.mxu0 %v6072
      %v6074 = vand.u32 %v5860, 4294901760
      %6075 = vmatpush.msra.mxu0 %v6074
      %v6076 = vand.u32 %v5859, 4294901760
      %6077 = vmatpush.msra.mxu0 %v6076
      %v6078 = vand.u32 %v5858, 4294901760
      %6079 = vmatpush.msra.mxu0 %v6078
      %v6080 = vand.u32 %v5868, 4294901760
      %6081 = vmatmul.f32.gmra.mxu0 %v6080
      %v6082 = vpop.f32.mrf.mxu0
      %v6083 = vadd.f32 %v6054, %v6082
      %v6084 = vand.u32 %v5871, 4294901760
      %6085 = vmatmul.f32.gmra.mxu0 %v6084
      %v6086 = vpop.f32.mrf.mxu0
      %v6087 = vadd.f32 %v6058, %v6086
      %6088 = vdwg.mxu0
      %v6089 = vmax.f32 %v6083, 0.0
      %v6090 = vmax.f32 %v6087, 0.0
      %s6091 = scalar_lea.vmem %s9, 64
      %v6092 = vld [vmem:[%s6091] sm:$0xff]
      %v6093 = vld [vmem:[%s6091 + $0x8] sm:$0xff]
      %v6094 = vld [vmem:[%s6091 + $0x10] sm:$0xff]
      %v6095 = vld [vmem:[%s6091 + $0x18] sm:$0xff]
      %v6096 = vld [vmem:[%s6091 + $0x20] sm:$0xff]
      %v6097 = vld [vmem:[%s6091 + $0x28] sm:$0xff]
      %v6098 = vld [vmem:[%s6091 + $0x30] sm:$0xff]
      %v6099 = vld [vmem:[%s6091 + $0x38] sm:$0xff]
      %s6100 = scalar_lea.vmem %s10, 1
      %v6101 = vld [vmem:[%s6100] sm:$0x1]
      %v6103 = vperm.slane %v6101, 0
      %v6106 = vsel %vm3136, %v6089, 0
      %v6109 = vsel %vm3136, %v6090, 0
      %6111 = vmatpush.msra.mxu0 0.0
      %6112 = vmatpush.msra.mxu0 0.0
      %6113 = vmatpush.msra.mxu0 0.0
      %6114 = vmatpush.msra.mxu0 0.0
      %6115 = vmatpush.msra.mxu0 0.0
      %6116 = vmatpush.msra.mxu0 0.0
      %6117 = vmatpush.msra.mxu0 0.0
      %6118 = vmatpush.msra.mxu0 0.0
      %v6119 = vand.u32 %v6099, 4294901760
      %6120 = vmatpush.msra.mxu0 %v6119
      %v6121 = vand.u32 %v6098, 4294901760
      %6122 = vmatpush.msra.mxu0 %v6121
      %v6123 = vand.u32 %v6097, 4294901760
      %6124 = vmatpush.msra.mxu0 %v6123
      %v6125 = vand.u32 %v6096, 4294901760
      %6126 = vmatpush.msra.mxu0 %v6125
      %v6127 = vand.u32 %v6095, 4294901760
      %6128 = vmatpush.msra.mxu0 %v6127
      %v6129 = vand.u32 %v6094, 4294901760
      %6130 = vmatpush.msra.mxu0 %v6129
      %v6131 = vand.u32 %v6093, 4294901760
      %6132 = vmatpush.msra.mxu0 %v6131
      %v6133 = vand.u32 %v6092, 4294901760
      %6134 = vmatpush.msra.mxu0 %v6133
      %v6135 = vand.u32 %v6106, 4294901760
      %v6136 = vsub.f32 %v6106, %v6135
      %v6137 = vand.u32 %v6136, 4294901760
      %v6138 = vsub.f32 %v6136, %v6137
      %v6139 = vand.u32 %v6138, 4294901760
      %6140 = vmatmul.f32.gmra.mxu0 %v6139
      %v6141 = vpop.f32.mrf.mxu0
      %v6142 = vadd.f32 %v6103, %v6141
      %v6143 = vand.u32 %v6109, 4294901760
      %v6144 = vsub.f32 %v6109, %v6143
      %v6145 = vand.u32 %v6144, 4294901760
      %v6146 = vsub.f32 %v6144, %v6145
      %v6147 = vand.u32 %v6146, 4294901760
      %6148 = vmatmul.f32.gmra.mxu0 %v6147
      %v6149 = vpop.f32.mrf.mxu0
      %6150 = vdwg.mxu0
      %6151 = vmatpush.msra.mxu0 0.0
      %6152 = vmatpush.msra.mxu0 0.0
      %6153 = vmatpush.msra.mxu0 0.0
      %6154 = vmatpush.msra.mxu0 0.0
      %6155 = vmatpush.msra.mxu0 0.0
      %6156 = vmatpush.msra.mxu0 0.0
      %6157 = vmatpush.msra.mxu0 0.0
      %6158 = vmatpush.msra.mxu0 0.0
      %v6159 = vand.u32 %v6099, 4294901760
      %v6160 = vsub.f32 %v6099, %v6159
      %v6161 = vand.u32 %v6160, 4294901760
      %v6162 = vsub.f32 %v6160, %v6161
      %v6163 = vand.u32 %v6162, 4294901760
      %6164 = vmatpush.msra.mxu0 %v6163
      %v6165 = vand.u32 %v6098, 4294901760
      %v6166 = vsub.f32 %v6098, %v6165
      %v6167 = vand.u32 %v6166, 4294901760
      %v6168 = vsub.f32 %v6166, %v6167
      %v6169 = vand.u32 %v6168, 4294901760
      %6170 = vmatpush.msra.mxu0 %v6169
      %v6171 = vand.u32 %v6097, 4294901760
      %v6172 = vsub.f32 %v6097, %v6171
      %v6173 = vand.u32 %v6172, 4294901760
      %v6174 = vsub.f32 %v6172, %v6173
      %v6175 = vand.u32 %v6174, 4294901760
      %6176 = vmatpush.msra.mxu0 %v6175
      %v6177 = vand.u32 %v6096, 4294901760
      %v6178 = vsub.f32 %v6096, %v6177
      %v6179 = vand.u32 %v6178, 4294901760
      %v6180 = vsub.f32 %v6178, %v6179
      %v6181 = vand.u32 %v6180, 4294901760
      %6182 = vmatpush.msra.mxu0 %v6181
      %v6183 = vand.u32 %v6095, 4294901760
      %v6184 = vsub.f32 %v6095, %v6183
      %v6185 = vand.u32 %v6184, 4294901760
      %v6186 = vsub.f32 %v6184, %v6185
      %v6187 = vand.u32 %v6186, 4294901760
      %6188 = vmatpush.msra.mxu0 %v6187
      %v6189 = vand.u32 %v6094, 4294901760
      %v6190 = vsub.f32 %v6094, %v6189
      %v6191 = vand.u32 %v6190, 4294901760
      %v6192 = vsub.f32 %v6190, %v6191
      %v6193 = vand.u32 %v6192, 4294901760
      %6194 = vmatpush.msra.mxu0 %v6193
      %v6195 = vand.u32 %v6093, 4294901760
      %v6196 = vsub.f32 %v6093, %v6195
      %v6197 = vand.u32 %v6196, 4294901760
      %v6198 = vsub.f32 %v6196, %v6197
      %v6199 = vand.u32 %v6198, 4294901760
      %6200 = vmatpush.msra.mxu0 %v6199
      %v6201 = vand.u32 %v6092, 4294901760
      %v6202 = vsub.f32 %v6092, %v6201
      %v6203 = vand.u32 %v6202, 4294901760
      %v6204 = vsub.f32 %v6202, %v6203
      %v6205 = vand.u32 %v6204, 4294901760
      %6206 = vmatpush.msra.mxu0 %v6205
      %v6207 = vand.u32 %v6106, 4294901760
      %6208 = vmatmul.f32.gmra.mxu0 %v6207
      %v6209 = vpop.f32.mrf.mxu0
      %v6210 = vadd.f32 %v6142, %v6209
      %v6211 = vand.u32 %v6109, 4294901760
      %6212 = vmatmul.f32.gmra.mxu0 %v6211
      %v6213 = vpop.f32.mrf.mxu0
      %6214 = vdwg.mxu0
      %6215 = vmatpush.msra.mxu0 0.0
      %6216 = vmatpush.msra.mxu0 0.0
      %6217 = vmatpush.msra.mxu0 0.0
      %6218 = vmatpush.msra.mxu0 0.0
      %6219 = vmatpush.msra.mxu0 0.0
      %6220 = vmatpush.msra.mxu0 0.0
      %6221 = vmatpush.msra.mxu0 0.0
      %6222 = vmatpush.msra.mxu0 0.0
      %v6223 = vand.u32 %v6099, 4294901760
      %v6224 = vsub.f32 %v6099, %v6223
      %6225 = vmatpush.msra.mxu0 %v6224
      %v6226 = vand.u32 %v6098, 4294901760
      %v6227 = vsub.f32 %v6098, %v6226
      %6228 = vmatpush.msra.mxu0 %v6227
      %v6229 = vand.u32 %v6097, 4294901760
      %v6230 = vsub.f32 %v6097, %v6229
      %6231 = vmatpush.msra.mxu0 %v6230
      %v6232 = vand.u32 %v6096, 4294901760
      %v6233 = vsub.f32 %v6096, %v6232
      %6234 = vmatpush.msra.mxu0 %v6233
      %v6235 = vand.u32 %v6095, 4294901760
      %v6236 = vsub.f32 %v6095, %v6235
      %6237 = vmatpush.msra.mxu0 %v6236
      %v6238 = vand.u32 %v6094, 4294901760
      %v6239 = vsub.f32 %v6094, %v6238
      %6240 = vmatpush.msra.mxu0 %v6239
      %v6241 = vand.u32 %v6093, 4294901760
      %v6242 = vsub.f32 %v6093, %v6241
      %6243 = vmatpush.msra.mxu0 %v6242
      %v6244 = vand.u32 %v6092, 4294901760
      %v6245 = vsub.f32 %v6092, %v6244
      %6246 = vmatpush.msra.mxu0 %v6245
      %v6247 = vand.u32 %v6106, 4294901760
      %v6248 = vsub.f32 %v6106, %v6247
      %6249 = vmatmul.f32.gmra.mxu0 %v6248
      %v6250 = vpop.f32.mrf.mxu0
      %v6251 = vadd.f32 %v6210, %v6250
      %v6252 = vand.u32 %v6109, 4294901760
      %v6253 = vsub.f32 %v6109, %v6252
      %6254 = vmatmul.f32.gmra.mxu0 %v6253
      %v6255 = vpop.f32.mrf.mxu0
      %6256 = vdwg.mxu0
      %6257 = vmatpush.msra.mxu0 0.0
      %6258 = vmatpush.msra.mxu0 0.0
      %6259 = vmatpush.msra.mxu0 0.0
      %6260 = vmatpush.msra.mxu0 0.0
      %6261 = vmatpush.msra.mxu0 0.0
      %6262 = vmatpush.msra.mxu0 0.0
      %6263 = vmatpush.msra.mxu0 0.0
      %6264 = vmatpush.msra.mxu0 0.0
      %v6265 = vand.u32 %v6099, 4294901760
      %6266 = vmatpush.msra.mxu0 %v6265
      %v6267 = vand.u32 %v6098, 4294901760
      %6268 = vmatpush.msra.mxu0 %v6267
      %v6269 = vand.u32 %v6097, 4294901760
      %6270 = vmatpush.msra.mxu0 %v6269
      %v6271 = vand.u32 %v6096, 4294901760
      %6272 = vmatpush.msra.mxu0 %v6271
      %v6273 = vand.u32 %v6095, 4294901760
      %6274 = vmatpush.msra.mxu0 %v6273
      %v6275 = vand.u32 %v6094, 4294901760
      %6276 = vmatpush.msra.mxu0 %v6275
      %v6277 = vand.u32 %v6093, 4294901760
      %6278 = vmatpush.msra.mxu0 %v6277
      %v6279 = vand.u32 %v6092, 4294901760
      %6280 = vmatpush.msra.mxu0 %v6279
      %v6281 = vand.u32 %v6106, 4294901760
      %v6282 = vsub.f32 %v6106, %v6281
      %v6283 = vand.u32 %v6282, 4294901760
      %6284 = vmatmul.f32.gmra.mxu0 %v6283
      %v6285 = vpop.f32.mrf.mxu0
      %v6286 = vadd.f32 %v6251, %v6285
      %v6287 = vand.u32 %v6109, 4294901760
      %v6288 = vsub.f32 %v6109, %v6287
      %v6289 = vand.u32 %v6288, 4294901760
      %6290 = vmatmul.f32.gmra.mxu0 %v6289
      %v6291 = vpop.f32.mrf.mxu0
      %6292 = vdwg.mxu0
      %6293 = vmatpush.msra.mxu0 0.0
      %6294 = vmatpush.msra.mxu0 0.0
      %6295 = vmatpush.msra.mxu0 0.0
      %6296 = vmatpush.msra.mxu0 0.0
      %6297 = vmatpush.msra.mxu0 0.0
      %6298 = vmatpush.msra.mxu0 0.0
      %6299 = vmatpush.msra.mxu0 0.0
      %6300 = vmatpush.msra.mxu0 0.0
      %v6301 = vand.u32 %v6099, 4294901760
      %v6302 = vsub.f32 %v6099, %v6301
      %v6303 = vand.u32 %v6302, 4294901760
      %6304 = vmatpush.msra.mxu0 %v6303
      %v6305 = vand.u32 %v6098, 4294901760
      %v6306 = vsub.f32 %v6098, %v6305
      %v6307 = vand.u32 %v6306, 4294901760
      %6308 = vmatpush.msra.mxu0 %v6307
      %v6309 = vand.u32 %v6097, 4294901760
      %v6310 = vsub.f32 %v6097, %v6309
      %v6311 = vand.u32 %v6310, 4294901760
      %6312 = vmatpush.msra.mxu0 %v6311
      %v6313 = vand.u32 %v6096, 4294901760
      %v6314 = vsub.f32 %v6096, %v6313
      %v6315 = vand.u32 %v6314, 4294901760
      %6316 = vmatpush.msra.mxu0 %v6315
      %v6317 = vand.u32 %v6095, 4294901760
      %v6318 = vsub.f32 %v6095, %v6317
      %v6319 = vand.u32 %v6318, 4294901760
      %6320 = vmatpush.msra.mxu0 %v6319
      %v6321 = vand.u32 %v6094, 4294901760
      %v6322 = vsub.f32 %v6094, %v6321
      %v6323 = vand.u32 %v6322, 4294901760
      %6324 = vmatpush.msra.mxu0 %v6323
      %v6325 = vand.u32 %v6093, 4294901760
      %v6326 = vsub.f32 %v6093, %v6325
      %v6327 = vand.u32 %v6326, 4294901760
      %6328 = vmatpush.msra.mxu0 %v6327
      %v6329 = vand.u32 %v6092, 4294901760
      %v6330 = vsub.f32 %v6092, %v6329
      %v6331 = vand.u32 %v6330, 4294901760
      %6332 = vmatpush.msra.mxu0 %v6331
      %v6333 = vand.u32 %v6106, 4294901760
      %6334 = vmatmul.f32.gmra.mxu0 %v6333
      %v6335 = vpop.f32.mrf.mxu0
      %v6336 = vadd.f32 %v6286, %v6335
      %v6337 = vand.u32 %v6109, 4294901760
      %6338 = vmatmul.f32.gmra.mxu0 %v6337
      %v6339 = vpop.f32.mrf.mxu0
      %6340 = vdwg.mxu0
      %6341 = vmatpush.msra.mxu0 0.0
      %6342 = vmatpush.msra.mxu0 0.0
      %6343 = vmatpush.msra.mxu0 0.0
      %6344 = vmatpush.msra.mxu0 0.0
      %6345 = vmatpush.msra.mxu0 0.0
      %6346 = vmatpush.msra.mxu0 0.0
      %6347 = vmatpush.msra.mxu0 0.0
      %6348 = vmatpush.msra.mxu0 0.0
      %v6349 = vand.u32 %v6099, 4294901760
      %6350 = vmatpush.msra.mxu0 %v6349
      %v6351 = vand.u32 %v6098, 4294901760
      %6352 = vmatpush.msra.mxu0 %v6351
      %v6353 = vand.u32 %v6097, 4294901760
      %6354 = vmatpush.msra.mxu0 %v6353
      %v6355 = vand.u32 %v6096, 4294901760
      %6356 = vmatpush.msra.mxu0 %v6355
      %v6357 = vand.u32 %v6095, 4294901760
      %6358 = vmatpush.msra.mxu0 %v6357
      %v6359 = vand.u32 %v6094, 4294901760
      %6360 = vmatpush.msra.mxu0 %v6359
      %v6361 = vand.u32 %v6093, 4294901760
      %6362 = vmatpush.msra.mxu0 %v6361
      %v6363 = vand.u32 %v6092, 4294901760
      %6364 = vmatpush.msra.mxu0 %v6363
      %v6365 = vand.u32 %v6106, 4294901760
      %6366 = vmatmul.f32.gmra.mxu0 %v6365
      %v6367 = vpop.f32.mrf.mxu0
      %v6368 = vadd.f32 %v6336, %v6367
      %v6369 = vand.u32 %v6109, 4294901760
      %6370 = vmatmul.f32.gmra.mxu0 %v6369
      %v6371 = vpop.f32.mrf.mxu0
      %6372 = vdwg.mxu0
      %v6373 = vadd.f32 %v6368, %v5855
      %s6374 = scalar_lea.vmem %s11, 1
      %v6375 = vld [vmem:[%s6374] sm:$0x1]
      %s6376 = scalar_lea.vmem %s12, 1
      %v6377 = vld [vmem:[%s6376] sm:$0x1]
      %v6378 = vsel %vm503, %v6373, 0.0
      %6379 = vadd.xlane.f32.xlu0 %v6378
      %v6380 = vpop.xlane.xlu0 %6379
      %v6381 = vmul.f32 %v6380, %v2843
      %v6382 = vsub.f32 %v6373, %v6381
      %v6383 = vmul.f32 %v6382, %v6382
      %v6384 = vsel %vm503, %v6383, 0.0
      %6385 = vadd.xlane.f32.xlu0 %v6384
      %v6386 = vpop.xlane.xlu0 %6385
      %v6387 = vmul.f32 %v6386, %v2843
      %v6388 = vadd.f32 %v6387, 1e-05
      %v6389 = vrsqrt.pop %v6388
      %v6390 = vmul.f32 %v6389, %v6388
      %v6391 = vmul.f32 %v6390, %v6389
      %v6392 = vmul.f32 0.5, %v6391
      %v6393 = vsub.f32 1.5, %v6392
      %v6394 = vmul.f32 %v6389, %v6393
      %vm6395 = vweird.f32 %v6388
      %vm6396 = vweird.f32 %v6389
      %vm6397 = vmor %vm6395, %vm6396
      %v6398 = vsel %vm6397, %v6389, %v6394
      %v6399 = vmul.f32 %v6382, %v6398
      %v6401 = vperm.slane %v6375, 0
      %v6403 = vmul.f32 %v6399, %v6401
      %v6405 = vperm.slane %v6377, 0
      %v6407 = vadd.f32 %v6403, %v6405
      %v6408 = vld [vmem:[%s13] sm:$0x7]
      %v6409 = vld [vmem:[%s14] sm:$0x7]
      %v6410 = vadd.f32 %v6408, %v6409
      %v6411 = vperm.slane %v6407, 0
      %v6412 = vadd.f32 %v6411, %v6410
      %vm6413 = vcmask 256000
      %6414 = vst.msk [vmem:[%s492] sm:$0x7] %vm6413, %v6412
      %p6415 = scmp.lt.s32.totalorder %s26, 1
      %s6416 = scalar_select %p6415, %s26, 1
      %s6417 = smul.addr %s6416, 4
      %s6418 = scalar_lea.vmem %s15, %s6417
      // Predicated region
      $region81: #{tpu_custom_call.1} parent=79 // pred_check
        %p6419 = pneg %p364
      $region82: #{tpu_custom_call.1} parent=79 // pred_check_branch
        %6421 = sbr.rel (%p6419) target = $region84
      $region83: #{tpu_custom_call.1} parent=79 // pred_region
        _
      $region84: #{tpu_custom_call.1} parent=79 // pred_fallthru
        _
    $region80: #{tpu_custom_call.1} parent=5 // pred_fallthru
      _
    %p6422 = scmp.le.s32.totalorder 2, %s21
    // Predicated region
    $region85: #{tpu_custom_call.1} parent=5 // pred_check
      %p6423 = pneg %p6422
    $region86: #{tpu_custom_call.1} parent=5 // pred_check_branch
      %6425 = sbr.rel (%p6423) target = $region88
    $region87: #{tpu_custom_call.1} parent=5 // pred_region
      %s6426 = ssub.s32 %s21, 2
      // Predicated region
      $region89: #{tpu_custom_call.1} parent=87 // pred_check
        %p6427 = pneg %p370
      $region90: #{tpu_custom_call.1} parent=87 // pred_check_branch
        %6429 = sbr.rel (%p6427) target = $region92
      $region91: #{tpu_custom_call.1} parent=87 // pred_region
        %p6430 = scmp.lt.s32.totalorder %s27, 1
        %s6431 = scalar_select %p6430, %s27, 1
        %s6432 = smul.addr %s6431, 4
        %s6433 = scalar_lea.vmem %s15, %s6432
      $region92: #{tpu_custom_call.1} parent=87 // pred_fallthru
        _
    $region88: #{tpu_custom_call.1} parent=5 // pred_fallthru
      _
  $region6: #{tpu_custom_call.1} parent=0 // loop_footer
    %s25 = sadd.s32 1, %s21
  $region7: #{tpu_custom_call.1} parent=0 // loop_footer_branch
    %20 = sbr.rel target = $region3
  $region8: #{tpu_custom_call.1} parent=0 // loop_exit
    _

</llo_original>
